<compile_context>
chip_gen: v6e
topology: v6e:2x2x1
jax: 0.10.0
libtpu: 0.0.40
codegen_flags: <defaults>
</compile_context>

<pallas_src>
import functools

import jax
import jax.numpy as jnp
from jax.experimental import pallas as pl
from jax.experimental.pallas import tpu as pltpu


def _round_up(a, b):
    return (a + b - 1) // b * b


# ----------------------------------------------------------------------------
# Fused ResBlock kernel: conv1 -> bn1 -> lrelu -> conv2 -> bn2 -> + x
# ----------------------------------------------------------------------------
def _resblock_kernel(x2_ref, mask_ref,
                     w1_ref, b1_ref, g1_ref, be1_ref,
                     w2_ref, b2_ref, g2_ref, be2_ref,
                     o_ref, h_ref,
                     *, K, p, Wpp, G, L, slope, eps, inv_m):
    Cp = x2_ref.shape[0]
    mask = mask_ref[...]                                   # (Cp, L): 1.0 at valid pixels

    def conv(src_ref, w_ref, b_ref):
        # Sum of K*K shifted GEMMs; src_ref is (Cp, Ltot), padded + flattened.
        acc = jnp.zeros((Cp, L), jnp.float32)
        for kh in range(K):
            for kw in range(K):
                s = G + (kh - p) * Wpp + (kw - p)          # static lane offset
                acc = acc + jnp.dot(w_ref[kh * K + kw], src_ref[:, s:s + L],
                                    preferred_element_type=jnp.float32)
        return acc + b_ref[...]

    def batchnorm(z, g_ref, be_ref):
        # Training-mode (batch) stats over the N*H*W valid positions only.
        mean = jnp.sum(z * mask, axis=1, keepdims=True) * inv_m
        d = z - mean
        var = jnp.sum(d * d * mask, axis=1, keepdims=True) * inv_m
        inv = 1.0 / jnp.sqrt(var + eps)
        return d * inv * g_ref[...] + be_ref[...]

    # conv1 -> bn1 -> LeakyReLU; re-zero padding ring so it feeds conv2 correctly
    z = conv(x2_ref, w1_ref, b1_ref)
    z = batchnorm(z, g1_ref, be1_ref)
    z = jnp.where(z >= 0.0, z, slope * z)
    h_ref[...] = jnp.zeros_like(h_ref)                     # zero guards + padding
    h_ref[:, G:G + L] = z * mask                           # lane-aligned store

    # conv2 -> bn2 -> residual add against the (already zero-padded) input
    z = conv(h_ref, w2_ref, b2_ref)
    z = batchnorm(z, g2_ref, be2_ref)
    o_ref[...] = x2_ref[:, G:G + L] + z * mask


# ----------------------------------------------------------------------------
# Wrapper: layout glue + pallas_call
# ----------------------------------------------------------------------------
def resblock_forward(x, params, *, kernel, stride, padding, slope, eps=1e-5):
    w1, b1, g1, be1, w2, b2, g2, be2 = params
    N, C, H, W = x.shape
    K, p = kernel, padding
    assert stride == 1 and 2 * p == K - 1, "residual needs shape-preserving convs"
    assert w1.shape == (C, C, K, K) and w2.shape == (C, C, K, K)

    Cp = _round_up(C, 8)                       # sublane-aligned channel count
    Hp = H + 2 * p
    Wpp = W + 2 * p                            # grow the padded row length until
    while (N * Hp * Wpp) % 128 != 0:           # the flattened frame is lane-dense
        Wpp += 1
    L = N * Hp * Wpp                           # flattened, zero-padded frame length
    G = _round_up(p * Wpp + p, 128)            # guard columns >= max conv shift
    Ltot = 2 * G + L

    # ---- glue (layout only): channel-major, zero-padded, flattened input ----
    xpad = jnp.pad(x, ((0, 0), (0, Cp - C), (p, p), (p, Wpp - W - p)))
    x2 = jnp.pad(xpad.transpose(1, 0, 2, 3).reshape(Cp, L), ((0, 0), (G, G)))
    mask = (jnp.zeros((N, Hp, Wpp), jnp.float32)
            .at[:, p:p + H, p:p + W].set(1.0).reshape(1, L))
    mask = jnp.broadcast_to(mask, (Cp, L))

    def prep_w(w):                             # (C,C,K,K) -> (K*K, Cp, Cp), tap-major
        wp = jnp.zeros((Cp, Cp, K, K), jnp.float32).at[:C, :C].set(w)
        return wp.transpose(2, 3, 0, 1).reshape(K * K, Cp, Cp)

    def prep_v(v):                             # (C,) -> (Cp, 1)
        return jnp.zeros((Cp, 1), jnp.float32).at[:C, 0].set(v)

    flops = 2 * 2 * K * K * Cp * Cp * L + 16 * Cp * L
    bytes_accessed = 4 * (Cp * Ltot + Cp * L + 2 * K * K * Cp * Cp + 6 * Cp + Cp * L)

    out2 = pl.pallas_call(
        functools.partial(_resblock_kernel, K=K, p=p, Wpp=Wpp, G=G, L=L,
                          slope=float(slope), eps=float(eps),
                          inv_m=1.0 / float(N * H * W)),
        out_shape=jax.ShapeDtypeStruct((Cp, L), jnp.float32),
        in_specs=[pl.BlockSpec(memory_space=pltpu.MemorySpace.VMEM)] * 10,
        out_specs=pl.BlockSpec(memory_space=pltpu.MemorySpace.VMEM),
        scratch_shapes=[pltpu.VMEM((Cp, Ltot), jnp.float32)],
        cost_estimate=pl.CostEstimate(flops=flops, transcendentals=2 * Cp,
                                      bytes_accessed=bytes_accessed),
        compiler_params=pltpu.CompilerParams(vmem_limit_bytes=16 * 1024 * 1024),
    )(x2, mask, prep_w(w1), prep_v(b1), prep_v(g1), prep_v(be1),
      prep_w(w2), prep_v(b2), prep_v(g2), prep_v(be2))

    # ---- glue: un-flatten, drop channel and spatial padding ----
    out = out2[:C].reshape(C, N, Hp, Wpp).transpose(1, 0, 2, 3)
    return out[:, :, p:p + H, p:p + W]


# ----------------------------------------------------------------------------
# Pure-JAX reference (training-mode BatchNorm, same as a fresh PyTorch module)
# ----------------------------------------------------------------------------
def resblock_reference(x, params, *, kernel, stride, padding, slope, eps=1e-5):
    w1, b1, g1, be1, w2, b2, g2, be2 = params
    dn = ("NCHW", "OIHW", "NCHW")

    def conv(z, w, b):
        z = jax.lax.conv_general_dilated(z, w, (stride, stride),
                                         [(padding, padding)] * 2,
                                         dimension_numbers=dn,
                                         precision=jax.lax.Precision.HIGHEST)
        return z + b[None, :, None, None]

    def bn(z, g, be):
        mean = jnp.mean(z, axis=(0, 2, 3), keepdims=True)
        var = jnp.mean((z - mean) ** 2, axis=(0, 2, 3), keepdims=True)
        zn = (z - mean) * (1.0 / jnp.sqrt(var + eps))
        return zn * g[None, :, None, None] + be[None, :, None, None]

    z = conv(x, w1, b1)
    z = bn(z, g1, be1)
    z = jnp.where(z >= 0.0, z, slope * z)
    z = conv(z, w2, b2)
    z = bn(z, g2, be2)
    return x + z


# ----------------------------------------------------------------------------
# Main
# ----------------------------------------------------------------------------
if __name__ == "__main__":
    # ResBlock(nf, kernel, stride, padding, slope)
    nf, kernel, stride, padding, slope = 4, 3, 1, 1, 0.3
    N, H, W = 2, 16, 16

    key = jax.random.PRNGKey(0)
    ks = jax.random.split(key, 9)
    fan = nf * kernel * kernel

    def u(k, shape):
        return (jax.random.uniform(k, shape, jnp.float32, -1.0, 1.0)
                / jnp.sqrt(jnp.float32(fan)))

    w1, b1 = u(ks[1], (nf, nf, kernel, kernel)), u(ks[2], (nf,))
    w2, b2 = u(ks[3], (nf, nf, kernel, kernel)), u(ks[4], (nf,))
    # BatchNorm affine params (PyTorch init is weight=1, bias=0; perturb to
    # exercise the code path).
    g1 = 1.0 + 0.1 * jax.random.normal(ks[5], (nf,), jnp.float32)
    be1 = 0.1 * jax.random.normal(ks[6], (nf,), jnp.float32)
    g2 = 1.0 + 0.1 * jax.random.normal(ks[7], (nf,), jnp.float32)
    be2 = 0.1 * jax.random.normal(ks[8], (nf,), jnp.float32)
    params = (w1, b1, g1, be1, w2, b2, g2, be2)

    x = jax.random.normal(ks[0], (N, nf, H, W), jnp.float32)

    fwd = jax.jit(functools.partial(resblock_forward, kernel=kernel,
                                    stride=stride, padding=padding, slope=slope))
    out = jax.block_until_ready(fwd(x, params))

    ref = jax.block_until_ready(
        resblock_reference(x, params, kernel=kernel, stride=stride,
                           padding=padding, slope=slope))

    assert out.shape == (N, nf, H, W), out.shape
    err = float(jnp.max(jnp.abs(out - ref)))
    assert jnp.allclose(out, ref, atol=5e-3, rtol=5e-3), err

    print("KERNEL_OK")
</pallas_src>

<mosaic_0001>
module attributes {stable_mosaic.version = 11 : i64} {
  func.func @_resblock_kernel(%arg0: memref<8x1408xf32, #tpu.memory_space<vmem>>, %arg1: memref<8x1152xf32, #tpu.memory_space<vmem>>, %arg2: memref<9x8x8xf32, #tpu.memory_space<vmem>>, %arg3: memref<8x1xf32, #tpu.memory_space<vmem>>, %arg4: memref<8x1xf32, #tpu.memory_space<vmem>>, %arg5: memref<8x1xf32, #tpu.memory_space<vmem>>, %arg6: memref<9x8x8xf32, #tpu.memory_space<vmem>>, %arg7: memref<8x1xf32, #tpu.memory_space<vmem>>, %arg8: memref<8x1xf32, #tpu.memory_space<vmem>>, %arg9: memref<8x1xf32, #tpu.memory_space<vmem>>, %arg10: memref<8x1152xf32, #tpu.memory_space<vmem>>, %arg11: memref<8x1408xf32, #tpu.memory_space<vmem>>) attributes {dimension_semantics = [], scalar_prefetch = 0 : i64, scratch_operands = 1 : i64, tpu.core_type = #tpu.core_type<tc>} {
    %c0 = arith.constant 0 : index
    %c0_0 = arith.constant 0 : index
    %0 = vector.load %arg1[%c0, %c0_0] : memref<8x1152xf32, #tpu.memory_space<vmem>>, vector<8x1152xf32>
    %cst = arith.constant 0.000000e+00 : f32
    %1 = vector.broadcast %cst : f32 to vector<8x1152xf32>
    %c0_1 = arith.constant 0 : index
    %c0_2 = arith.constant 0 : index
    %c0_3 = arith.constant 0 : index
    %2 = vector.load %arg2[%c0_1, %c0_2, %c0_3] : memref<9x8x8xf32, #tpu.memory_space<vmem>>, vector<1x8x8xf32>
    %3 = vector.shape_cast %2 : vector<1x8x8xf32> to vector<8x8xf32>
    %c0_4 = arith.constant 0 : index
    %c95 = arith.constant 95 : index
    %4 = vector.load %arg0[%c0_4, %c95] : memref<8x1408xf32, #tpu.memory_space<vmem>>, vector<8x1152xf32>
    %cst_5 = arith.constant dense<0.000000e+00> : vector<8x1152xf32>
    %5 = tpu.matmul %3, %4, %cst_5 {dimension_numbers = #tpu.dot_dimension_numbers<[1], [0], [0], [1], [0, 0, 1, 1], [], []>} : vector<8x8xf32>, vector<8x1152xf32>, vector<8x1152xf32> -> vector<8x1152xf32>
    %6 = arith.addf %1, %5 : vector<8x1152xf32>
    %c1 = arith.constant 1 : index
    %c0_6 = arith.constant 0 : index
    %c0_7 = arith.constant 0 : index
    %7 = vector.load %arg2[%c1, %c0_6, %c0_7] : memref<9x8x8xf32, #tpu.memory_space<vmem>>, vector<1x8x8xf32>
    %8 = vector.shape_cast %7 : vector<1x8x8xf32> to vector<8x8xf32>
    %c0_8 = arith.constant 0 : index
    %c96 = arith.constant 96 : index
    %9 = vector.load %arg0[%c0_8, %c96] : memref<8x1408xf32, #tpu.memory_space<vmem>>, vector<8x1152xf32>
    %cst_9 = arith.constant dense<0.000000e+00> : vector<8x1152xf32>
    %10 = tpu.matmul %8, %9, %cst_9 {dimension_numbers = #tpu.dot_dimension_numbers<[1], [0], [0], [1], [0, 0, 1, 1], [], []>} : vector<8x8xf32>, vector<8x1152xf32>, vector<8x1152xf32> -> vector<8x1152xf32>
    %11 = arith.addf %6, %10 : vector<8x1152xf32>
    %c2 = arith.constant 2 : index
    %c0_10 = arith.constant 0 : index
    %c0_11 = arith.constant 0 : index
    %12 = vector.load %arg2[%c2, %c0_10, %c0_11] : memref<9x8x8xf32, #tpu.memory_space<vmem>>, vector<1x8x8xf32>
    %13 = vector.shape_cast %12 : vector<1x8x8xf32> to vector<8x8xf32>
    %c0_12 = arith.constant 0 : index
    %c97 = arith.constant 97 : index
    %14 = vector.load %arg0[%c0_12, %c97] : memref<8x1408xf32, #tpu.memory_space<vmem>>, vector<8x1152xf32>
    %cst_13 = arith.constant dense<0.000000e+00> : vector<8x1152xf32>
    %15 = tpu.matmul %13, %14, %cst_13 {dimension_numbers = #tpu.dot_dimension_numbers<[1], [0], [0], [1], [0, 0, 1, 1], [], []>} : vector<8x8xf32>, vector<8x1152xf32>, vector<8x1152xf32> -> vector<8x1152xf32>
    %16 = arith.addf %11, %15 : vector<8x1152xf32>
    %c3 = arith.constant 3 : index
    %c0_14 = arith.constant 0 : index
    %c0_15 = arith.constant 0 : index
    %17 = vector.load %arg2[%c3, %c0_14, %c0_15] : memref<9x8x8xf32, #tpu.memory_space<vmem>>, vector<1x8x8xf32>
    %18 = vector.shape_cast %17 : vector<1x8x8xf32> to vector<8x8xf32>
    %c0_16 = arith.constant 0 : index
    %c127 = arith.constant 127 : index
    %19 = vector.load %arg0[%c0_16, %c127] : memref<8x1408xf32, #tpu.memory_space<vmem>>, vector<8x1152xf32>
    %cst_17 = arith.constant dense<0.000000e+00> : vector<8x1152xf32>
    %20 = tpu.matmul %18, %19, %cst_17 {dimension_numbers = #tpu.dot_dimension_numbers<[1], [0], [0], [1], [0, 0, 1, 1], [], []>} : vector<8x8xf32>, vector<8x1152xf32>, vector<8x1152xf32> -> vector<8x1152xf32>
    %21 = arith.addf %16, %20 : vector<8x1152xf32>
    %c4 = arith.constant 4 : index
    %c0_18 = arith.constant 0 : index
    %c0_19 = arith.constant 0 : index
    %22 = vector.load %arg2[%c4, %c0_18, %c0_19] : memref<9x8x8xf32, #tpu.memory_space<vmem>>, vector<1x8x8xf32>
    %23 = vector.shape_cast %22 : vector<1x8x8xf32> to vector<8x8xf32>
    %c0_20 = arith.constant 0 : index
    %c128 = arith.constant 128 : index
    %24 = vector.load %arg0[%c0_20, %c128] : memref<8x1408xf32, #tpu.memory_space<vmem>>, vector<8x1152xf32>
    %cst_21 = arith.constant dense<0.000000e+00> : vector<8x1152xf32>
    %25 = tpu.matmul %23, %24, %cst_21 {dimension_numbers = #tpu.dot_dimension_numbers<[1], [0], [0], [1], [0, 0, 1, 1], [], []>} : vector<8x8xf32>, vector<8x1152xf32>, vector<8x1152xf32> -> vector<8x1152xf32>
    %26 = arith.addf %21, %25 : vector<8x1152xf32>
    %c5 = arith.constant 5 : index
    %c0_22 = arith.constant 0 : index
    %c0_23 = arith.constant 0 : index
    %27 = vector.load %arg2[%c5, %c0_22, %c0_23] : memref<9x8x8xf32, #tpu.memory_space<vmem>>, vector<1x8x8xf32>
    %28 = vector.shape_cast %27 : vector<1x8x8xf32> to vector<8x8xf32>
    %c0_24 = arith.constant 0 : index
    %c129 = arith.constant 129 : index
    %29 = vector.load %arg0[%c0_24, %c129] : memref<8x1408xf32, #tpu.memory_space<vmem>>, vector<8x1152xf32>
    %cst_25 = arith.constant dense<0.000000e+00> : vector<8x1152xf32>
    %30 = tpu.matmul %28, %29, %cst_25 {dimension_numbers = #tpu.dot_dimension_numbers<[1], [0], [0], [1], [0, 0, 1, 1], [], []>} : vector<8x8xf32>, vector<8x1152xf32>, vector<8x1152xf32> -> vector<8x1152xf32>
    %31 = arith.addf %26, %30 : vector<8x1152xf32>
    %c6 = arith.constant 6 : index
    %c0_26 = arith.constant 0 : index
    %c0_27 = arith.constant 0 : index
    %32 = vector.load %arg2[%c6, %c0_26, %c0_27] : memref<9x8x8xf32, #tpu.memory_space<vmem>>, vector<1x8x8xf32>
    %33 = vector.shape_cast %32 : vector<1x8x8xf32> to vector<8x8xf32>
    %c0_28 = arith.constant 0 : index
    %c159 = arith.constant 159 : index
    %34 = vector.load %arg0[%c0_28, %c159] : memref<8x1408xf32, #tpu.memory_space<vmem>>, vector<8x1152xf32>
    %cst_29 = arith.constant dense<0.000000e+00> : vector<8x1152xf32>
    %35 = tpu.matmul %33, %34, %cst_29 {dimension_numbers = #tpu.dot_dimension_numbers<[1], [0], [0], [1], [0, 0, 1, 1], [], []>} : vector<8x8xf32>, vector<8x1152xf32>, vector<8x1152xf32> -> vector<8x1152xf32>
    %36 = arith.addf %31, %35 : vector<8x1152xf32>
    %c7 = arith.constant 7 : index
    %c0_30 = arith.constant 0 : index
    %c0_31 = arith.constant 0 : index
    %37 = vector.load %arg2[%c7, %c0_30, %c0_31] : memref<9x8x8xf32, #tpu.memory_space<vmem>>, vector<1x8x8xf32>
    %38 = vector.shape_cast %37 : vector<1x8x8xf32> to vector<8x8xf32>
    %c0_32 = arith.constant 0 : index
    %c160 = arith.constant 160 : index
    %39 = vector.load %arg0[%c0_32, %c160] : memref<8x1408xf32, #tpu.memory_space<vmem>>, vector<8x1152xf32>
    %cst_33 = arith.constant dense<0.000000e+00> : vector<8x1152xf32>
    %40 = tpu.matmul %38, %39, %cst_33 {dimension_numbers = #tpu.dot_dimension_numbers<[1], [0], [0], [1], [0, 0, 1, 1], [], []>} : vector<8x8xf32>, vector<8x1152xf32>, vector<8x1152xf32> -> vector<8x1152xf32>
    %41 = arith.addf %36, %40 : vector<8x1152xf32>
    %c8 = arith.constant 8 : index
    %c0_34 = arith.constant 0 : index
    %c0_35 = arith.constant 0 : index
    %42 = vector.load %arg2[%c8, %c0_34, %c0_35] : memref<9x8x8xf32, #tpu.memory_space<vmem>>, vector<1x8x8xf32>
    %43 = vector.shape_cast %42 : vector<1x8x8xf32> to vector<8x8xf32>
    %c0_36 = arith.constant 0 : index
    %c161 = arith.constant 161 : index
    %44 = vector.load %arg0[%c0_36, %c161] : memref<8x1408xf32, #tpu.memory_space<vmem>>, vector<8x1152xf32>
    %cst_37 = arith.constant dense<0.000000e+00> : vector<8x1152xf32>
    %45 = tpu.matmul %43, %44, %cst_37 {dimension_numbers = #tpu.dot_dimension_numbers<[1], [0], [0], [1], [0, 0, 1, 1], [], []>} : vector<8x8xf32>, vector<8x1152xf32>, vector<8x1152xf32> -> vector<8x1152xf32>
    %46 = arith.addf %41, %45 : vector<8x1152xf32>
    %c0_38 = arith.constant 0 : index
    %c0_39 = arith.constant 0 : index
    %47 = vector.load %arg3[%c0_38, %c0_39] : memref<8x1xf32, #tpu.memory_space<vmem>>, vector<8x1xf32>
    %48 = vector.broadcast %47 : vector<8x1xf32> to vector<8x1152xf32>
    %49 = arith.addf %46, %48 : vector<8x1152xf32>
    %50 = arith.mulf %49, %0 : vector<8x1152xf32>
    %cst_40 = arith.constant dense<0.000000e+00> : vector<8xf32>
    %51 = vector.multi_reduction <add>, %50, %cst_40 [1] : vector<8x1152xf32> to vector<8xf32>
    %52 = vector.shape_cast %51 : vector<8xf32> to vector<8x1xf32>
    %cst_41 = arith.constant 0.001953125 : f32
    %53 = vector.broadcast %cst_41 : f32 to vector<8x1xf32>
    %54 = arith.mulf %52, %53 : vector<8x1xf32>
    %55 = vector.broadcast %54 : vector<8x1xf32> to vector<8x1152xf32>
    %56 = arith.subf %49, %55 : vector<8x1152xf32>
    %57 = arith.mulf %56, %56 : vector<8x1152xf32>
    %58 = arith.mulf %57, %0 : vector<8x1152xf32>
    %cst_42 = arith.constant dense<0.000000e+00> : vector<8xf32>
    %59 = vector.multi_reduction <add>, %58, %cst_42 [1] : vector<8x1152xf32> to vector<8xf32>
    %60 = vector.shape_cast %59 : vector<8xf32> to vector<8x1xf32>
    %cst_43 = arith.constant 0.001953125 : f32
    %61 = vector.broadcast %cst_43 : f32 to vector<8x1xf32>
    %62 = arith.mulf %60, %61 : vector<8x1xf32>
    %cst_44 = arith.constant 9.99999974E-6 : f32
    %63 = vector.broadcast %cst_44 : f32 to vector<8x1xf32>
    %64 = arith.addf %62, %63 : vector<8x1xf32>
    %65 = math.sqrt %64 : vector<8x1xf32>
    %cst_45 = arith.constant 1.000000e+00 : f32
    %66 = vector.broadcast %cst_45 : f32 to vector<8x1xf32>
    %67 = arith.divf %66, %65 : vector<8x1xf32>
    %68 = vector.broadcast %67 : vector<8x1xf32> to vector<8x1152xf32>
    %69 = arith.mulf %56, %68 : vector<8x1152xf32>
    %c0_46 = arith.constant 0 : index
    %c0_47 = arith.constant 0 : index
    %70 = vector.load %arg4[%c0_46, %c0_47] : memref<8x1xf32, #tpu.memory_space<vmem>>, vector<8x1xf32>
    %71 = vector.broadcast %70 : vector<8x1xf32> to vector<8x1152xf32>
    %72 = arith.mulf %69, %71 : vector<8x1152xf32>
    %c0_48 = arith.constant 0 : index
    %c0_49 = arith.constant 0 : index
    %73 = vector.load %arg5[%c0_48, %c0_49] : memref<8x1xf32, #tpu.memory_space<vmem>>, vector<8x1xf32>
    %74 = vector.broadcast %73 : vector<8x1xf32> to vector<8x1152xf32>
    %75 = arith.addf %72, %74 : vector<8x1152xf32>
    %cst_50 = arith.constant 0.000000e+00 : f32
    %76 = vector.broadcast %cst_50 : f32 to vector<8x1152xf32>
    %77 = arith.cmpf oge, %75, %76 : vector<8x1152xf32>
    %cst_51 = arith.constant 3.000000e-01 : f32
    %78 = vector.broadcast %cst_51 : f32 to vector<8x1152xf32>
    %79 = arith.mulf %78, %75 : vector<8x1152xf32>
    %80 = arith.select %77, %75, %79 : vector<8x1152xi1>, vector<8x1152xf32>
    %cst_52 = arith.constant 0.000000e+00 : f32
    %81 = vector.broadcast %cst_52 : f32 to vector<8x1408xf32>
    %c0_53 = arith.constant 0 : index
    %c0_54 = arith.constant 0 : index
    %82 = vector.load %arg11[%c0_53, %c0_54] : memref<8x1408xf32, #tpu.memory_space<vmem>>, vector<8x1408xf32>
    tpu.vector_store %arg11[%c0_53, %c0_54], %81 {strides = array<i32>} : memref<8x1408xf32, #tpu.memory_space<vmem>>, vector<8x1408xf32>,
    %83 = arith.mulf %80, %0 : vector<8x1152xf32>
    %c0_55 = arith.constant 0 : index
    %c128_56 = arith.constant 128 : index
    %84 = vector.load %arg11[%c0_55, %c128_56] : memref<8x1408xf32, #tpu.memory_space<vmem>>, vector<8x1152xf32>
    tpu.vector_store %arg11[%c0_55, %c128_56], %83 {strides = array<i32>} : memref<8x1408xf32, #tpu.memory_space<vmem>>, vector<8x1152xf32>,
    %cst_57 = arith.constant 0.000000e+00 : f32
    %85 = vector.broadcast %cst_57 : f32 to vector<8x1152xf32>
    %c0_58 = arith.constant 0 : index
    %c0_59 = arith.constant 0 : index
    %c0_60 = arith.constant 0 : index
    %86 = vector.load %arg6[%c0_58, %c0_59, %c0_60] : memref<9x8x8xf32, #tpu.memory_space<vmem>>, vector<1x8x8xf32>
    %87 = vector.shape_cast %86 : vector<1x8x8xf32> to vector<8x8xf32>
    %c0_61 = arith.constant 0 : index
    %c95_62 = arith.constant 95 : index
    %88 = vector.load %arg11[%c0_61, %c95_62] : memref<8x1408xf32, #tpu.memory_space<vmem>>, vector<8x1152xf32>
    %cst_63 = arith.constant dense<0.000000e+00> : vector<8x1152xf32>
    %89 = tpu.matmul %87, %88, %cst_63 {dimension_numbers = #tpu.dot_dimension_numbers<[1], [0], [0], [1], [0, 0, 1, 1], [], []>} : vector<8x8xf32>, vector<8x1152xf32>, vector<8x1152xf32> -> vector<8x1152xf32>
    %90 = arith.addf %85, %89 : vector<8x1152xf32>
    %c1_64 = arith.constant 1 : index
    %c0_65 = arith.constant 0 : index
    %c0_66 = arith.constant 0 : index
    %91 = vector.load %arg6[%c1_64, %c0_65, %c0_66] : memref<9x8x8xf32, #tpu.memory_space<vmem>>, vector<1x8x8xf32>
    %92 = vector.shape_cast %91 : vector<1x8x8xf32> to vector<8x8xf32>
    %c0_67 = arith.constant 0 : index
    %c96_68 = arith.constant 96 : index
    %93 = vector.load %arg11[%c0_67, %c96_68] : memref<8x1408xf32, #tpu.memory_space<vmem>>, vector<8x1152xf32>
    %cst_69 = arith.constant dense<0.000000e+00> : vector<8x1152xf32>
    %94 = tpu.matmul %92, %93, %cst_69 {dimension_numbers = #tpu.dot_dimension_numbers<[1], [0], [0], [1], [0, 0, 1, 1], [], []>} : vector<8x8xf32>, vector<8x1152xf32>, vector<8x1152xf32> -> vector<8x1152xf32>
    %95 = arith.addf %90, %94 : vector<8x1152xf32>
    %c2_70 = arith.constant 2 : index
    %c0_71 = arith.constant 0 : index
    %c0_72 = arith.constant 0 : index
    %96 = vector.load %arg6[%c2_70, %c0_71, %c0_72] : memref<9x8x8xf32, #tpu.memory_space<vmem>>, vector<1x8x8xf32>
    %97 = vector.shape_cast %96 : vector<1x8x8xf32> to vector<8x8xf32>
    %c0_73 = arith.constant 0 : index
    %c97_74 = arith.constant 97 : index
    %98 = vector.load %arg11[%c0_73, %c97_74] : memref<8x1408xf32, #tpu.memory_space<vmem>>, vector<8x1152xf32>
    %cst_75 = arith.constant dense<0.000000e+00> : vector<8x1152xf32>
    %99 = tpu.matmul %97, %98, %cst_75 {dimension_numbers = #tpu.dot_dimension_numbers<[1], [0], [0], [1], [0, 0, 1, 1], [], []>} : vector<8x8xf32>, vector<8x1152xf32>, vector<8x1152xf32> -> vector<8x1152xf32>
    %100 = arith.addf %95, %99 : vector<8x1152xf32>
    %c3_76 = arith.constant 3 : index
    %c0_77 = arith.constant 0 : index
    %c0_78 = arith.constant 0 : index
    %101 = vector.load %arg6[%c3_76, %c0_77, %c0_78] : memref<9x8x8xf32, #tpu.memory_space<vmem>>, vector<1x8x8xf32>
    %102 = vector.shape_cast %101 : vector<1x8x8xf32> to vector<8x8xf32>
    %c0_79 = arith.constant 0 : index
    %c127_80 = arith.constant 127 : index
    %103 = vector.load %arg11[%c0_79, %c127_80] : memref<8x1408xf32, #tpu.memory_space<vmem>>, vector<8x1152xf32>
    %cst_81 = arith.constant dense<0.000000e+00> : vector<8x1152xf32>
    %104 = tpu.matmul %102, %103, %cst_81 {dimension_numbers = #tpu.dot_dimension_numbers<[1], [0], [0], [1], [0, 0, 1, 1], [], []>} : vector<8x8xf32>, vector<8x1152xf32>, vector<8x1152xf32> -> vector<8x1152xf32>
    %105 = arith.addf %100, %104 : vector<8x1152xf32>
    %c4_82 = arith.constant 4 : index
    %c0_83 = arith.constant 0 : index
    %c0_84 = arith.constant 0 : index
    %106 = vector.load %arg6[%c4_82, %c0_83, %c0_84] : memref<9x8x8xf32, #tpu.memory_space<vmem>>, vector<1x8x8xf32>
    %107 = vector.shape_cast %106 : vector<1x8x8xf32> to vector<8x8xf32>
    %c0_85 = arith.constant 0 : index
    %c128_86 = arith.constant 128 : index
    %108 = vector.load %arg11[%c0_85, %c128_86] : memref<8x1408xf32, #tpu.memory_space<vmem>>, vector<8x1152xf32>
    %cst_87 = arith.constant dense<0.000000e+00> : vector<8x1152xf32>
    %109 = tpu.matmul %107, %108, %cst_87 {dimension_numbers = #tpu.dot_dimension_numbers<[1], [0], [0], [1], [0, 0, 1, 1], [], []>} : vector<8x8xf32>, vector<8x1152xf32>, vector<8x1152xf32> -> vector<8x1152xf32>
    %110 = arith.addf %105, %109 : vector<8x1152xf32>
    %c5_88 = arith.constant 5 : index
    %c0_89 = arith.constant 0 : index
    %c0_90 = arith.constant 0 : index
    %111 = vector.load %arg6[%c5_88, %c0_89, %c0_90] : memref<9x8x8xf32, #tpu.memory_space<vmem>>, vector<1x8x8xf32>
    %112 = vector.shape_cast %111 : vector<1x8x8xf32> to vector<8x8xf32>
    %c0_91 = arith.constant 0 : index
    %c129_92 = arith.constant 129 : index
    %113 = vector.load %arg11[%c0_91, %c129_92] : memref<8x1408xf32, #tpu.memory_space<vmem>>, vector<8x1152xf32>
    %cst_93 = arith.constant dense<0.000000e+00> : vector<8x1152xf32>
    %114 = tpu.matmul %112, %113, %cst_93 {dimension_numbers = #tpu.dot_dimension_numbers<[1], [0], [0], [1], [0, 0, 1, 1], [], []>} : vector<8x8xf32>, vector<8x1152xf32>, vector<8x1152xf32> -> vector<8x1152xf32>
    %115 = arith.addf %110, %114 : vector<8x1152xf32>
    %c6_94 = arith.constant 6 : index
    %c0_95 = arith.constant 0 : index
    %c0_96 = arith.constant 0 : index
    %116 = vector.load %arg6[%c6_94, %c0_95, %c0_96] : memref<9x8x8xf32, #tpu.memory_space<vmem>>, vector<1x8x8xf32>
    %117 = vector.shape_cast %116 : vector<1x8x8xf32> to vector<8x8xf32>
    %c0_97 = arith.constant 0 : index
    %c159_98 = arith.constant 159 : index
    %118 = vector.load %arg11[%c0_97, %c159_98] : memref<8x1408xf32, #tpu.memory_space<vmem>>, vector<8x1152xf32>
    %cst_99 = arith.constant dense<0.000000e+00> : vector<8x1152xf32>
    %119 = tpu.matmul %117, %118, %cst_99 {dimension_numbers = #tpu.dot_dimension_numbers<[1], [0], [0], [1], [0, 0, 1, 1], [], []>} : vector<8x8xf32>, vector<8x1152xf32>, vector<8x1152xf32> -> vector<8x1152xf32>
    %120 = arith.addf %115, %119 : vector<8x1152xf32>
    %c7_100 = arith.constant 7 : index
    %c0_101 = arith.constant 0 : index
    %c0_102 = arith.constant 0 : index
    %121 = vector.load %arg6[%c7_100, %c0_101, %c0_102] : memref<9x8x8xf32, #tpu.memory_space<vmem>>, vector<1x8x8xf32>
    %122 = vector.shape_cast %121 : vector<1x8x8xf32> to vector<8x8xf32>
    %c0_103 = arith.constant 0 : index
    %c160_104 = arith.constant 160 : index
    %123 = vector.load %arg11[%c0_103, %c160_104] : memref<8x1408xf32, #tpu.memory_space<vmem>>, vector<8x1152xf32>
    %cst_105 = arith.constant dense<0.000000e+00> : vector<8x1152xf32>
    %124 = tpu.matmul %122, %123, %cst_105 {dimension_numbers = #tpu.dot_dimension_numbers<[1], [0], [0], [1], [0, 0, 1, 1], [], []>} : vector<8x8xf32>, vector<8x1152xf32>, vector<8x1152xf32> -> vector<8x1152xf32>
    %125 = arith.addf %120, %124 : vector<8x1152xf32>
    %c8_106 = arith.constant 8 : index
    %c0_107 = arith.constant 0 : index
    %c0_108 = arith.constant 0 : index
    %126 = vector.load %arg6[%c8_106, %c0_107, %c0_108] : memref<9x8x8xf32, #tpu.memory_space<vmem>>, vector<1x8x8xf32>
    %127 = vector.shape_cast %126 : vector<1x8x8xf32> to vector<8x8xf32>
    %c0_109 = arith.constant 0 : index
    %c161_110 = arith.constant 161 : index
    %128 = vector.load %arg11[%c0_109, %c161_110] : memref<8x1408xf32, #tpu.memory_space<vmem>>, vector<8x1152xf32>
    %cst_111 = arith.constant dense<0.000000e+00> : vector<8x1152xf32>
    %129 = tpu.matmul %127, %128, %cst_111 {dimension_numbers = #tpu.dot_dimension_numbers<[1], [0], [0], [1], [0, 0, 1, 1], [], []>} : vector<8x8xf32>, vector<8x1152xf32>, vector<8x1152xf32> -> vector<8x1152xf32>
    %130 = arith.addf %125, %129 : vector<8x1152xf32>
    %c0_112 = arith.constant 0 : index
    %c0_113 = arith.constant 0 : index
    %131 = vector.load %arg7[%c0_112, %c0_113] : memref<8x1xf32, #tpu.memory_space<vmem>>, vector<8x1xf32>
    %132 = vector.broadcast %131 : vector<8x1xf32> to vector<8x1152xf32>
    %133 = arith.addf %130, %132 : vector<8x1152xf32>
    %134 = arith.mulf %133, %0 : vector<8x1152xf32>
    %cst_114 = arith.constant dense<0.000000e+00> : vector<8xf32>
    %135 = vector.multi_reduction <add>, %134, %cst_114 [1] : vector<8x1152xf32> to vector<8xf32>
    %136 = vector.shape_cast %135 : vector<8xf32> to vector<8x1xf32>
    %cst_115 = arith.constant 0.001953125 : f32
    %137 = vector.broadcast %cst_115 : f32 to vector<8x1xf32>
    %138 = arith.mulf %136, %137 : vector<8x1xf32>
    %139 = vector.broadcast %138 : vector<8x1xf32> to vector<8x1152xf32>
    %140 = arith.subf %133, %139 : vector<8x1152xf32>
    %141 = arith.mulf %140, %140 : vector<8x1152xf32>
    %142 = arith.mulf %141, %0 : vector<8x1152xf32>
    %cst_116 = arith.constant dense<0.000000e+00> : vector<8xf32>
    %143 = vector.multi_reduction <add>, %142, %cst_116 [1] : vector<8x1152xf32> to vector<8xf32>
    %144 = vector.shape_cast %143 : vector<8xf32> to vector<8x1xf32>
    %cst_117 = arith.constant 0.001953125 : f32
    %145 = vector.broadcast %cst_117 : f32 to vector<8x1xf32>
    %146 = arith.mulf %144, %145 : vector<8x1xf32>
    %cst_118 = arith.constant 9.99999974E-6 : f32
    %147 = vector.broadcast %cst_118 : f32 to vector<8x1xf32>
    %148 = arith.addf %146, %147 : vector<8x1xf32>
    %149 = math.sqrt %148 : vector<8x1xf32>
    %cst_119 = arith.constant 1.000000e+00 : f32
    %150 = vector.broadcast %cst_119 : f32 to vector<8x1xf32>
    %151 = arith.divf %150, %149 : vector<8x1xf32>
    %152 = vector.broadcast %151 : vector<8x1xf32> to vector<8x1152xf32>
    %153 = arith.mulf %140, %152 : vector<8x1152xf32>
    %c0_120 = arith.constant 0 : index
    %c0_121 = arith.constant 0 : index
    %154 = vector.load %arg8[%c0_120, %c0_121] : memref<8x1xf32, #tpu.memory_space<vmem>>, vector<8x1xf32>
    %155 = vector.broadcast %154 : vector<8x1xf32> to vector<8x1152xf32>
    %156 = arith.mulf %153, %155 : vector<8x1152xf32>
    %c0_122 = arith.constant 0 : index
    %c0_123 = arith.constant 0 : index
    %157 = vector.load %arg9[%c0_122, %c0_123] : memref<8x1xf32, #tpu.memory_space<vmem>>, vector<8x1xf32>
    %158 = vector.broadcast %157 : vector<8x1xf32> to vector<8x1152xf32>
    %159 = arith.addf %156, %158 : vector<8x1152xf32>
    %c0_124 = arith.constant 0 : index
    %c128_125 = arith.constant 128 : index
    %160 = vector.load %arg0[%c0_124, %c128_125] : memref<8x1408xf32, #tpu.memory_space<vmem>>, vector<8x1152xf32>
    %161 = arith.mulf %159, %0 : vector<8x1152xf32>
    %162 = arith.addf %160, %161 : vector<8x1152xf32>
    %c0_126 = arith.constant 0 : index
    %c0_127 = arith.constant 0 : index
    %163 = vector.load %arg10[%c0_126, %c0_127] : memref<8x1152xf32, #tpu.memory_space<vmem>>, vector<8x1152xf32>
    tpu.vector_store %arg10[%c0_126, %c0_127], %162 {strides = array<i32>} : memref<8x1152xf32, #tpu.memory_space<vmem>>, vector<8x1152xf32>,
    return
  }
}

</mosaic_0001>

<llo_original>
// kernel: resblock_forward.1
$region0: #{resblock_forward.1}
  #allocation0 [shape = 'u32[]', space=smem, size = 0x4, offset = 0x4, fixed_abs, tag = 'smem constant byte address 0x4 - core index']
  #allocation1 [shape = 'u32[144,128]{1,0:T(1,128)}', space=vmem, size = 0x12000, scoped, tag = 'internal scratch']
  #allocation2 [shape = 'f32[8,1408]{1,0:T(8,128)}', space=vmem, size = 0xb000, scoped, tag = 'scratch operand']
  %s0 = inlined_call_operand.vmem [shape: f32[8,1408], index: 0, kind: input, shape index: {}]
  %s1 = inlined_call_operand.vmem [shape: f32[8,1152], index: 1, kind: input, shape index: {}]
  %s2 = inlined_call_operand.vmem [shape: f32[9,8,8], index: 2, kind: input, shape index: {}]
  %s3 = inlined_call_operand.vmem [shape: f32[8,1], index: 3, kind: input, shape index: {}]
  %s4 = inlined_call_operand.vmem [shape: f32[8,1], index: 4, kind: input, shape index: {}]
  %s5 = inlined_call_operand.vmem [shape: f32[8,1], index: 5, kind: input, shape index: {}]
  %s6 = inlined_call_operand.vmem [shape: f32[9,8,8], index: 6, kind: input, shape index: {}]
  %s7 = inlined_call_operand.vmem [shape: f32[8,1], index: 7, kind: input, shape index: {}]
  %s8 = inlined_call_operand.vmem [shape: f32[8,1], index: 8, kind: input, shape index: {}]
  %s9 = inlined_call_operand.vmem [shape: f32[8,1], index: 9, kind: input, shape index: {}]
  %s10 = inlined_call_operand.vmem [shape: f32[8,1152], index: 10, kind: output, shape index: {}]
  %s11 = sld [smem:[#allocation0]]
  $region50: #{resblock_forward.1} parent=0
    _
  %s13 = ssub.s32 1, %s11
  %s14 = scalar_select 0, %s13, %s11
  // Predicated region
  $region2: #{resblock_forward.1} parent=0 // pred_check
    _
  $region3: #{resblock_forward.1} parent=0 // pred_check_branch
    %16 = sbr.rel (0) target = $region5
  $region4: #{resblock_forward.1} parent=0 // pred_region
    _
  $region5: #{resblock_forward.1} parent=0 // pred_fallthru
    _
  // Predicated region
  $region6: #{resblock_forward.1} parent=0 // pred_check
    _
  $region7: #{resblock_forward.1} parent=0 // pred_check_branch
    %18 = sbr.rel (0) target = $region9
  $region8: #{resblock_forward.1} parent=0 // pred_region
    _
  $region9: #{resblock_forward.1} parent=0 // pred_fallthru
    _
  // Predicated region
  $region10: #{resblock_forward.1} parent=0 // pred_check
    _
  $region11: #{resblock_forward.1} parent=0 // pred_check_branch
    %20 = sbr.rel (0) target = $region13
  $region12: #{resblock_forward.1} parent=0 // pred_region
    _
  $region13: #{resblock_forward.1} parent=0 // pred_fallthru
    _
  // Predicated region
  $region14: #{resblock_forward.1} parent=0 // pred_check
    _
  $region15: #{resblock_forward.1} parent=0 // pred_check_branch
    %22 = sbr.rel (0) target = $region17
  $region16: #{resblock_forward.1} parent=0 // pred_region
    _
  $region17: #{resblock_forward.1} parent=0 // pred_fallthru
    _
  // Predicated region
  $region18: #{resblock_forward.1} parent=0 // pred_check
    _
  $region19: #{resblock_forward.1} parent=0 // pred_check_branch
    %24 = sbr.rel (0) target = $region21
  $region20: #{resblock_forward.1} parent=0 // pred_region
    _
  $region21: #{resblock_forward.1} parent=0 // pred_fallthru
    _
  // Predicated region
  $region22: #{resblock_forward.1} parent=0 // pred_check
    _
  $region23: #{resblock_forward.1} parent=0 // pred_check_branch
    %26 = sbr.rel (0) target = $region25
  $region24: #{resblock_forward.1} parent=0 // pred_region
    _
  $region25: #{resblock_forward.1} parent=0 // pred_fallthru
    _
  // Predicated region
  $region26: #{resblock_forward.1} parent=0 // pred_check
    _
  $region27: #{resblock_forward.1} parent=0 // pred_check_branch
    %28 = sbr.rel (0) target = $region29
  $region28: #{resblock_forward.1} parent=0 // pred_region
    _
  $region29: #{resblock_forward.1} parent=0 // pred_fallthru
    _
  // Predicated region
  $region30: #{resblock_forward.1} parent=0 // pred_check
    _
  $region31: #{resblock_forward.1} parent=0 // pred_check_branch
    %30 = sbr.rel (0) target = $region33
  $region32: #{resblock_forward.1} parent=0 // pred_region
    _
  $region33: #{resblock_forward.1} parent=0 // pred_fallthru
    _
  // Predicated region
  $region34: #{resblock_forward.1} parent=0 // pred_check
    _
  $region35: #{resblock_forward.1} parent=0 // pred_check_branch
    %32 = sbr.rel (0) target = $region37
  $region36: #{resblock_forward.1} parent=0 // pred_region
    _
  $region37: #{resblock_forward.1} parent=0 // pred_fallthru
    _
  // Predicated region
  $region38: #{resblock_forward.1} parent=0 // pred_check
    _
  $region39: #{resblock_forward.1} parent=0 // pred_check_branch
    %34 = sbr.rel (0) target = $region41
  $region40: #{resblock_forward.1} parent=0 // pred_region
    _
  $region41: #{resblock_forward.1} parent=0 // pred_fallthru
    _
  %v35 = vld [vmem:[%s1] sm:$0xff]
  %v36 = vld [vmem:[%s1 + $0x8] sm:$0xff]
  %v37 = vld [vmem:[%s1 + $0x10] sm:$0xff]
  %v38 = vld [vmem:[%s1 + $0x18] sm:$0xff]
  %v39 = vld [vmem:[%s1 + $0x20] sm:$0xff]
  %v40 = vld [vmem:[%s1 + $0x28] sm:$0xff]
  %v41 = vld [vmem:[%s1 + $0x30] sm:$0xff]
  %v42 = vld [vmem:[%s1 + $0x38] sm:$0xff]
  %v43 = vld [vmem:[%s1 + $0x40] sm:$0xff]
  %v44 = vld [vmem:[%s2] sm:$0xff]
  %v45 = vld [vmem:[%s0] sm:$0xff]
  %v46 = vld [vmem:[%s0 + $0x8] sm:$0xff]
  %v47 = vld [vmem:[%s0 + $0x10] sm:$0xff]
  %v48 = vld [vmem:[%s0 + $0x18] sm:$0xff]
  %v49 = vld [vmem:[%s0 + $0x20] sm:$0xff]
  %v50 = vld [vmem:[%s0 + $0x28] sm:$0xff]
  %v51 = vld [vmem:[%s0 + $0x30] sm:$0xff]
  %v52 = vld [vmem:[%s0 + $0x38] sm:$0xff]
  %v53 = vld [vmem:[%s0 + $0x40] sm:$0xff]
  %v54 = vld [vmem:[%s0 + $0x48] sm:$0xff]
  %s55 = scalar_lea.vmem %s2, 8
  %v56 = vld [vmem:[%s55] sm:$0xff]
  %67 = vrot.lane.b32.xlu0 %v45, 32
  %v68 = vpop.permute.xlu0 %67
  %69 = vrot.lane.b32.xlu0 %v46, 32
  %v70 = vpop.permute.xlu0 %69
  %71 = vrot.lane.b32.xlu0 %v47, 32
  %v72 = vpop.permute.xlu0 %71
  %73 = vrot.lane.b32.xlu0 %v48, 32
  %v74 = vpop.permute.xlu0 %73
  %75 = vrot.lane.b32.xlu0 %v49, 32
  %v76 = vpop.permute.xlu0 %75
  %77 = vrot.lane.b32.xlu0 %v50, 32
  %v78 = vpop.permute.xlu0 %77
  %79 = vrot.lane.b32.xlu0 %v51, 32
  %v80 = vpop.permute.xlu0 %79
  %81 = vrot.lane.b32.xlu0 %v52, 32
  %v82 = vpop.permute.xlu0 %81
  %83 = vrot.lane.b32.xlu0 %v53, 32
  %v84 = vpop.permute.xlu0 %83
  %85 = vrot.lane.b32.xlu0 %v54, 32
  %v86 = vpop.permute.xlu0 %85
  %vm87 = vcmask 261120
  %v88 = vsel %vm87, %v68, %v70
  %v89 = vsel %vm87, %v70, %v72
  %v90 = vsel %vm87, %v72, %v74
  %v91 = vsel %vm87, %v74, %v76
  %v92 = vsel %vm87, %v76, %v78
  %v93 = vsel %vm87, %v78, %v80
  %v94 = vsel %vm87, %v80, %v82
  %v95 = vsel %vm87, %v82, %v84
  %v96 = vsel %vm87, %v84, %v86
  %vm106 = vcmask 64512
  %v108 = vsel %vm106, %v56, 0
  %110 = vmatprep.subr.mxu0 0.0
  %111 = vmatpush1.msra.mxu0 0.0
  %112 = vmatprep.subr.mxu0 0.0
  %113 = vmatpush1.msra.mxu0 0.0
  %114 = vmatprep.subr.mxu0 0.0
  %115 = vmatpush1.msra.mxu0 0.0
  %116 = vmatprep.subr.mxu0 0.0
  %117 = vmatpush1.msra.mxu0 0.0
  %118 = vmatprep.subr.mxu0 0.0
  %119 = vmatpush1.msra.mxu0 0.0
  %120 = vmatprep.subr.mxu0 0.0
  %121 = vmatpush1.msra.mxu0 0.0
  %122 = vmatprep.subr.mxu0 0.0
  %123 = vmatpush1.msra.mxu0 0.0
  %124 = vmatprep.subr.mxu0 0.0
  %125 = vmatpush1.msra.mxu0 0.0
  %126 = vmatprep.subr.mxu0 0.0
  %127 = vmatpush1.msra.mxu0 0.0
  %128 = vmatprep.subr.mxu0 0.0
  %129 = vmatpush1.msra.mxu0 0.0
  %130 = vmatprep.subr.mxu0 0.0
  %131 = vmatpush1.msra.mxu0 0.0
  %132 = vmatprep.subr.mxu0 0.0
  %133 = vmatpush1.msra.mxu0 0.0
  %134 = vmatprep.subr.mxu0 0.0
  %135 = vmatpush1.msra.mxu0 0.0
  %136 = vmatprep.subr.mxu0 0.0
  %137 = vmatpush1.msra.mxu0 0.0
  %138 = vmatprep.subr.mxu0 0.0
  %139 = vmatpush1.msra.mxu0 0.0
  %140 = vmatprep.subr.mxu0 %v89
  %141 = vmatpush1.msra.mxu0 %v88
  %142 = vmatprep.subr.mxu0 0.0
  %143 = vmatpush2.msra.mxu0 0.0
  %144 = vmatprep.subr.mxu0 0.0
  %145 = vmatpush2.msra.mxu0 0.0
  %146 = vmatprep.subr.mxu0 0.0
  %147 = vmatpush2.msra.mxu0 0.0
  %148 = vmatprep.subr.mxu0 0.0
  %149 = vmatpush2.msra.mxu0 0.0
  %150 = vmatprep.subr.mxu0 0.0
  %151 = vmatpush2.msra.mxu0 0.0
  %152 = vmatprep.subr.mxu0 0.0
  %153 = vmatpush2.msra.mxu0 0.0
  %154 = vmatprep.subr.mxu0 0.0
  %155 = vmatpush2.msra.mxu0 0.0
  %156 = vmatprep.subr.mxu0 0.0
  %157 = vmatpush2.msra.mxu0 0.0
  %158 = vmatprep.subr.mxu0 0.0
  %159 = vmatpush2.msra.mxu0 0.0
  %160 = vmatprep.subr.mxu0 0.0
  %161 = vmatpush2.msra.mxu0 0.0
  %162 = vmatprep.subr.mxu0 0.0
  %163 = vmatpush2.msra.mxu0 0.0
  %164 = vmatprep.subr.mxu0 0.0
  %165 = vmatpush2.msra.mxu0 0.0
  %166 = vmatprep.subr.mxu0 0.0
  %167 = vmatpush2.msra.mxu0 0.0
  %168 = vmatprep.subr.mxu0 0.0
  %169 = vmatpush2.msra.mxu0 0.0
  %170 = vmatprep.subr.mxu0 0.0
  %171 = vmatpush2.msra.mxu0 0.0
  %172 = vmatprep.subr.mxu0 0.0
  %173 = vmatpush2.msra.mxu0 0.0
  %174 = vmatprep.mubr.f32.mxu0 0.0
  %175 = vmatmul.mubr.f32.gmra.mxu0 %v108
  %v176 = vpop.f32.mrf.mxu0
  %v177 = vadd.f32 0.0, %v176
  %v178 = vpop.f32.mrf.mxu0
  %v179 = vadd.f32 0.0, %v178
  %180 = vdwg.mxu0
  %181 = vmatprep.subr.mxu0 0.0
  %182 = vmatpush1.msra.mxu0 0.0
  %183 = vmatprep.subr.mxu0 0.0
  %184 = vmatpush1.msra.mxu0 0.0
  %185 = vmatprep.subr.mxu0 0.0
  %186 = vmatpush1.msra.mxu0 0.0
  %187 = vmatprep.subr.mxu0 0.0
  %188 = vmatpush1.msra.mxu0 0.0
  %189 = vmatprep.subr.mxu0 0.0
  %190 = vmatpush1.msra.mxu0 0.0
  %191 = vmatprep.subr.mxu0 0.0
  %192 = vmatpush1.msra.mxu0 0.0
  %193 = vmatprep.subr.mxu0 0.0
  %194 = vmatpush1.msra.mxu0 0.0
  %195 = vmatprep.subr.mxu0 0.0
  %196 = vmatpush1.msra.mxu0 0.0
  %197 = vmatprep.subr.mxu0 0.0
  %198 = vmatpush1.msra.mxu0 0.0
  %199 = vmatprep.subr.mxu0 0.0
  %200 = vmatpush1.msra.mxu0 0.0
  %201 = vmatprep.subr.mxu0 0.0
  %202 = vmatpush1.msra.mxu0 0.0
  %203 = vmatprep.subr.mxu0 0.0
  %204 = vmatpush1.msra.mxu0 0.0
  %205 = vmatprep.subr.mxu0 0.0
  %206 = vmatpush1.msra.mxu0 0.0
  %207 = vmatprep.subr.mxu0 0.0
  %208 = vmatpush1.msra.mxu0 0.0
  %209 = vmatprep.subr.mxu0 0.0
  %210 = vmatpush1.msra.mxu0 0.0
  %211 = vmatprep.subr.mxu0 %v91
  %212 = vmatpush1.msra.mxu0 %v90
  %213 = vmatprep.subr.mxu0 0.0
  %214 = vmatpush2.msra.mxu0 0.0
  %215 = vmatprep.subr.mxu0 0.0
  %216 = vmatpush2.msra.mxu0 0.0
  %217 = vmatprep.subr.mxu0 0.0
  %218 = vmatpush2.msra.mxu0 0.0
  %219 = vmatprep.subr.mxu0 0.0
  %220 = vmatpush2.msra.mxu0 0.0
  %221 = vmatprep.subr.mxu0 0.0
  %222 = vmatpush2.msra.mxu0 0.0
  %223 = vmatprep.subr.mxu0 0.0
  %224 = vmatpush2.msra.mxu0 0.0
  %225 = vmatprep.subr.mxu0 0.0
  %226 = vmatpush2.msra.mxu0 0.0
  %227 = vmatprep.subr.mxu0 0.0
  %228 = vmatpush2.msra.mxu0 0.0
  %229 = vmatprep.subr.mxu0 0.0
  %230 = vmatpush2.msra.mxu0 0.0
  %231 = vmatprep.subr.mxu0 0.0
  %232 = vmatpush2.msra.mxu0 0.0
  %233 = vmatprep.subr.mxu0 0.0
  %234 = vmatpush2.msra.mxu0 0.0
  %235 = vmatprep.subr.mxu0 0.0
  %236 = vmatpush2.msra.mxu0 0.0
  %237 = vmatprep.subr.mxu0 0.0
  %238 = vmatpush2.msra.mxu0 0.0
  %239 = vmatprep.subr.mxu0 0.0
  %240 = vmatpush2.msra.mxu0 0.0
  %241 = vmatprep.subr.mxu0 0.0
  %242 = vmatpush2.msra.mxu0 0.0
  %243 = vmatprep.subr.mxu0 0.0
  %244 = vmatpush2.msra.mxu0 0.0
  %245 = vmatprep.mubr.f32.mxu0 0.0
  %246 = vmatmul.mubr.f32.gmra.mxu0 %v108
  %v247 = vpop.f32.mrf.mxu0
  %v248 = vadd.f32 0.0, %v247
  %v249 = vpop.f32.mrf.mxu0
  %v250 = vadd.f32 0.0, %v249
  %251 = vdwg.mxu0
  %252 = vmatprep.subr.mxu0 0.0
  %253 = vmatpush1.msra.mxu0 0.0
  %254 = vmatprep.subr.mxu0 0.0
  %255 = vmatpush1.msra.mxu0 0.0
  %256 = vmatprep.subr.mxu0 0.0
  %257 = vmatpush1.msra.mxu0 0.0
  %258 = vmatprep.subr.mxu0 0.0
  %259 = vmatpush1.msra.mxu0 0.0
  %260 = vmatprep.subr.mxu0 0.0
  %261 = vmatpush1.msra.mxu0 0.0
  %262 = vmatprep.subr.mxu0 0.0
  %263 = vmatpush1.msra.mxu0 0.0
  %264 = vmatprep.subr.mxu0 0.0
  %265 = vmatpush1.msra.mxu0 0.0
  %266 = vmatprep.subr.mxu0 0.0
  %267 = vmatpush1.msra.mxu0 0.0
  %268 = vmatprep.subr.mxu0 0.0
  %269 = vmatpush1.msra.mxu0 0.0
  %270 = vmatprep.subr.mxu0 0.0
  %271 = vmatpush1.msra.mxu0 0.0
  %272 = vmatprep.subr.mxu0 0.0
  %273 = vmatpush1.msra.mxu0 0.0
  %274 = vmatprep.subr.mxu0 0.0
  %275 = vmatpush1.msra.mxu0 0.0
  %276 = vmatprep.subr.mxu0 0.0
  %277 = vmatpush1.msra.mxu0 0.0
  %278 = vmatprep.subr.mxu0 0.0
  %279 = vmatpush1.msra.mxu0 0.0
  %280 = vmatprep.subr.mxu0 0.0
  %281 = vmatpush1.msra.mxu0 0.0
  %282 = vmatprep.subr.mxu0 %v93
  %283 = vmatpush1.msra.mxu0 %v92
  %284 = vmatprep.subr.mxu0 0.0
  %285 = vmatpush2.msra.mxu0 0.0
  %286 = vmatprep.subr.mxu0 0.0
  %287 = vmatpush2.msra.mxu0 0.0
  %288 = vmatprep.subr.mxu0 0.0
  %289 = vmatpush2.msra.mxu0 0.0
  %290 = vmatprep.subr.mxu0 0.0
  %291 = vmatpush2.msra.mxu0 0.0
  %292 = vmatprep.subr.mxu0 0.0
  %293 = vmatpush2.msra.mxu0 0.0
  %294 = vmatprep.subr.mxu0 0.0
  %295 = vmatpush2.msra.mxu0 0.0
  %296 = vmatprep.subr.mxu0 0.0
  %297 = vmatpush2.msra.mxu0 0.0
  %298 = vmatprep.subr.mxu0 0.0
  %299 = vmatpush2.msra.mxu0 0.0
  %300 = vmatprep.subr.mxu0 0.0
  %301 = vmatpush2.msra.mxu0 0.0
  %302 = vmatprep.subr.mxu0 0.0
  %303 = vmatpush2.msra.mxu0 0.0
  %304 = vmatprep.subr.mxu0 0.0
  %305 = vmatpush2.msra.mxu0 0.0
  %306 = vmatprep.subr.mxu0 0.0
  %307 = vmatpush2.msra.mxu0 0.0
  %308 = vmatprep.subr.mxu0 0.0
  %309 = vmatpush2.msra.mxu0 0.0
  %310 = vmatprep.subr.mxu0 0.0
  %311 = vmatpush2.msra.mxu0 0.0
  %312 = vmatprep.subr.mxu0 0.0
  %313 = vmatpush2.msra.mxu0 0.0
  %314 = vmatprep.subr.mxu0 0.0
  %315 = vmatpush2.msra.mxu0 0.0
  %316 = vmatprep.mubr.f32.mxu0 0.0
  %317 = vmatmul.mubr.f32.gmra.mxu0 %v108
  %v318 = vpop.f32.mrf.mxu0
  %v319 = vadd.f32 0.0, %v318
  %v320 = vpop.f32.mrf.mxu0
  %v321 = vadd.f32 0.0, %v320
  %322 = vdwg.mxu0
  %323 = vmatprep.subr.mxu0 0.0
  %324 = vmatpush1.msra.mxu0 0.0
  %325 = vmatprep.subr.mxu0 0.0
  %326 = vmatpush1.msra.mxu0 0.0
  %327 = vmatprep.subr.mxu0 0.0
  %328 = vmatpush1.msra.mxu0 0.0
  %329 = vmatprep.subr.mxu0 0.0
  %330 = vmatpush1.msra.mxu0 0.0
  %331 = vmatprep.subr.mxu0 0.0
  %332 = vmatpush1.msra.mxu0 0.0
  %333 = vmatprep.subr.mxu0 0.0
  %334 = vmatpush1.msra.mxu0 0.0
  %335 = vmatprep.subr.mxu0 0.0
  %336 = vmatpush1.msra.mxu0 0.0
  %337 = vmatprep.subr.mxu0 0.0
  %338 = vmatpush1.msra.mxu0 0.0
  %339 = vmatprep.subr.mxu0 0.0
  %340 = vmatpush1.msra.mxu0 0.0
  %341 = vmatprep.subr.mxu0 0.0
  %342 = vmatpush1.msra.mxu0 0.0
  %343 = vmatprep.subr.mxu0 0.0
  %344 = vmatpush1.msra.mxu0 0.0
  %345 = vmatprep.subr.mxu0 0.0
  %346 = vmatpush1.msra.mxu0 0.0
  %347 = vmatprep.subr.mxu0 0.0
  %348 = vmatpush1.msra.mxu0 0.0
  %349 = vmatprep.subr.mxu0 0.0
  %350 = vmatpush1.msra.mxu0 0.0
  %351 = vmatprep.subr.mxu0 0.0
  %352 = vmatpush1.msra.mxu0 0.0
  %353 = vmatprep.subr.mxu0 %v95
  %354 = vmatpush1.msra.mxu0 %v94
  %355 = vmatprep.subr.mxu0 0.0
  %356 = vmatpush2.msra.mxu0 0.0
  %357 = vmatprep.subr.mxu0 0.0
  %358 = vmatpush2.msra.mxu0 0.0
  %359 = vmatprep.subr.mxu0 0.0
  %360 = vmatpush2.msra.mxu0 0.0
  %361 = vmatprep.subr.mxu0 0.0
  %362 = vmatpush2.msra.mxu0 0.0
  %363 = vmatprep.subr.mxu0 0.0
  %364 = vmatpush2.msra.mxu0 0.0
  %365 = vmatprep.subr.mxu0 0.0
  %366 = vmatpush2.msra.mxu0 0.0
  %367 = vmatprep.subr.mxu0 0.0
  %368 = vmatpush2.msra.mxu0 0.0
  %369 = vmatprep.subr.mxu0 0.0
  %370 = vmatpush2.msra.mxu0 0.0
  %371 = vmatprep.subr.mxu0 0.0
  %372 = vmatpush2.msra.mxu0 0.0
  %373 = vmatprep.subr.mxu0 0.0
  %374 = vmatpush2.msra.mxu0 0.0
  %375 = vmatprep.subr.mxu0 0.0
  %376 = vmatpush2.msra.mxu0 0.0
  %377 = vmatprep.subr.mxu0 0.0
  %378 = vmatpush2.msra.mxu0 0.0
  %379 = vmatprep.subr.mxu0 0.0
  %380 = vmatpush2.msra.mxu0 0.0
  %381 = vmatprep.subr.mxu0 0.0
  %382 = vmatpush2.msra.mxu0 0.0
  %383 = vmatprep.subr.mxu0 0.0
  %384 = vmatpush2.msra.mxu0 0.0
  %385 = vmatprep.subr.mxu0 0.0
  %386 = vmatpush2.msra.mxu0 0.0
  %387 = vmatprep.mubr.f32.mxu0 0.0
  %388 = vmatmul.mubr.f32.gmra.mxu0 %v108
  %v389 = vpop.f32.mrf.mxu0
  %v390 = vadd.f32 0.0, %v389
  %v391 = vpop.f32.mrf.mxu0
  %v392 = vadd.f32 0.0, %v391
  %393 = vdwg.mxu0
  %394 = vmatprep.subr.mxu0 0.0
  %395 = vmatpush1.msra.mxu0 0.0
  %396 = vmatprep.subr.mxu0 0.0
  %397 = vmatpush1.msra.mxu0 0.0
  %398 = vmatprep.subr.mxu0 0.0
  %399 = vmatpush1.msra.mxu0 0.0
  %400 = vmatprep.subr.mxu0 0.0
  %401 = vmatpush1.msra.mxu0 0.0
  %402 = vmatprep.subr.mxu0 0.0
  %403 = vmatpush1.msra.mxu0 0.0
  %404 = vmatprep.subr.mxu0 0.0
  %405 = vmatpush1.msra.mxu0 0.0
  %406 = vmatprep.subr.mxu0 0.0
  %407 = vmatpush1.msra.mxu0 0.0
  %408 = vmatprep.subr.mxu0 0.0
  %409 = vmatpush1.msra.mxu0 0.0
  %410 = vmatprep.subr.mxu0 0.0
  %411 = vmatpush1.msra.mxu0 0.0
  %412 = vmatprep.subr.mxu0 0.0
  %413 = vmatpush1.msra.mxu0 0.0
  %414 = vmatprep.subr.mxu0 0.0
  %415 = vmatpush1.msra.mxu0 0.0
  %416 = vmatprep.subr.mxu0 0.0
  %417 = vmatpush1.msra.mxu0 0.0
  %418 = vmatprep.subr.mxu0 0.0
  %419 = vmatpush1.msra.mxu0 0.0
  %420 = vmatprep.subr.mxu0 0.0
  %421 = vmatpush1.msra.mxu0 0.0
  %422 = vmatprep.subr.mxu0 0.0
  %423 = vmatpush1.msra.mxu0 0.0
  %424 = vmatprep.subr.mxu0 0.0
  %425 = vmatpush1.msra.mxu0 %v96
  %426 = vmatprep.subr.mxu0 0.0
  %427 = vmatpush2.msra.mxu0 0.0
  %428 = vmatprep.subr.mxu0 0.0
  %429 = vmatpush2.msra.mxu0 0.0
  %430 = vmatprep.subr.mxu0 0.0
  %431 = vmatpush2.msra.mxu0 0.0
  %432 = vmatprep.subr.mxu0 0.0
  %433 = vmatpush2.msra.mxu0 0.0
  %434 = vmatprep.subr.mxu0 0.0
  %435 = vmatpush2.msra.mxu0 0.0
  %436 = vmatprep.subr.mxu0 0.0
  %437 = vmatpush2.msra.mxu0 0.0
  %438 = vmatprep.subr.mxu0 0.0
  %439 = vmatpush2.msra.mxu0 0.0
  %440 = vmatprep.subr.mxu0 0.0
  %441 = vmatpush2.msra.mxu0 0.0
  %442 = vmatprep.subr.mxu0 0.0
  %443 = vmatpush2.msra.mxu0 0.0
  %444 = vmatprep.subr.mxu0 0.0
  %445 = vmatpush2.msra.mxu0 0.0
  %446 = vmatprep.subr.mxu0 0.0
  %447 = vmatpush2.msra.mxu0 0.0
  %448 = vmatprep.subr.mxu0 0.0
  %449 = vmatpush2.msra.mxu0 0.0
  %450 = vmatprep.subr.mxu0 0.0
  %451 = vmatpush2.msra.mxu0 0.0
  %452 = vmatprep.subr.mxu0 0.0
  %453 = vmatpush2.msra.mxu0 0.0
  %454 = vmatprep.subr.mxu0 0.0
  %455 = vmatpush2.msra.mxu0 0.0
  %456 = vmatprep.subr.mxu0 0.0
  %457 = vmatpush2.msra.mxu0 0.0
  %458 = vmatprep.mubr.f32.mxu0 0.0
  %459 = vmatmul.mubr.f32.gmra.mxu0 %v108
  %v460 = vpop.f32.mrf.mxu0
  %v461 = vadd.f32 0.0, %v460
  %v462 = vpop.f32.mrf.mxu0
  %463 = vdwg.mxu0
  %464 = vrot.lane.b32.xlu0 %v45, 33
  %v465 = vpop.permute.xlu0 %464
  %466 = vrot.lane.b32.xlu0 %v46, 33
  %v467 = vpop.permute.xlu0 %466
  %468 = vrot.lane.b32.xlu0 %v47, 33
  %v469 = vpop.permute.xlu0 %468
  %470 = vrot.lane.b32.xlu0 %v48, 33
  %v471 = vpop.permute.xlu0 %470
  %472 = vrot.lane.b32.xlu0 %v49, 33
  %v473 = vpop.permute.xlu0 %472
  %474 = vrot.lane.b32.xlu0 %v50, 33
  %v475 = vpop.permute.xlu0 %474
  %476 = vrot.lane.b32.xlu0 %v51, 33
  %v477 = vpop.permute.xlu0 %476
  %478 = vrot.lane.b32.xlu0 %v52, 33
  %v479 = vpop.permute.xlu0 %478
  %480 = vrot.lane.b32.xlu0 %v53, 33
  %v481 = vpop.permute.xlu0 %480
  %482 = vrot.lane.b32.xlu0 %v54, 33
  %v483 = vpop.permute.xlu0 %482
  %vm484 = vcmask 269312
  %v485 = vsel %vm484, %v465, %v467
  %v486 = vsel %vm484, %v467, %v469
  %v487 = vsel %vm484, %v469, %v471
  %v488 = vsel %vm484, %v471, %v473
  %v489 = vsel %vm484, %v473, %v475
  %v490 = vsel %vm484, %v475, %v477
  %v491 = vsel %vm484, %v477, %v479
  %v492 = vsel %vm484, %v479, %v481
  %v493 = vsel %vm484, %v481, %v483
  %v504 = vsel %vm106, %v44, 0
  %506 = vmatprep.subr.mxu0 0.0
  %507 = vmatpush1.msra.mxu0 0.0
  %508 = vmatprep.subr.mxu0 0.0
  %509 = vmatpush1.msra.mxu0 0.0
  %510 = vmatprep.subr.mxu0 0.0
  %511 = vmatpush1.msra.mxu0 0.0
  %512 = vmatprep.subr.mxu0 0.0
  %513 = vmatpush1.msra.mxu0 0.0
  %514 = vmatprep.subr.mxu0 0.0
  %515 = vmatpush1.msra.mxu0 0.0
  %516 = vmatprep.subr.mxu0 0.0
  %517 = vmatpush1.msra.mxu0 0.0
  %518 = vmatprep.subr.mxu0 0.0
  %519 = vmatpush1.msra.mxu0 0.0
  %520 = vmatprep.subr.mxu0 0.0
  %521 = vmatpush1.msra.mxu0 0.0
  %522 = vmatprep.subr.mxu0 0.0
  %523 = vmatpush1.msra.mxu0 0.0
  %524 = vmatprep.subr.mxu0 0.0
  %525 = vmatpush1.msra.mxu0 0.0
  %526 = vmatprep.subr.mxu0 0.0
  %527 = vmatpush1.msra.mxu0 0.0
  %528 = vmatprep.subr.mxu0 0.0
  %529 = vmatpush1.msra.mxu0 0.0
  %530 = vmatprep.subr.mxu0 0.0
  %531 = vmatpush1.msra.mxu0 0.0
  %532 = vmatprep.subr.mxu0 0.0
  %533 = vmatpush1.msra.mxu0 0.0
  %534 = vmatprep.subr.mxu0 0.0
  %535 = vmatpush1.msra.mxu0 0.0
  %536 = vmatprep.subr.mxu0 %v486
  %537 = vmatpush1.msra.mxu0 %v485
  %538 = vmatprep.subr.mxu0 0.0
  %539 = vmatpush2.msra.mxu0 0.0
  %540 = vmatprep.subr.mxu0 0.0
  %541 = vmatpush2.msra.mxu0 0.0
  %542 = vmatprep.subr.mxu0 0.0
  %543 = vmatpush2.msra.mxu0 0.0
  %544 = vmatprep.subr.mxu0 0.0
  %545 = vmatpush2.msra.mxu0 0.0
  %546 = vmatprep.subr.mxu0 0.0
  %547 = vmatpush2.msra.mxu0 0.0
  %548 = vmatprep.subr.mxu0 0.0
  %549 = vmatpush2.msra.mxu0 0.0
  %550 = vmatprep.subr.mxu0 0.0
  %551 = vmatpush2.msra.mxu0 0.0
  %552 = vmatprep.subr.mxu0 0.0
  %553 = vmatpush2.msra.mxu0 0.0
  %554 = vmatprep.subr.mxu0 0.0
  %555 = vmatpush2.msra.mxu0 0.0
  %556 = vmatprep.subr.mxu0 0.0
  %557 = vmatpush2.msra.mxu0 0.0
  %558 = vmatprep.subr.mxu0 0.0
  %559 = vmatpush2.msra.mxu0 0.0
  %560 = vmatprep.subr.mxu0 0.0
  %561 = vmatpush2.msra.mxu0 0.0
  %562 = vmatprep.subr.mxu0 0.0
  %563 = vmatpush2.msra.mxu0 0.0
  %564 = vmatprep.subr.mxu0 0.0
  %565 = vmatpush2.msra.mxu0 0.0
  %566 = vmatprep.subr.mxu0 0.0
  %567 = vmatpush2.msra.mxu0 0.0
  %568 = vmatprep.subr.mxu0 0.0
  %569 = vmatpush2.msra.mxu0 0.0
  %570 = vmatprep.mubr.f32.mxu0 0.0
  %571 = vmatmul.mubr.f32.gmra.mxu0 %v504
  %v572 = vpop.f32.mrf.mxu0
  %v573 = vadd.f32 %v177, %v572
  %v574 = vpop.f32.mrf.mxu0
  %v575 = vadd.f32 %v179, %v574
  %576 = vdwg.mxu0
  %577 = vmatprep.subr.mxu0 0.0
  %578 = vmatpush1.msra.mxu0 0.0
  %579 = vmatprep.subr.mxu0 0.0
  %580 = vmatpush1.msra.mxu0 0.0
  %581 = vmatprep.subr.mxu0 0.0
  %582 = vmatpush1.msra.mxu0 0.0
  %583 = vmatprep.subr.mxu0 0.0
  %584 = vmatpush1.msra.mxu0 0.0
  %585 = vmatprep.subr.mxu0 0.0
  %586 = vmatpush1.msra.mxu0 0.0
  %587 = vmatprep.subr.mxu0 0.0
  %588 = vmatpush1.msra.mxu0 0.0
  %589 = vmatprep.subr.mxu0 0.0
  %590 = vmatpush1.msra.mxu0 0.0
  %591 = vmatprep.subr.mxu0 0.0
  %592 = vmatpush1.msra.mxu0 0.0
  %593 = vmatprep.subr.mxu0 0.0
  %594 = vmatpush1.msra.mxu0 0.0
  %595 = vmatprep.subr.mxu0 0.0
  %596 = vmatpush1.msra.mxu0 0.0
  %597 = vmatprep.subr.mxu0 0.0
  %598 = vmatpush1.msra.mxu0 0.0
  %599 = vmatprep.subr.mxu0 0.0
  %600 = vmatpush1.msra.mxu0 0.0
  %601 = vmatprep.subr.mxu0 0.0
  %602 = vmatpush1.msra.mxu0 0.0
  %603 = vmatprep.subr.mxu0 0.0
  %604 = vmatpush1.msra.mxu0 0.0
  %605 = vmatprep.subr.mxu0 0.0
  %606 = vmatpush1.msra.mxu0 0.0
  %607 = vmatprep.subr.mxu0 %v488
  %608 = vmatpush1.msra.mxu0 %v487
  %609 = vmatprep.subr.mxu0 0.0
  %610 = vmatpush2.msra.mxu0 0.0
  %611 = vmatprep.subr.mxu0 0.0
  %612 = vmatpush2.msra.mxu0 0.0
  %613 = vmatprep.subr.mxu0 0.0
  %614 = vmatpush2.msra.mxu0 0.0
  %615 = vmatprep.subr.mxu0 0.0
  %616 = vmatpush2.msra.mxu0 0.0
  %617 = vmatprep.subr.mxu0 0.0
  %618 = vmatpush2.msra.mxu0 0.0
  %619 = vmatprep.subr.mxu0 0.0
  %620 = vmatpush2.msra.mxu0 0.0
  %621 = vmatprep.subr.mxu0 0.0
  %622 = vmatpush2.msra.mxu0 0.0
  %623 = vmatprep.subr.mxu0 0.0
  %624 = vmatpush2.msra.mxu0 0.0
  %625 = vmatprep.subr.mxu0 0.0
  %626 = vmatpush2.msra.mxu0 0.0
  %627 = vmatprep.subr.mxu0 0.0
  %628 = vmatpush2.msra.mxu0 0.0
  %629 = vmatprep.subr.mxu0 0.0
  %630 = vmatpush2.msra.mxu0 0.0
  %631 = vmatprep.subr.mxu0 0.0
  %632 = vmatpush2.msra.mxu0 0.0
  %633 = vmatprep.subr.mxu0 0.0
  %634 = vmatpush2.msra.mxu0 0.0
  %635 = vmatprep.subr.mxu0 0.0
  %636 = vmatpush2.msra.mxu0 0.0
  %637 = vmatprep.subr.mxu0 0.0
  %638 = vmatpush2.msra.mxu0 0.0
  %639 = vmatprep.subr.mxu0 0.0
  %640 = vmatpush2.msra.mxu0 0.0
  %641 = vmatprep.mubr.f32.mxu0 0.0
  %642 = vmatmul.mubr.f32.gmra.mxu0 %v504
  %v643 = vpop.f32.mrf.mxu0
  %v644 = vadd.f32 %v248, %v643
  %v645 = vpop.f32.mrf.mxu0
  %v646 = vadd.f32 %v250, %v645
  %647 = vdwg.mxu0
  %648 = vmatprep.subr.mxu0 0.0
  %649 = vmatpush1.msra.mxu0 0.0
  %650 = vmatprep.subr.mxu0 0.0
  %651 = vmatpush1.msra.mxu0 0.0
  %652 = vmatprep.subr.mxu0 0.0
  %653 = vmatpush1.msra.mxu0 0.0
  %654 = vmatprep.subr.mxu0 0.0
  %655 = vmatpush1.msra.mxu0 0.0
  %656 = vmatprep.subr.mxu0 0.0
  %657 = vmatpush1.msra.mxu0 0.0
  %658 = vmatprep.subr.mxu0 0.0
  %659 = vmatpush1.msra.mxu0 0.0
  %660 = vmatprep.subr.mxu0 0.0
  %661 = vmatpush1.msra.mxu0 0.0
  %662 = vmatprep.subr.mxu0 0.0
  %663 = vmatpush1.msra.mxu0 0.0
  %664 = vmatprep.subr.mxu0 0.0
  %665 = vmatpush1.msra.mxu0 0.0
  %666 = vmatprep.subr.mxu0 0.0
  %667 = vmatpush1.msra.mxu0 0.0
  %668 = vmatprep.subr.mxu0 0.0
  %669 = vmatpush1.msra.mxu0 0.0
  %670 = vmatprep.subr.mxu0 0.0
  %671 = vmatpush1.msra.mxu0 0.0
  %672 = vmatprep.subr.mxu0 0.0
  %673 = vmatpush1.msra.mxu0 0.0
  %674 = vmatprep.subr.mxu0 0.0
  %675 = vmatpush1.msra.mxu0 0.0
  %676 = vmatprep.subr.mxu0 0.0
  %677 = vmatpush1.msra.mxu0 0.0
  %678 = vmatprep.subr.mxu0 %v490
  %679 = vmatpush1.msra.mxu0 %v489
  %680 = vmatprep.subr.mxu0 0.0
  %681 = vmatpush2.msra.mxu0 0.0
  %682 = vmatprep.subr.mxu0 0.0
  %683 = vmatpush2.msra.mxu0 0.0
  %684 = vmatprep.subr.mxu0 0.0
  %685 = vmatpush2.msra.mxu0 0.0
  %686 = vmatprep.subr.mxu0 0.0
  %687 = vmatpush2.msra.mxu0 0.0
  %688 = vmatprep.subr.mxu0 0.0
  %689 = vmatpush2.msra.mxu0 0.0
  %690 = vmatprep.subr.mxu0 0.0
  %691 = vmatpush2.msra.mxu0 0.0
  %692 = vmatprep.subr.mxu0 0.0
  %693 = vmatpush2.msra.mxu0 0.0
  %694 = vmatprep.subr.mxu0 0.0
  %695 = vmatpush2.msra.mxu0 0.0
  %696 = vmatprep.subr.mxu0 0.0
  %697 = vmatpush2.msra.mxu0 0.0
  %698 = vmatprep.subr.mxu0 0.0
  %699 = vmatpush2.msra.mxu0 0.0
  %700 = vmatprep.subr.mxu0 0.0
  %701 = vmatpush2.msra.mxu0 0.0
  %702 = vmatprep.subr.mxu0 0.0
  %703 = vmatpush2.msra.mxu0 0.0
  %704 = vmatprep.subr.mxu0 0.0
  %705 = vmatpush2.msra.mxu0 0.0
  %706 = vmatprep.subr.mxu0 0.0
  %707 = vmatpush2.msra.mxu0 0.0
  %708 = vmatprep.subr.mxu0 0.0
  %709 = vmatpush2.msra.mxu0 0.0
  %710 = vmatprep.subr.mxu0 0.0
  %711 = vmatpush2.msra.mxu0 0.0
  %712 = vmatprep.mubr.f32.mxu0 0.0
  %713 = vmatmul.mubr.f32.gmra.mxu0 %v504
  %v714 = vpop.f32.mrf.mxu0
  %v715 = vadd.f32 %v319, %v714
  %v716 = vpop.f32.mrf.mxu0
  %v717 = vadd.f32 %v321, %v716
  %718 = vdwg.mxu0
  %719 = vmatprep.subr.mxu0 0.0
  %720 = vmatpush1.msra.mxu0 0.0
  %721 = vmatprep.subr.mxu0 0.0
  %722 = vmatpush1.msra.mxu0 0.0
  %723 = vmatprep.subr.mxu0 0.0
  %724 = vmatpush1.msra.mxu0 0.0
  %725 = vmatprep.subr.mxu0 0.0
  %726 = vmatpush1.msra.mxu0 0.0
  %727 = vmatprep.subr.mxu0 0.0
  %728 = vmatpush1.msra.mxu0 0.0
  %729 = vmatprep.subr.mxu0 0.0
  %730 = vmatpush1.msra.mxu0 0.0
  %731 = vmatprep.subr.mxu0 0.0
  %732 = vmatpush1.msra.mxu0 0.0
  %733 = vmatprep.subr.mxu0 0.0
  %734 = vmatpush1.msra.mxu0 0.0
  %735 = vmatprep.subr.mxu0 0.0
  %736 = vmatpush1.msra.mxu0 0.0
  %737 = vmatprep.subr.mxu0 0.0
  %738 = vmatpush1.msra.mxu0 0.0
  %739 = vmatprep.subr.mxu0 0.0
  %740 = vmatpush1.msra.mxu0 0.0
  %741 = vmatprep.subr.mxu0 0.0
  %742 = vmatpush1.msra.mxu0 0.0
  %743 = vmatprep.subr.mxu0 0.0
  %744 = vmatpush1.msra.mxu0 0.0
  %745 = vmatprep.subr.mxu0 0.0
  %746 = vmatpush1.msra.mxu0 0.0
  %747 = vmatprep.subr.mxu0 0.0
  %748 = vmatpush1.msra.mxu0 0.0
  %749 = vmatprep.subr.mxu0 %v492
  %750 = vmatpush1.msra.mxu0 %v491
  %751 = vmatprep.subr.mxu0 0.0
  %752 = vmatpush2.msra.mxu0 0.0
  %753 = vmatprep.subr.mxu0 0.0
  %754 = vmatpush2.msra.mxu0 0.0
  %755 = vmatprep.subr.mxu0 0.0
  %756 = vmatpush2.msra.mxu0 0.0
  %757 = vmatprep.subr.mxu0 0.0
  %758 = vmatpush2.msra.mxu0 0.0
  %759 = vmatprep.subr.mxu0 0.0
  %760 = vmatpush2.msra.mxu0 0.0
  %761 = vmatprep.subr.mxu0 0.0
  %762 = vmatpush2.msra.mxu0 0.0
  %763 = vmatprep.subr.mxu0 0.0
  %764 = vmatpush2.msra.mxu0 0.0
  %765 = vmatprep.subr.mxu0 0.0
  %766 = vmatpush2.msra.mxu0 0.0
  %767 = vmatprep.subr.mxu0 0.0
  %768 = vmatpush2.msra.mxu0 0.0
  %769 = vmatprep.subr.mxu0 0.0
  %770 = vmatpush2.msra.mxu0 0.0
  %771 = vmatprep.subr.mxu0 0.0
  %772 = vmatpush2.msra.mxu0 0.0
  %773 = vmatprep.subr.mxu0 0.0
  %774 = vmatpush2.msra.mxu0 0.0
  %775 = vmatprep.subr.mxu0 0.0
  %776 = vmatpush2.msra.mxu0 0.0
  %777 = vmatprep.subr.mxu0 0.0
  %778 = vmatpush2.msra.mxu0 0.0
  %779 = vmatprep.subr.mxu0 0.0
  %780 = vmatpush2.msra.mxu0 0.0
  %781 = vmatprep.subr.mxu0 0.0
  %782 = vmatpush2.msra.mxu0 0.0
  %783 = vmatprep.mubr.f32.mxu0 0.0
  %784 = vmatmul.mubr.f32.gmra.mxu0 %v504
  %v785 = vpop.f32.mrf.mxu0
  %v786 = vadd.f32 %v390, %v785
  %v787 = vpop.f32.mrf.mxu0
  %v788 = vadd.f32 %v392, %v787
  %789 = vdwg.mxu0
  %790 = vmatprep.subr.mxu0 0.0
  %791 = vmatpush1.msra.mxu0 0.0
  %792 = vmatprep.subr.mxu0 0.0
  %793 = vmatpush1.msra.mxu0 0.0
  %794 = vmatprep.subr.mxu0 0.0
  %795 = vmatpush1.msra.mxu0 0.0
  %796 = vmatprep.subr.mxu0 0.0
  %797 = vmatpush1.msra.mxu0 0.0
  %798 = vmatprep.subr.mxu0 0.0
  %799 = vmatpush1.msra.mxu0 0.0
  %800 = vmatprep.subr.mxu0 0.0
  %801 = vmatpush1.msra.mxu0 0.0
  %802 = vmatprep.subr.mxu0 0.0
  %803 = vmatpush1.msra.mxu0 0.0
  %804 = vmatprep.subr.mxu0 0.0
  %805 = vmatpush1.msra.mxu0 0.0
  %806 = vmatprep.subr.mxu0 0.0
  %807 = vmatpush1.msra.mxu0 0.0
  %808 = vmatprep.subr.mxu0 0.0
  %809 = vmatpush1.msra.mxu0 0.0
  %810 = vmatprep.subr.mxu0 0.0
  %811 = vmatpush1.msra.mxu0 0.0
  %812 = vmatprep.subr.mxu0 0.0
  %813 = vmatpush1.msra.mxu0 0.0
  %814 = vmatprep.subr.mxu0 0.0
  %815 = vmatpush1.msra.mxu0 0.0
  %816 = vmatprep.subr.mxu0 0.0
  %817 = vmatpush1.msra.mxu0 0.0
  %818 = vmatprep.subr.mxu0 0.0
  %819 = vmatpush1.msra.mxu0 0.0
  %820 = vmatprep.subr.mxu0 0.0
  %821 = vmatpush1.msra.mxu0 %v493
  %822 = vmatprep.subr.mxu0 0.0
  %823 = vmatpush2.msra.mxu0 0.0
  %824 = vmatprep.subr.mxu0 0.0
  %825 = vmatpush2.msra.mxu0 0.0
  %826 = vmatprep.subr.mxu0 0.0
  %827 = vmatpush2.msra.mxu0 0.0
  %828 = vmatprep.subr.mxu0 0.0
  %829 = vmatpush2.msra.mxu0 0.0
  %830 = vmatprep.subr.mxu0 0.0
  %831 = vmatpush2.msra.mxu0 0.0
  %832 = vmatprep.subr.mxu0 0.0
  %833 = vmatpush2.msra.mxu0 0.0
  %834 = vmatprep.subr.mxu0 0.0
  %835 = vmatpush2.msra.mxu0 0.0
  %836 = vmatprep.subr.mxu0 0.0
  %837 = vmatpush2.msra.mxu0 0.0
  %838 = vmatprep.subr.mxu0 0.0
  %839 = vmatpush2.msra.mxu0 0.0
  %840 = vmatprep.subr.mxu0 0.0
  %841 = vmatpush2.msra.mxu0 0.0
  %842 = vmatprep.subr.mxu0 0.0
  %843 = vmatpush2.msra.mxu0 0.0
  %844 = vmatprep.subr.mxu0 0.0
  %845 = vmatpush2.msra.mxu0 0.0
  %846 = vmatprep.subr.mxu0 0.0
  %847 = vmatpush2.msra.mxu0 0.0
  %848 = vmatprep.subr.mxu0 0.0
  %849 = vmatpush2.msra.mxu0 0.0
  %850 = vmatprep.subr.mxu0 0.0
  %851 = vmatpush2.msra.mxu0 0.0
  %852 = vmatprep.subr.mxu0 0.0
  %853 = vmatpush2.msra.mxu0 0.0
  %854 = vmatprep.mubr.f32.mxu0 0.0
  %855 = vmatmul.mubr.f32.gmra.mxu0 %v504
  %v856 = vpop.f32.mrf.mxu0
  %v857 = vadd.f32 %v461, %v856
  %v858 = vpop.f32.mrf.mxu0
  %859 = vdwg.mxu0
  %s860 = scalar_lea.vmem %s2, 16
  %v861 = vld [vmem:[%s860] sm:$0xff]
  %862 = vrot.lane.b32.xlu0 %v45, 31
  %v863 = vpop.permute.xlu0 %862
  %864 = vrot.lane.b32.xlu0 %v46, 31
  %v865 = vpop.permute.xlu0 %864
  %866 = vrot.lane.b32.xlu0 %v47, 31
  %v867 = vpop.permute.xlu0 %866
  %868 = vrot.lane.b32.xlu0 %v48, 31
  %v869 = vpop.permute.xlu0 %868
  %870 = vrot.lane.b32.xlu0 %v49, 31
  %v871 = vpop.permute.xlu0 %870
  %872 = vrot.lane.b32.xlu0 %v50, 31
  %v873 = vpop.permute.xlu0 %872
  %874 = vrot.lane.b32.xlu0 %v51, 31
  %v875 = vpop.permute.xlu0 %874
  %876 = vrot.lane.b32.xlu0 %v52, 31
  %v877 = vpop.permute.xlu0 %876
  %878 = vrot.lane.b32.xlu0 %v53, 31
  %v879 = vpop.permute.xlu0 %878
  %880 = vrot.lane.b32.xlu0 %v54, 31
  %v881 = vpop.permute.xlu0 %880
  %vm882 = vcmask 252928
  %v883 = vsel %vm882, %v863, %v865
  %v884 = vsel %vm882, %v865, %v867
  %v885 = vsel %vm882, %v867, %v869
  %v886 = vsel %vm882, %v869, %v871
  %v887 = vsel %vm882, %v871, %v873
  %v888 = vsel %vm882, %v873, %v875
  %v889 = vsel %vm882, %v875, %v877
  %v890 = vsel %vm882, %v877, %v879
  %v891 = vsel %vm882, %v879, %v881
  %v902 = vsel %vm106, %v861, 0
  %904 = vmatprep.subr.mxu0 0.0
  %905 = vmatpush1.msra.mxu0 0.0
  %906 = vmatprep.subr.mxu0 0.0
  %907 = vmatpush1.msra.mxu0 0.0
  %908 = vmatprep.subr.mxu0 0.0
  %909 = vmatpush1.msra.mxu0 0.0
  %910 = vmatprep.subr.mxu0 0.0
  %911 = vmatpush1.msra.mxu0 0.0
  %912 = vmatprep.subr.mxu0 0.0
  %913 = vmatpush1.msra.mxu0 0.0
  %914 = vmatprep.subr.mxu0 0.0
  %915 = vmatpush1.msra.mxu0 0.0
  %916 = vmatprep.subr.mxu0 0.0
  %917 = vmatpush1.msra.mxu0 0.0
  %918 = vmatprep.subr.mxu0 0.0
  %919 = vmatpush1.msra.mxu0 0.0
  %920 = vmatprep.subr.mxu0 0.0
  %921 = vmatpush1.msra.mxu0 0.0
  %922 = vmatprep.subr.mxu0 0.0
  %923 = vmatpush1.msra.mxu0 0.0
  %924 = vmatprep.subr.mxu0 0.0
  %925 = vmatpush1.msra.mxu0 0.0
  %926 = vmatprep.subr.mxu0 0.0
  %927 = vmatpush1.msra.mxu0 0.0
  %928 = vmatprep.subr.mxu0 0.0
  %929 = vmatpush1.msra.mxu0 0.0
  %930 = vmatprep.subr.mxu0 0.0
  %931 = vmatpush1.msra.mxu0 0.0
  %932 = vmatprep.subr.mxu0 0.0
  %933 = vmatpush1.msra.mxu0 0.0
  %934 = vmatprep.subr.mxu0 %v884
  %935 = vmatpush1.msra.mxu0 %v883
  %936 = vmatprep.subr.mxu0 0.0
  %937 = vmatpush2.msra.mxu0 0.0
  %938 = vmatprep.subr.mxu0 0.0
  %939 = vmatpush2.msra.mxu0 0.0
  %940 = vmatprep.subr.mxu0 0.0
  %941 = vmatpush2.msra.mxu0 0.0
  %942 = vmatprep.subr.mxu0 0.0
  %943 = vmatpush2.msra.mxu0 0.0
  %944 = vmatprep.subr.mxu0 0.0
  %945 = vmatpush2.msra.mxu0 0.0
  %946 = vmatprep.subr.mxu0 0.0
  %947 = vmatpush2.msra.mxu0 0.0
  %948 = vmatprep.subr.mxu0 0.0
  %949 = vmatpush2.msra.mxu0 0.0
  %950 = vmatprep.subr.mxu0 0.0
  %951 = vmatpush2.msra.mxu0 0.0
  %952 = vmatprep.subr.mxu0 0.0
  %953 = vmatpush2.msra.mxu0 0.0
  %954 = vmatprep.subr.mxu0 0.0
  %955 = vmatpush2.msra.mxu0 0.0
  %956 = vmatprep.subr.mxu0 0.0
  %957 = vmatpush2.msra.mxu0 0.0
  %958 = vmatprep.subr.mxu0 0.0
  %959 = vmatpush2.msra.mxu0 0.0
  %960 = vmatprep.subr.mxu0 0.0
  %961 = vmatpush2.msra.mxu0 0.0
  %962 = vmatprep.subr.mxu0 0.0
  %963 = vmatpush2.msra.mxu0 0.0
  %964 = vmatprep.subr.mxu0 0.0
  %965 = vmatpush2.msra.mxu0 0.0
  %966 = vmatprep.subr.mxu0 0.0
  %967 = vmatpush2.msra.mxu0 0.0
  %968 = vmatprep.mubr.f32.mxu0 0.0
  %969 = vmatmul.mubr.f32.gmra.mxu0 %v902
  %v970 = vpop.f32.mrf.mxu0
  %v971 = vadd.f32 0.0, %v970
  %v972 = vpop.f32.mrf.mxu0
  %v973 = vadd.f32 0.0, %v972
  %974 = vdwg.mxu0
  %975 = vmatprep.subr.mxu0 0.0
  %976 = vmatpush1.msra.mxu0 0.0
  %977 = vmatprep.subr.mxu0 0.0
  %978 = vmatpush1.msra.mxu0 0.0
  %979 = vmatprep.subr.mxu0 0.0
  %980 = vmatpush1.msra.mxu0 0.0
  %981 = vmatprep.subr.mxu0 0.0
  %982 = vmatpush1.msra.mxu0 0.0
  %983 = vmatprep.subr.mxu0 0.0
  %984 = vmatpush1.msra.mxu0 0.0
  %985 = vmatprep.subr.mxu0 0.0
  %986 = vmatpush1.msra.mxu0 0.0
  %987 = vmatprep.subr.mxu0 0.0
  %988 = vmatpush1.msra.mxu0 0.0
  %989 = vmatprep.subr.mxu0 0.0
  %990 = vmatpush1.msra.mxu0 0.0
  %991 = vmatprep.subr.mxu0 0.0
  %992 = vmatpush1.msra.mxu0 0.0
  %993 = vmatprep.subr.mxu0 0.0
  %994 = vmatpush1.msra.mxu0 0.0
  %995 = vmatprep.subr.mxu0 0.0
  %996 = vmatpush1.msra.mxu0 0.0
  %997 = vmatprep.subr.mxu0 0.0
  %998 = vmatpush1.msra.mxu0 0.0
  %999 = vmatprep.subr.mxu0 0.0
  %1000 = vmatpush1.msra.mxu0 0.0
  %1001 = vmatprep.subr.mxu0 0.0
  %1002 = vmatpush1.msra.mxu0 0.0
  %1003 = vmatprep.subr.mxu0 0.0
  %1004 = vmatpush1.msra.mxu0 0.0
  %1005 = vmatprep.subr.mxu0 %v886
  %1006 = vmatpush1.msra.mxu0 %v885
  %1007 = vmatprep.subr.mxu0 0.0
  %1008 = vmatpush2.msra.mxu0 0.0
  %1009 = vmatprep.subr.mxu0 0.0
  %1010 = vmatpush2.msra.mxu0 0.0
  %1011 = vmatprep.subr.mxu0 0.0
  %1012 = vmatpush2.msra.mxu0 0.0
  %1013 = vmatprep.subr.mxu0 0.0
  %1014 = vmatpush2.msra.mxu0 0.0
  %1015 = vmatprep.subr.mxu0 0.0
  %1016 = vmatpush2.msra.mxu0 0.0
  %1017 = vmatprep.subr.mxu0 0.0
  %1018 = vmatpush2.msra.mxu0 0.0
  %1019 = vmatprep.subr.mxu0 0.0
  %1020 = vmatpush2.msra.mxu0 0.0
  %1021 = vmatprep.subr.mxu0 0.0
  %1022 = vmatpush2.msra.mxu0 0.0
  %1023 = vmatprep.subr.mxu0 0.0
  %1024 = vmatpush2.msra.mxu0 0.0
  %1025 = vmatprep.subr.mxu0 0.0
  %1026 = vmatpush2.msra.mxu0 0.0
  %1027 = vmatprep.subr.mxu0 0.0
  %1028 = vmatpush2.msra.mxu0 0.0
  %1029 = vmatprep.subr.mxu0 0.0
  %1030 = vmatpush2.msra.mxu0 0.0
  %1031 = vmatprep.subr.mxu0 0.0
  %1032 = vmatpush2.msra.mxu0 0.0
  %1033 = vmatprep.subr.mxu0 0.0
  %1034 = vmatpush2.msra.mxu0 0.0
  %1035 = vmatprep.subr.mxu0 0.0
  %1036 = vmatpush2.msra.mxu0 0.0
  %1037 = vmatprep.subr.mxu0 0.0
  %1038 = vmatpush2.msra.mxu0 0.0
  %1039 = vmatprep.mubr.f32.mxu0 0.0
  %1040 = vmatmul.mubr.f32.gmra.mxu0 %v902
  %v1041 = vpop.f32.mrf.mxu0
  %v1042 = vadd.f32 0.0, %v1041
  %v1043 = vpop.f32.mrf.mxu0
  %v1044 = vadd.f32 0.0, %v1043
  %1045 = vdwg.mxu0
  %1046 = vmatprep.subr.mxu0 0.0
  %1047 = vmatpush1.msra.mxu0 0.0
  %1048 = vmatprep.subr.mxu0 0.0
  %1049 = vmatpush1.msra.mxu0 0.0
  %1050 = vmatprep.subr.mxu0 0.0
  %1051 = vmatpush1.msra.mxu0 0.0
  %1052 = vmatprep.subr.mxu0 0.0
  %1053 = vmatpush1.msra.mxu0 0.0
  %1054 = vmatprep.subr.mxu0 0.0
  %1055 = vmatpush1.msra.mxu0 0.0
  %1056 = vmatprep.subr.mxu0 0.0
  %1057 = vmatpush1.msra.mxu0 0.0
  %1058 = vmatprep.subr.mxu0 0.0
  %1059 = vmatpush1.msra.mxu0 0.0
  %1060 = vmatprep.subr.mxu0 0.0
  %1061 = vmatpush1.msra.mxu0 0.0
  %1062 = vmatprep.subr.mxu0 0.0
  %1063 = vmatpush1.msra.mxu0 0.0
  %1064 = vmatprep.subr.mxu0 0.0
  %1065 = vmatpush1.msra.mxu0 0.0
  %1066 = vmatprep.subr.mxu0 0.0
  %1067 = vmatpush1.msra.mxu0 0.0
  %1068 = vmatprep.subr.mxu0 0.0
  %1069 = vmatpush1.msra.mxu0 0.0
  %1070 = vmatprep.subr.mxu0 0.0
  %1071 = vmatpush1.msra.mxu0 0.0
  %1072 = vmatprep.subr.mxu0 0.0
  %1073 = vmatpush1.msra.mxu0 0.0
  %1074 = vmatprep.subr.mxu0 0.0
  %1075 = vmatpush1.msra.mxu0 0.0
  %1076 = vmatprep.subr.mxu0 %v888
  %1077 = vmatpush1.msra.mxu0 %v887
  %1078 = vmatprep.subr.mxu0 0.0
  %1079 = vmatpush2.msra.mxu0 0.0
  %1080 = vmatprep.subr.mxu0 0.0
  %1081 = vmatpush2.msra.mxu0 0.0
  %1082 = vmatprep.subr.mxu0 0.0
  %1083 = vmatpush2.msra.mxu0 0.0
  %1084 = vmatprep.subr.mxu0 0.0
  %1085 = vmatpush2.msra.mxu0 0.0
  %1086 = vmatprep.subr.mxu0 0.0
  %1087 = vmatpush2.msra.mxu0 0.0
  %1088 = vmatprep.subr.mxu0 0.0
  %1089 = vmatpush2.msra.mxu0 0.0
  %1090 = vmatprep.subr.mxu0 0.0
  %1091 = vmatpush2.msra.mxu0 0.0
  %1092 = vmatprep.subr.mxu0 0.0
  %1093 = vmatpush2.msra.mxu0 0.0
  %1094 = vmatprep.subr.mxu0 0.0
  %1095 = vmatpush2.msra.mxu0 0.0
  %1096 = vmatprep.subr.mxu0 0.0
  %1097 = vmatpush2.msra.mxu0 0.0
  %1098 = vmatprep.subr.mxu0 0.0
  %1099 = vmatpush2.msra.mxu0 0.0
  %1100 = vmatprep.subr.mxu0 0.0
  %1101 = vmatpush2.msra.mxu0 0.0
  %1102 = vmatprep.subr.mxu0 0.0
  %1103 = vmatpush2.msra.mxu0 0.0
  %1104 = vmatprep.subr.mxu0 0.0
  %1105 = vmatpush2.msra.mxu0 0.0
  %1106 = vmatprep.subr.mxu0 0.0
  %1107 = vmatpush2.msra.mxu0 0.0
  %1108 = vmatprep.subr.mxu0 0.0
  %1109 = vmatpush2.msra.mxu0 0.0
  %1110 = vmatprep.mubr.f32.mxu0 0.0
  %1111 = vmatmul.mubr.f32.gmra.mxu0 %v902
  %v1112 = vpop.f32.mrf.mxu0
  %v1113 = vadd.f32 0.0, %v1112
  %v1114 = vpop.f32.mrf.mxu0
  %v1115 = vadd.f32 0.0, %v1114
  %1116 = vdwg.mxu0
  %1117 = vmatprep.subr.mxu0 0.0
  %1118 = vmatpush1.msra.mxu0 0.0
  %1119 = vmatprep.subr.mxu0 0.0
  %1120 = vmatpush1.msra.mxu0 0.0
  %1121 = vmatprep.subr.mxu0 0.0
  %1122 = vmatpush1.msra.mxu0 0.0
  %1123 = vmatprep.subr.mxu0 0.0
  %1124 = vmatpush1.msra.mxu0 0.0
  %1125 = vmatprep.subr.mxu0 0.0
  %1126 = vmatpush1.msra.mxu0 0.0
  %1127 = vmatprep.subr.mxu0 0.0
  %1128 = vmatpush1.msra.mxu0 0.0
  %1129 = vmatprep.subr.mxu0 0.0
  %1130 = vmatpush1.msra.mxu0 0.0
  %1131 = vmatprep.subr.mxu0 0.0
  %1132 = vmatpush1.msra.mxu0 0.0
  %1133 = vmatprep.subr.mxu0 0.0
  %1134 = vmatpush1.msra.mxu0 0.0
  %1135 = vmatprep.subr.mxu0 0.0
  %1136 = vmatpush1.msra.mxu0 0.0
  %1137 = vmatprep.subr.mxu0 0.0
  %1138 = vmatpush1.msra.mxu0 0.0
  %1139 = vmatprep.subr.mxu0 0.0
  %1140 = vmatpush1.msra.mxu0 0.0
  %1141 = vmatprep.subr.mxu0 0.0
  %1142 = vmatpush1.msra.mxu0 0.0
  %1143 = vmatprep.subr.mxu0 0.0
  %1144 = vmatpush1.msra.mxu0 0.0
  %1145 = vmatprep.subr.mxu0 0.0
  %1146 = vmatpush1.msra.mxu0 0.0
  %1147 = vmatprep.subr.mxu0 %v890
  %1148 = vmatpush1.msra.mxu0 %v889
  %1149 = vmatprep.subr.mxu0 0.0
  %1150 = vmatpush2.msra.mxu0 0.0
  %1151 = vmatprep.subr.mxu0 0.0
  %1152 = vmatpush2.msra.mxu0 0.0
  %1153 = vmatprep.subr.mxu0 0.0
  %1154 = vmatpush2.msra.mxu0 0.0
  %1155 = vmatprep.subr.mxu0 0.0
  %1156 = vmatpush2.msra.mxu0 0.0
  %1157 = vmatprep.subr.mxu0 0.0
  %1158 = vmatpush2.msra.mxu0 0.0
  %1159 = vmatprep.subr.mxu0 0.0
  %1160 = vmatpush2.msra.mxu0 0.0
  %1161 = vmatprep.subr.mxu0 0.0
  %1162 = vmatpush2.msra.mxu0 0.0
  %1163 = vmatprep.subr.mxu0 0.0
  %1164 = vmatpush2.msra.mxu0 0.0
  %1165 = vmatprep.subr.mxu0 0.0
  %1166 = vmatpush2.msra.mxu0 0.0
  %1167 = vmatprep.subr.mxu0 0.0
  %1168 = vmatpush2.msra.mxu0 0.0
  %1169 = vmatprep.subr.mxu0 0.0
  %1170 = vmatpush2.msra.mxu0 0.0
  %1171 = vmatprep.subr.mxu0 0.0
  %1172 = vmatpush2.msra.mxu0 0.0
  %1173 = vmatprep.subr.mxu0 0.0
  %1174 = vmatpush2.msra.mxu0 0.0
  %1175 = vmatprep.subr.mxu0 0.0
  %1176 = vmatpush2.msra.mxu0 0.0
  %1177 = vmatprep.subr.mxu0 0.0
  %1178 = vmatpush2.msra.mxu0 0.0
  %1179 = vmatprep.subr.mxu0 0.0
  %1180 = vmatpush2.msra.mxu0 0.0
  %1181 = vmatprep.mubr.f32.mxu0 0.0
  %1182 = vmatmul.mubr.f32.gmra.mxu0 %v902
  %v1183 = vpop.f32.mrf.mxu0
  %v1184 = vadd.f32 0.0, %v1183
  %v1185 = vpop.f32.mrf.mxu0
  %v1186 = vadd.f32 0.0, %v1185
  %1187 = vdwg.mxu0
  %1188 = vmatprep.subr.mxu0 0.0
  %1189 = vmatpush1.msra.mxu0 0.0
  %1190 = vmatprep.subr.mxu0 0.0
  %1191 = vmatpush1.msra.mxu0 0.0
  %1192 = vmatprep.subr.mxu0 0.0
  %1193 = vmatpush1.msra.mxu0 0.0
  %1194 = vmatprep.subr.mxu0 0.0
  %1195 = vmatpush1.msra.mxu0 0.0
  %1196 = vmatprep.subr.mxu0 0.0
  %1197 = vmatpush1.msra.mxu0 0.0
  %1198 = vmatprep.subr.mxu0 0.0
  %1199 = vmatpush1.msra.mxu0 0.0
  %1200 = vmatprep.subr.mxu0 0.0
  %1201 = vmatpush1.msra.mxu0 0.0
  %1202 = vmatprep.subr.mxu0 0.0
  %1203 = vmatpush1.msra.mxu0 0.0
  %1204 = vmatprep.subr.mxu0 0.0
  %1205 = vmatpush1.msra.mxu0 0.0
  %1206 = vmatprep.subr.mxu0 0.0
  %1207 = vmatpush1.msra.mxu0 0.0
  %1208 = vmatprep.subr.mxu0 0.0
  %1209 = vmatpush1.msra.mxu0 0.0
  %1210 = vmatprep.subr.mxu0 0.0
  %1211 = vmatpush1.msra.mxu0 0.0
  %1212 = vmatprep.subr.mxu0 0.0
  %1213 = vmatpush1.msra.mxu0 0.0
  %1214 = vmatprep.subr.mxu0 0.0
  %1215 = vmatpush1.msra.mxu0 0.0
  %1216 = vmatprep.subr.mxu0 0.0
  %1217 = vmatpush1.msra.mxu0 0.0
  %1218 = vmatprep.subr.mxu0 0.0
  %1219 = vmatpush1.msra.mxu0 %v891
  %1220 = vmatprep.subr.mxu0 0.0
  %1221 = vmatpush2.msra.mxu0 0.0
  %1222 = vmatprep.subr.mxu0 0.0
  %1223 = vmatpush2.msra.mxu0 0.0
  %1224 = vmatprep.subr.mxu0 0.0
  %1225 = vmatpush2.msra.mxu0 0.0
  %1226 = vmatprep.subr.mxu0 0.0
  %1227 = vmatpush2.msra.mxu0 0.0
  %1228 = vmatprep.subr.mxu0 0.0
  %1229 = vmatpush2.msra.mxu0 0.0
  %1230 = vmatprep.subr.mxu0 0.0
  %1231 = vmatpush2.msra.mxu0 0.0
  %1232 = vmatprep.subr.mxu0 0.0
  %1233 = vmatpush2.msra.mxu0 0.0
  %1234 = vmatprep.subr.mxu0 0.0
  %1235 = vmatpush2.msra.mxu0 0.0
  %1236 = vmatprep.subr.mxu0 0.0
  %1237 = vmatpush2.msra.mxu0 0.0
  %1238 = vmatprep.subr.mxu0 0.0
  %1239 = vmatpush2.msra.mxu0 0.0
  %1240 = vmatprep.subr.mxu0 0.0
  %1241 = vmatpush2.msra.mxu0 0.0
  %1242 = vmatprep.subr.mxu0 0.0
  %1243 = vmatpush2.msra.mxu0 0.0
  %1244 = vmatprep.subr.mxu0 0.0
  %1245 = vmatpush2.msra.mxu0 0.0
  %1246 = vmatprep.subr.mxu0 0.0
  %1247 = vmatpush2.msra.mxu0 0.0
  %1248 = vmatprep.subr.mxu0 0.0
  %1249 = vmatpush2.msra.mxu0 0.0
  %1250 = vmatprep.subr.mxu0 0.0
  %1251 = vmatpush2.msra.mxu0 0.0
  %1252 = vmatprep.mubr.f32.mxu0 0.0
  %1253 = vmatmul.mubr.f32.gmra.mxu0 %v902
  %v1254 = vpop.f32.mrf.mxu0
  %v1255 = vadd.f32 0.0, %v1254
  %v1256 = vpop.f32.mrf.mxu0
  %1257 = vdwg.mxu0
  %v1258 = vadd.f32 %v573, %v971
  %v1259 = vadd.f32 %v575, %v973
  %v1260 = vadd.f32 %v644, %v1042
  %v1261 = vadd.f32 %v646, %v1044
  %v1262 = vadd.f32 %v715, %v1113
  %v1263 = vadd.f32 %v717, %v1115
  %v1264 = vadd.f32 %v786, %v1184
  %v1265 = vadd.f32 %v788, %v1186
  %v1266 = vadd.f32 %v857, %v1255
  %s1267 = scalar_lea.vmem %s2, 24
  %v1268 = vld [vmem:[%s1267] sm:$0xff]
  %1269 = vrot.lane.b32.xlu0 %v45, 1
  %v1270 = vpop.permute.xlu0 %1269
  %1271 = vrot.lane.b32.xlu0 %v46, 1
  %v1272 = vpop.permute.xlu0 %1271
  %1273 = vrot.lane.b32.xlu0 %v47, 1
  %v1274 = vpop.permute.xlu0 %1273
  %1275 = vrot.lane.b32.xlu0 %v48, 1
  %v1276 = vpop.permute.xlu0 %1275
  %1277 = vrot.lane.b32.xlu0 %v49, 1
  %v1278 = vpop.permute.xlu0 %1277
  %1279 = vrot.lane.b32.xlu0 %v50, 1
  %v1280 = vpop.permute.xlu0 %1279
  %1281 = vrot.lane.b32.xlu0 %v51, 1
  %v1282 = vpop.permute.xlu0 %1281
  %1283 = vrot.lane.b32.xlu0 %v52, 1
  %v1284 = vpop.permute.xlu0 %1283
  %1285 = vrot.lane.b32.xlu0 %v53, 1
  %v1286 = vpop.permute.xlu0 %1285
  %1287 = vrot.lane.b32.xlu0 %v54, 1
  %v1288 = vpop.permute.xlu0 %1287
  %vm1289 = vcmask 7168
  %v1290 = vsel %vm1289, %v1270, %v1272
  %v1291 = vsel %vm1289, %v1272, %v1274
  %v1292 = vsel %vm1289, %v1274, %v1276
  %v1293 = vsel %vm1289, %v1276, %v1278
  %v1294 = vsel %vm1289, %v1278, %v1280
  %v1295 = vsel %vm1289, %v1280, %v1282
  %v1296 = vsel %vm1289, %v1282, %v1284
  %v1297 = vsel %vm1289, %v1284, %v1286
  %v1298 = vsel %vm1289, %v1286, %v1288
  %v1309 = vsel %vm106, %v1268, 0
  %1311 = vmatprep.subr.mxu0 0.0
  %1312 = vmatpush1.msra.mxu0 0.0
  %1313 = vmatprep.subr.mxu0 0.0
  %1314 = vmatpush1.msra.mxu0 0.0
  %1315 = vmatprep.subr.mxu0 0.0
  %1316 = vmatpush1.msra.mxu0 0.0
  %1317 = vmatprep.subr.mxu0 0.0
  %1318 = vmatpush1.msra.mxu0 0.0
  %1319 = vmatprep.subr.mxu0 0.0
  %1320 = vmatpush1.msra.mxu0 0.0
  %1321 = vmatprep.subr.mxu0 0.0
  %1322 = vmatpush1.msra.mxu0 0.0
  %1323 = vmatprep.subr.mxu0 0.0
  %1324 = vmatpush1.msra.mxu0 0.0
  %1325 = vmatprep.subr.mxu0 0.0
  %1326 = vmatpush1.msra.mxu0 0.0
  %1327 = vmatprep.subr.mxu0 0.0
  %1328 = vmatpush1.msra.mxu0 0.0
  %1329 = vmatprep.subr.mxu0 0.0
  %1330 = vmatpush1.msra.mxu0 0.0
  %1331 = vmatprep.subr.mxu0 0.0
  %1332 = vmatpush1.msra.mxu0 0.0
  %1333 = vmatprep.subr.mxu0 0.0
  %1334 = vmatpush1.msra.mxu0 0.0
  %1335 = vmatprep.subr.mxu0 0.0
  %1336 = vmatpush1.msra.mxu0 0.0
  %1337 = vmatprep.subr.mxu0 0.0
  %1338 = vmatpush1.msra.mxu0 0.0
  %1339 = vmatprep.subr.mxu0 0.0
  %1340 = vmatpush1.msra.mxu0 0.0
  %1341 = vmatprep.subr.mxu0 %v1291
  %1342 = vmatpush1.msra.mxu0 %v1290
  %1343 = vmatprep.subr.mxu0 0.0
  %1344 = vmatpush2.msra.mxu0 0.0
  %1345 = vmatprep.subr.mxu0 0.0
  %1346 = vmatpush2.msra.mxu0 0.0
  %1347 = vmatprep.subr.mxu0 0.0
  %1348 = vmatpush2.msra.mxu0 0.0
  %1349 = vmatprep.subr.mxu0 0.0
  %1350 = vmatpush2.msra.mxu0 0.0
  %1351 = vmatprep.subr.mxu0 0.0
  %1352 = vmatpush2.msra.mxu0 0.0
  %1353 = vmatprep.subr.mxu0 0.0
  %1354 = vmatpush2.msra.mxu0 0.0
  %1355 = vmatprep.subr.mxu0 0.0
  %1356 = vmatpush2.msra.mxu0 0.0
  %1357 = vmatprep.subr.mxu0 0.0
  %1358 = vmatpush2.msra.mxu0 0.0
  %1359 = vmatprep.subr.mxu0 0.0
  %1360 = vmatpush2.msra.mxu0 0.0
  %1361 = vmatprep.subr.mxu0 0.0
  %1362 = vmatpush2.msra.mxu0 0.0
  %1363 = vmatprep.subr.mxu0 0.0
  %1364 = vmatpush2.msra.mxu0 0.0
  %1365 = vmatprep.subr.mxu0 0.0
  %1366 = vmatpush2.msra.mxu0 0.0
  %1367 = vmatprep.subr.mxu0 0.0
  %1368 = vmatpush2.msra.mxu0 0.0
  %1369 = vmatprep.subr.mxu0 0.0
  %1370 = vmatpush2.msra.mxu0 0.0
  %1371 = vmatprep.subr.mxu0 0.0
  %1372 = vmatpush2.msra.mxu0 0.0
  %1373 = vmatprep.subr.mxu0 0.0
  %1374 = vmatpush2.msra.mxu0 0.0
  %1375 = vmatprep.mubr.f32.mxu0 0.0
  %1376 = vmatmul.mubr.f32.gmra.mxu0 %v1309
  %v1377 = vpop.f32.mrf.mxu0
  %v1378 = vadd.f32 0.0, %v1377
  %v1379 = vpop.f32.mrf.mxu0
  %v1380 = vadd.f32 0.0, %v1379
  %1381 = vdwg.mxu0
  %1382 = vmatprep.subr.mxu0 0.0
  %1383 = vmatpush1.msra.mxu0 0.0
  %1384 = vmatprep.subr.mxu0 0.0
  %1385 = vmatpush1.msra.mxu0 0.0
  %1386 = vmatprep.subr.mxu0 0.0
  %1387 = vmatpush1.msra.mxu0 0.0
  %1388 = vmatprep.subr.mxu0 0.0
  %1389 = vmatpush1.msra.mxu0 0.0
  %1390 = vmatprep.subr.mxu0 0.0
  %1391 = vmatpush1.msra.mxu0 0.0
  %1392 = vmatprep.subr.mxu0 0.0
  %1393 = vmatpush1.msra.mxu0 0.0
  %1394 = vmatprep.subr.mxu0 0.0
  %1395 = vmatpush1.msra.mxu0 0.0
  %1396 = vmatprep.subr.mxu0 0.0
  %1397 = vmatpush1.msra.mxu0 0.0
  %1398 = vmatprep.subr.mxu0 0.0
  %1399 = vmatpush1.msra.mxu0 0.0
  %1400 = vmatprep.subr.mxu0 0.0
  %1401 = vmatpush1.msra.mxu0 0.0
  %1402 = vmatprep.subr.mxu0 0.0
  %1403 = vmatpush1.msra.mxu0 0.0
  %1404 = vmatprep.subr.mxu0 0.0
  %1405 = vmatpush1.msra.mxu0 0.0
  %1406 = vmatprep.subr.mxu0 0.0
  %1407 = vmatpush1.msra.mxu0 0.0
  %1408 = vmatprep.subr.mxu0 0.0
  %1409 = vmatpush1.msra.mxu0 0.0
  %1410 = vmatprep.subr.mxu0 0.0
  %1411 = vmatpush1.msra.mxu0 0.0
  %1412 = vmatprep.subr.mxu0 %v1293
  %1413 = vmatpush1.msra.mxu0 %v1292
  %1414 = vmatprep.subr.mxu0 0.0
  %1415 = vmatpush2.msra.mxu0 0.0
  %1416 = vmatprep.subr.mxu0 0.0
  %1417 = vmatpush2.msra.mxu0 0.0
  %1418 = vmatprep.subr.mxu0 0.0
  %1419 = vmatpush2.msra.mxu0 0.0
  %1420 = vmatprep.subr.mxu0 0.0
  %1421 = vmatpush2.msra.mxu0 0.0
  %1422 = vmatprep.subr.mxu0 0.0
  %1423 = vmatpush2.msra.mxu0 0.0
  %1424 = vmatprep.subr.mxu0 0.0
  %1425 = vmatpush2.msra.mxu0 0.0
  %1426 = vmatprep.subr.mxu0 0.0
  %1427 = vmatpush2.msra.mxu0 0.0
  %1428 = vmatprep.subr.mxu0 0.0
  %1429 = vmatpush2.msra.mxu0 0.0
  %1430 = vmatprep.subr.mxu0 0.0
  %1431 = vmatpush2.msra.mxu0 0.0
  %1432 = vmatprep.subr.mxu0 0.0
  %1433 = vmatpush2.msra.mxu0 0.0
  %1434 = vmatprep.subr.mxu0 0.0
  %1435 = vmatpush2.msra.mxu0 0.0
  %1436 = vmatprep.subr.mxu0 0.0
  %1437 = vmatpush2.msra.mxu0 0.0
  %1438 = vmatprep.subr.mxu0 0.0
  %1439 = vmatpush2.msra.mxu0 0.0
  %1440 = vmatprep.subr.mxu0 0.0
  %1441 = vmatpush2.msra.mxu0 0.0
  %1442 = vmatprep.subr.mxu0 0.0
  %1443 = vmatpush2.msra.mxu0 0.0
  %1444 = vmatprep.subr.mxu0 0.0
  %1445 = vmatpush2.msra.mxu0 0.0
  %1446 = vmatprep.mubr.f32.mxu0 0.0
  %1447 = vmatmul.mubr.f32.gmra.mxu0 %v1309
  %v1448 = vpop.f32.mrf.mxu0
  %v1449 = vadd.f32 0.0, %v1448
  %v1450 = vpop.f32.mrf.mxu0
  %v1451 = vadd.f32 0.0, %v1450
  %1452 = vdwg.mxu0
  %1453 = vmatprep.subr.mxu0 0.0
  %1454 = vmatpush1.msra.mxu0 0.0
  %1455 = vmatprep.subr.mxu0 0.0
  %1456 = vmatpush1.msra.mxu0 0.0
  %1457 = vmatprep.subr.mxu0 0.0
  %1458 = vmatpush1.msra.mxu0 0.0
  %1459 = vmatprep.subr.mxu0 0.0
  %1460 = vmatpush1.msra.mxu0 0.0
  %1461 = vmatprep.subr.mxu0 0.0
  %1462 = vmatpush1.msra.mxu0 0.0
  %1463 = vmatprep.subr.mxu0 0.0
  %1464 = vmatpush1.msra.mxu0 0.0
  %1465 = vmatprep.subr.mxu0 0.0
  %1466 = vmatpush1.msra.mxu0 0.0
  %1467 = vmatprep.subr.mxu0 0.0
  %1468 = vmatpush1.msra.mxu0 0.0
  %1469 = vmatprep.subr.mxu0 0.0
  %1470 = vmatpush1.msra.mxu0 0.0
  %1471 = vmatprep.subr.mxu0 0.0
  %1472 = vmatpush1.msra.mxu0 0.0
  %1473 = vmatprep.subr.mxu0 0.0
  %1474 = vmatpush1.msra.mxu0 0.0
  %1475 = vmatprep.subr.mxu0 0.0
  %1476 = vmatpush1.msra.mxu0 0.0
  %1477 = vmatprep.subr.mxu0 0.0
  %1478 = vmatpush1.msra.mxu0 0.0
  %1479 = vmatprep.subr.mxu0 0.0
  %1480 = vmatpush1.msra.mxu0 0.0
  %1481 = vmatprep.subr.mxu0 0.0
  %1482 = vmatpush1.msra.mxu0 0.0
  %1483 = vmatprep.subr.mxu0 %v1295
  %1484 = vmatpush1.msra.mxu0 %v1294
  %1485 = vmatprep.subr.mxu0 0.0
  %1486 = vmatpush2.msra.mxu0 0.0
  %1487 = vmatprep.subr.mxu0 0.0
  %1488 = vmatpush2.msra.mxu0 0.0
  %1489 = vmatprep.subr.mxu0 0.0
  %1490 = vmatpush2.msra.mxu0 0.0
  %1491 = vmatprep.subr.mxu0 0.0
  %1492 = vmatpush2.msra.mxu0 0.0
  %1493 = vmatprep.subr.mxu0 0.0
  %1494 = vmatpush2.msra.mxu0 0.0
  %1495 = vmatprep.subr.mxu0 0.0
  %1496 = vmatpush2.msra.mxu0 0.0
  %1497 = vmatprep.subr.mxu0 0.0
  %1498 = vmatpush2.msra.mxu0 0.0
  %1499 = vmatprep.subr.mxu0 0.0
  %1500 = vmatpush2.msra.mxu0 0.0
  %1501 = vmatprep.subr.mxu0 0.0
  %1502 = vmatpush2.msra.mxu0 0.0
  %1503 = vmatprep.subr.mxu0 0.0
  %1504 = vmatpush2.msra.mxu0 0.0
  %1505 = vmatprep.subr.mxu0 0.0
  %1506 = vmatpush2.msra.mxu0 0.0
  %1507 = vmatprep.subr.mxu0 0.0
  %1508 = vmatpush2.msra.mxu0 0.0
  %1509 = vmatprep.subr.mxu0 0.0
  %1510 = vmatpush2.msra.mxu0 0.0
  %1511 = vmatprep.subr.mxu0 0.0
  %1512 = vmatpush2.msra.mxu0 0.0
  %1513 = vmatprep.subr.mxu0 0.0
  %1514 = vmatpush2.msra.mxu0 0.0
  %1515 = vmatprep.subr.mxu0 0.0
  %1516 = vmatpush2.msra.mxu0 0.0
  %1517 = vmatprep.mubr.f32.mxu0 0.0
  %1518 = vmatmul.mubr.f32.gmra.mxu0 %v1309
  %v1519 = vpop.f32.mrf.mxu0
  %v1520 = vadd.f32 0.0, %v1519
  %v1521 = vpop.f32.mrf.mxu0
  %v1522 = vadd.f32 0.0, %v1521
  %1523 = vdwg.mxu0
  %1524 = vmatprep.subr.mxu0 0.0
  %1525 = vmatpush1.msra.mxu0 0.0
  %1526 = vmatprep.subr.mxu0 0.0
  %1527 = vmatpush1.msra.mxu0 0.0
  %1528 = vmatprep.subr.mxu0 0.0
  %1529 = vmatpush1.msra.mxu0 0.0
  %1530 = vmatprep.subr.mxu0 0.0
  %1531 = vmatpush1.msra.mxu0 0.0
  %1532 = vmatprep.subr.mxu0 0.0
  %1533 = vmatpush1.msra.mxu0 0.0
  %1534 = vmatprep.subr.mxu0 0.0
  %1535 = vmatpush1.msra.mxu0 0.0
  %1536 = vmatprep.subr.mxu0 0.0
  %1537 = vmatpush1.msra.mxu0 0.0
  %1538 = vmatprep.subr.mxu0 0.0
  %1539 = vmatpush1.msra.mxu0 0.0
  %1540 = vmatprep.subr.mxu0 0.0
  %1541 = vmatpush1.msra.mxu0 0.0
  %1542 = vmatprep.subr.mxu0 0.0
  %1543 = vmatpush1.msra.mxu0 0.0
  %1544 = vmatprep.subr.mxu0 0.0
  %1545 = vmatpush1.msra.mxu0 0.0
  %1546 = vmatprep.subr.mxu0 0.0
  %1547 = vmatpush1.msra.mxu0 0.0
  %1548 = vmatprep.subr.mxu0 0.0
  %1549 = vmatpush1.msra.mxu0 0.0
  %1550 = vmatprep.subr.mxu0 0.0
  %1551 = vmatpush1.msra.mxu0 0.0
  %1552 = vmatprep.subr.mxu0 0.0
  %1553 = vmatpush1.msra.mxu0 0.0
  %1554 = vmatprep.subr.mxu0 %v1297
  %1555 = vmatpush1.msra.mxu0 %v1296
  %1556 = vmatprep.subr.mxu0 0.0
  %1557 = vmatpush2.msra.mxu0 0.0
  %1558 = vmatprep.subr.mxu0 0.0
  %1559 = vmatpush2.msra.mxu0 0.0
  %1560 = vmatprep.subr.mxu0 0.0
  %1561 = vmatpush2.msra.mxu0 0.0
  %1562 = vmatprep.subr.mxu0 0.0
  %1563 = vmatpush2.msra.mxu0 0.0
  %1564 = vmatprep.subr.mxu0 0.0
  %1565 = vmatpush2.msra.mxu0 0.0
  %1566 = vmatprep.subr.mxu0 0.0
  %1567 = vmatpush2.msra.mxu0 0.0
  %1568 = vmatprep.subr.mxu0 0.0
  %1569 = vmatpush2.msra.mxu0 0.0
  %1570 = vmatprep.subr.mxu0 0.0
  %1571 = vmatpush2.msra.mxu0 0.0
  %1572 = vmatprep.subr.mxu0 0.0
  %1573 = vmatpush2.msra.mxu0 0.0
  %1574 = vmatprep.subr.mxu0 0.0
  %1575 = vmatpush2.msra.mxu0 0.0
  %1576 = vmatprep.subr.mxu0 0.0
  %1577 = vmatpush2.msra.mxu0 0.0
  %1578 = vmatprep.subr.mxu0 0.0
  %1579 = vmatpush2.msra.mxu0 0.0
  %1580 = vmatprep.subr.mxu0 0.0
  %1581 = vmatpush2.msra.mxu0 0.0
  %1582 = vmatprep.subr.mxu0 0.0
  %1583 = vmatpush2.msra.mxu0 0.0
  %1584 = vmatprep.subr.mxu0 0.0
  %1585 = vmatpush2.msra.mxu0 0.0
  %1586 = vmatprep.subr.mxu0 0.0
  %1587 = vmatpush2.msra.mxu0 0.0
  %1588 = vmatprep.mubr.f32.mxu0 0.0
  %1589 = vmatmul.mubr.f32.gmra.mxu0 %v1309
  %v1590 = vpop.f32.mrf.mxu0
  %v1591 = vadd.f32 0.0, %v1590
  %v1592 = vpop.f32.mrf.mxu0
  %v1593 = vadd.f32 0.0, %v1592
  %1594 = vdwg.mxu0
  %1595 = vmatprep.subr.mxu0 0.0
  %1596 = vmatpush1.msra.mxu0 0.0
  %1597 = vmatprep.subr.mxu0 0.0
  %1598 = vmatpush1.msra.mxu0 0.0
  %1599 = vmatprep.subr.mxu0 0.0
  %1600 = vmatpush1.msra.mxu0 0.0
  %1601 = vmatprep.subr.mxu0 0.0
  %1602 = vmatpush1.msra.mxu0 0.0
  %1603 = vmatprep.subr.mxu0 0.0
  %1604 = vmatpush1.msra.mxu0 0.0
  %1605 = vmatprep.subr.mxu0 0.0
  %1606 = vmatpush1.msra.mxu0 0.0
  %1607 = vmatprep.subr.mxu0 0.0
  %1608 = vmatpush1.msra.mxu0 0.0
  %1609 = vmatprep.subr.mxu0 0.0
  %1610 = vmatpush1.msra.mxu0 0.0
  %1611 = vmatprep.subr.mxu0 0.0
  %1612 = vmatpush1.msra.mxu0 0.0
  %1613 = vmatprep.subr.mxu0 0.0
  %1614 = vmatpush1.msra.mxu0 0.0
  %1615 = vmatprep.subr.mxu0 0.0
  %1616 = vmatpush1.msra.mxu0 0.0
  %1617 = vmatprep.subr.mxu0 0.0
  %1618 = vmatpush1.msra.mxu0 0.0
  %1619 = vmatprep.subr.mxu0 0.0
  %1620 = vmatpush1.msra.mxu0 0.0
  %1621 = vmatprep.subr.mxu0 0.0
  %1622 = vmatpush1.msra.mxu0 0.0
  %1623 = vmatprep.subr.mxu0 0.0
  %1624 = vmatpush1.msra.mxu0 0.0
  %1625 = vmatprep.subr.mxu0 0.0
  %1626 = vmatpush1.msra.mxu0 %v1298
  %1627 = vmatprep.subr.mxu0 0.0
  %1628 = vmatpush2.msra.mxu0 0.0
  %1629 = vmatprep.subr.mxu0 0.0
  %1630 = vmatpush2.msra.mxu0 0.0
  %1631 = vmatprep.subr.mxu0 0.0
  %1632 = vmatpush2.msra.mxu0 0.0
  %1633 = vmatprep.subr.mxu0 0.0
  %1634 = vmatpush2.msra.mxu0 0.0
  %1635 = vmatprep.subr.mxu0 0.0
  %1636 = vmatpush2.msra.mxu0 0.0
  %1637 = vmatprep.subr.mxu0 0.0
  %1638 = vmatpush2.msra.mxu0 0.0
  %1639 = vmatprep.subr.mxu0 0.0
  %1640 = vmatpush2.msra.mxu0 0.0
  %1641 = vmatprep.subr.mxu0 0.0
  %1642 = vmatpush2.msra.mxu0 0.0
  %1643 = vmatprep.subr.mxu0 0.0
  %1644 = vmatpush2.msra.mxu0 0.0
  %1645 = vmatprep.subr.mxu0 0.0
  %1646 = vmatpush2.msra.mxu0 0.0
  %1647 = vmatprep.subr.mxu0 0.0
  %1648 = vmatpush2.msra.mxu0 0.0
  %1649 = vmatprep.subr.mxu0 0.0
  %1650 = vmatpush2.msra.mxu0 0.0
  %1651 = vmatprep.subr.mxu0 0.0
  %1652 = vmatpush2.msra.mxu0 0.0
  %1653 = vmatprep.subr.mxu0 0.0
  %1654 = vmatpush2.msra.mxu0 0.0
  %1655 = vmatprep.subr.mxu0 0.0
  %1656 = vmatpush2.msra.mxu0 0.0
  %1657 = vmatprep.subr.mxu0 0.0
  %1658 = vmatpush2.msra.mxu0 0.0
  %1659 = vmatprep.mubr.f32.mxu0 0.0
  %1660 = vmatmul.mubr.f32.gmra.mxu0 %v1309
  %v1661 = vpop.f32.mrf.mxu0
  %v1662 = vadd.f32 0.0, %v1661
  %v1663 = vpop.f32.mrf.mxu0
  %1664 = vdwg.mxu0
  %v1665 = vadd.f32 %v1258, %v1378
  %v1666 = vadd.f32 %v1259, %v1380
  %v1667 = vadd.f32 %v1260, %v1449
  %v1668 = vadd.f32 %v1261, %v1451
  %v1669 = vadd.f32 %v1262, %v1520
  %v1670 = vadd.f32 %v1263, %v1522
  %v1671 = vadd.f32 %v1264, %v1591
  %v1672 = vadd.f32 %v1265, %v1593
  %v1673 = vadd.f32 %v1266, %v1662
  %s1674 = scalar_lea.vmem %s2, 32
  %v1675 = vld [vmem:[%s1674] sm:$0xff]
  %v1677 = vsel %vm106, %v1675, 0
  %1679 = vmatprep.subr.mxu0 0.0
  %1680 = vmatpush1.msra.mxu0 0.0
  %1681 = vmatprep.subr.mxu0 0.0
  %1682 = vmatpush1.msra.mxu0 0.0
  %1683 = vmatprep.subr.mxu0 0.0
  %1684 = vmatpush1.msra.mxu0 0.0
  %1685 = vmatprep.subr.mxu0 0.0
  %1686 = vmatpush1.msra.mxu0 0.0
  %1687 = vmatprep.subr.mxu0 0.0
  %1688 = vmatpush1.msra.mxu0 0.0
  %1689 = vmatprep.subr.mxu0 0.0
  %1690 = vmatpush1.msra.mxu0 0.0
  %1691 = vmatprep.subr.mxu0 0.0
  %1692 = vmatpush1.msra.mxu0 0.0
  %1693 = vmatprep.subr.mxu0 0.0
  %1694 = vmatpush1.msra.mxu0 0.0
  %1695 = vmatprep.subr.mxu0 0.0
  %1696 = vmatpush1.msra.mxu0 0.0
  %1697 = vmatprep.subr.mxu0 0.0
  %1698 = vmatpush1.msra.mxu0 0.0
  %1699 = vmatprep.subr.mxu0 0.0
  %1700 = vmatpush1.msra.mxu0 0.0
  %1701 = vmatprep.subr.mxu0 0.0
  %1702 = vmatpush1.msra.mxu0 0.0
  %1703 = vmatprep.subr.mxu0 0.0
  %1704 = vmatpush1.msra.mxu0 0.0
  %1705 = vmatprep.subr.mxu0 0.0
  %1706 = vmatpush1.msra.mxu0 0.0
  %1707 = vmatprep.subr.mxu0 0.0
  %1708 = vmatpush1.msra.mxu0 0.0
  %1709 = vmatprep.subr.mxu0 %v47
  %1710 = vmatpush1.msra.mxu0 %v46
  %1711 = vmatprep.subr.mxu0 0.0
  %1712 = vmatpush2.msra.mxu0 0.0
  %1713 = vmatprep.subr.mxu0 0.0
  %1714 = vmatpush2.msra.mxu0 0.0
  %1715 = vmatprep.subr.mxu0 0.0
  %1716 = vmatpush2.msra.mxu0 0.0
  %1717 = vmatprep.subr.mxu0 0.0
  %1718 = vmatpush2.msra.mxu0 0.0
  %1719 = vmatprep.subr.mxu0 0.0
  %1720 = vmatpush2.msra.mxu0 0.0
  %1721 = vmatprep.subr.mxu0 0.0
  %1722 = vmatpush2.msra.mxu0 0.0
  %1723 = vmatprep.subr.mxu0 0.0
  %1724 = vmatpush2.msra.mxu0 0.0
  %1725 = vmatprep.subr.mxu0 0.0
  %1726 = vmatpush2.msra.mxu0 0.0
  %1727 = vmatprep.subr.mxu0 0.0
  %1728 = vmatpush2.msra.mxu0 0.0
  %1729 = vmatprep.subr.mxu0 0.0
  %1730 = vmatpush2.msra.mxu0 0.0
  %1731 = vmatprep.subr.mxu0 0.0
  %1732 = vmatpush2.msra.mxu0 0.0
  %1733 = vmatprep.subr.mxu0 0.0
  %1734 = vmatpush2.msra.mxu0 0.0
  %1735 = vmatprep.subr.mxu0 0.0
  %1736 = vmatpush2.msra.mxu0 0.0
  %1737 = vmatprep.subr.mxu0 0.0
  %1738 = vmatpush2.msra.mxu0 0.0
  %1739 = vmatprep.subr.mxu0 0.0
  %1740 = vmatpush2.msra.mxu0 0.0
  %1741 = vmatprep.subr.mxu0 0.0
  %1742 = vmatpush2.msra.mxu0 0.0
  %1743 = vmatprep.mubr.f32.mxu0 0.0
  %1744 = vmatmul.mubr.f32.gmra.mxu0 %v1677
  %v1745 = vpop.f32.mrf.mxu0
  %v1746 = vadd.f32 0.0, %v1745
  %v1747 = vpop.f32.mrf.mxu0
  %v1748 = vadd.f32 0.0, %v1747
  %1749 = vdwg.mxu0
  %1750 = vmatprep.subr.mxu0 0.0
  %1751 = vmatpush1.msra.mxu0 0.0
  %1752 = vmatprep.subr.mxu0 0.0
  %1753 = vmatpush1.msra.mxu0 0.0
  %1754 = vmatprep.subr.mxu0 0.0
  %1755 = vmatpush1.msra.mxu0 0.0
  %1756 = vmatprep.subr.mxu0 0.0
  %1757 = vmatpush1.msra.mxu0 0.0
  %1758 = vmatprep.subr.mxu0 0.0
  %1759 = vmatpush1.msra.mxu0 0.0
  %1760 = vmatprep.subr.mxu0 0.0
  %1761 = vmatpush1.msra.mxu0 0.0
  %1762 = vmatprep.subr.mxu0 0.0
  %1763 = vmatpush1.msra.mxu0 0.0
  %1764 = vmatprep.subr.mxu0 0.0
  %1765 = vmatpush1.msra.mxu0 0.0
  %1766 = vmatprep.subr.mxu0 0.0
  %1767 = vmatpush1.msra.mxu0 0.0
  %1768 = vmatprep.subr.mxu0 0.0
  %1769 = vmatpush1.msra.mxu0 0.0
  %1770 = vmatprep.subr.mxu0 0.0
  %1771 = vmatpush1.msra.mxu0 0.0
  %1772 = vmatprep.subr.mxu0 0.0
  %1773 = vmatpush1.msra.mxu0 0.0
  %1774 = vmatprep.subr.mxu0 0.0
  %1775 = vmatpush1.msra.mxu0 0.0
  %1776 = vmatprep.subr.mxu0 0.0
  %1777 = vmatpush1.msra.mxu0 0.0
  %1778 = vmatprep.subr.mxu0 0.0
  %1779 = vmatpush1.msra.mxu0 0.0
  %1780 = vmatprep.subr.mxu0 %v49
  %1781 = vmatpush1.msra.mxu0 %v48
  %1782 = vmatprep.subr.mxu0 0.0
  %1783 = vmatpush2.msra.mxu0 0.0
  %1784 = vmatprep.subr.mxu0 0.0
  %1785 = vmatpush2.msra.mxu0 0.0
  %1786 = vmatprep.subr.mxu0 0.0
  %1787 = vmatpush2.msra.mxu0 0.0
  %1788 = vmatprep.subr.mxu0 0.0
  %1789 = vmatpush2.msra.mxu0 0.0
  %1790 = vmatprep.subr.mxu0 0.0
  %1791 = vmatpush2.msra.mxu0 0.0
  %1792 = vmatprep.subr.mxu0 0.0
  %1793 = vmatpush2.msra.mxu0 0.0
  %1794 = vmatprep.subr.mxu0 0.0
  %1795 = vmatpush2.msra.mxu0 0.0
  %1796 = vmatprep.subr.mxu0 0.0
  %1797 = vmatpush2.msra.mxu0 0.0
  %1798 = vmatprep.subr.mxu0 0.0
  %1799 = vmatpush2.msra.mxu0 0.0
  %1800 = vmatprep.subr.mxu0 0.0
  %1801 = vmatpush2.msra.mxu0 0.0
  %1802 = vmatprep.subr.mxu0 0.0
  %1803 = vmatpush2.msra.mxu0 0.0
  %1804 = vmatprep.subr.mxu0 0.0
  %1805 = vmatpush2.msra.mxu0 0.0
  %1806 = vmatprep.subr.mxu0 0.0
  %1807 = vmatpush2.msra.mxu0 0.0
  %1808 = vmatprep.subr.mxu0 0.0
  %1809 = vmatpush2.msra.mxu0 0.0
  %1810 = vmatprep.subr.mxu0 0.0
  %1811 = vmatpush2.msra.mxu0 0.0
  %1812 = vmatprep.subr.mxu0 0.0
  %1813 = vmatpush2.msra.mxu0 0.0
  %1814 = vmatprep.mubr.f32.mxu0 0.0
  %1815 = vmatmul.mubr.f32.gmra.mxu0 %v1677
  %v1816 = vpop.f32.mrf.mxu0
  %v1817 = vadd.f32 0.0, %v1816
  %v1818 = vpop.f32.mrf.mxu0
  %v1819 = vadd.f32 0.0, %v1818
  %1820 = vdwg.mxu0
  %1821 = vmatprep.subr.mxu0 0.0
  %1822 = vmatpush1.msra.mxu0 0.0
  %1823 = vmatprep.subr.mxu0 0.0
  %1824 = vmatpush1.msra.mxu0 0.0
  %1825 = vmatprep.subr.mxu0 0.0
  %1826 = vmatpush1.msra.mxu0 0.0
  %1827 = vmatprep.subr.mxu0 0.0
  %1828 = vmatpush1.msra.mxu0 0.0
  %1829 = vmatprep.subr.mxu0 0.0
  %1830 = vmatpush1.msra.mxu0 0.0
  %1831 = vmatprep.subr.mxu0 0.0
  %1832 = vmatpush1.msra.mxu0 0.0
  %1833 = vmatprep.subr.mxu0 0.0
  %1834 = vmatpush1.msra.mxu0 0.0
  %1835 = vmatprep.subr.mxu0 0.0
  %1836 = vmatpush1.msra.mxu0 0.0
  %1837 = vmatprep.subr.mxu0 0.0
  %1838 = vmatpush1.msra.mxu0 0.0
  %1839 = vmatprep.subr.mxu0 0.0
  %1840 = vmatpush1.msra.mxu0 0.0
  %1841 = vmatprep.subr.mxu0 0.0
  %1842 = vmatpush1.msra.mxu0 0.0
  %1843 = vmatprep.subr.mxu0 0.0
  %1844 = vmatpush1.msra.mxu0 0.0
  %1845 = vmatprep.subr.mxu0 0.0
  %1846 = vmatpush1.msra.mxu0 0.0
  %1847 = vmatprep.subr.mxu0 0.0
  %1848 = vmatpush1.msra.mxu0 0.0
  %1849 = vmatprep.subr.mxu0 0.0
  %1850 = vmatpush1.msra.mxu0 0.0
  %1851 = vmatprep.subr.mxu0 %v51
  %1852 = vmatpush1.msra.mxu0 %v50
  %1853 = vmatprep.subr.mxu0 0.0
  %1854 = vmatpush2.msra.mxu0 0.0
  %1855 = vmatprep.subr.mxu0 0.0
  %1856 = vmatpush2.msra.mxu0 0.0
  %1857 = vmatprep.subr.mxu0 0.0
  %1858 = vmatpush2.msra.mxu0 0.0
  %1859 = vmatprep.subr.mxu0 0.0
  %1860 = vmatpush2.msra.mxu0 0.0
  %1861 = vmatprep.subr.mxu0 0.0
  %1862 = vmatpush2.msra.mxu0 0.0
  %1863 = vmatprep.subr.mxu0 0.0
  %1864 = vmatpush2.msra.mxu0 0.0
  %1865 = vmatprep.subr.mxu0 0.0
  %1866 = vmatpush2.msra.mxu0 0.0
  %1867 = vmatprep.subr.mxu0 0.0
  %1868 = vmatpush2.msra.mxu0 0.0
  %1869 = vmatprep.subr.mxu0 0.0
  %1870 = vmatpush2.msra.mxu0 0.0
  %1871 = vmatprep.subr.mxu0 0.0
  %1872 = vmatpush2.msra.mxu0 0.0
  %1873 = vmatprep.subr.mxu0 0.0
  %1874 = vmatpush2.msra.mxu0 0.0
  %1875 = vmatprep.subr.mxu0 0.0
  %1876 = vmatpush2.msra.mxu0 0.0
  %1877 = vmatprep.subr.mxu0 0.0
  %1878 = vmatpush2.msra.mxu0 0.0
  %1879 = vmatprep.subr.mxu0 0.0
  %1880 = vmatpush2.msra.mxu0 0.0
  %1881 = vmatprep.subr.mxu0 0.0
  %1882 = vmatpush2.msra.mxu0 0.0
  %1883 = vmatprep.subr.mxu0 0.0
  %1884 = vmatpush2.msra.mxu0 0.0
  %1885 = vmatprep.mubr.f32.mxu0 0.0
  %1886 = vmatmul.mubr.f32.gmra.mxu0 %v1677
  %v1887 = vpop.f32.mrf.mxu0
  %v1888 = vadd.f32 0.0, %v1887
  %v1889 = vpop.f32.mrf.mxu0
  %v1890 = vadd.f32 0.0, %v1889
  %1891 = vdwg.mxu0
  %1892 = vmatprep.subr.mxu0 0.0
  %1893 = vmatpush1.msra.mxu0 0.0
  %1894 = vmatprep.subr.mxu0 0.0
  %1895 = vmatpush1.msra.mxu0 0.0
  %1896 = vmatprep.subr.mxu0 0.0
  %1897 = vmatpush1.msra.mxu0 0.0
  %1898 = vmatprep.subr.mxu0 0.0
  %1899 = vmatpush1.msra.mxu0 0.0
  %1900 = vmatprep.subr.mxu0 0.0
  %1901 = vmatpush1.msra.mxu0 0.0
  %1902 = vmatprep.subr.mxu0 0.0
  %1903 = vmatpush1.msra.mxu0 0.0
  %1904 = vmatprep.subr.mxu0 0.0
  %1905 = vmatpush1.msra.mxu0 0.0
  %1906 = vmatprep.subr.mxu0 0.0
  %1907 = vmatpush1.msra.mxu0 0.0
  %1908 = vmatprep.subr.mxu0 0.0
  %1909 = vmatpush1.msra.mxu0 0.0
  %1910 = vmatprep.subr.mxu0 0.0
  %1911 = vmatpush1.msra.mxu0 0.0
  %1912 = vmatprep.subr.mxu0 0.0
  %1913 = vmatpush1.msra.mxu0 0.0
  %1914 = vmatprep.subr.mxu0 0.0
  %1915 = vmatpush1.msra.mxu0 0.0
  %1916 = vmatprep.subr.mxu0 0.0
  %1917 = vmatpush1.msra.mxu0 0.0
  %1918 = vmatprep.subr.mxu0 0.0
  %1919 = vmatpush1.msra.mxu0 0.0
  %1920 = vmatprep.subr.mxu0 0.0
  %1921 = vmatpush1.msra.mxu0 0.0
  %1922 = vmatprep.subr.mxu0 %v53
  %1923 = vmatpush1.msra.mxu0 %v52
  %1924 = vmatprep.subr.mxu0 0.0
  %1925 = vmatpush2.msra.mxu0 0.0
  %1926 = vmatprep.subr.mxu0 0.0
  %1927 = vmatpush2.msra.mxu0 0.0
  %1928 = vmatprep.subr.mxu0 0.0
  %1929 = vmatpush2.msra.mxu0 0.0
  %1930 = vmatprep.subr.mxu0 0.0
  %1931 = vmatpush2.msra.mxu0 0.0
  %1932 = vmatprep.subr.mxu0 0.0
  %1933 = vmatpush2.msra.mxu0 0.0
  %1934 = vmatprep.subr.mxu0 0.0
  %1935 = vmatpush2.msra.mxu0 0.0
  %1936 = vmatprep.subr.mxu0 0.0
  %1937 = vmatpush2.msra.mxu0 0.0
  %1938 = vmatprep.subr.mxu0 0.0
  %1939 = vmatpush2.msra.mxu0 0.0
  %1940 = vmatprep.subr.mxu0 0.0
  %1941 = vmatpush2.msra.mxu0 0.0
  %1942 = vmatprep.subr.mxu0 0.0
  %1943 = vmatpush2.msra.mxu0 0.0
  %1944 = vmatprep.subr.mxu0 0.0
  %1945 = vmatpush2.msra.mxu0 0.0
  %1946 = vmatprep.subr.mxu0 0.0
  %1947 = vmatpush2.msra.mxu0 0.0
  %1948 = vmatprep.subr.mxu0 0.0
  %1949 = vmatpush2.msra.mxu0 0.0
  %1950 = vmatprep.subr.mxu0 0.0
  %1951 = vmatpush2.msra.mxu0 0.0
  %1952 = vmatprep.subr.mxu0 0.0
  %1953 = vmatpush2.msra.mxu0 0.0
  %1954 = vmatprep.subr.mxu0 0.0
  %1955 = vmatpush2.msra.mxu0 0.0
  %1956 = vmatprep.mubr.f32.mxu0 0.0
  %1957 = vmatmul.mubr.f32.gmra.mxu0 %v1677
  %v1958 = vpop.f32.mrf.mxu0
  %v1959 = vadd.f32 0.0, %v1958
  %v1960 = vpop.f32.mrf.mxu0
  %v1961 = vadd.f32 0.0, %v1960
  %1962 = vdwg.mxu0
  %1963 = vmatprep.subr.mxu0 0.0
  %1964 = vmatpush1.msra.mxu0 0.0
  %1965 = vmatprep.subr.mxu0 0.0
  %1966 = vmatpush1.msra.mxu0 0.0
  %1967 = vmatprep.subr.mxu0 0.0
  %1968 = vmatpush1.msra.mxu0 0.0
  %1969 = vmatprep.subr.mxu0 0.0
  %1970 = vmatpush1.msra.mxu0 0.0
  %1971 = vmatprep.subr.mxu0 0.0
  %1972 = vmatpush1.msra.mxu0 0.0
  %1973 = vmatprep.subr.mxu0 0.0
  %1974 = vmatpush1.msra.mxu0 0.0
  %1975 = vmatprep.subr.mxu0 0.0
  %1976 = vmatpush1.msra.mxu0 0.0
  %1977 = vmatprep.subr.mxu0 0.0
  %1978 = vmatpush1.msra.mxu0 0.0
  %1979 = vmatprep.subr.mxu0 0.0
  %1980 = vmatpush1.msra.mxu0 0.0
  %1981 = vmatprep.subr.mxu0 0.0
  %1982 = vmatpush1.msra.mxu0 0.0
  %1983 = vmatprep.subr.mxu0 0.0
  %1984 = vmatpush1.msra.mxu0 0.0
  %1985 = vmatprep.subr.mxu0 0.0
  %1986 = vmatpush1.msra.mxu0 0.0
  %1987 = vmatprep.subr.mxu0 0.0
  %1988 = vmatpush1.msra.mxu0 0.0
  %1989 = vmatprep.subr.mxu0 0.0
  %1990 = vmatpush1.msra.mxu0 0.0
  %1991 = vmatprep.subr.mxu0 0.0
  %1992 = vmatpush1.msra.mxu0 0.0
  %1993 = vmatprep.subr.mxu0 0.0
  %1994 = vmatpush1.msra.mxu0 %v54
  %1995 = vmatprep.subr.mxu0 0.0
  %1996 = vmatpush2.msra.mxu0 0.0
  %1997 = vmatprep.subr.mxu0 0.0
  %1998 = vmatpush2.msra.mxu0 0.0
  %1999 = vmatprep.subr.mxu0 0.0
  %2000 = vmatpush2.msra.mxu0 0.0
  %2001 = vmatprep.subr.mxu0 0.0
  %2002 = vmatpush2.msra.mxu0 0.0
  %2003 = vmatprep.subr.mxu0 0.0
  %2004 = vmatpush2.msra.mxu0 0.0
  %2005 = vmatprep.subr.mxu0 0.0
  %2006 = vmatpush2.msra.mxu0 0.0
  %2007 = vmatprep.subr.mxu0 0.0
  %2008 = vmatpush2.msra.mxu0 0.0
  %2009 = vmatprep.subr.mxu0 0.0
  %2010 = vmatpush2.msra.mxu0 0.0
  %2011 = vmatprep.subr.mxu0 0.0
  %2012 = vmatpush2.msra.mxu0 0.0
  %2013 = vmatprep.subr.mxu0 0.0
  %2014 = vmatpush2.msra.mxu0 0.0
  %2015 = vmatprep.subr.mxu0 0.0
  %2016 = vmatpush2.msra.mxu0 0.0
  %2017 = vmatprep.subr.mxu0 0.0
  %2018 = vmatpush2.msra.mxu0 0.0
  %2019 = vmatprep.subr.mxu0 0.0
  %2020 = vmatpush2.msra.mxu0 0.0
  %2021 = vmatprep.subr.mxu0 0.0
  %2022 = vmatpush2.msra.mxu0 0.0
  %2023 = vmatprep.subr.mxu0 0.0
  %2024 = vmatpush2.msra.mxu0 0.0
  %2025 = vmatprep.subr.mxu0 0.0
  %2026 = vmatpush2.msra.mxu0 0.0
  %2027 = vmatprep.mubr.f32.mxu0 0.0
  %2028 = vmatmul.mubr.f32.gmra.mxu0 %v1677
  %v2029 = vpop.f32.mrf.mxu0
  %v2030 = vadd.f32 0.0, %v2029
  %v2031 = vpop.f32.mrf.mxu0
  %2032 = vdwg.mxu0
  %v2033 = vadd.f32 %v1665, %v1746
  %v2034 = vadd.f32 %v1666, %v1748
  %v2035 = vadd.f32 %v1667, %v1817
  %v2036 = vadd.f32 %v1668, %v1819
  %v2037 = vadd.f32 %v1669, %v1888
  %v2038 = vadd.f32 %v1670, %v1890
  %v2039 = vadd.f32 %v1671, %v1959
  %v2040 = vadd.f32 %v1672, %v1961
  %v2041 = vadd.f32 %v1673, %v2030
  %s2042 = scalar_lea.vmem %s2, 40
  %v2043 = vld [vmem:[%s2042] sm:$0xff]
  %v2044 = vld [vmem:[%s0 + $0x8] sm:$0xff]
  %v2045 = vld [vmem:[%s0 + $0x10] sm:$0xff]
  %v2046 = vld [vmem:[%s0 + $0x18] sm:$0xff]
  %v2047 = vld [vmem:[%s0 + $0x20] sm:$0xff]
  %v2048 = vld [vmem:[%s0 + $0x28] sm:$0xff]
  %v2049 = vld [vmem:[%s0 + $0x30] sm:$0xff]
  %v2050 = vld [vmem:[%s0 + $0x38] sm:$0xff]
  %v2051 = vld [vmem:[%s0 + $0x40] sm:$0xff]
  %v2052 = vld [vmem:[%s0 + $0x48] sm:$0xff]
  %v2053 = vld [vmem:[%s0 + $0x50] sm:$0xff]
  %2064 = vrot.lane.b32.xlu0 %v2044, 127
  %v2065 = vpop.permute.xlu0 %2064
  %2066 = vrot.lane.b32.xlu0 %v2045, 127
  %v2067 = vpop.permute.xlu0 %2066
  %2068 = vrot.lane.b32.xlu0 %v2046, 127
  %v2069 = vpop.permute.xlu0 %2068
  %2070 = vrot.lane.b32.xlu0 %v2047, 127
  %v2071 = vpop.permute.xlu0 %2070
  %2072 = vrot.lane.b32.xlu0 %v2048, 127
  %v2073 = vpop.permute.xlu0 %2072
  %2074 = vrot.lane.b32.xlu0 %v2049, 127
  %v2075 = vpop.permute.xlu0 %2074
  %2076 = vrot.lane.b32.xlu0 %v2050, 127
  %v2077 = vpop.permute.xlu0 %2076
  %2078 = vrot.lane.b32.xlu0 %v2051, 127
  %v2079 = vpop.permute.xlu0 %2078
  %2080 = vrot.lane.b32.xlu0 %v2052, 127
  %v2081 = vpop.permute.xlu0 %2080
  %2082 = vrot.lane.b32.xlu0 %v2053, 127
  %v2083 = vpop.permute.xlu0 %2082
  %vm2084 = vcmask 1039360
  %v2085 = vsel %vm2084, %v2065, %v2067
  %v2086 = vsel %vm2084, %v2067, %v2069
  %v2087 = vsel %vm2084, %v2069, %v2071
  %v2088 = vsel %vm2084, %v2071, %v2073
  %v2089 = vsel %vm2084, %v2073, %v2075
  %v2090 = vsel %vm2084, %v2075, %v2077
  %v2091 = vsel %vm2084, %v2077, %v2079
  %v2092 = vsel %vm2084, %v2079, %v2081
  %v2093 = vsel %vm2084, %v2081, %v2083
  %v2104 = vsel %vm106, %v2043, 0
  %2106 = vmatprep.subr.mxu0 0.0
  %2107 = vmatpush1.msra.mxu0 0.0
  %2108 = vmatprep.subr.mxu0 0.0
  %2109 = vmatpush1.msra.mxu0 0.0
  %2110 = vmatprep.subr.mxu0 0.0
  %2111 = vmatpush1.msra.mxu0 0.0
  %2112 = vmatprep.subr.mxu0 0.0
  %2113 = vmatpush1.msra.mxu0 0.0
  %2114 = vmatprep.subr.mxu0 0.0
  %2115 = vmatpush1.msra.mxu0 0.0
  %2116 = vmatprep.subr.mxu0 0.0
  %2117 = vmatpush1.msra.mxu0 0.0
  %2118 = vmatprep.subr.mxu0 0.0
  %2119 = vmatpush1.msra.mxu0 0.0
  %2120 = vmatprep.subr.mxu0 0.0
  %2121 = vmatpush1.msra.mxu0 0.0
  %2122 = vmatprep.subr.mxu0 0.0
  %2123 = vmatpush1.msra.mxu0 0.0
  %2124 = vmatprep.subr.mxu0 0.0
  %2125 = vmatpush1.msra.mxu0 0.0
  %2126 = vmatprep.subr.mxu0 0.0
  %2127 = vmatpush1.msra.mxu0 0.0
  %2128 = vmatprep.subr.mxu0 0.0
  %2129 = vmatpush1.msra.mxu0 0.0
  %2130 = vmatprep.subr.mxu0 0.0
  %2131 = vmatpush1.msra.mxu0 0.0
  %2132 = vmatprep.subr.mxu0 0.0
  %2133 = vmatpush1.msra.mxu0 0.0
  %2134 = vmatprep.subr.mxu0 0.0
  %2135 = vmatpush1.msra.mxu0 0.0
  %2136 = vmatprep.subr.mxu0 %v2086
  %2137 = vmatpush1.msra.mxu0 %v2085
  %2138 = vmatprep.subr.mxu0 0.0
  %2139 = vmatpush2.msra.mxu0 0.0
  %2140 = vmatprep.subr.mxu0 0.0
  %2141 = vmatpush2.msra.mxu0 0.0
  %2142 = vmatprep.subr.mxu0 0.0
  %2143 = vmatpush2.msra.mxu0 0.0
  %2144 = vmatprep.subr.mxu0 0.0
  %2145 = vmatpush2.msra.mxu0 0.0
  %2146 = vmatprep.subr.mxu0 0.0
  %2147 = vmatpush2.msra.mxu0 0.0
  %2148 = vmatprep.subr.mxu0 0.0
  %2149 = vmatpush2.msra.mxu0 0.0
  %2150 = vmatprep.subr.mxu0 0.0
  %2151 = vmatpush2.msra.mxu0 0.0
  %2152 = vmatprep.subr.mxu0 0.0
  %2153 = vmatpush2.msra.mxu0 0.0
  %2154 = vmatprep.subr.mxu0 0.0
  %2155 = vmatpush2.msra.mxu0 0.0
  %2156 = vmatprep.subr.mxu0 0.0
  %2157 = vmatpush2.msra.mxu0 0.0
  %2158 = vmatprep.subr.mxu0 0.0
  %2159 = vmatpush2.msra.mxu0 0.0
  %2160 = vmatprep.subr.mxu0 0.0
  %2161 = vmatpush2.msra.mxu0 0.0
  %2162 = vmatprep.subr.mxu0 0.0
  %2163 = vmatpush2.msra.mxu0 0.0
  %2164 = vmatprep.subr.mxu0 0.0
  %2165 = vmatpush2.msra.mxu0 0.0
  %2166 = vmatprep.subr.mxu0 0.0
  %2167 = vmatpush2.msra.mxu0 0.0
  %2168 = vmatprep.subr.mxu0 0.0
  %2169 = vmatpush2.msra.mxu0 0.0
  %2170 = vmatprep.mubr.f32.mxu0 0.0
  %2171 = vmatmul.mubr.f32.gmra.mxu0 %v2104
  %v2172 = vpop.f32.mrf.mxu0
  %v2173 = vadd.f32 0.0, %v2172
  %v2174 = vpop.f32.mrf.mxu0
  %v2175 = vadd.f32 0.0, %v2174
  %2176 = vdwg.mxu0
  %2177 = vmatprep.subr.mxu0 0.0
  %2178 = vmatpush1.msra.mxu0 0.0
  %2179 = vmatprep.subr.mxu0 0.0
  %2180 = vmatpush1.msra.mxu0 0.0
  %2181 = vmatprep.subr.mxu0 0.0
  %2182 = vmatpush1.msra.mxu0 0.0
  %2183 = vmatprep.subr.mxu0 0.0
  %2184 = vmatpush1.msra.mxu0 0.0
  %2185 = vmatprep.subr.mxu0 0.0
  %2186 = vmatpush1.msra.mxu0 0.0
  %2187 = vmatprep.subr.mxu0 0.0
  %2188 = vmatpush1.msra.mxu0 0.0
  %2189 = vmatprep.subr.mxu0 0.0
  %2190 = vmatpush1.msra.mxu0 0.0
  %2191 = vmatprep.subr.mxu0 0.0
  %2192 = vmatpush1.msra.mxu0 0.0
  %2193 = vmatprep.subr.mxu0 0.0
  %2194 = vmatpush1.msra.mxu0 0.0
  %2195 = vmatprep.subr.mxu0 0.0
  %2196 = vmatpush1.msra.mxu0 0.0
  %2197 = vmatprep.subr.mxu0 0.0
  %2198 = vmatpush1.msra.mxu0 0.0
  %2199 = vmatprep.subr.mxu0 0.0
  %2200 = vmatpush1.msra.mxu0 0.0
  %2201 = vmatprep.subr.mxu0 0.0
  %2202 = vmatpush1.msra.mxu0 0.0
  %2203 = vmatprep.subr.mxu0 0.0
  %2204 = vmatpush1.msra.mxu0 0.0
  %2205 = vmatprep.subr.mxu0 0.0
  %2206 = vmatpush1.msra.mxu0 0.0
  %2207 = vmatprep.subr.mxu0 %v2088
  %2208 = vmatpush1.msra.mxu0 %v2087
  %2209 = vmatprep.subr.mxu0 0.0
  %2210 = vmatpush2.msra.mxu0 0.0
  %2211 = vmatprep.subr.mxu0 0.0
  %2212 = vmatpush2.msra.mxu0 0.0
  %2213 = vmatprep.subr.mxu0 0.0
  %2214 = vmatpush2.msra.mxu0 0.0
  %2215 = vmatprep.subr.mxu0 0.0
  %2216 = vmatpush2.msra.mxu0 0.0
  %2217 = vmatprep.subr.mxu0 0.0
  %2218 = vmatpush2.msra.mxu0 0.0
  %2219 = vmatprep.subr.mxu0 0.0
  %2220 = vmatpush2.msra.mxu0 0.0
  %2221 = vmatprep.subr.mxu0 0.0
  %2222 = vmatpush2.msra.mxu0 0.0
  %2223 = vmatprep.subr.mxu0 0.0
  %2224 = vmatpush2.msra.mxu0 0.0
  %2225 = vmatprep.subr.mxu0 0.0
  %2226 = vmatpush2.msra.mxu0 0.0
  %2227 = vmatprep.subr.mxu0 0.0
  %2228 = vmatpush2.msra.mxu0 0.0
  %2229 = vmatprep.subr.mxu0 0.0
  %2230 = vmatpush2.msra.mxu0 0.0
  %2231 = vmatprep.subr.mxu0 0.0
  %2232 = vmatpush2.msra.mxu0 0.0
  %2233 = vmatprep.subr.mxu0 0.0
  %2234 = vmatpush2.msra.mxu0 0.0
  %2235 = vmatprep.subr.mxu0 0.0
  %2236 = vmatpush2.msra.mxu0 0.0
  %2237 = vmatprep.subr.mxu0 0.0
  %2238 = vmatpush2.msra.mxu0 0.0
  %2239 = vmatprep.subr.mxu0 0.0
  %2240 = vmatpush2.msra.mxu0 0.0
  %2241 = vmatprep.mubr.f32.mxu0 0.0
  %2242 = vmatmul.mubr.f32.gmra.mxu0 %v2104
  %v2243 = vpop.f32.mrf.mxu0
  %v2244 = vadd.f32 0.0, %v2243
  %v2245 = vpop.f32.mrf.mxu0
  %v2246 = vadd.f32 0.0, %v2245
  %2247 = vdwg.mxu0
  %2248 = vmatprep.subr.mxu0 0.0
  %2249 = vmatpush1.msra.mxu0 0.0
  %2250 = vmatprep.subr.mxu0 0.0
  %2251 = vmatpush1.msra.mxu0 0.0
  %2252 = vmatprep.subr.mxu0 0.0
  %2253 = vmatpush1.msra.mxu0 0.0
  %2254 = vmatprep.subr.mxu0 0.0
  %2255 = vmatpush1.msra.mxu0 0.0
  %2256 = vmatprep.subr.mxu0 0.0
  %2257 = vmatpush1.msra.mxu0 0.0
  %2258 = vmatprep.subr.mxu0 0.0
  %2259 = vmatpush1.msra.mxu0 0.0
  %2260 = vmatprep.subr.mxu0 0.0
  %2261 = vmatpush1.msra.mxu0 0.0
  %2262 = vmatprep.subr.mxu0 0.0
  %2263 = vmatpush1.msra.mxu0 0.0
  %2264 = vmatprep.subr.mxu0 0.0
  %2265 = vmatpush1.msra.mxu0 0.0
  %2266 = vmatprep.subr.mxu0 0.0
  %2267 = vmatpush1.msra.mxu0 0.0
  %2268 = vmatprep.subr.mxu0 0.0
  %2269 = vmatpush1.msra.mxu0 0.0
  %2270 = vmatprep.subr.mxu0 0.0
  %2271 = vmatpush1.msra.mxu0 0.0
  %2272 = vmatprep.subr.mxu0 0.0
  %2273 = vmatpush1.msra.mxu0 0.0
  %2274 = vmatprep.subr.mxu0 0.0
  %2275 = vmatpush1.msra.mxu0 0.0
  %2276 = vmatprep.subr.mxu0 0.0
  %2277 = vmatpush1.msra.mxu0 0.0
  %2278 = vmatprep.subr.mxu0 %v2090
  %2279 = vmatpush1.msra.mxu0 %v2089
  %2280 = vmatprep.subr.mxu0 0.0
  %2281 = vmatpush2.msra.mxu0 0.0
  %2282 = vmatprep.subr.mxu0 0.0
  %2283 = vmatpush2.msra.mxu0 0.0
  %2284 = vmatprep.subr.mxu0 0.0
  %2285 = vmatpush2.msra.mxu0 0.0
  %2286 = vmatprep.subr.mxu0 0.0
  %2287 = vmatpush2.msra.mxu0 0.0
  %2288 = vmatprep.subr.mxu0 0.0
  %2289 = vmatpush2.msra.mxu0 0.0
  %2290 = vmatprep.subr.mxu0 0.0
  %2291 = vmatpush2.msra.mxu0 0.0
  %2292 = vmatprep.subr.mxu0 0.0
  %2293 = vmatpush2.msra.mxu0 0.0
  %2294 = vmatprep.subr.mxu0 0.0
  %2295 = vmatpush2.msra.mxu0 0.0
  %2296 = vmatprep.subr.mxu0 0.0
  %2297 = vmatpush2.msra.mxu0 0.0
  %2298 = vmatprep.subr.mxu0 0.0
  %2299 = vmatpush2.msra.mxu0 0.0
  %2300 = vmatprep.subr.mxu0 0.0
  %2301 = vmatpush2.msra.mxu0 0.0
  %2302 = vmatprep.subr.mxu0 0.0
  %2303 = vmatpush2.msra.mxu0 0.0
  %2304 = vmatprep.subr.mxu0 0.0
  %2305 = vmatpush2.msra.mxu0 0.0
  %2306 = vmatprep.subr.mxu0 0.0
  %2307 = vmatpush2.msra.mxu0 0.0
  %2308 = vmatprep.subr.mxu0 0.0
  %2309 = vmatpush2.msra.mxu0 0.0
  %2310 = vmatprep.subr.mxu0 0.0
  %2311 = vmatpush2.msra.mxu0 0.0
  %2312 = vmatprep.mubr.f32.mxu0 0.0
  %2313 = vmatmul.mubr.f32.gmra.mxu0 %v2104
  %v2314 = vpop.f32.mrf.mxu0
  %v2315 = vadd.f32 0.0, %v2314
  %v2316 = vpop.f32.mrf.mxu0
  %v2317 = vadd.f32 0.0, %v2316
  %2318 = vdwg.mxu0
  %2319 = vmatprep.subr.mxu0 0.0
  %2320 = vmatpush1.msra.mxu0 0.0
  %2321 = vmatprep.subr.mxu0 0.0
  %2322 = vmatpush1.msra.mxu0 0.0
  %2323 = vmatprep.subr.mxu0 0.0
  %2324 = vmatpush1.msra.mxu0 0.0
  %2325 = vmatprep.subr.mxu0 0.0
  %2326 = vmatpush1.msra.mxu0 0.0
  %2327 = vmatprep.subr.mxu0 0.0
  %2328 = vmatpush1.msra.mxu0 0.0
  %2329 = vmatprep.subr.mxu0 0.0
  %2330 = vmatpush1.msra.mxu0 0.0
  %2331 = vmatprep.subr.mxu0 0.0
  %2332 = vmatpush1.msra.mxu0 0.0
  %2333 = vmatprep.subr.mxu0 0.0
  %2334 = vmatpush1.msra.mxu0 0.0
  %2335 = vmatprep.subr.mxu0 0.0
  %2336 = vmatpush1.msra.mxu0 0.0
  %2337 = vmatprep.subr.mxu0 0.0
  %2338 = vmatpush1.msra.mxu0 0.0
  %2339 = vmatprep.subr.mxu0 0.0
  %2340 = vmatpush1.msra.mxu0 0.0
  %2341 = vmatprep.subr.mxu0 0.0
  %2342 = vmatpush1.msra.mxu0 0.0
  %2343 = vmatprep.subr.mxu0 0.0
  %2344 = vmatpush1.msra.mxu0 0.0
  %2345 = vmatprep.subr.mxu0 0.0
  %2346 = vmatpush1.msra.mxu0 0.0
  %2347 = vmatprep.subr.mxu0 0.0
  %2348 = vmatpush1.msra.mxu0 0.0
  %2349 = vmatprep.subr.mxu0 %v2092
  %2350 = vmatpush1.msra.mxu0 %v2091
  %2351 = vmatprep.subr.mxu0 0.0
  %2352 = vmatpush2.msra.mxu0 0.0
  %2353 = vmatprep.subr.mxu0 0.0
  %2354 = vmatpush2.msra.mxu0 0.0
  %2355 = vmatprep.subr.mxu0 0.0
  %2356 = vmatpush2.msra.mxu0 0.0
  %2357 = vmatprep.subr.mxu0 0.0
  %2358 = vmatpush2.msra.mxu0 0.0
  %2359 = vmatprep.subr.mxu0 0.0
  %2360 = vmatpush2.msra.mxu0 0.0
  %2361 = vmatprep.subr.mxu0 0.0
  %2362 = vmatpush2.msra.mxu0 0.0
  %2363 = vmatprep.subr.mxu0 0.0
  %2364 = vmatpush2.msra.mxu0 0.0
  %2365 = vmatprep.subr.mxu0 0.0
  %2366 = vmatpush2.msra.mxu0 0.0
  %2367 = vmatprep.subr.mxu0 0.0
  %2368 = vmatpush2.msra.mxu0 0.0
  %2369 = vmatprep.subr.mxu0 0.0
  %2370 = vmatpush2.msra.mxu0 0.0
  %2371 = vmatprep.subr.mxu0 0.0
  %2372 = vmatpush2.msra.mxu0 0.0
  %2373 = vmatprep.subr.mxu0 0.0
  %2374 = vmatpush2.msra.mxu0 0.0
  %2375 = vmatprep.subr.mxu0 0.0
  %2376 = vmatpush2.msra.mxu0 0.0
  %2377 = vmatprep.subr.mxu0 0.0
  %2378 = vmatpush2.msra.mxu0 0.0
  %2379 = vmatprep.subr.mxu0 0.0
  %2380 = vmatpush2.msra.mxu0 0.0
  %2381 = vmatprep.subr.mxu0 0.0
  %2382 = vmatpush2.msra.mxu0 0.0
  %2383 = vmatprep.mubr.f32.mxu0 0.0
  %2384 = vmatmul.mubr.f32.gmra.mxu0 %v2104
  %v2385 = vpop.f32.mrf.mxu0
  %v2386 = vadd.f32 0.0, %v2385
  %v2387 = vpop.f32.mrf.mxu0
  %v2388 = vadd.f32 0.0, %v2387
  %2389 = vdwg.mxu0
  %2390 = vmatprep.subr.mxu0 0.0
  %2391 = vmatpush1.msra.mxu0 0.0
  %2392 = vmatprep.subr.mxu0 0.0
  %2393 = vmatpush1.msra.mxu0 0.0
  %2394 = vmatprep.subr.mxu0 0.0
  %2395 = vmatpush1.msra.mxu0 0.0
  %2396 = vmatprep.subr.mxu0 0.0
  %2397 = vmatpush1.msra.mxu0 0.0
  %2398 = vmatprep.subr.mxu0 0.0
  %2399 = vmatpush1.msra.mxu0 0.0
  %2400 = vmatprep.subr.mxu0 0.0
  %2401 = vmatpush1.msra.mxu0 0.0
  %2402 = vmatprep.subr.mxu0 0.0
  %2403 = vmatpush1.msra.mxu0 0.0
  %2404 = vmatprep.subr.mxu0 0.0
  %2405 = vmatpush1.msra.mxu0 0.0
  %2406 = vmatprep.subr.mxu0 0.0
  %2407 = vmatpush1.msra.mxu0 0.0
  %2408 = vmatprep.subr.mxu0 0.0
  %2409 = vmatpush1.msra.mxu0 0.0
  %2410 = vmatprep.subr.mxu0 0.0
  %2411 = vmatpush1.msra.mxu0 0.0
  %2412 = vmatprep.subr.mxu0 0.0
  %2413 = vmatpush1.msra.mxu0 0.0
  %2414 = vmatprep.subr.mxu0 0.0
  %2415 = vmatpush1.msra.mxu0 0.0
  %2416 = vmatprep.subr.mxu0 0.0
  %2417 = vmatpush1.msra.mxu0 0.0
  %2418 = vmatprep.subr.mxu0 0.0
  %2419 = vmatpush1.msra.mxu0 0.0
  %2420 = vmatprep.subr.mxu0 0.0
  %2421 = vmatpush1.msra.mxu0 %v2093
  %2422 = vmatprep.subr.mxu0 0.0
  %2423 = vmatpush2.msra.mxu0 0.0
  %2424 = vmatprep.subr.mxu0 0.0
  %2425 = vmatpush2.msra.mxu0 0.0
  %2426 = vmatprep.subr.mxu0 0.0
  %2427 = vmatpush2.msra.mxu0 0.0
  %2428 = vmatprep.subr.mxu0 0.0
  %2429 = vmatpush2.msra.mxu0 0.0
  %2430 = vmatprep.subr.mxu0 0.0
  %2431 = vmatpush2.msra.mxu0 0.0
  %2432 = vmatprep.subr.mxu0 0.0
  %2433 = vmatpush2.msra.mxu0 0.0
  %2434 = vmatprep.subr.mxu0 0.0
  %2435 = vmatpush2.msra.mxu0 0.0
  %2436 = vmatprep.subr.mxu0 0.0
  %2437 = vmatpush2.msra.mxu0 0.0
  %2438 = vmatprep.subr.mxu0 0.0
  %2439 = vmatpush2.msra.mxu0 0.0
  %2440 = vmatprep.subr.mxu0 0.0
  %2441 = vmatpush2.msra.mxu0 0.0
  %2442 = vmatprep.subr.mxu0 0.0
  %2443 = vmatpush2.msra.mxu0 0.0
  %2444 = vmatprep.subr.mxu0 0.0
  %2445 = vmatpush2.msra.mxu0 0.0
  %2446 = vmatprep.subr.mxu0 0.0
  %2447 = vmatpush2.msra.mxu0 0.0
  %2448 = vmatprep.subr.mxu0 0.0
  %2449 = vmatpush2.msra.mxu0 0.0
  %2450 = vmatprep.subr.mxu0 0.0
  %2451 = vmatpush2.msra.mxu0 0.0
  %2452 = vmatprep.subr.mxu0 0.0
  %2453 = vmatpush2.msra.mxu0 0.0
  %2454 = vmatprep.mubr.f32.mxu0 0.0
  %2455 = vmatmul.mubr.f32.gmra.mxu0 %v2104
  %v2456 = vpop.f32.mrf.mxu0
  %v2457 = vadd.f32 0.0, %v2456
  %v2458 = vpop.f32.mrf.mxu0
  %2459 = vdwg.mxu0
  %v2460 = vadd.f32 %v2033, %v2173
  %v2461 = vadd.f32 %v2034, %v2175
  %v2462 = vadd.f32 %v2035, %v2244
  %v2463 = vadd.f32 %v2036, %v2246
  %v2464 = vadd.f32 %v2037, %v2315
  %v2465 = vadd.f32 %v2038, %v2317
  %v2466 = vadd.f32 %v2039, %v2386
  %v2467 = vadd.f32 %v2040, %v2388
  %v2468 = vadd.f32 %v2041, %v2457
  %s2469 = scalar_lea.vmem %s2, 48
  %v2470 = vld [vmem:[%s2469] sm:$0xff]
  %2471 = vrot.lane.b32.xlu0 %v2044, 97
  %v2472 = vpop.permute.xlu0 %2471
  %2473 = vrot.lane.b32.xlu0 %v2045, 97
  %v2474 = vpop.permute.xlu0 %2473
  %2475 = vrot.lane.b32.xlu0 %v2046, 97
  %v2476 = vpop.permute.xlu0 %2475
  %2477 = vrot.lane.b32.xlu0 %v2047, 97
  %v2478 = vpop.permute.xlu0 %2477
  %2479 = vrot.lane.b32.xlu0 %v2048, 97
  %v2480 = vpop.permute.xlu0 %2479
  %2481 = vrot.lane.b32.xlu0 %v2049, 97
  %v2482 = vpop.permute.xlu0 %2481
  %2483 = vrot.lane.b32.xlu0 %v2050, 97
  %v2484 = vpop.permute.xlu0 %2483
  %2485 = vrot.lane.b32.xlu0 %v2051, 97
  %v2486 = vpop.permute.xlu0 %2485
  %2487 = vrot.lane.b32.xlu0 %v2052, 97
  %v2488 = vpop.permute.xlu0 %2487
  %2489 = vrot.lane.b32.xlu0 %v2053, 97
  %v2490 = vpop.permute.xlu0 %2489
  %vm2491 = vcmask 793600
  %v2492 = vsel %vm2491, %v2472, %v2474
  %v2493 = vsel %vm2491, %v2474, %v2476
  %v2494 = vsel %vm2491, %v2476, %v2478
  %v2495 = vsel %vm2491, %v2478, %v2480
  %v2496 = vsel %vm2491, %v2480, %v2482
  %v2497 = vsel %vm2491, %v2482, %v2484
  %v2498 = vsel %vm2491, %v2484, %v2486
  %v2499 = vsel %vm2491, %v2486, %v2488
  %v2500 = vsel %vm2491, %v2488, %v2490
  %v2511 = vsel %vm106, %v2470, 0
  %2513 = vmatprep.subr.mxu0 0.0
  %2514 = vmatpush1.msra.mxu0 0.0
  %2515 = vmatprep.subr.mxu0 0.0
  %2516 = vmatpush1.msra.mxu0 0.0
  %2517 = vmatprep.subr.mxu0 0.0
  %2518 = vmatpush1.msra.mxu0 0.0
  %2519 = vmatprep.subr.mxu0 0.0
  %2520 = vmatpush1.msra.mxu0 0.0
  %2521 = vmatprep.subr.mxu0 0.0
  %2522 = vmatpush1.msra.mxu0 0.0
  %2523 = vmatprep.subr.mxu0 0.0
  %2524 = vmatpush1.msra.mxu0 0.0
  %2525 = vmatprep.subr.mxu0 0.0
  %2526 = vmatpush1.msra.mxu0 0.0
  %2527 = vmatprep.subr.mxu0 0.0
  %2528 = vmatpush1.msra.mxu0 0.0
  %2529 = vmatprep.subr.mxu0 0.0
  %2530 = vmatpush1.msra.mxu0 0.0
  %2531 = vmatprep.subr.mxu0 0.0
  %2532 = vmatpush1.msra.mxu0 0.0
  %2533 = vmatprep.subr.mxu0 0.0
  %2534 = vmatpush1.msra.mxu0 0.0
  %2535 = vmatprep.subr.mxu0 0.0
  %2536 = vmatpush1.msra.mxu0 0.0
  %2537 = vmatprep.subr.mxu0 0.0
  %2538 = vmatpush1.msra.mxu0 0.0
  %2539 = vmatprep.subr.mxu0 0.0
  %2540 = vmatpush1.msra.mxu0 0.0
  %2541 = vmatprep.subr.mxu0 0.0
  %2542 = vmatpush1.msra.mxu0 0.0
  %2543 = vmatprep.subr.mxu0 %v2493
  %2544 = vmatpush1.msra.mxu0 %v2492
  %2545 = vmatprep.subr.mxu0 0.0
  %2546 = vmatpush2.msra.mxu0 0.0
  %2547 = vmatprep.subr.mxu0 0.0
  %2548 = vmatpush2.msra.mxu0 0.0
  %2549 = vmatprep.subr.mxu0 0.0
  %2550 = vmatpush2.msra.mxu0 0.0
  %2551 = vmatprep.subr.mxu0 0.0
  %2552 = vmatpush2.msra.mxu0 0.0
  %2553 = vmatprep.subr.mxu0 0.0
  %2554 = vmatpush2.msra.mxu0 0.0
  %2555 = vmatprep.subr.mxu0 0.0
  %2556 = vmatpush2.msra.mxu0 0.0
  %2557 = vmatprep.subr.mxu0 0.0
  %2558 = vmatpush2.msra.mxu0 0.0
  %2559 = vmatprep.subr.mxu0 0.0
  %2560 = vmatpush2.msra.mxu0 0.0
  %2561 = vmatprep.subr.mxu0 0.0
  %2562 = vmatpush2.msra.mxu0 0.0
  %2563 = vmatprep.subr.mxu0 0.0
  %2564 = vmatpush2.msra.mxu0 0.0
  %2565 = vmatprep.subr.mxu0 0.0
  %2566 = vmatpush2.msra.mxu0 0.0
  %2567 = vmatprep.subr.mxu0 0.0
  %2568 = vmatpush2.msra.mxu0 0.0
  %2569 = vmatprep.subr.mxu0 0.0
  %2570 = vmatpush2.msra.mxu0 0.0
  %2571 = vmatprep.subr.mxu0 0.0
  %2572 = vmatpush2.msra.mxu0 0.0
  %2573 = vmatprep.subr.mxu0 0.0
  %2574 = vmatpush2.msra.mxu0 0.0
  %2575 = vmatprep.subr.mxu0 0.0
  %2576 = vmatpush2.msra.mxu0 0.0
  %2577 = vmatprep.mubr.f32.mxu0 0.0
  %2578 = vmatmul.mubr.f32.gmra.mxu0 %v2511
  %v2579 = vpop.f32.mrf.mxu0
  %v2580 = vadd.f32 0.0, %v2579
  %v2581 = vpop.f32.mrf.mxu0
  %v2582 = vadd.f32 0.0, %v2581
  %2583 = vdwg.mxu0
  %2584 = vmatprep.subr.mxu0 0.0
  %2585 = vmatpush1.msra.mxu0 0.0
  %2586 = vmatprep.subr.mxu0 0.0
  %2587 = vmatpush1.msra.mxu0 0.0
  %2588 = vmatprep.subr.mxu0 0.0
  %2589 = vmatpush1.msra.mxu0 0.0
  %2590 = vmatprep.subr.mxu0 0.0
  %2591 = vmatpush1.msra.mxu0 0.0
  %2592 = vmatprep.subr.mxu0 0.0
  %2593 = vmatpush1.msra.mxu0 0.0
  %2594 = vmatprep.subr.mxu0 0.0
  %2595 = vmatpush1.msra.mxu0 0.0
  %2596 = vmatprep.subr.mxu0 0.0
  %2597 = vmatpush1.msra.mxu0 0.0
  %2598 = vmatprep.subr.mxu0 0.0
  %2599 = vmatpush1.msra.mxu0 0.0
  %2600 = vmatprep.subr.mxu0 0.0
  %2601 = vmatpush1.msra.mxu0 0.0
  %2602 = vmatprep.subr.mxu0 0.0
  %2603 = vmatpush1.msra.mxu0 0.0
  %2604 = vmatprep.subr.mxu0 0.0
  %2605 = vmatpush1.msra.mxu0 0.0
  %2606 = vmatprep.subr.mxu0 0.0
  %2607 = vmatpush1.msra.mxu0 0.0
  %2608 = vmatprep.subr.mxu0 0.0
  %2609 = vmatpush1.msra.mxu0 0.0
  %2610 = vmatprep.subr.mxu0 0.0
  %2611 = vmatpush1.msra.mxu0 0.0
  %2612 = vmatprep.subr.mxu0 0.0
  %2613 = vmatpush1.msra.mxu0 0.0
  %2614 = vmatprep.subr.mxu0 %v2495
  %2615 = vmatpush1.msra.mxu0 %v2494
  %2616 = vmatprep.subr.mxu0 0.0
  %2617 = vmatpush2.msra.mxu0 0.0
  %2618 = vmatprep.subr.mxu0 0.0
  %2619 = vmatpush2.msra.mxu0 0.0
  %2620 = vmatprep.subr.mxu0 0.0
  %2621 = vmatpush2.msra.mxu0 0.0
  %2622 = vmatprep.subr.mxu0 0.0
  %2623 = vmatpush2.msra.mxu0 0.0
  %2624 = vmatprep.subr.mxu0 0.0
  %2625 = vmatpush2.msra.mxu0 0.0
  %2626 = vmatprep.subr.mxu0 0.0
  %2627 = vmatpush2.msra.mxu0 0.0
  %2628 = vmatprep.subr.mxu0 0.0
  %2629 = vmatpush2.msra.mxu0 0.0
  %2630 = vmatprep.subr.mxu0 0.0
  %2631 = vmatpush2.msra.mxu0 0.0
  %2632 = vmatprep.subr.mxu0 0.0
  %2633 = vmatpush2.msra.mxu0 0.0
  %2634 = vmatprep.subr.mxu0 0.0
  %2635 = vmatpush2.msra.mxu0 0.0
  %2636 = vmatprep.subr.mxu0 0.0
  %2637 = vmatpush2.msra.mxu0 0.0
  %2638 = vmatprep.subr.mxu0 0.0
  %2639 = vmatpush2.msra.mxu0 0.0
  %2640 = vmatprep.subr.mxu0 0.0
  %2641 = vmatpush2.msra.mxu0 0.0
  %2642 = vmatprep.subr.mxu0 0.0
  %2643 = vmatpush2.msra.mxu0 0.0
  %2644 = vmatprep.subr.mxu0 0.0
  %2645 = vmatpush2.msra.mxu0 0.0
  %2646 = vmatprep.subr.mxu0 0.0
  %2647 = vmatpush2.msra.mxu0 0.0
  %2648 = vmatprep.mubr.f32.mxu0 0.0
  %2649 = vmatmul.mubr.f32.gmra.mxu0 %v2511
  %v2650 = vpop.f32.mrf.mxu0
  %v2651 = vadd.f32 0.0, %v2650
  %v2652 = vpop.f32.mrf.mxu0
  %v2653 = vadd.f32 0.0, %v2652
  %2654 = vdwg.mxu0
  %2655 = vmatprep.subr.mxu0 0.0
  %2656 = vmatpush1.msra.mxu0 0.0
  %2657 = vmatprep.subr.mxu0 0.0
  %2658 = vmatpush1.msra.mxu0 0.0
  %2659 = vmatprep.subr.mxu0 0.0
  %2660 = vmatpush1.msra.mxu0 0.0
  %2661 = vmatprep.subr.mxu0 0.0
  %2662 = vmatpush1.msra.mxu0 0.0
  %2663 = vmatprep.subr.mxu0 0.0
  %2664 = vmatpush1.msra.mxu0 0.0
  %2665 = vmatprep.subr.mxu0 0.0
  %2666 = vmatpush1.msra.mxu0 0.0
  %2667 = vmatprep.subr.mxu0 0.0
  %2668 = vmatpush1.msra.mxu0 0.0
  %2669 = vmatprep.subr.mxu0 0.0
  %2670 = vmatpush1.msra.mxu0 0.0
  %2671 = vmatprep.subr.mxu0 0.0
  %2672 = vmatpush1.msra.mxu0 0.0
  %2673 = vmatprep.subr.mxu0 0.0
  %2674 = vmatpush1.msra.mxu0 0.0
  %2675 = vmatprep.subr.mxu0 0.0
  %2676 = vmatpush1.msra.mxu0 0.0
  %2677 = vmatprep.subr.mxu0 0.0
  %2678 = vmatpush1.msra.mxu0 0.0
  %2679 = vmatprep.subr.mxu0 0.0
  %2680 = vmatpush1.msra.mxu0 0.0
  %2681 = vmatprep.subr.mxu0 0.0
  %2682 = vmatpush1.msra.mxu0 0.0
  %2683 = vmatprep.subr.mxu0 0.0
  %2684 = vmatpush1.msra.mxu0 0.0
  %2685 = vmatprep.subr.mxu0 %v2497
  %2686 = vmatpush1.msra.mxu0 %v2496
  %2687 = vmatprep.subr.mxu0 0.0
  %2688 = vmatpush2.msra.mxu0 0.0
  %2689 = vmatprep.subr.mxu0 0.0
  %2690 = vmatpush2.msra.mxu0 0.0
  %2691 = vmatprep.subr.mxu0 0.0
  %2692 = vmatpush2.msra.mxu0 0.0
  %2693 = vmatprep.subr.mxu0 0.0
  %2694 = vmatpush2.msra.mxu0 0.0
  %2695 = vmatprep.subr.mxu0 0.0
  %2696 = vmatpush2.msra.mxu0 0.0
  %2697 = vmatprep.subr.mxu0 0.0
  %2698 = vmatpush2.msra.mxu0 0.0
  %2699 = vmatprep.subr.mxu0 0.0
  %2700 = vmatpush2.msra.mxu0 0.0
  %2701 = vmatprep.subr.mxu0 0.0
  %2702 = vmatpush2.msra.mxu0 0.0
  %2703 = vmatprep.subr.mxu0 0.0
  %2704 = vmatpush2.msra.mxu0 0.0
  %2705 = vmatprep.subr.mxu0 0.0
  %2706 = vmatpush2.msra.mxu0 0.0
  %2707 = vmatprep.subr.mxu0 0.0
  %2708 = vmatpush2.msra.mxu0 0.0
  %2709 = vmatprep.subr.mxu0 0.0
  %2710 = vmatpush2.msra.mxu0 0.0
  %2711 = vmatprep.subr.mxu0 0.0
  %2712 = vmatpush2.msra.mxu0 0.0
  %2713 = vmatprep.subr.mxu0 0.0
  %2714 = vmatpush2.msra.mxu0 0.0
  %2715 = vmatprep.subr.mxu0 0.0
  %2716 = vmatpush2.msra.mxu0 0.0
  %2717 = vmatprep.subr.mxu0 0.0
  %2718 = vmatpush2.msra.mxu0 0.0
  %2719 = vmatprep.mubr.f32.mxu0 0.0
  %2720 = vmatmul.mubr.f32.gmra.mxu0 %v2511
  %v2721 = vpop.f32.mrf.mxu0
  %v2722 = vadd.f32 0.0, %v2721
  %v2723 = vpop.f32.mrf.mxu0
  %v2724 = vadd.f32 0.0, %v2723
  %2725 = vdwg.mxu0
  %2726 = vmatprep.subr.mxu0 0.0
  %2727 = vmatpush1.msra.mxu0 0.0
  %2728 = vmatprep.subr.mxu0 0.0
  %2729 = vmatpush1.msra.mxu0 0.0
  %2730 = vmatprep.subr.mxu0 0.0
  %2731 = vmatpush1.msra.mxu0 0.0
  %2732 = vmatprep.subr.mxu0 0.0
  %2733 = vmatpush1.msra.mxu0 0.0
  %2734 = vmatprep.subr.mxu0 0.0
  %2735 = vmatpush1.msra.mxu0 0.0
  %2736 = vmatprep.subr.mxu0 0.0
  %2737 = vmatpush1.msra.mxu0 0.0
  %2738 = vmatprep.subr.mxu0 0.0
  %2739 = vmatpush1.msra.mxu0 0.0
  %2740 = vmatprep.subr.mxu0 0.0
  %2741 = vmatpush1.msra.mxu0 0.0
  %2742 = vmatprep.subr.mxu0 0.0
  %2743 = vmatpush1.msra.mxu0 0.0
  %2744 = vmatprep.subr.mxu0 0.0
  %2745 = vmatpush1.msra.mxu0 0.0
  %2746 = vmatprep.subr.mxu0 0.0
  %2747 = vmatpush1.msra.mxu0 0.0
  %2748 = vmatprep.subr.mxu0 0.0
  %2749 = vmatpush1.msra.mxu0 0.0
  %2750 = vmatprep.subr.mxu0 0.0
  %2751 = vmatpush1.msra.mxu0 0.0
  %2752 = vmatprep.subr.mxu0 0.0
  %2753 = vmatpush1.msra.mxu0 0.0
  %2754 = vmatprep.subr.mxu0 0.0
  %2755 = vmatpush1.msra.mxu0 0.0
  %2756 = vmatprep.subr.mxu0 %v2499
  %2757 = vmatpush1.msra.mxu0 %v2498
  %2758 = vmatprep.subr.mxu0 0.0
  %2759 = vmatpush2.msra.mxu0 0.0
  %2760 = vmatprep.subr.mxu0 0.0
  %2761 = vmatpush2.msra.mxu0 0.0
  %2762 = vmatprep.subr.mxu0 0.0
  %2763 = vmatpush2.msra.mxu0 0.0
  %2764 = vmatprep.subr.mxu0 0.0
  %2765 = vmatpush2.msra.mxu0 0.0
  %2766 = vmatprep.subr.mxu0 0.0
  %2767 = vmatpush2.msra.mxu0 0.0
  %2768 = vmatprep.subr.mxu0 0.0
  %2769 = vmatpush2.msra.mxu0 0.0
  %2770 = vmatprep.subr.mxu0 0.0
  %2771 = vmatpush2.msra.mxu0 0.0
  %2772 = vmatprep.subr.mxu0 0.0
  %2773 = vmatpush2.msra.mxu0 0.0
  %2774 = vmatprep.subr.mxu0 0.0
  %2775 = vmatpush2.msra.mxu0 0.0
  %2776 = vmatprep.subr.mxu0 0.0
  %2777 = vmatpush2.msra.mxu0 0.0
  %2778 = vmatprep.subr.mxu0 0.0
  %2779 = vmatpush2.msra.mxu0 0.0
  %2780 = vmatprep.subr.mxu0 0.0
  %2781 = vmatpush2.msra.mxu0 0.0
  %2782 = vmatprep.subr.mxu0 0.0
  %2783 = vmatpush2.msra.mxu0 0.0
  %2784 = vmatprep.subr.mxu0 0.0
  %2785 = vmatpush2.msra.mxu0 0.0
  %2786 = vmatprep.subr.mxu0 0.0
  %2787 = vmatpush2.msra.mxu0 0.0
  %2788 = vmatprep.subr.mxu0 0.0
  %2789 = vmatpush2.msra.mxu0 0.0
  %2790 = vmatprep.mubr.f32.mxu0 0.0
  %2791 = vmatmul.mubr.f32.gmra.mxu0 %v2511
  %v2792 = vpop.f32.mrf.mxu0
  %v2793 = vadd.f32 0.0, %v2792
  %v2794 = vpop.f32.mrf.mxu0
  %v2795 = vadd.f32 0.0, %v2794
  %2796 = vdwg.mxu0
  %2797 = vmatprep.subr.mxu0 0.0
  %2798 = vmatpush1.msra.mxu0 0.0
  %2799 = vmatprep.subr.mxu0 0.0
  %2800 = vmatpush1.msra.mxu0 0.0
  %2801 = vmatprep.subr.mxu0 0.0
  %2802 = vmatpush1.msra.mxu0 0.0
  %2803 = vmatprep.subr.mxu0 0.0
  %2804 = vmatpush1.msra.mxu0 0.0
  %2805 = vmatprep.subr.mxu0 0.0
  %2806 = vmatpush1.msra.mxu0 0.0
  %2807 = vmatprep.subr.mxu0 0.0
  %2808 = vmatpush1.msra.mxu0 0.0
  %2809 = vmatprep.subr.mxu0 0.0
  %2810 = vmatpush1.msra.mxu0 0.0
  %2811 = vmatprep.subr.mxu0 0.0
  %2812 = vmatpush1.msra.mxu0 0.0
  %2813 = vmatprep.subr.mxu0 0.0
  %2814 = vmatpush1.msra.mxu0 0.0
  %2815 = vmatprep.subr.mxu0 0.0
  %2816 = vmatpush1.msra.mxu0 0.0
  %2817 = vmatprep.subr.mxu0 0.0
  %2818 = vmatpush1.msra.mxu0 0.0
  %2819 = vmatprep.subr.mxu0 0.0
  %2820 = vmatpush1.msra.mxu0 0.0
  %2821 = vmatprep.subr.mxu0 0.0
  %2822 = vmatpush1.msra.mxu0 0.0
  %2823 = vmatprep.subr.mxu0 0.0
  %2824 = vmatpush1.msra.mxu0 0.0
  %2825 = vmatprep.subr.mxu0 0.0
  %2826 = vmatpush1.msra.mxu0 0.0
  %2827 = vmatprep.subr.mxu0 0.0
  %2828 = vmatpush1.msra.mxu0 %v2500
  %2829 = vmatprep.subr.mxu0 0.0
  %2830 = vmatpush2.msra.mxu0 0.0
  %2831 = vmatprep.subr.mxu0 0.0
  %2832 = vmatpush2.msra.mxu0 0.0
  %2833 = vmatprep.subr.mxu0 0.0
  %2834 = vmatpush2.msra.mxu0 0.0
  %2835 = vmatprep.subr.mxu0 0.0
  %2836 = vmatpush2.msra.mxu0 0.0
  %2837 = vmatprep.subr.mxu0 0.0
  %2838 = vmatpush2.msra.mxu0 0.0
  %2839 = vmatprep.subr.mxu0 0.0
  %2840 = vmatpush2.msra.mxu0 0.0
  %2841 = vmatprep.subr.mxu0 0.0
  %2842 = vmatpush2.msra.mxu0 0.0
  %2843 = vmatprep.subr.mxu0 0.0
  %2844 = vmatpush2.msra.mxu0 0.0
  %2845 = vmatprep.subr.mxu0 0.0
  %2846 = vmatpush2.msra.mxu0 0.0
  %2847 = vmatprep.subr.mxu0 0.0
  %2848 = vmatpush2.msra.mxu0 0.0
  %2849 = vmatprep.subr.mxu0 0.0
  %2850 = vmatpush2.msra.mxu0 0.0
  %2851 = vmatprep.subr.mxu0 0.0
  %2852 = vmatpush2.msra.mxu0 0.0
  %2853 = vmatprep.subr.mxu0 0.0
  %2854 = vmatpush2.msra.mxu0 0.0
  %2855 = vmatprep.subr.mxu0 0.0
  %2856 = vmatpush2.msra.mxu0 0.0
  %2857 = vmatprep.subr.mxu0 0.0
  %2858 = vmatpush2.msra.mxu0 0.0
  %2859 = vmatprep.subr.mxu0 0.0
  %2860 = vmatpush2.msra.mxu0 0.0
  %2861 = vmatprep.mubr.f32.mxu0 0.0
  %2862 = vmatmul.mubr.f32.gmra.mxu0 %v2511
  %v2863 = vpop.f32.mrf.mxu0
  %v2864 = vadd.f32 0.0, %v2863
  %v2865 = vpop.f32.mrf.mxu0
  %2866 = vdwg.mxu0
  %v2867 = vadd.f32 %v2460, %v2580
  %v2868 = vadd.f32 %v2461, %v2582
  %v2869 = vadd.f32 %v2462, %v2651
  %v2870 = vadd.f32 %v2463, %v2653
  %v2871 = vadd.f32 %v2464, %v2722
  %v2872 = vadd.f32 %v2465, %v2724
  %v2873 = vadd.f32 %v2466, %v2793
  %v2874 = vadd.f32 %v2467, %v2795
  %v2875 = vadd.f32 %v2468, %v2864
  %s2876 = scalar_lea.vmem %s2, 56
  %v2877 = vld [vmem:[%s2876] sm:$0xff]
  %2878 = vrot.lane.b32.xlu0 %v2044, 96
  %v2879 = vpop.permute.xlu0 %2878
  %2880 = vrot.lane.b32.xlu0 %v2045, 96
  %v2881 = vpop.permute.xlu0 %2880
  %2882 = vrot.lane.b32.xlu0 %v2046, 96
  %v2883 = vpop.permute.xlu0 %2882
  %2884 = vrot.lane.b32.xlu0 %v2047, 96
  %v2885 = vpop.permute.xlu0 %2884
  %2886 = vrot.lane.b32.xlu0 %v2048, 96
  %v2887 = vpop.permute.xlu0 %2886
  %2888 = vrot.lane.b32.xlu0 %v2049, 96
  %v2889 = vpop.permute.xlu0 %2888
  %2890 = vrot.lane.b32.xlu0 %v2050, 96
  %v2891 = vpop.permute.xlu0 %2890
  %2892 = vrot.lane.b32.xlu0 %v2051, 96
  %v2893 = vpop.permute.xlu0 %2892
  %2894 = vrot.lane.b32.xlu0 %v2052, 96
  %v2895 = vpop.permute.xlu0 %2894
  %2896 = vrot.lane.b32.xlu0 %v2053, 96
  %v2897 = vpop.permute.xlu0 %2896
  %vm2898 = vcmask 785408
  %v2899 = vsel %vm2898, %v2879, %v2881
  %v2900 = vsel %vm2898, %v2881, %v2883
  %v2901 = vsel %vm2898, %v2883, %v2885
  %v2902 = vsel %vm2898, %v2885, %v2887
  %v2903 = vsel %vm2898, %v2887, %v2889
  %v2904 = vsel %vm2898, %v2889, %v2891
  %v2905 = vsel %vm2898, %v2891, %v2893
  %v2906 = vsel %vm2898, %v2893, %v2895
  %v2907 = vsel %vm2898, %v2895, %v2897
  %v2918 = vsel %vm106, %v2877, 0
  %2920 = vmatprep.subr.mxu0 0.0
  %2921 = vmatpush1.msra.mxu0 0.0
  %2922 = vmatprep.subr.mxu0 0.0
  %2923 = vmatpush1.msra.mxu0 0.0
  %2924 = vmatprep.subr.mxu0 0.0
  %2925 = vmatpush1.msra.mxu0 0.0
  %2926 = vmatprep.subr.mxu0 0.0
  %2927 = vmatpush1.msra.mxu0 0.0
  %2928 = vmatprep.subr.mxu0 0.0
  %2929 = vmatpush1.msra.mxu0 0.0
  %2930 = vmatprep.subr.mxu0 0.0
  %2931 = vmatpush1.msra.mxu0 0.0
  %2932 = vmatprep.subr.mxu0 0.0
  %2933 = vmatpush1.msra.mxu0 0.0
  %2934 = vmatprep.subr.mxu0 0.0
  %2935 = vmatpush1.msra.mxu0 0.0
  %2936 = vmatprep.subr.mxu0 0.0
  %2937 = vmatpush1.msra.mxu0 0.0
  %2938 = vmatprep.subr.mxu0 0.0
  %2939 = vmatpush1.msra.mxu0 0.0
  %2940 = vmatprep.subr.mxu0 0.0
  %2941 = vmatpush1.msra.mxu0 0.0
  %2942 = vmatprep.subr.mxu0 0.0
  %2943 = vmatpush1.msra.mxu0 0.0
  %2944 = vmatprep.subr.mxu0 0.0
  %2945 = vmatpush1.msra.mxu0 0.0
  %2946 = vmatprep.subr.mxu0 0.0
  %2947 = vmatpush1.msra.mxu0 0.0
  %2948 = vmatprep.subr.mxu0 0.0
  %2949 = vmatpush1.msra.mxu0 0.0
  %2950 = vmatprep.subr.mxu0 %v2900
  %2951 = vmatpush1.msra.mxu0 %v2899
  %2952 = vmatprep.subr.mxu0 0.0
  %2953 = vmatpush2.msra.mxu0 0.0
  %2954 = vmatprep.subr.mxu0 0.0
  %2955 = vmatpush2.msra.mxu0 0.0
  %2956 = vmatprep.subr.mxu0 0.0
  %2957 = vmatpush2.msra.mxu0 0.0
  %2958 = vmatprep.subr.mxu0 0.0
  %2959 = vmatpush2.msra.mxu0 0.0
  %2960 = vmatprep.subr.mxu0 0.0
  %2961 = vmatpush2.msra.mxu0 0.0
  %2962 = vmatprep.subr.mxu0 0.0
  %2963 = vmatpush2.msra.mxu0 0.0
  %2964 = vmatprep.subr.mxu0 0.0
  %2965 = vmatpush2.msra.mxu0 0.0
  %2966 = vmatprep.subr.mxu0 0.0
  %2967 = vmatpush2.msra.mxu0 0.0
  %2968 = vmatprep.subr.mxu0 0.0
  %2969 = vmatpush2.msra.mxu0 0.0
  %2970 = vmatprep.subr.mxu0 0.0
  %2971 = vmatpush2.msra.mxu0 0.0
  %2972 = vmatprep.subr.mxu0 0.0
  %2973 = vmatpush2.msra.mxu0 0.0
  %2974 = vmatprep.subr.mxu0 0.0
  %2975 = vmatpush2.msra.mxu0 0.0
  %2976 = vmatprep.subr.mxu0 0.0
  %2977 = vmatpush2.msra.mxu0 0.0
  %2978 = vmatprep.subr.mxu0 0.0
  %2979 = vmatpush2.msra.mxu0 0.0
  %2980 = vmatprep.subr.mxu0 0.0
  %2981 = vmatpush2.msra.mxu0 0.0
  %2982 = vmatprep.subr.mxu0 0.0
  %2983 = vmatpush2.msra.mxu0 0.0
  %2984 = vmatprep.mubr.f32.mxu0 0.0
  %2985 = vmatmul.mubr.f32.gmra.mxu0 %v2918
  %v2986 = vpop.f32.mrf.mxu0
  %v2987 = vadd.f32 0.0, %v2986
  %v2988 = vpop.f32.mrf.mxu0
  %v2989 = vadd.f32 0.0, %v2988
  %2990 = vdwg.mxu0
  %2991 = vmatprep.subr.mxu0 0.0
  %2992 = vmatpush1.msra.mxu0 0.0
  %2993 = vmatprep.subr.mxu0 0.0
  %2994 = vmatpush1.msra.mxu0 0.0
  %2995 = vmatprep.subr.mxu0 0.0
  %2996 = vmatpush1.msra.mxu0 0.0
  %2997 = vmatprep.subr.mxu0 0.0
  %2998 = vmatpush1.msra.mxu0 0.0
  %2999 = vmatprep.subr.mxu0 0.0
  %3000 = vmatpush1.msra.mxu0 0.0
  %3001 = vmatprep.subr.mxu0 0.0
  %3002 = vmatpush1.msra.mxu0 0.0
  %3003 = vmatprep.subr.mxu0 0.0
  %3004 = vmatpush1.msra.mxu0 0.0
  %3005 = vmatprep.subr.mxu0 0.0
  %3006 = vmatpush1.msra.mxu0 0.0
  %3007 = vmatprep.subr.mxu0 0.0
  %3008 = vmatpush1.msra.mxu0 0.0
  %3009 = vmatprep.subr.mxu0 0.0
  %3010 = vmatpush1.msra.mxu0 0.0
  %3011 = vmatprep.subr.mxu0 0.0
  %3012 = vmatpush1.msra.mxu0 0.0
  %3013 = vmatprep.subr.mxu0 0.0
  %3014 = vmatpush1.msra.mxu0 0.0
  %3015 = vmatprep.subr.mxu0 0.0
  %3016 = vmatpush1.msra.mxu0 0.0
  %3017 = vmatprep.subr.mxu0 0.0
  %3018 = vmatpush1.msra.mxu0 0.0
  %3019 = vmatprep.subr.mxu0 0.0
  %3020 = vmatpush1.msra.mxu0 0.0
  %3021 = vmatprep.subr.mxu0 %v2902
  %3022 = vmatpush1.msra.mxu0 %v2901
  %3023 = vmatprep.subr.mxu0 0.0
  %3024 = vmatpush2.msra.mxu0 0.0
  %3025 = vmatprep.subr.mxu0 0.0
  %3026 = vmatpush2.msra.mxu0 0.0
  %3027 = vmatprep.subr.mxu0 0.0
  %3028 = vmatpush2.msra.mxu0 0.0
  %3029 = vmatprep.subr.mxu0 0.0
  %3030 = vmatpush2.msra.mxu0 0.0
  %3031 = vmatprep.subr.mxu0 0.0
  %3032 = vmatpush2.msra.mxu0 0.0
  %3033 = vmatprep.subr.mxu0 0.0
  %3034 = vmatpush2.msra.mxu0 0.0
  %3035 = vmatprep.subr.mxu0 0.0
  %3036 = vmatpush2.msra.mxu0 0.0
  %3037 = vmatprep.subr.mxu0 0.0
  %3038 = vmatpush2.msra.mxu0 0.0
  %3039 = vmatprep.subr.mxu0 0.0
  %3040 = vmatpush2.msra.mxu0 0.0
  %3041 = vmatprep.subr.mxu0 0.0
  %3042 = vmatpush2.msra.mxu0 0.0
  %3043 = vmatprep.subr.mxu0 0.0
  %3044 = vmatpush2.msra.mxu0 0.0
  %3045 = vmatprep.subr.mxu0 0.0
  %3046 = vmatpush2.msra.mxu0 0.0
  %3047 = vmatprep.subr.mxu0 0.0
  %3048 = vmatpush2.msra.mxu0 0.0
  %3049 = vmatprep.subr.mxu0 0.0
  %3050 = vmatpush2.msra.mxu0 0.0
  %3051 = vmatprep.subr.mxu0 0.0
  %3052 = vmatpush2.msra.mxu0 0.0
  %3053 = vmatprep.subr.mxu0 0.0
  %3054 = vmatpush2.msra.mxu0 0.0
  %3055 = vmatprep.mubr.f32.mxu0 0.0
  %3056 = vmatmul.mubr.f32.gmra.mxu0 %v2918
  %v3057 = vpop.f32.mrf.mxu0
  %v3058 = vadd.f32 0.0, %v3057
  %v3059 = vpop.f32.mrf.mxu0
  %v3060 = vadd.f32 0.0, %v3059
  %3061 = vdwg.mxu0
  %3062 = vmatprep.subr.mxu0 0.0
  %3063 = vmatpush1.msra.mxu0 0.0
  %3064 = vmatprep.subr.mxu0 0.0
  %3065 = vmatpush1.msra.mxu0 0.0
  %3066 = vmatprep.subr.mxu0 0.0
  %3067 = vmatpush1.msra.mxu0 0.0
  %3068 = vmatprep.subr.mxu0 0.0
  %3069 = vmatpush1.msra.mxu0 0.0
  %3070 = vmatprep.subr.mxu0 0.0
  %3071 = vmatpush1.msra.mxu0 0.0
  %3072 = vmatprep.subr.mxu0 0.0
  %3073 = vmatpush1.msra.mxu0 0.0
  %3074 = vmatprep.subr.mxu0 0.0
  %3075 = vmatpush1.msra.mxu0 0.0
  %3076 = vmatprep.subr.mxu0 0.0
  %3077 = vmatpush1.msra.mxu0 0.0
  %3078 = vmatprep.subr.mxu0 0.0
  %3079 = vmatpush1.msra.mxu0 0.0
  %3080 = vmatprep.subr.mxu0 0.0
  %3081 = vmatpush1.msra.mxu0 0.0
  %3082 = vmatprep.subr.mxu0 0.0
  %3083 = vmatpush1.msra.mxu0 0.0
  %3084 = vmatprep.subr.mxu0 0.0
  %3085 = vmatpush1.msra.mxu0 0.0
  %3086 = vmatprep.subr.mxu0 0.0
  %3087 = vmatpush1.msra.mxu0 0.0
  %3088 = vmatprep.subr.mxu0 0.0
  %3089 = vmatpush1.msra.mxu0 0.0
  %3090 = vmatprep.subr.mxu0 0.0
  %3091 = vmatpush1.msra.mxu0 0.0
  %3092 = vmatprep.subr.mxu0 %v2904
  %3093 = vmatpush1.msra.mxu0 %v2903
  %3094 = vmatprep.subr.mxu0 0.0
  %3095 = vmatpush2.msra.mxu0 0.0
  %3096 = vmatprep.subr.mxu0 0.0
  %3097 = vmatpush2.msra.mxu0 0.0
  %3098 = vmatprep.subr.mxu0 0.0
  %3099 = vmatpush2.msra.mxu0 0.0
  %3100 = vmatprep.subr.mxu0 0.0
  %3101 = vmatpush2.msra.mxu0 0.0
  %3102 = vmatprep.subr.mxu0 0.0
  %3103 = vmatpush2.msra.mxu0 0.0
  %3104 = vmatprep.subr.mxu0 0.0
  %3105 = vmatpush2.msra.mxu0 0.0
  %3106 = vmatprep.subr.mxu0 0.0
  %3107 = vmatpush2.msra.mxu0 0.0
  %3108 = vmatprep.subr.mxu0 0.0
  %3109 = vmatpush2.msra.mxu0 0.0
  %3110 = vmatprep.subr.mxu0 0.0
  %3111 = vmatpush2.msra.mxu0 0.0
  %3112 = vmatprep.subr.mxu0 0.0
  %3113 = vmatpush2.msra.mxu0 0.0
  %3114 = vmatprep.subr.mxu0 0.0
  %3115 = vmatpush2.msra.mxu0 0.0
  %3116 = vmatprep.subr.mxu0 0.0
  %3117 = vmatpush2.msra.mxu0 0.0
  %3118 = vmatprep.subr.mxu0 0.0
  %3119 = vmatpush2.msra.mxu0 0.0
  %3120 = vmatprep.subr.mxu0 0.0
  %3121 = vmatpush2.msra.mxu0 0.0
  %3122 = vmatprep.subr.mxu0 0.0
  %3123 = vmatpush2.msra.mxu0 0.0
  %3124 = vmatprep.subr.mxu0 0.0
  %3125 = vmatpush2.msra.mxu0 0.0
  %3126 = vmatprep.mubr.f32.mxu0 0.0
  %3127 = vmatmul.mubr.f32.gmra.mxu0 %v2918
  %v3128 = vpop.f32.mrf.mxu0
  %v3129 = vadd.f32 0.0, %v3128
  %v3130 = vpop.f32.mrf.mxu0
  %v3131 = vadd.f32 0.0, %v3130
  %3132 = vdwg.mxu0
  %3133 = vmatprep.subr.mxu0 0.0
  %3134 = vmatpush1.msra.mxu0 0.0
  %3135 = vmatprep.subr.mxu0 0.0
  %3136 = vmatpush1.msra.mxu0 0.0
  %3137 = vmatprep.subr.mxu0 0.0
  %3138 = vmatpush1.msra.mxu0 0.0
  %3139 = vmatprep.subr.mxu0 0.0
  %3140 = vmatpush1.msra.mxu0 0.0
  %3141 = vmatprep.subr.mxu0 0.0
  %3142 = vmatpush1.msra.mxu0 0.0
  %3143 = vmatprep.subr.mxu0 0.0
  %3144 = vmatpush1.msra.mxu0 0.0
  %3145 = vmatprep.subr.mxu0 0.0
  %3146 = vmatpush1.msra.mxu0 0.0
  %3147 = vmatprep.subr.mxu0 0.0
  %3148 = vmatpush1.msra.mxu0 0.0
  %3149 = vmatprep.subr.mxu0 0.0
  %3150 = vmatpush1.msra.mxu0 0.0
  %3151 = vmatprep.subr.mxu0 0.0
  %3152 = vmatpush1.msra.mxu0 0.0
  %3153 = vmatprep.subr.mxu0 0.0
  %3154 = vmatpush1.msra.mxu0 0.0
  %3155 = vmatprep.subr.mxu0 0.0
  %3156 = vmatpush1.msra.mxu0 0.0
  %3157 = vmatprep.subr.mxu0 0.0
  %3158 = vmatpush1.msra.mxu0 0.0
  %3159 = vmatprep.subr.mxu0 0.0
  %3160 = vmatpush1.msra.mxu0 0.0
  %3161 = vmatprep.subr.mxu0 0.0
  %3162 = vmatpush1.msra.mxu0 0.0
  %3163 = vmatprep.subr.mxu0 %v2906
  %3164 = vmatpush1.msra.mxu0 %v2905
  %3165 = vmatprep.subr.mxu0 0.0
  %3166 = vmatpush2.msra.mxu0 0.0
  %3167 = vmatprep.subr.mxu0 0.0
  %3168 = vmatpush2.msra.mxu0 0.0
  %3169 = vmatprep.subr.mxu0 0.0
  %3170 = vmatpush2.msra.mxu0 0.0
  %3171 = vmatprep.subr.mxu0 0.0
  %3172 = vmatpush2.msra.mxu0 0.0
  %3173 = vmatprep.subr.mxu0 0.0
  %3174 = vmatpush2.msra.mxu0 0.0
  %3175 = vmatprep.subr.mxu0 0.0
  %3176 = vmatpush2.msra.mxu0 0.0
  %3177 = vmatprep.subr.mxu0 0.0
  %3178 = vmatpush2.msra.mxu0 0.0
  %3179 = vmatprep.subr.mxu0 0.0
  %3180 = vmatpush2.msra.mxu0 0.0
  %3181 = vmatprep.subr.mxu0 0.0
  %3182 = vmatpush2.msra.mxu0 0.0
  %3183 = vmatprep.subr.mxu0 0.0
  %3184 = vmatpush2.msra.mxu0 0.0
  %3185 = vmatprep.subr.mxu0 0.0
  %3186 = vmatpush2.msra.mxu0 0.0
  %3187 = vmatprep.subr.mxu0 0.0
  %3188 = vmatpush2.msra.mxu0 0.0
  %3189 = vmatprep.subr.mxu0 0.0
  %3190 = vmatpush2.msra.mxu0 0.0
  %3191 = vmatprep.subr.mxu0 0.0
  %3192 = vmatpush2.msra.mxu0 0.0
  %3193 = vmatprep.subr.mxu0 0.0
  %3194 = vmatpush2.msra.mxu0 0.0
  %3195 = vmatprep.subr.mxu0 0.0
  %3196 = vmatpush2.msra.mxu0 0.0
  %3197 = vmatprep.mubr.f32.mxu0 0.0
  %3198 = vmatmul.mubr.f32.gmra.mxu0 %v2918
  %v3199 = vpop.f32.mrf.mxu0
  %v3200 = vadd.f32 0.0, %v3199
  %v3201 = vpop.f32.mrf.mxu0
  %v3202 = vadd.f32 0.0, %v3201
  %3203 = vdwg.mxu0
  %3204 = vmatprep.subr.mxu0 0.0
  %3205 = vmatpush1.msra.mxu0 0.0
  %3206 = vmatprep.subr.mxu0 0.0
  %3207 = vmatpush1.msra.mxu0 0.0
  %3208 = vmatprep.subr.mxu0 0.0
  %3209 = vmatpush1.msra.mxu0 0.0
  %3210 = vmatprep.subr.mxu0 0.0
  %3211 = vmatpush1.msra.mxu0 0.0
  %3212 = vmatprep.subr.mxu0 0.0
  %3213 = vmatpush1.msra.mxu0 0.0
  %3214 = vmatprep.subr.mxu0 0.0
  %3215 = vmatpush1.msra.mxu0 0.0
  %3216 = vmatprep.subr.mxu0 0.0
  %3217 = vmatpush1.msra.mxu0 0.0
  %3218 = vmatprep.subr.mxu0 0.0
  %3219 = vmatpush1.msra.mxu0 0.0
  %3220 = vmatprep.subr.mxu0 0.0
  %3221 = vmatpush1.msra.mxu0 0.0
  %3222 = vmatprep.subr.mxu0 0.0
  %3223 = vmatpush1.msra.mxu0 0.0
  %3224 = vmatprep.subr.mxu0 0.0
  %3225 = vmatpush1.msra.mxu0 0.0
  %3226 = vmatprep.subr.mxu0 0.0
  %3227 = vmatpush1.msra.mxu0 0.0
  %3228 = vmatprep.subr.mxu0 0.0
  %3229 = vmatpush1.msra.mxu0 0.0
  %3230 = vmatprep.subr.mxu0 0.0
  %3231 = vmatpush1.msra.mxu0 0.0
  %3232 = vmatprep.subr.mxu0 0.0
  %3233 = vmatpush1.msra.mxu0 0.0
  %3234 = vmatprep.subr.mxu0 0.0
  %3235 = vmatpush1.msra.mxu0 %v2907
  %3236 = vmatprep.subr.mxu0 0.0
  %3237 = vmatpush2.msra.mxu0 0.0
  %3238 = vmatprep.subr.mxu0 0.0
  %3239 = vmatpush2.msra.mxu0 0.0
  %3240 = vmatprep.subr.mxu0 0.0
  %3241 = vmatpush2.msra.mxu0 0.0
  %3242 = vmatprep.subr.mxu0 0.0
  %3243 = vmatpush2.msra.mxu0 0.0
  %3244 = vmatprep.subr.mxu0 0.0
  %3245 = vmatpush2.msra.mxu0 0.0
  %3246 = vmatprep.subr.mxu0 0.0
  %3247 = vmatpush2.msra.mxu0 0.0
  %3248 = vmatprep.subr.mxu0 0.0
  %3249 = vmatpush2.msra.mxu0 0.0
  %3250 = vmatprep.subr.mxu0 0.0
  %3251 = vmatpush2.msra.mxu0 0.0
  %3252 = vmatprep.subr.mxu0 0.0
  %3253 = vmatpush2.msra.mxu0 0.0
  %3254 = vmatprep.subr.mxu0 0.0
  %3255 = vmatpush2.msra.mxu0 0.0
  %3256 = vmatprep.subr.mxu0 0.0
  %3257 = vmatpush2.msra.mxu0 0.0
  %3258 = vmatprep.subr.mxu0 0.0
  %3259 = vmatpush2.msra.mxu0 0.0
  %3260 = vmatprep.subr.mxu0 0.0
  %3261 = vmatpush2.msra.mxu0 0.0
  %3262 = vmatprep.subr.mxu0 0.0
  %3263 = vmatpush2.msra.mxu0 0.0
  %3264 = vmatprep.subr.mxu0 0.0
  %3265 = vmatpush2.msra.mxu0 0.0
  %3266 = vmatprep.subr.mxu0 0.0
  %3267 = vmatpush2.msra.mxu0 0.0
  %3268 = vmatprep.mubr.f32.mxu0 0.0
  %3269 = vmatmul.mubr.f32.gmra.mxu0 %v2918
  %v3270 = vpop.f32.mrf.mxu0
  %v3271 = vadd.f32 0.0, %v3270
  %v3272 = vpop.f32.mrf.mxu0
  %3273 = vdwg.mxu0
  %v3274 = vadd.f32 %v2867, %v2987
  %v3275 = vadd.f32 %v2868, %v2989
  %v3276 = vadd.f32 %v2869, %v3058
  %v3277 = vadd.f32 %v2870, %v3060
  %v3278 = vadd.f32 %v2871, %v3129
  %v3279 = vadd.f32 %v2872, %v3131
  %v3280 = vadd.f32 %v2873, %v3200
  %v3281 = vadd.f32 %v2874, %v3202
  %v3282 = vadd.f32 %v2875, %v3271
  %s3283 = scalar_lea.vmem %s2, 64
  %v3284 = vld [vmem:[%s3283] sm:$0xff]
  %3285 = vrot.lane.b32.xlu0 %v2044, 95
  %v3286 = vpop.permute.xlu0 %3285
  %3287 = vrot.lane.b32.xlu0 %v2045, 95
  %v3288 = vpop.permute.xlu0 %3287
  %3289 = vrot.lane.b32.xlu0 %v2046, 95
  %v3290 = vpop.permute.xlu0 %3289
  %3291 = vrot.lane.b32.xlu0 %v2047, 95
  %v3292 = vpop.permute.xlu0 %3291
  %3293 = vrot.lane.b32.xlu0 %v2048, 95
  %v3294 = vpop.permute.xlu0 %3293
  %3295 = vrot.lane.b32.xlu0 %v2049, 95
  %v3296 = vpop.permute.xlu0 %3295
  %3297 = vrot.lane.b32.xlu0 %v2050, 95
  %v3298 = vpop.permute.xlu0 %3297
  %3299 = vrot.lane.b32.xlu0 %v2051, 95
  %v3300 = vpop.permute.xlu0 %3299
  %3301 = vrot.lane.b32.xlu0 %v2052, 95
  %v3302 = vpop.permute.xlu0 %3301
  %3303 = vrot.lane.b32.xlu0 %v2053, 95
  %v3304 = vpop.permute.xlu0 %3303
  %vm3305 = vcmask 777216
  %v3306 = vsel %vm3305, %v3286, %v3288
  %v3307 = vsel %vm3305, %v3288, %v3290
  %v3308 = vsel %vm3305, %v3290, %v3292
  %v3309 = vsel %vm3305, %v3292, %v3294
  %v3310 = vsel %vm3305, %v3294, %v3296
  %v3311 = vsel %vm3305, %v3296, %v3298
  %v3312 = vsel %vm3305, %v3298, %v3300
  %v3313 = vsel %vm3305, %v3300, %v3302
  %v3314 = vsel %vm3305, %v3302, %v3304
  %v3325 = vsel %vm106, %v3284, 0
  %3327 = vmatprep.subr.mxu0 0.0
  %3328 = vmatpush1.msra.mxu0 0.0
  %3329 = vmatprep.subr.mxu0 0.0
  %3330 = vmatpush1.msra.mxu0 0.0
  %3331 = vmatprep.subr.mxu0 0.0
  %3332 = vmatpush1.msra.mxu0 0.0
  %3333 = vmatprep.subr.mxu0 0.0
  %3334 = vmatpush1.msra.mxu0 0.0
  %3335 = vmatprep.subr.mxu0 0.0
  %3336 = vmatpush1.msra.mxu0 0.0
  %3337 = vmatprep.subr.mxu0 0.0
  %3338 = vmatpush1.msra.mxu0 0.0
  %3339 = vmatprep.subr.mxu0 0.0
  %3340 = vmatpush1.msra.mxu0 0.0
  %3341 = vmatprep.subr.mxu0 0.0
  %3342 = vmatpush1.msra.mxu0 0.0
  %3343 = vmatprep.subr.mxu0 0.0
  %3344 = vmatpush1.msra.mxu0 0.0
  %3345 = vmatprep.subr.mxu0 0.0
  %3346 = vmatpush1.msra.mxu0 0.0
  %3347 = vmatprep.subr.mxu0 0.0
  %3348 = vmatpush1.msra.mxu0 0.0
  %3349 = vmatprep.subr.mxu0 0.0
  %3350 = vmatpush1.msra.mxu0 0.0
  %3351 = vmatprep.subr.mxu0 0.0
  %3352 = vmatpush1.msra.mxu0 0.0
  %3353 = vmatprep.subr.mxu0 0.0
  %3354 = vmatpush1.msra.mxu0 0.0
  %3355 = vmatprep.subr.mxu0 0.0
  %3356 = vmatpush1.msra.mxu0 0.0
  %3357 = vmatprep.subr.mxu0 %v3307
  %3358 = vmatpush1.msra.mxu0 %v3306
  %3359 = vmatprep.subr.mxu0 0.0
  %3360 = vmatpush2.msra.mxu0 0.0
  %3361 = vmatprep.subr.mxu0 0.0
  %3362 = vmatpush2.msra.mxu0 0.0
  %3363 = vmatprep.subr.mxu0 0.0
  %3364 = vmatpush2.msra.mxu0 0.0
  %3365 = vmatprep.subr.mxu0 0.0
  %3366 = vmatpush2.msra.mxu0 0.0
  %3367 = vmatprep.subr.mxu0 0.0
  %3368 = vmatpush2.msra.mxu0 0.0
  %3369 = vmatprep.subr.mxu0 0.0
  %3370 = vmatpush2.msra.mxu0 0.0
  %3371 = vmatprep.subr.mxu0 0.0
  %3372 = vmatpush2.msra.mxu0 0.0
  %3373 = vmatprep.subr.mxu0 0.0
  %3374 = vmatpush2.msra.mxu0 0.0
  %3375 = vmatprep.subr.mxu0 0.0
  %3376 = vmatpush2.msra.mxu0 0.0
  %3377 = vmatprep.subr.mxu0 0.0
  %3378 = vmatpush2.msra.mxu0 0.0
  %3379 = vmatprep.subr.mxu0 0.0
  %3380 = vmatpush2.msra.mxu0 0.0
  %3381 = vmatprep.subr.mxu0 0.0
  %3382 = vmatpush2.msra.mxu0 0.0
  %3383 = vmatprep.subr.mxu0 0.0
  %3384 = vmatpush2.msra.mxu0 0.0
  %3385 = vmatprep.subr.mxu0 0.0
  %3386 = vmatpush2.msra.mxu0 0.0
  %3387 = vmatprep.subr.mxu0 0.0
  %3388 = vmatpush2.msra.mxu0 0.0
  %3389 = vmatprep.subr.mxu0 0.0
  %3390 = vmatpush2.msra.mxu0 0.0
  %3391 = vmatprep.mubr.f32.mxu0 0.0
  %3392 = vmatmul.mubr.f32.gmra.mxu0 %v3325
  %v3393 = vpop.f32.mrf.mxu0
  %v3394 = vadd.f32 0.0, %v3393
  %v3395 = vpop.f32.mrf.mxu0
  %v3396 = vadd.f32 0.0, %v3395
  %3397 = vdwg.mxu0
  %3398 = vmatprep.subr.mxu0 0.0
  %3399 = vmatpush1.msra.mxu0 0.0
  %3400 = vmatprep.subr.mxu0 0.0
  %3401 = vmatpush1.msra.mxu0 0.0
  %3402 = vmatprep.subr.mxu0 0.0
  %3403 = vmatpush1.msra.mxu0 0.0
  %3404 = vmatprep.subr.mxu0 0.0
  %3405 = vmatpush1.msra.mxu0 0.0
  %3406 = vmatprep.subr.mxu0 0.0
  %3407 = vmatpush1.msra.mxu0 0.0
  %3408 = vmatprep.subr.mxu0 0.0
  %3409 = vmatpush1.msra.mxu0 0.0
  %3410 = vmatprep.subr.mxu0 0.0
  %3411 = vmatpush1.msra.mxu0 0.0
  %3412 = vmatprep.subr.mxu0 0.0
  %3413 = vmatpush1.msra.mxu0 0.0
  %3414 = vmatprep.subr.mxu0 0.0
  %3415 = vmatpush1.msra.mxu0 0.0
  %3416 = vmatprep.subr.mxu0 0.0
  %3417 = vmatpush1.msra.mxu0 0.0
  %3418 = vmatprep.subr.mxu0 0.0
  %3419 = vmatpush1.msra.mxu0 0.0
  %3420 = vmatprep.subr.mxu0 0.0
  %3421 = vmatpush1.msra.mxu0 0.0
  %3422 = vmatprep.subr.mxu0 0.0
  %3423 = vmatpush1.msra.mxu0 0.0
  %3424 = vmatprep.subr.mxu0 0.0
  %3425 = vmatpush1.msra.mxu0 0.0
  %3426 = vmatprep.subr.mxu0 0.0
  %3427 = vmatpush1.msra.mxu0 0.0
  %3428 = vmatprep.subr.mxu0 %v3309
  %3429 = vmatpush1.msra.mxu0 %v3308
  %3430 = vmatprep.subr.mxu0 0.0
  %3431 = vmatpush2.msra.mxu0 0.0
  %3432 = vmatprep.subr.mxu0 0.0
  %3433 = vmatpush2.msra.mxu0 0.0
  %3434 = vmatprep.subr.mxu0 0.0
  %3435 = vmatpush2.msra.mxu0 0.0
  %3436 = vmatprep.subr.mxu0 0.0
  %3437 = vmatpush2.msra.mxu0 0.0
  %3438 = vmatprep.subr.mxu0 0.0
  %3439 = vmatpush2.msra.mxu0 0.0
  %3440 = vmatprep.subr.mxu0 0.0
  %3441 = vmatpush2.msra.mxu0 0.0
  %3442 = vmatprep.subr.mxu0 0.0
  %3443 = vmatpush2.msra.mxu0 0.0
  %3444 = vmatprep.subr.mxu0 0.0
  %3445 = vmatpush2.msra.mxu0 0.0
  %3446 = vmatprep.subr.mxu0 0.0
  %3447 = vmatpush2.msra.mxu0 0.0
  %3448 = vmatprep.subr.mxu0 0.0
  %3449 = vmatpush2.msra.mxu0 0.0
  %3450 = vmatprep.subr.mxu0 0.0
  %3451 = vmatpush2.msra.mxu0 0.0
  %3452 = vmatprep.subr.mxu0 0.0
  %3453 = vmatpush2.msra.mxu0 0.0
  %3454 = vmatprep.subr.mxu0 0.0
  %3455 = vmatpush2.msra.mxu0 0.0
  %3456 = vmatprep.subr.mxu0 0.0
  %3457 = vmatpush2.msra.mxu0 0.0
  %3458 = vmatprep.subr.mxu0 0.0
  %3459 = vmatpush2.msra.mxu0 0.0
  %3460 = vmatprep.subr.mxu0 0.0
  %3461 = vmatpush2.msra.mxu0 0.0
  %3462 = vmatprep.mubr.f32.mxu0 0.0
  %3463 = vmatmul.mubr.f32.gmra.mxu0 %v3325
  %v3464 = vpop.f32.mrf.mxu0
  %v3465 = vadd.f32 0.0, %v3464
  %v3466 = vpop.f32.mrf.mxu0
  %v3467 = vadd.f32 0.0, %v3466
  %3468 = vdwg.mxu0
  %3469 = vmatprep.subr.mxu0 0.0
  %3470 = vmatpush1.msra.mxu0 0.0
  %3471 = vmatprep.subr.mxu0 0.0
  %3472 = vmatpush1.msra.mxu0 0.0
  %3473 = vmatprep.subr.mxu0 0.0
  %3474 = vmatpush1.msra.mxu0 0.0
  %3475 = vmatprep.subr.mxu0 0.0
  %3476 = vmatpush1.msra.mxu0 0.0
  %3477 = vmatprep.subr.mxu0 0.0
  %3478 = vmatpush1.msra.mxu0 0.0
  %3479 = vmatprep.subr.mxu0 0.0
  %3480 = vmatpush1.msra.mxu0 0.0
  %3481 = vmatprep.subr.mxu0 0.0
  %3482 = vmatpush1.msra.mxu0 0.0
  %3483 = vmatprep.subr.mxu0 0.0
  %3484 = vmatpush1.msra.mxu0 0.0
  %3485 = vmatprep.subr.mxu0 0.0
  %3486 = vmatpush1.msra.mxu0 0.0
  %3487 = vmatprep.subr.mxu0 0.0
  %3488 = vmatpush1.msra.mxu0 0.0
  %3489 = vmatprep.subr.mxu0 0.0
  %3490 = vmatpush1.msra.mxu0 0.0
  %3491 = vmatprep.subr.mxu0 0.0
  %3492 = vmatpush1.msra.mxu0 0.0
  %3493 = vmatprep.subr.mxu0 0.0
  %3494 = vmatpush1.msra.mxu0 0.0
  %3495 = vmatprep.subr.mxu0 0.0
  %3496 = vmatpush1.msra.mxu0 0.0
  %3497 = vmatprep.subr.mxu0 0.0
  %3498 = vmatpush1.msra.mxu0 0.0
  %3499 = vmatprep.subr.mxu0 %v3311
  %3500 = vmatpush1.msra.mxu0 %v3310
  %3501 = vmatprep.subr.mxu0 0.0
  %3502 = vmatpush2.msra.mxu0 0.0
  %3503 = vmatprep.subr.mxu0 0.0
  %3504 = vmatpush2.msra.mxu0 0.0
  %3505 = vmatprep.subr.mxu0 0.0
  %3506 = vmatpush2.msra.mxu0 0.0
  %3507 = vmatprep.subr.mxu0 0.0
  %3508 = vmatpush2.msra.mxu0 0.0
  %3509 = vmatprep.subr.mxu0 0.0
  %3510 = vmatpush2.msra.mxu0 0.0
  %3511 = vmatprep.subr.mxu0 0.0
  %3512 = vmatpush2.msra.mxu0 0.0
  %3513 = vmatprep.subr.mxu0 0.0
  %3514 = vmatpush2.msra.mxu0 0.0
  %3515 = vmatprep.subr.mxu0 0.0
  %3516 = vmatpush2.msra.mxu0 0.0
  %3517 = vmatprep.subr.mxu0 0.0
  %3518 = vmatpush2.msra.mxu0 0.0
  %3519 = vmatprep.subr.mxu0 0.0
  %3520 = vmatpush2.msra.mxu0 0.0
  %3521 = vmatprep.subr.mxu0 0.0
  %3522 = vmatpush2.msra.mxu0 0.0
  %3523 = vmatprep.subr.mxu0 0.0
  %3524 = vmatpush2.msra.mxu0 0.0
  %3525 = vmatprep.subr.mxu0 0.0
  %3526 = vmatpush2.msra.mxu0 0.0
  %3527 = vmatprep.subr.mxu0 0.0
  %3528 = vmatpush2.msra.mxu0 0.0
  %3529 = vmatprep.subr.mxu0 0.0
  %3530 = vmatpush2.msra.mxu0 0.0
  %3531 = vmatprep.subr.mxu0 0.0
  %3532 = vmatpush2.msra.mxu0 0.0
  %3533 = vmatprep.mubr.f32.mxu0 0.0
  %3534 = vmatmul.mubr.f32.gmra.mxu0 %v3325
  %v3535 = vpop.f32.mrf.mxu0
  %v3536 = vadd.f32 0.0, %v3535
  %v3537 = vpop.f32.mrf.mxu0
  %v3538 = vadd.f32 0.0, %v3537
  %3539 = vdwg.mxu0
  %3540 = vmatprep.subr.mxu0 0.0
  %3541 = vmatpush1.msra.mxu0 0.0
  %3542 = vmatprep.subr.mxu0 0.0
  %3543 = vmatpush1.msra.mxu0 0.0
  %3544 = vmatprep.subr.mxu0 0.0
  %3545 = vmatpush1.msra.mxu0 0.0
  %3546 = vmatprep.subr.mxu0 0.0
  %3547 = vmatpush1.msra.mxu0 0.0
  %3548 = vmatprep.subr.mxu0 0.0
  %3549 = vmatpush1.msra.mxu0 0.0
  %3550 = vmatprep.subr.mxu0 0.0
  %3551 = vmatpush1.msra.mxu0 0.0
  %3552 = vmatprep.subr.mxu0 0.0
  %3553 = vmatpush1.msra.mxu0 0.0
  %3554 = vmatprep.subr.mxu0 0.0
  %3555 = vmatpush1.msra.mxu0 0.0
  %3556 = vmatprep.subr.mxu0 0.0
  %3557 = vmatpush1.msra.mxu0 0.0
  %3558 = vmatprep.subr.mxu0 0.0
  %3559 = vmatpush1.msra.mxu0 0.0
  %3560 = vmatprep.subr.mxu0 0.0
  %3561 = vmatpush1.msra.mxu0 0.0
  %3562 = vmatprep.subr.mxu0 0.0
  %3563 = vmatpush1.msra.mxu0 0.0
  %3564 = vmatprep.subr.mxu0 0.0
  %3565 = vmatpush1.msra.mxu0 0.0
  %3566 = vmatprep.subr.mxu0 0.0
  %3567 = vmatpush1.msra.mxu0 0.0
  %3568 = vmatprep.subr.mxu0 0.0
  %3569 = vmatpush1.msra.mxu0 0.0
  %3570 = vmatprep.subr.mxu0 %v3313
  %3571 = vmatpush1.msra.mxu0 %v3312
  %3572 = vmatprep.subr.mxu0 0.0
  %3573 = vmatpush2.msra.mxu0 0.0
  %3574 = vmatprep.subr.mxu0 0.0
  %3575 = vmatpush2.msra.mxu0 0.0
  %3576 = vmatprep.subr.mxu0 0.0
  %3577 = vmatpush2.msra.mxu0 0.0
  %3578 = vmatprep.subr.mxu0 0.0
  %3579 = vmatpush2.msra.mxu0 0.0
  %3580 = vmatprep.subr.mxu0 0.0
  %3581 = vmatpush2.msra.mxu0 0.0
  %3582 = vmatprep.subr.mxu0 0.0
  %3583 = vmatpush2.msra.mxu0 0.0
  %3584 = vmatprep.subr.mxu0 0.0
  %3585 = vmatpush2.msra.mxu0 0.0
  %3586 = vmatprep.subr.mxu0 0.0
  %3587 = vmatpush2.msra.mxu0 0.0
  %3588 = vmatprep.subr.mxu0 0.0
  %3589 = vmatpush2.msra.mxu0 0.0
  %3590 = vmatprep.subr.mxu0 0.0
  %3591 = vmatpush2.msra.mxu0 0.0
  %3592 = vmatprep.subr.mxu0 0.0
  %3593 = vmatpush2.msra.mxu0 0.0
  %3594 = vmatprep.subr.mxu0 0.0
  %3595 = vmatpush2.msra.mxu0 0.0
  %3596 = vmatprep.subr.mxu0 0.0
  %3597 = vmatpush2.msra.mxu0 0.0
  %3598 = vmatprep.subr.mxu0 0.0
  %3599 = vmatpush2.msra.mxu0 0.0
  %3600 = vmatprep.subr.mxu0 0.0
  %3601 = vmatpush2.msra.mxu0 0.0
  %3602 = vmatprep.subr.mxu0 0.0
  %3603 = vmatpush2.msra.mxu0 0.0
  %3604 = vmatprep.mubr.f32.mxu0 0.0
  %3605 = vmatmul.mubr.f32.gmra.mxu0 %v3325
  %v3606 = vpop.f32.mrf.mxu0
  %v3607 = vadd.f32 0.0, %v3606
  %v3608 = vpop.f32.mrf.mxu0
  %v3609 = vadd.f32 0.0, %v3608
  %3610 = vdwg.mxu0
  %3611 = vmatprep.subr.mxu0 0.0
  %3612 = vmatpush1.msra.mxu0 0.0
  %3613 = vmatprep.subr.mxu0 0.0
  %3614 = vmatpush1.msra.mxu0 0.0
  %3615 = vmatprep.subr.mxu0 0.0
  %3616 = vmatpush1.msra.mxu0 0.0
  %3617 = vmatprep.subr.mxu0 0.0
  %3618 = vmatpush1.msra.mxu0 0.0
  %3619 = vmatprep.subr.mxu0 0.0
  %3620 = vmatpush1.msra.mxu0 0.0
  %3621 = vmatprep.subr.mxu0 0.0
  %3622 = vmatpush1.msra.mxu0 0.0
  %3623 = vmatprep.subr.mxu0 0.0
  %3624 = vmatpush1.msra.mxu0 0.0
  %3625 = vmatprep.subr.mxu0 0.0
  %3626 = vmatpush1.msra.mxu0 0.0
  %3627 = vmatprep.subr.mxu0 0.0
  %3628 = vmatpush1.msra.mxu0 0.0
  %3629 = vmatprep.subr.mxu0 0.0
  %3630 = vmatpush1.msra.mxu0 0.0
  %3631 = vmatprep.subr.mxu0 0.0
  %3632 = vmatpush1.msra.mxu0 0.0
  %3633 = vmatprep.subr.mxu0 0.0
  %3634 = vmatpush1.msra.mxu0 0.0
  %3635 = vmatprep.subr.mxu0 0.0
  %3636 = vmatpush1.msra.mxu0 0.0
  %3637 = vmatprep.subr.mxu0 0.0
  %3638 = vmatpush1.msra.mxu0 0.0
  %3639 = vmatprep.subr.mxu0 0.0
  %3640 = vmatpush1.msra.mxu0 0.0
  %3641 = vmatprep.subr.mxu0 0.0
  %3642 = vmatpush1.msra.mxu0 %v3314
  %3643 = vmatprep.subr.mxu0 0.0
  %3644 = vmatpush2.msra.mxu0 0.0
  %3645 = vmatprep.subr.mxu0 0.0
  %3646 = vmatpush2.msra.mxu0 0.0
  %3647 = vmatprep.subr.mxu0 0.0
  %3648 = vmatpush2.msra.mxu0 0.0
  %3649 = vmatprep.subr.mxu0 0.0
  %3650 = vmatpush2.msra.mxu0 0.0
  %3651 = vmatprep.subr.mxu0 0.0
  %3652 = vmatpush2.msra.mxu0 0.0
  %3653 = vmatprep.subr.mxu0 0.0
  %3654 = vmatpush2.msra.mxu0 0.0
  %3655 = vmatprep.subr.mxu0 0.0
  %3656 = vmatpush2.msra.mxu0 0.0
  %3657 = vmatprep.subr.mxu0 0.0
  %3658 = vmatpush2.msra.mxu0 0.0
  %3659 = vmatprep.subr.mxu0 0.0
  %3660 = vmatpush2.msra.mxu0 0.0
  %3661 = vmatprep.subr.mxu0 0.0
  %3662 = vmatpush2.msra.mxu0 0.0
  %3663 = vmatprep.subr.mxu0 0.0
  %3664 = vmatpush2.msra.mxu0 0.0
  %3665 = vmatprep.subr.mxu0 0.0
  %3666 = vmatpush2.msra.mxu0 0.0
  %3667 = vmatprep.subr.mxu0 0.0
  %3668 = vmatpush2.msra.mxu0 0.0
  %3669 = vmatprep.subr.mxu0 0.0
  %3670 = vmatpush2.msra.mxu0 0.0
  %3671 = vmatprep.subr.mxu0 0.0
  %3672 = vmatpush2.msra.mxu0 0.0
  %3673 = vmatprep.subr.mxu0 0.0
  %3674 = vmatpush2.msra.mxu0 0.0
  %3675 = vmatprep.mubr.f32.mxu0 0.0
  %3676 = vmatmul.mubr.f32.gmra.mxu0 %v3325
  %v3677 = vpop.f32.mrf.mxu0
  %v3678 = vadd.f32 0.0, %v3677
  %v3679 = vpop.f32.mrf.mxu0
  %3680 = vdwg.mxu0
  %v3681 = vadd.f32 %v3274, %v3394
  %v3682 = vadd.f32 %v3275, %v3396
  %v3683 = vadd.f32 %v3276, %v3465
  %v3684 = vadd.f32 %v3277, %v3467
  %v3685 = vadd.f32 %v3278, %v3536
  %v3686 = vadd.f32 %v3279, %v3538
  %v3687 = vadd.f32 %v3280, %v3607
  %v3688 = vadd.f32 %v3281, %v3609
  %v3689 = vadd.f32 %v3282, %v3678
  %v3690 = vld [vmem:[%s3] sm:$0xff]
  %3692 = vset.pattern.permute.xlu0 0
  %3693 = vperm.xlu0 %3692, %v3690
  %v3694 = vpop.permute.xlu0 %3693
  %v3696 = vadd.f32 %v3681, %v3694
  %v3697 = vadd.f32 %v3682, %v3694
  %v3698 = vadd.f32 %v3683, %v3694
  %v3699 = vadd.f32 %v3684, %v3694
  %v3700 = vadd.f32 %v3685, %v3694
  %v3701 = vadd.f32 %v3686, %v3694
  %v3702 = vadd.f32 %v3687, %v3694
  %v3703 = vadd.f32 %v3688, %v3694
  %v3704 = vadd.f32 %v3689, %v3694
  %v3705 = vmul.f32 %v3696, %v35
  %v3706 = vmul.f32 %v3697, %v36
  %v3707 = vmul.f32 %v3698, %v37
  %v3708 = vmul.f32 %v3699, %v38
  %v3709 = vmul.f32 %v3700, %v39
  %v3710 = vmul.f32 %v3701, %v40
  %v3711 = vmul.f32 %v3702, %v41
  %v3712 = vmul.f32 %v3703, %v42
  %v3713 = vmul.f32 %v3704, %v43
  %v3714 = vadd.f32 %v3705, %v3706
  %v3715 = vadd.f32 %v3714, %v3707
  %v3716 = vadd.f32 %v3715, %v3708
  %v3717 = vadd.f32 %v3716, %v3709
  %v3718 = vadd.f32 %v3717, %v3710
  %v3719 = vadd.f32 %v3718, %v3711
  %v3720 = vadd.f32 %v3719, %v3712
  %v3721 = vadd.f32 %v3720, %v3713
  %3722 = vadd.xlane.f32.xlu0 %v3721
  %v3723 = vpop.xlane.xlu0 %3722
  %v3724 = vmul.f32 %v3723, 0.001953125
  %v3725 = vsub.f32 %v3696, %v3724
  %v3726 = vsub.f32 %v3697, %v3724
  %v3727 = vsub.f32 %v3698, %v3724
  %v3728 = vsub.f32 %v3699, %v3724
  %v3729 = vsub.f32 %v3700, %v3724
  %v3730 = vsub.f32 %v3701, %v3724
  %v3731 = vsub.f32 %v3702, %v3724
  %v3732 = vsub.f32 %v3703, %v3724
  %v3733 = vsub.f32 %v3704, %v3724
  %v3734 = vmul.f32 %v3725, %v3725
  %v3735 = vmul.f32 %v3726, %v3726
  %v3736 = vmul.f32 %v3727, %v3727
  %v3737 = vmul.f32 %v3728, %v3728
  %v3738 = vmul.f32 %v3729, %v3729
  %v3739 = vmul.f32 %v3730, %v3730
  %v3740 = vmul.f32 %v3731, %v3731
  %v3741 = vmul.f32 %v3732, %v3732
  %v3742 = vmul.f32 %v3733, %v3733
  %v3743 = vmul.f32 %v3734, %v35
  %v3744 = vmul.f32 %v3735, %v36
  %v3745 = vmul.f32 %v3736, %v37
  %v3746 = vmul.f32 %v3737, %v38
  %v3747 = vmul.f32 %v3738, %v39
  %v3748 = vmul.f32 %v3739, %v40
  %v3749 = vmul.f32 %v3740, %v41
  %v3750 = vmul.f32 %v3741, %v42
  %v3751 = vmul.f32 %v3742, %v43
  %v3752 = vadd.f32 %v3743, %v3744
  %v3753 = vadd.f32 %v3752, %v3745
  %v3754 = vadd.f32 %v3753, %v3746
  %v3755 = vadd.f32 %v3754, %v3747
  %v3756 = vadd.f32 %v3755, %v3748
  %v3757 = vadd.f32 %v3756, %v3749
  %v3758 = vadd.f32 %v3757, %v3750
  %v3759 = vadd.f32 %v3758, %v3751
  %3760 = vadd.xlane.f32.xlu0 %v3759
  %v3761 = vpop.xlane.xlu0 %3760
  %v3762 = vmul.f32 %v3761, 0.001953125
  %v3763 = vadd.f32 %v3762, 1e-05
  %v3764 = vrsqrt.pop %v3763
  %v3765 = vmul.f32 %v3763, %v3764
  %vm3766 = vcmp.eq.f32.partialorder %v3763, inf
  %v3767 = vsel %vm3766, %v3763, %v3765
  %vm3768 = vcmp.eq.f32.partialorder %v3763, 0.0
  %v3769 = vand.u32 %v3763, 2147483648
  %v3770 = vsel %vm3768, %v3769, %v3767
  %v3771 = vrcp.pop %v3770
  %v3772 = vmul.f32 1.0, %v3771
  %v3773 = vmul.f32 %v3725, %v3772
  %v3774 = vmul.f32 %v3726, %v3772
  %v3775 = vmul.f32 %v3727, %v3772
  %v3776 = vmul.f32 %v3728, %v3772
  %v3777 = vmul.f32 %v3729, %v3772
  %v3778 = vmul.f32 %v3730, %v3772
  %v3779 = vmul.f32 %v3731, %v3772
  %v3780 = vmul.f32 %v3732, %v3772
  %v3781 = vmul.f32 %v3733, %v3772
  %v3782 = vld [vmem:[%s4] sm:$0xff]
  %3784 = vset.pattern.permute.xlu0 0
  %3785 = vperm.xlu0 %3784, %v3782
  %v3786 = vpop.permute.xlu0 %3785
  %v3788 = vmul.f32 %v3773, %v3786
  %v3789 = vmul.f32 %v3774, %v3786
  %v3790 = vmul.f32 %v3775, %v3786
  %v3791 = vmul.f32 %v3776, %v3786
  %v3792 = vmul.f32 %v3777, %v3786
  %v3793 = vmul.f32 %v3778, %v3786
  %v3794 = vmul.f32 %v3779, %v3786
  %v3795 = vmul.f32 %v3780, %v3786
  %v3796 = vmul.f32 %v3781, %v3786
  %v3797 = vld [vmem:[%s5] sm:$0xff]
  %3799 = vset.pattern.permute.xlu0 0
  %3800 = vperm.xlu0 %3799, %v3797
  %v3801 = vpop.permute.xlu0 %3800
  %v3803 = vadd.f32 %v3788, %v3801
  %v3804 = vadd.f32 %v3789, %v3801
  %v3805 = vadd.f32 %v3790, %v3801
  %v3806 = vadd.f32 %v3791, %v3801
  %v3807 = vadd.f32 %v3792, %v3801
  %v3808 = vadd.f32 %v3793, %v3801
  %v3809 = vadd.f32 %v3794, %v3801
  %v3810 = vadd.f32 %v3795, %v3801
  %v3811 = vadd.f32 %v3796, %v3801
  %vm3812 = vcmp.ge.f32.partialorder %v3803, 0.0
  %vm3813 = vcmp.ge.f32.partialorder %v3804, 0.0
  %vm3814 = vcmp.ge.f32.partialorder %v3805, 0.0
  %vm3815 = vcmp.ge.f32.partialorder %v3806, 0.0
  %vm3816 = vcmp.ge.f32.partialorder %v3807, 0.0
  %vm3817 = vcmp.ge.f32.partialorder %v3808, 0.0
  %vm3818 = vcmp.ge.f32.partialorder %v3809, 0.0
  %vm3819 = vcmp.ge.f32.partialorder %v3810, 0.0
  %vm3820 = vcmp.ge.f32.partialorder %v3811, 0.0
  %v3821 = vmul.f32 %v3803, 0.3
  %v3822 = vmul.f32 %v3804, 0.3
  %v3823 = vmul.f32 %v3805, 0.3
  %v3824 = vmul.f32 %v3806, 0.3
  %v3825 = vmul.f32 %v3807, 0.3
  %v3826 = vmul.f32 %v3808, 0.3
  %v3827 = vmul.f32 %v3809, 0.3
  %v3828 = vmul.f32 %v3810, 0.3
  %v3829 = vmul.f32 %v3811, 0.3
  %v3830 = vsel %vm3812, %v3803, %v3821
  %v3831 = vsel %vm3813, %v3804, %v3822
  %v3832 = vsel %vm3814, %v3805, %v3823
  %v3833 = vsel %vm3815, %v3806, %v3824
  %v3834 = vsel %vm3816, %v3807, %v3825
  %v3835 = vsel %vm3817, %v3808, %v3826
  %v3836 = vsel %vm3818, %v3809, %v3827
  %v3837 = vsel %vm3819, %v3810, %v3828
  %v3838 = vsel %vm3820, %v3811, %v3829
  %3839 = vst [vmem:[#allocation2] sm:$0xff] 0.0
  %3840 = vst [vmem:[#allocation2 + $0x8] sm:$0xff] 0.0
  %3841 = vst [vmem:[#allocation2 + $0x10] sm:$0xff] 0.0
  %3842 = vst [vmem:[#allocation2 + $0x18] sm:$0xff] 0.0
  %3843 = vst [vmem:[#allocation2 + $0x20] sm:$0xff] 0.0
  %3844 = vst [vmem:[#allocation2 + $0x28] sm:$0xff] 0.0
  %3845 = vst [vmem:[#allocation2 + $0x30] sm:$0xff] 0.0
  %3846 = vst [vmem:[#allocation2 + $0x38] sm:$0xff] 0.0
  %3847 = vst [vmem:[#allocation2 + $0x40] sm:$0xff] 0.0
  %3848 = vst [vmem:[#allocation2 + $0x48] sm:$0xff] 0.0
  %3849 = vst [vmem:[#allocation2 + $0x50] sm:$0xff] 0.0
  %v3850 = vmul.f32 %v3830, %v35
  %v3851 = vmul.f32 %v3831, %v36
  %v3852 = vmul.f32 %v3832, %v37
  %v3853 = vmul.f32 %v3833, %v38
  %v3854 = vmul.f32 %v3834, %v39
  %v3855 = vmul.f32 %v3835, %v40
  %v3856 = vmul.f32 %v3836, %v41
  %v3857 = vmul.f32 %v3837, %v42
  %v3858 = vmul.f32 %v3838, %v43
  %3859 = vst [vmem:[#allocation2 + $0x8] sm:$0xff] %v3850
  %3860 = vst [vmem:[#allocation2 + $0x10] sm:$0xff] %v3851
  %3861 = vst [vmem:[#allocation2 + $0x18] sm:$0xff] %v3852
  %3862 = vst [vmem:[#allocation2 + $0x20] sm:$0xff] %v3853
  %3863 = vst [vmem:[#allocation2 + $0x28] sm:$0xff] %v3854
  %3864 = vst [vmem:[#allocation2 + $0x30] sm:$0xff] %v3855
  %3865 = vst [vmem:[#allocation2 + $0x38] sm:$0xff] %v3856
  %3866 = vst [vmem:[#allocation2 + $0x40] sm:$0xff] %v3857
  %3867 = vst [vmem:[#allocation2 + $0x48] sm:$0xff] %v3858
  %v3868 = vld [vmem:[%s6] sm:$0xff]
  %v3869 = vld [vmem:[#allocation2] sm:$0xff]
  %v3870 = vld [vmem:[#allocation2 + $0x8] sm:$0xff]
  %v3871 = vld [vmem:[#allocation2 + $0x10] sm:$0xff]
  %v3872 = vld [vmem:[#allocation2 + $0x18] sm:$0xff]
  %v3873 = vld [vmem:[#allocation2 + $0x20] sm:$0xff]
  %v3874 = vld [vmem:[#allocation2 + $0x28] sm:$0xff]
  %v3875 = vld [vmem:[#allocation2 + $0x30] sm:$0xff]
  %v3876 = vld [vmem:[#allocation2 + $0x38] sm:$0xff]
  %v3877 = vld [vmem:[#allocation2 + $0x40] sm:$0xff]
  %v3878 = vld [vmem:[#allocation2 + $0x48] sm:$0xff]
  %s3879 = scalar_lea.vmem %s6, 8
  %v3880 = vld [vmem:[%s3879] sm:$0xff]
  %3891 = vrot.lane.b32.xlu0 %v3869, 32
  %v3892 = vpop.permute.xlu0 %3891
  %3893 = vrot.lane.b32.xlu0 %v3870, 32
  %v3894 = vpop.permute.xlu0 %3893
  %3895 = vrot.lane.b32.xlu0 %v3871, 32
  %v3896 = vpop.permute.xlu0 %3895
  %3897 = vrot.lane.b32.xlu0 %v3872, 32
  %v3898 = vpop.permute.xlu0 %3897
  %3899 = vrot.lane.b32.xlu0 %v3873, 32
  %v3900 = vpop.permute.xlu0 %3899
  %3901 = vrot.lane.b32.xlu0 %v3874, 32
  %v3902 = vpop.permute.xlu0 %3901
  %3903 = vrot.lane.b32.xlu0 %v3875, 32
  %v3904 = vpop.permute.xlu0 %3903
  %3905 = vrot.lane.b32.xlu0 %v3876, 32
  %v3906 = vpop.permute.xlu0 %3905
  %3907 = vrot.lane.b32.xlu0 %v3877, 32
  %v3908 = vpop.permute.xlu0 %3907
  %3909 = vrot.lane.b32.xlu0 %v3878, 32
  %v3910 = vpop.permute.xlu0 %3909
  %v3911 = vsel %vm87, %v3892, %v3894
  %v3912 = vsel %vm87, %v3894, %v3896
  %v3913 = vsel %vm87, %v3896, %v3898
  %v3914 = vsel %vm87, %v3898, %v3900
  %v3915 = vsel %vm87, %v3900, %v3902
  %v3916 = vsel %vm87, %v3902, %v3904
  %v3917 = vsel %vm87, %v3904, %v3906
  %v3918 = vsel %vm87, %v3906, %v3908
  %v3919 = vsel %vm87, %v3908, %v3910
  %v3930 = vsel %vm106, %v3880, 0
  %3932 = vmatprep.subr.mxu0 0.0
  %3933 = vmatpush1.msra.mxu0 0.0
  %3934 = vmatprep.subr.mxu0 0.0
  %3935 = vmatpush1.msra.mxu0 0.0
  %3936 = vmatprep.subr.mxu0 0.0
  %3937 = vmatpush1.msra.mxu0 0.0
  %3938 = vmatprep.subr.mxu0 0.0
  %3939 = vmatpush1.msra.mxu0 0.0
  %3940 = vmatprep.subr.mxu0 0.0
  %3941 = vmatpush1.msra.mxu0 0.0
  %3942 = vmatprep.subr.mxu0 0.0
  %3943 = vmatpush1.msra.mxu0 0.0
  %3944 = vmatprep.subr.mxu0 0.0
  %3945 = vmatpush1.msra.mxu0 0.0
  %3946 = vmatprep.subr.mxu0 0.0
  %3947 = vmatpush1.msra.mxu0 0.0
  %3948 = vmatprep.subr.mxu0 0.0
  %3949 = vmatpush1.msra.mxu0 0.0
  %3950 = vmatprep.subr.mxu0 0.0
  %3951 = vmatpush1.msra.mxu0 0.0
  %3952 = vmatprep.subr.mxu0 0.0
  %3953 = vmatpush1.msra.mxu0 0.0
  %3954 = vmatprep.subr.mxu0 0.0
  %3955 = vmatpush1.msra.mxu0 0.0
  %3956 = vmatprep.subr.mxu0 0.0
  %3957 = vmatpush1.msra.mxu0 0.0
  %3958 = vmatprep.subr.mxu0 0.0
  %3959 = vmatpush1.msra.mxu0 0.0
  %3960 = vmatprep.subr.mxu0 0.0
  %3961 = vmatpush1.msra.mxu0 0.0
  %3962 = vmatprep.subr.mxu0 %v3912
  %3963 = vmatpush1.msra.mxu0 %v3911
  %3964 = vmatprep.subr.mxu0 0.0
  %3965 = vmatpush2.msra.mxu0 0.0
  %3966 = vmatprep.subr.mxu0 0.0
  %3967 = vmatpush2.msra.mxu0 0.0
  %3968 = vmatprep.subr.mxu0 0.0
  %3969 = vmatpush2.msra.mxu0 0.0
  %3970 = vmatprep.subr.mxu0 0.0
  %3971 = vmatpush2.msra.mxu0 0.0
  %3972 = vmatprep.subr.mxu0 0.0
  %3973 = vmatpush2.msra.mxu0 0.0
  %3974 = vmatprep.subr.mxu0 0.0
  %3975 = vmatpush2.msra.mxu0 0.0
  %3976 = vmatprep.subr.mxu0 0.0
  %3977 = vmatpush2.msra.mxu0 0.0
  %3978 = vmatprep.subr.mxu0 0.0
  %3979 = vmatpush2.msra.mxu0 0.0
  %3980 = vmatprep.subr.mxu0 0.0
  %3981 = vmatpush2.msra.mxu0 0.0
  %3982 = vmatprep.subr.mxu0 0.0
  %3983 = vmatpush2.msra.mxu0 0.0
  %3984 = vmatprep.subr.mxu0 0.0
  %3985 = vmatpush2.msra.mxu0 0.0
  %3986 = vmatprep.subr.mxu0 0.0
  %3987 = vmatpush2.msra.mxu0 0.0
  %3988 = vmatprep.subr.mxu0 0.0
  %3989 = vmatpush2.msra.mxu0 0.0
  %3990 = vmatprep.subr.mxu0 0.0
  %3991 = vmatpush2.msra.mxu0 0.0
  %3992 = vmatprep.subr.mxu0 0.0
  %3993 = vmatpush2.msra.mxu0 0.0
  %3994 = vmatprep.subr.mxu0 0.0
  %3995 = vmatpush2.msra.mxu0 0.0
  %3996 = vmatprep.mubr.f32.mxu0 0.0
  %3997 = vmatmul.mubr.f32.gmra.mxu0 %v3930
  %v3998 = vpop.f32.mrf.mxu0
  %v3999 = vadd.f32 0.0, %v3998
  %v4000 = vpop.f32.mrf.mxu0
  %v4001 = vadd.f32 0.0, %v4000
  %4002 = vdwg.mxu0
  %4003 = vmatprep.subr.mxu0 0.0
  %4004 = vmatpush1.msra.mxu0 0.0
  %4005 = vmatprep.subr.mxu0 0.0
  %4006 = vmatpush1.msra.mxu0 0.0
  %4007 = vmatprep.subr.mxu0 0.0
  %4008 = vmatpush1.msra.mxu0 0.0
  %4009 = vmatprep.subr.mxu0 0.0
  %4010 = vmatpush1.msra.mxu0 0.0
  %4011 = vmatprep.subr.mxu0 0.0
  %4012 = vmatpush1.msra.mxu0 0.0
  %4013 = vmatprep.subr.mxu0 0.0
  %4014 = vmatpush1.msra.mxu0 0.0
  %4015 = vmatprep.subr.mxu0 0.0
  %4016 = vmatpush1.msra.mxu0 0.0
  %4017 = vmatprep.subr.mxu0 0.0
  %4018 = vmatpush1.msra.mxu0 0.0
  %4019 = vmatprep.subr.mxu0 0.0
  %4020 = vmatpush1.msra.mxu0 0.0
  %4021 = vmatprep.subr.mxu0 0.0
  %4022 = vmatpush1.msra.mxu0 0.0
  %4023 = vmatprep.subr.mxu0 0.0
  %4024 = vmatpush1.msra.mxu0 0.0
  %4025 = vmatprep.subr.mxu0 0.0
  %4026 = vmatpush1.msra.mxu0 0.0
  %4027 = vmatprep.subr.mxu0 0.0
  %4028 = vmatpush1.msra.mxu0 0.0
  %4029 = vmatprep.subr.mxu0 0.0
  %4030 = vmatpush1.msra.mxu0 0.0
  %4031 = vmatprep.subr.mxu0 0.0
  %4032 = vmatpush1.msra.mxu0 0.0
  %4033 = vmatprep.subr.mxu0 %v3914
  %4034 = vmatpush1.msra.mxu0 %v3913
  %4035 = vmatprep.subr.mxu0 0.0
  %4036 = vmatpush2.msra.mxu0 0.0
  %4037 = vmatprep.subr.mxu0 0.0
  %4038 = vmatpush2.msra.mxu0 0.0
  %4039 = vmatprep.subr.mxu0 0.0
  %4040 = vmatpush2.msra.mxu0 0.0
  %4041 = vmatprep.subr.mxu0 0.0
  %4042 = vmatpush2.msra.mxu0 0.0
  %4043 = vmatprep.subr.mxu0 0.0
  %4044 = vmatpush2.msra.mxu0 0.0
  %4045 = vmatprep.subr.mxu0 0.0
  %4046 = vmatpush2.msra.mxu0 0.0
  %4047 = vmatprep.subr.mxu0 0.0
  %4048 = vmatpush2.msra.mxu0 0.0
  %4049 = vmatprep.subr.mxu0 0.0
  %4050 = vmatpush2.msra.mxu0 0.0
  %4051 = vmatprep.subr.mxu0 0.0
  %4052 = vmatpush2.msra.mxu0 0.0
  %4053 = vmatprep.subr.mxu0 0.0
  %4054 = vmatpush2.msra.mxu0 0.0
  %4055 = vmatprep.subr.mxu0 0.0
  %4056 = vmatpush2.msra.mxu0 0.0
  %4057 = vmatprep.subr.mxu0 0.0
  %4058 = vmatpush2.msra.mxu0 0.0
  %4059 = vmatprep.subr.mxu0 0.0
  %4060 = vmatpush2.msra.mxu0 0.0
  %4061 = vmatprep.subr.mxu0 0.0
  %4062 = vmatpush2.msra.mxu0 0.0
  %4063 = vmatprep.subr.mxu0 0.0
  %4064 = vmatpush2.msra.mxu0 0.0
  %4065 = vmatprep.subr.mxu0 0.0
  %4066 = vmatpush2.msra.mxu0 0.0
  %4067 = vmatprep.mubr.f32.mxu0 0.0
  %4068 = vmatmul.mubr.f32.gmra.mxu0 %v3930
  %v4069 = vpop.f32.mrf.mxu0
  %v4070 = vadd.f32 0.0, %v4069
  %v4071 = vpop.f32.mrf.mxu0
  %v4072 = vadd.f32 0.0, %v4071
  %4073 = vdwg.mxu0
  %4074 = vmatprep.subr.mxu0 0.0
  %4075 = vmatpush1.msra.mxu0 0.0
  %4076 = vmatprep.subr.mxu0 0.0
  %4077 = vmatpush1.msra.mxu0 0.0
  %4078 = vmatprep.subr.mxu0 0.0
  %4079 = vmatpush1.msra.mxu0 0.0
  %4080 = vmatprep.subr.mxu0 0.0
  %4081 = vmatpush1.msra.mxu0 0.0
  %4082 = vmatprep.subr.mxu0 0.0
  %4083 = vmatpush1.msra.mxu0 0.0
  %4084 = vmatprep.subr.mxu0 0.0
  %4085 = vmatpush1.msra.mxu0 0.0
  %4086 = vmatprep.subr.mxu0 0.0
  %4087 = vmatpush1.msra.mxu0 0.0
  %4088 = vmatprep.subr.mxu0 0.0
  %4089 = vmatpush1.msra.mxu0 0.0
  %4090 = vmatprep.subr.mxu0 0.0
  %4091 = vmatpush1.msra.mxu0 0.0
  %4092 = vmatprep.subr.mxu0 0.0
  %4093 = vmatpush1.msra.mxu0 0.0
  %4094 = vmatprep.subr.mxu0 0.0
  %4095 = vmatpush1.msra.mxu0 0.0
  %4096 = vmatprep.subr.mxu0 0.0
  %4097 = vmatpush1.msra.mxu0 0.0
  %4098 = vmatprep.subr.mxu0 0.0
  %4099 = vmatpush1.msra.mxu0 0.0
  %4100 = vmatprep.subr.mxu0 0.0
  %4101 = vmatpush1.msra.mxu0 0.0
  %4102 = vmatprep.subr.mxu0 0.0
  %4103 = vmatpush1.msra.mxu0 0.0
  %4104 = vmatprep.subr.mxu0 %v3916
  %4105 = vmatpush1.msra.mxu0 %v3915
  %4106 = vmatprep.subr.mxu0 0.0
  %4107 = vmatpush2.msra.mxu0 0.0
  %4108 = vmatprep.subr.mxu0 0.0
  %4109 = vmatpush2.msra.mxu0 0.0
  %4110 = vmatprep.subr.mxu0 0.0
  %4111 = vmatpush2.msra.mxu0 0.0
  %4112 = vmatprep.subr.mxu0 0.0
  %4113 = vmatpush2.msra.mxu0 0.0
  %4114 = vmatprep.subr.mxu0 0.0
  %4115 = vmatpush2.msra.mxu0 0.0
  %4116 = vmatprep.subr.mxu0 0.0
  %4117 = vmatpush2.msra.mxu0 0.0
  %4118 = vmatprep.subr.mxu0 0.0
  %4119 = vmatpush2.msra.mxu0 0.0
  %4120 = vmatprep.subr.mxu0 0.0
  %4121 = vmatpush2.msra.mxu0 0.0
  %4122 = vmatprep.subr.mxu0 0.0
  %4123 = vmatpush2.msra.mxu0 0.0
  %4124 = vmatprep.subr.mxu0 0.0
  %4125 = vmatpush2.msra.mxu0 0.0
  %4126 = vmatprep.subr.mxu0 0.0
  %4127 = vmatpush2.msra.mxu0 0.0
  %4128 = vmatprep.subr.mxu0 0.0
  %4129 = vmatpush2.msra.mxu0 0.0
  %4130 = vmatprep.subr.mxu0 0.0
  %4131 = vmatpush2.msra.mxu0 0.0
  %4132 = vmatprep.subr.mxu0 0.0
  %4133 = vmatpush2.msra.mxu0 0.0
  %4134 = vmatprep.subr.mxu0 0.0
  %4135 = vmatpush2.msra.mxu0 0.0
  %4136 = vmatprep.subr.mxu0 0.0
  %4137 = vmatpush2.msra.mxu0 0.0
  %4138 = vmatprep.mubr.f32.mxu0 0.0
  %4139 = vmatmul.mubr.f32.gmra.mxu0 %v3930
  %v4140 = vpop.f32.mrf.mxu0
  %v4141 = vadd.f32 0.0, %v4140
  %v4142 = vpop.f32.mrf.mxu0
  %v4143 = vadd.f32 0.0, %v4142
  %4144 = vdwg.mxu0
  %4145 = vmatprep.subr.mxu0 0.0
  %4146 = vmatpush1.msra.mxu0 0.0
  %4147 = vmatprep.subr.mxu0 0.0
  %4148 = vmatpush1.msra.mxu0 0.0
  %4149 = vmatprep.subr.mxu0 0.0
  %4150 = vmatpush1.msra.mxu0 0.0
  %4151 = vmatprep.subr.mxu0 0.0
  %4152 = vmatpush1.msra.mxu0 0.0
  %4153 = vmatprep.subr.mxu0 0.0
  %4154 = vmatpush1.msra.mxu0 0.0
  %4155 = vmatprep.subr.mxu0 0.0
  %4156 = vmatpush1.msra.mxu0 0.0
  %4157 = vmatprep.subr.mxu0 0.0
  %4158 = vmatpush1.msra.mxu0 0.0
  %4159 = vmatprep.subr.mxu0 0.0
  %4160 = vmatpush1.msra.mxu0 0.0
  %4161 = vmatprep.subr.mxu0 0.0
  %4162 = vmatpush1.msra.mxu0 0.0
  %4163 = vmatprep.subr.mxu0 0.0
  %4164 = vmatpush1.msra.mxu0 0.0
  %4165 = vmatprep.subr.mxu0 0.0
  %4166 = vmatpush1.msra.mxu0 0.0
  %4167 = vmatprep.subr.mxu0 0.0
  %4168 = vmatpush1.msra.mxu0 0.0
  %4169 = vmatprep.subr.mxu0 0.0
  %4170 = vmatpush1.msra.mxu0 0.0
  %4171 = vmatprep.subr.mxu0 0.0
  %4172 = vmatpush1.msra.mxu0 0.0
  %4173 = vmatprep.subr.mxu0 0.0
  %4174 = vmatpush1.msra.mxu0 0.0
  %4175 = vmatprep.subr.mxu0 %v3918
  %4176 = vmatpush1.msra.mxu0 %v3917
  %4177 = vmatprep.subr.mxu0 0.0
  %4178 = vmatpush2.msra.mxu0 0.0
  %4179 = vmatprep.subr.mxu0 0.0
  %4180 = vmatpush2.msra.mxu0 0.0
  %4181 = vmatprep.subr.mxu0 0.0
  %4182 = vmatpush2.msra.mxu0 0.0
  %4183 = vmatprep.subr.mxu0 0.0
  %4184 = vmatpush2.msra.mxu0 0.0
  %4185 = vmatprep.subr.mxu0 0.0
  %4186 = vmatpush2.msra.mxu0 0.0
  %4187 = vmatprep.subr.mxu0 0.0
  %4188 = vmatpush2.msra.mxu0 0.0
  %4189 = vmatprep.subr.mxu0 0.0
  %4190 = vmatpush2.msra.mxu0 0.0
  %4191 = vmatprep.subr.mxu0 0.0
  %4192 = vmatpush2.msra.mxu0 0.0
  %4193 = vmatprep.subr.mxu0 0.0
  %4194 = vmatpush2.msra.mxu0 0.0
  %4195 = vmatprep.subr.mxu0 0.0
  %4196 = vmatpush2.msra.mxu0 0.0
  %4197 = vmatprep.subr.mxu0 0.0
  %4198 = vmatpush2.msra.mxu0 0.0
  %4199 = vmatprep.subr.mxu0 0.0
  %4200 = vmatpush2.msra.mxu0 0.0
  %4201 = vmatprep.subr.mxu0 0.0
  %4202 = vmatpush2.msra.mxu0 0.0
  %4203 = vmatprep.subr.mxu0 0.0
  %4204 = vmatpush2.msra.mxu0 0.0
  %4205 = vmatprep.subr.mxu0 0.0
  %4206 = vmatpush2.msra.mxu0 0.0
  %4207 = vmatprep.subr.mxu0 0.0
  %4208 = vmatpush2.msra.mxu0 0.0
  %4209 = vmatprep.mubr.f32.mxu0 0.0
  %4210 = vmatmul.mubr.f32.gmra.mxu0 %v3930
  %v4211 = vpop.f32.mrf.mxu0
  %v4212 = vadd.f32 0.0, %v4211
  %v4213 = vpop.f32.mrf.mxu0
  %v4214 = vadd.f32 0.0, %v4213
  %4215 = vdwg.mxu0
  %4216 = vmatprep.subr.mxu0 0.0
  %4217 = vmatpush1.msra.mxu0 0.0
  %4218 = vmatprep.subr.mxu0 0.0
  %4219 = vmatpush1.msra.mxu0 0.0
  %4220 = vmatprep.subr.mxu0 0.0
  %4221 = vmatpush1.msra.mxu0 0.0
  %4222 = vmatprep.subr.mxu0 0.0
  %4223 = vmatpush1.msra.mxu0 0.0
  %4224 = vmatprep.subr.mxu0 0.0
  %4225 = vmatpush1.msra.mxu0 0.0
  %4226 = vmatprep.subr.mxu0 0.0
  %4227 = vmatpush1.msra.mxu0 0.0
  %4228 = vmatprep.subr.mxu0 0.0
  %4229 = vmatpush1.msra.mxu0 0.0
  %4230 = vmatprep.subr.mxu0 0.0
  %4231 = vmatpush1.msra.mxu0 0.0
  %4232 = vmatprep.subr.mxu0 0.0
  %4233 = vmatpush1.msra.mxu0 0.0
  %4234 = vmatprep.subr.mxu0 0.0
  %4235 = vmatpush1.msra.mxu0 0.0
  %4236 = vmatprep.subr.mxu0 0.0
  %4237 = vmatpush1.msra.mxu0 0.0
  %4238 = vmatprep.subr.mxu0 0.0
  %4239 = vmatpush1.msra.mxu0 0.0
  %4240 = vmatprep.subr.mxu0 0.0
  %4241 = vmatpush1.msra.mxu0 0.0
  %4242 = vmatprep.subr.mxu0 0.0
  %4243 = vmatpush1.msra.mxu0 0.0
  %4244 = vmatprep.subr.mxu0 0.0
  %4245 = vmatpush1.msra.mxu0 0.0
  %4246 = vmatprep.subr.mxu0 0.0
  %4247 = vmatpush1.msra.mxu0 %v3919
  %4248 = vmatprep.subr.mxu0 0.0
  %4249 = vmatpush2.msra.mxu0 0.0
  %4250 = vmatprep.subr.mxu0 0.0
  %4251 = vmatpush2.msra.mxu0 0.0
  %4252 = vmatprep.subr.mxu0 0.0
  %4253 = vmatpush2.msra.mxu0 0.0
  %4254 = vmatprep.subr.mxu0 0.0
  %4255 = vmatpush2.msra.mxu0 0.0
  %4256 = vmatprep.subr.mxu0 0.0
  %4257 = vmatpush2.msra.mxu0 0.0
  %4258 = vmatprep.subr.mxu0 0.0
  %4259 = vmatpush2.msra.mxu0 0.0
  %4260 = vmatprep.subr.mxu0 0.0
  %4261 = vmatpush2.msra.mxu0 0.0
  %4262 = vmatprep.subr.mxu0 0.0
  %4263 = vmatpush2.msra.mxu0 0.0
  %4264 = vmatprep.subr.mxu0 0.0
  %4265 = vmatpush2.msra.mxu0 0.0
  %4266 = vmatprep.subr.mxu0 0.0
  %4267 = vmatpush2.msra.mxu0 0.0
  %4268 = vmatprep.subr.mxu0 0.0
  %4269 = vmatpush2.msra.mxu0 0.0
  %4270 = vmatprep.subr.mxu0 0.0
  %4271 = vmatpush2.msra.mxu0 0.0
  %4272 = vmatprep.subr.mxu0 0.0
  %4273 = vmatpush2.msra.mxu0 0.0
  %4274 = vmatprep.subr.mxu0 0.0
  %4275 = vmatpush2.msra.mxu0 0.0
  %4276 = vmatprep.subr.mxu0 0.0
  %4277 = vmatpush2.msra.mxu0 0.0
  %4278 = vmatprep.subr.mxu0 0.0
  %4279 = vmatpush2.msra.mxu0 0.0
  %4280 = vmatprep.mubr.f32.mxu0 0.0
  %4281 = vmatmul.mubr.f32.gmra.mxu0 %v3930
  %v4282 = vpop.f32.mrf.mxu0
  %v4283 = vadd.f32 0.0, %v4282
  %v4284 = vpop.f32.mrf.mxu0
  %4285 = vdwg.mxu0
  %4286 = vrot.lane.b32.xlu0 %v3869, 33
  %v4287 = vpop.permute.xlu0 %4286
  %4288 = vrot.lane.b32.xlu0 %v3870, 33
  %v4289 = vpop.permute.xlu0 %4288
  %4290 = vrot.lane.b32.xlu0 %v3871, 33
  %v4291 = vpop.permute.xlu0 %4290
  %4292 = vrot.lane.b32.xlu0 %v3872, 33
  %v4293 = vpop.permute.xlu0 %4292
  %4294 = vrot.lane.b32.xlu0 %v3873, 33
  %v4295 = vpop.permute.xlu0 %4294
  %4296 = vrot.lane.b32.xlu0 %v3874, 33
  %v4297 = vpop.permute.xlu0 %4296
  %4298 = vrot.lane.b32.xlu0 %v3875, 33
  %v4299 = vpop.permute.xlu0 %4298
  %4300 = vrot.lane.b32.xlu0 %v3876, 33
  %v4301 = vpop.permute.xlu0 %4300
  %4302 = vrot.lane.b32.xlu0 %v3877, 33
  %v4303 = vpop.permute.xlu0 %4302
  %4304 = vrot.lane.b32.xlu0 %v3878, 33
  %v4305 = vpop.permute.xlu0 %4304
  %v4306 = vsel %vm484, %v4287, %v4289
  %v4307 = vsel %vm484, %v4289, %v4291
  %v4308 = vsel %vm484, %v4291, %v4293
  %v4309 = vsel %vm484, %v4293, %v4295
  %v4310 = vsel %vm484, %v4295, %v4297
  %v4311 = vsel %vm484, %v4297, %v4299
  %v4312 = vsel %vm484, %v4299, %v4301
  %v4313 = vsel %vm484, %v4301, %v4303
  %v4314 = vsel %vm484, %v4303, %v4305
  %v4325 = vsel %vm106, %v3868, 0
  %4327 = vmatprep.subr.mxu0 0.0
  %4328 = vmatpush1.msra.mxu0 0.0
  %4329 = vmatprep.subr.mxu0 0.0
  %4330 = vmatpush1.msra.mxu0 0.0
  %4331 = vmatprep.subr.mxu0 0.0
  %4332 = vmatpush1.msra.mxu0 0.0
  %4333 = vmatprep.subr.mxu0 0.0
  %4334 = vmatpush1.msra.mxu0 0.0
  %4335 = vmatprep.subr.mxu0 0.0
  %4336 = vmatpush1.msra.mxu0 0.0
  %4337 = vmatprep.subr.mxu0 0.0
  %4338 = vmatpush1.msra.mxu0 0.0
  %4339 = vmatprep.subr.mxu0 0.0
  %4340 = vmatpush1.msra.mxu0 0.0
  %4341 = vmatprep.subr.mxu0 0.0
  %4342 = vmatpush1.msra.mxu0 0.0
  %4343 = vmatprep.subr.mxu0 0.0
  %4344 = vmatpush1.msra.mxu0 0.0
  %4345 = vmatprep.subr.mxu0 0.0
  %4346 = vmatpush1.msra.mxu0 0.0
  %4347 = vmatprep.subr.mxu0 0.0
  %4348 = vmatpush1.msra.mxu0 0.0
  %4349 = vmatprep.subr.mxu0 0.0
  %4350 = vmatpush1.msra.mxu0 0.0
  %4351 = vmatprep.subr.mxu0 0.0
  %4352 = vmatpush1.msra.mxu0 0.0
  %4353 = vmatprep.subr.mxu0 0.0
  %4354 = vmatpush1.msra.mxu0 0.0
  %4355 = vmatprep.subr.mxu0 0.0
  %4356 = vmatpush1.msra.mxu0 0.0
  %4357 = vmatprep.subr.mxu0 %v4307
  %4358 = vmatpush1.msra.mxu0 %v4306
  %4359 = vmatprep.subr.mxu0 0.0
  %4360 = vmatpush2.msra.mxu0 0.0
  %4361 = vmatprep.subr.mxu0 0.0
  %4362 = vmatpush2.msra.mxu0 0.0
  %4363 = vmatprep.subr.mxu0 0.0
  %4364 = vmatpush2.msra.mxu0 0.0
  %4365 = vmatprep.subr.mxu0 0.0
  %4366 = vmatpush2.msra.mxu0 0.0
  %4367 = vmatprep.subr.mxu0 0.0
  %4368 = vmatpush2.msra.mxu0 0.0
  %4369 = vmatprep.subr.mxu0 0.0
  %4370 = vmatpush2.msra.mxu0 0.0
  %4371 = vmatprep.subr.mxu0 0.0
  %4372 = vmatpush2.msra.mxu0 0.0
  %4373 = vmatprep.subr.mxu0 0.0
  %4374 = vmatpush2.msra.mxu0 0.0
  %4375 = vmatprep.subr.mxu0 0.0
  %4376 = vmatpush2.msra.mxu0 0.0
  %4377 = vmatprep.subr.mxu0 0.0
  %4378 = vmatpush2.msra.mxu0 0.0
  %4379 = vmatprep.subr.mxu0 0.0
  %4380 = vmatpush2.msra.mxu0 0.0
  %4381 = vmatprep.subr.mxu0 0.0
  %4382 = vmatpush2.msra.mxu0 0.0
  %4383 = vmatprep.subr.mxu0 0.0
  %4384 = vmatpush2.msra.mxu0 0.0
  %4385 = vmatprep.subr.mxu0 0.0
  %4386 = vmatpush2.msra.mxu0 0.0
  %4387 = vmatprep.subr.mxu0 0.0
  %4388 = vmatpush2.msra.mxu0 0.0
  %4389 = vmatprep.subr.mxu0 0.0
  %4390 = vmatpush2.msra.mxu0 0.0
  %4391 = vmatprep.mubr.f32.mxu0 0.0
  %4392 = vmatmul.mubr.f32.gmra.mxu0 %v4325
  %v4393 = vpop.f32.mrf.mxu0
  %v4394 = vadd.f32 %v3999, %v4393
  %v4395 = vpop.f32.mrf.mxu0
  %v4396 = vadd.f32 %v4001, %v4395
  %4397 = vdwg.mxu0
  %4398 = vmatprep.subr.mxu0 0.0
  %4399 = vmatpush1.msra.mxu0 0.0
  %4400 = vmatprep.subr.mxu0 0.0
  %4401 = vmatpush1.msra.mxu0 0.0
  %4402 = vmatprep.subr.mxu0 0.0
  %4403 = vmatpush1.msra.mxu0 0.0
  %4404 = vmatprep.subr.mxu0 0.0
  %4405 = vmatpush1.msra.mxu0 0.0
  %4406 = vmatprep.subr.mxu0 0.0
  %4407 = vmatpush1.msra.mxu0 0.0
  %4408 = vmatprep.subr.mxu0 0.0
  %4409 = vmatpush1.msra.mxu0 0.0
  %4410 = vmatprep.subr.mxu0 0.0
  %4411 = vmatpush1.msra.mxu0 0.0
  %4412 = vmatprep.subr.mxu0 0.0
  %4413 = vmatpush1.msra.mxu0 0.0
  %4414 = vmatprep.subr.mxu0 0.0
  %4415 = vmatpush1.msra.mxu0 0.0
  %4416 = vmatprep.subr.mxu0 0.0
  %4417 = vmatpush1.msra.mxu0 0.0
  %4418 = vmatprep.subr.mxu0 0.0
  %4419 = vmatpush1.msra.mxu0 0.0
  %4420 = vmatprep.subr.mxu0 0.0
  %4421 = vmatpush1.msra.mxu0 0.0
  %4422 = vmatprep.subr.mxu0 0.0
  %4423 = vmatpush1.msra.mxu0 0.0
  %4424 = vmatprep.subr.mxu0 0.0
  %4425 = vmatpush1.msra.mxu0 0.0
  %4426 = vmatprep.subr.mxu0 0.0
  %4427 = vmatpush1.msra.mxu0 0.0
  %4428 = vmatprep.subr.mxu0 %v4309
  %4429 = vmatpush1.msra.mxu0 %v4308
  %4430 = vmatprep.subr.mxu0 0.0
  %4431 = vmatpush2.msra.mxu0 0.0
  %4432 = vmatprep.subr.mxu0 0.0
  %4433 = vmatpush2.msra.mxu0 0.0
  %4434 = vmatprep.subr.mxu0 0.0
  %4435 = vmatpush2.msra.mxu0 0.0
  %4436 = vmatprep.subr.mxu0 0.0
  %4437 = vmatpush2.msra.mxu0 0.0
  %4438 = vmatprep.subr.mxu0 0.0
  %4439 = vmatpush2.msra.mxu0 0.0
  %4440 = vmatprep.subr.mxu0 0.0
  %4441 = vmatpush2.msra.mxu0 0.0
  %4442 = vmatprep.subr.mxu0 0.0
  %4443 = vmatpush2.msra.mxu0 0.0
  %4444 = vmatprep.subr.mxu0 0.0
  %4445 = vmatpush2.msra.mxu0 0.0
  %4446 = vmatprep.subr.mxu0 0.0
  %4447 = vmatpush2.msra.mxu0 0.0
  %4448 = vmatprep.subr.mxu0 0.0
  %4449 = vmatpush2.msra.mxu0 0.0
  %4450 = vmatprep.subr.mxu0 0.0
  %4451 = vmatpush2.msra.mxu0 0.0
  %4452 = vmatprep.subr.mxu0 0.0
  %4453 = vmatpush2.msra.mxu0 0.0
  %4454 = vmatprep.subr.mxu0 0.0
  %4455 = vmatpush2.msra.mxu0 0.0
  %4456 = vmatprep.subr.mxu0 0.0
  %4457 = vmatpush2.msra.mxu0 0.0
  %4458 = vmatprep.subr.mxu0 0.0
  %4459 = vmatpush2.msra.mxu0 0.0
  %4460 = vmatprep.subr.mxu0 0.0
  %4461 = vmatpush2.msra.mxu0 0.0
  %4462 = vmatprep.mubr.f32.mxu0 0.0
  %4463 = vmatmul.mubr.f32.gmra.mxu0 %v4325
  %v4464 = vpop.f32.mrf.mxu0
  %v4465 = vadd.f32 %v4070, %v4464
  %v4466 = vpop.f32.mrf.mxu0
  %v4467 = vadd.f32 %v4072, %v4466
  %4468 = vdwg.mxu0
  %4469 = vmatprep.subr.mxu0 0.0
  %4470 = vmatpush1.msra.mxu0 0.0
  %4471 = vmatprep.subr.mxu0 0.0
  %4472 = vmatpush1.msra.mxu0 0.0
  %4473 = vmatprep.subr.mxu0 0.0
  %4474 = vmatpush1.msra.mxu0 0.0
  %4475 = vmatprep.subr.mxu0 0.0
  %4476 = vmatpush1.msra.mxu0 0.0
  %4477 = vmatprep.subr.mxu0 0.0
  %4478 = vmatpush1.msra.mxu0 0.0
  %4479 = vmatprep.subr.mxu0 0.0
  %4480 = vmatpush1.msra.mxu0 0.0
  %4481 = vmatprep.subr.mxu0 0.0
  %4482 = vmatpush1.msra.mxu0 0.0
  %4483 = vmatprep.subr.mxu0 0.0
  %4484 = vmatpush1.msra.mxu0 0.0
  %4485 = vmatprep.subr.mxu0 0.0
  %4486 = vmatpush1.msra.mxu0 0.0
  %4487 = vmatprep.subr.mxu0 0.0
  %4488 = vmatpush1.msra.mxu0 0.0
  %4489 = vmatprep.subr.mxu0 0.0
  %4490 = vmatpush1.msra.mxu0 0.0
  %4491 = vmatprep.subr.mxu0 0.0
  %4492 = vmatpush1.msra.mxu0 0.0
  %4493 = vmatprep.subr.mxu0 0.0
  %4494 = vmatpush1.msra.mxu0 0.0
  %4495 = vmatprep.subr.mxu0 0.0
  %4496 = vmatpush1.msra.mxu0 0.0
  %4497 = vmatprep.subr.mxu0 0.0
  %4498 = vmatpush1.msra.mxu0 0.0
  %4499 = vmatprep.subr.mxu0 %v4311
  %4500 = vmatpush1.msra.mxu0 %v4310
  %4501 = vmatprep.subr.mxu0 0.0
  %4502 = vmatpush2.msra.mxu0 0.0
  %4503 = vmatprep.subr.mxu0 0.0
  %4504 = vmatpush2.msra.mxu0 0.0
  %4505 = vmatprep.subr.mxu0 0.0
  %4506 = vmatpush2.msra.mxu0 0.0
  %4507 = vmatprep.subr.mxu0 0.0
  %4508 = vmatpush2.msra.mxu0 0.0
  %4509 = vmatprep.subr.mxu0 0.0
  %4510 = vmatpush2.msra.mxu0 0.0
  %4511 = vmatprep.subr.mxu0 0.0
  %4512 = vmatpush2.msra.mxu0 0.0
  %4513 = vmatprep.subr.mxu0 0.0
  %4514 = vmatpush2.msra.mxu0 0.0
  %4515 = vmatprep.subr.mxu0 0.0
  %4516 = vmatpush2.msra.mxu0 0.0
  %4517 = vmatprep.subr.mxu0 0.0
  %4518 = vmatpush2.msra.mxu0 0.0
  %4519 = vmatprep.subr.mxu0 0.0
  %4520 = vmatpush2.msra.mxu0 0.0
  %4521 = vmatprep.subr.mxu0 0.0
  %4522 = vmatpush2.msra.mxu0 0.0
  %4523 = vmatprep.subr.mxu0 0.0
  %4524 = vmatpush2.msra.mxu0 0.0
  %4525 = vmatprep.subr.mxu0 0.0
  %4526 = vmatpush2.msra.mxu0 0.0
  %4527 = vmatprep.subr.mxu0 0.0
  %4528 = vmatpush2.msra.mxu0 0.0
  %4529 = vmatprep.subr.mxu0 0.0
  %4530 = vmatpush2.msra.mxu0 0.0
  %4531 = vmatprep.subr.mxu0 0.0
  %4532 = vmatpush2.msra.mxu0 0.0
  %4533 = vmatprep.mubr.f32.mxu0 0.0
  %4534 = vmatmul.mubr.f32.gmra.mxu0 %v4325
  %v4535 = vpop.f32.mrf.mxu0
  %v4536 = vadd.f32 %v4141, %v4535
  %v4537 = vpop.f32.mrf.mxu0
  %v4538 = vadd.f32 %v4143, %v4537
  %4539 = vdwg.mxu0
  %4540 = vmatprep.subr.mxu0 0.0
  %4541 = vmatpush1.msra.mxu0 0.0
  %4542 = vmatprep.subr.mxu0 0.0
  %4543 = vmatpush1.msra.mxu0 0.0
  %4544 = vmatprep.subr.mxu0 0.0
  %4545 = vmatpush1.msra.mxu0 0.0
  %4546 = vmatprep.subr.mxu0 0.0
  %4547 = vmatpush1.msra.mxu0 0.0
  %4548 = vmatprep.subr.mxu0 0.0
  %4549 = vmatpush1.msra.mxu0 0.0
  %4550 = vmatprep.subr.mxu0 0.0
  %4551 = vmatpush1.msra.mxu0 0.0
  %4552 = vmatprep.subr.mxu0 0.0
  %4553 = vmatpush1.msra.mxu0 0.0
  %4554 = vmatprep.subr.mxu0 0.0
  %4555 = vmatpush1.msra.mxu0 0.0
  %4556 = vmatprep.subr.mxu0 0.0
  %4557 = vmatpush1.msra.mxu0 0.0
  %4558 = vmatprep.subr.mxu0 0.0
  %4559 = vmatpush1.msra.mxu0 0.0
  %4560 = vmatprep.subr.mxu0 0.0
  %4561 = vmatpush1.msra.mxu0 0.0
  %4562 = vmatprep.subr.mxu0 0.0
  %4563 = vmatpush1.msra.mxu0 0.0
  %4564 = vmatprep.subr.mxu0 0.0
  %4565 = vmatpush1.msra.mxu0 0.0
  %4566 = vmatprep.subr.mxu0 0.0
  %4567 = vmatpush1.msra.mxu0 0.0
  %4568 = vmatprep.subr.mxu0 0.0
  %4569 = vmatpush1.msra.mxu0 0.0
  %4570 = vmatprep.subr.mxu0 %v4313
  %4571 = vmatpush1.msra.mxu0 %v4312
  %4572 = vmatprep.subr.mxu0 0.0
  %4573 = vmatpush2.msra.mxu0 0.0
  %4574 = vmatprep.subr.mxu0 0.0
  %4575 = vmatpush2.msra.mxu0 0.0
  %4576 = vmatprep.subr.mxu0 0.0
  %4577 = vmatpush2.msra.mxu0 0.0
  %4578 = vmatprep.subr.mxu0 0.0
  %4579 = vmatpush2.msra.mxu0 0.0
  %4580 = vmatprep.subr.mxu0 0.0
  %4581 = vmatpush2.msra.mxu0 0.0
  %4582 = vmatprep.subr.mxu0 0.0
  %4583 = vmatpush2.msra.mxu0 0.0
  %4584 = vmatprep.subr.mxu0 0.0
  %4585 = vmatpush2.msra.mxu0 0.0
  %4586 = vmatprep.subr.mxu0 0.0
  %4587 = vmatpush2.msra.mxu0 0.0
  %4588 = vmatprep.subr.mxu0 0.0
  %4589 = vmatpush2.msra.mxu0 0.0
  %4590 = vmatprep.subr.mxu0 0.0
  %4591 = vmatpush2.msra.mxu0 0.0
  %4592 = vmatprep.subr.mxu0 0.0
  %4593 = vmatpush2.msra.mxu0 0.0
  %4594 = vmatprep.subr.mxu0 0.0
  %4595 = vmatpush2.msra.mxu0 0.0
  %4596 = vmatprep.subr.mxu0 0.0
  %4597 = vmatpush2.msra.mxu0 0.0
  %4598 = vmatprep.subr.mxu0 0.0
  %4599 = vmatpush2.msra.mxu0 0.0
  %4600 = vmatprep.subr.mxu0 0.0
  %4601 = vmatpush2.msra.mxu0 0.0
  %4602 = vmatprep.subr.mxu0 0.0
  %4603 = vmatpush2.msra.mxu0 0.0
  %4604 = vmatprep.mubr.f32.mxu0 0.0
  %4605 = vmatmul.mubr.f32.gmra.mxu0 %v4325
  %v4606 = vpop.f32.mrf.mxu0
  %v4607 = vadd.f32 %v4212, %v4606
  %v4608 = vpop.f32.mrf.mxu0
  %v4609 = vadd.f32 %v4214, %v4608
  %4610 = vdwg.mxu0
  %4611 = vmatprep.subr.mxu0 0.0
  %4612 = vmatpush1.msra.mxu0 0.0
  %4613 = vmatprep.subr.mxu0 0.0
  %4614 = vmatpush1.msra.mxu0 0.0
  %4615 = vmatprep.subr.mxu0 0.0
  %4616 = vmatpush1.msra.mxu0 0.0
  %4617 = vmatprep.subr.mxu0 0.0
  %4618 = vmatpush1.msra.mxu0 0.0
  %4619 = vmatprep.subr.mxu0 0.0
  %4620 = vmatpush1.msra.mxu0 0.0
  %4621 = vmatprep.subr.mxu0 0.0
  %4622 = vmatpush1.msra.mxu0 0.0
  %4623 = vmatprep.subr.mxu0 0.0
  %4624 = vmatpush1.msra.mxu0 0.0
  %4625 = vmatprep.subr.mxu0 0.0
  %4626 = vmatpush1.msra.mxu0 0.0
  %4627 = vmatprep.subr.mxu0 0.0
  %4628 = vmatpush1.msra.mxu0 0.0
  %4629 = vmatprep.subr.mxu0 0.0
  %4630 = vmatpush1.msra.mxu0 0.0
  %4631 = vmatprep.subr.mxu0 0.0
  %4632 = vmatpush1.msra.mxu0 0.0
  %4633 = vmatprep.subr.mxu0 0.0
  %4634 = vmatpush1.msra.mxu0 0.0
  %4635 = vmatprep.subr.mxu0 0.0
  %4636 = vmatpush1.msra.mxu0 0.0
  %4637 = vmatprep.subr.mxu0 0.0
  %4638 = vmatpush1.msra.mxu0 0.0
  %4639 = vmatprep.subr.mxu0 0.0
  %4640 = vmatpush1.msra.mxu0 0.0
  %4641 = vmatprep.subr.mxu0 0.0
  %4642 = vmatpush1.msra.mxu0 %v4314
  %4643 = vmatprep.subr.mxu0 0.0
  %4644 = vmatpush2.msra.mxu0 0.0
  %4645 = vmatprep.subr.mxu0 0.0
  %4646 = vmatpush2.msra.mxu0 0.0
  %4647 = vmatprep.subr.mxu0 0.0
  %4648 = vmatpush2.msra.mxu0 0.0
  %4649 = vmatprep.subr.mxu0 0.0
  %4650 = vmatpush2.msra.mxu0 0.0
  %4651 = vmatprep.subr.mxu0 0.0
  %4652 = vmatpush2.msra.mxu0 0.0
  %4653 = vmatprep.subr.mxu0 0.0
  %4654 = vmatpush2.msra.mxu0 0.0
  %4655 = vmatprep.subr.mxu0 0.0
  %4656 = vmatpush2.msra.mxu0 0.0
  %4657 = vmatprep.subr.mxu0 0.0
  %4658 = vmatpush2.msra.mxu0 0.0
  %4659 = vmatprep.subr.mxu0 0.0
  %4660 = vmatpush2.msra.mxu0 0.0
  %4661 = vmatprep.subr.mxu0 0.0
  %4662 = vmatpush2.msra.mxu0 0.0
  %4663 = vmatprep.subr.mxu0 0.0
  %4664 = vmatpush2.msra.mxu0 0.0
  %4665 = vmatprep.subr.mxu0 0.0
  %4666 = vmatpush2.msra.mxu0 0.0
  %4667 = vmatprep.subr.mxu0 0.0
  %4668 = vmatpush2.msra.mxu0 0.0
  %4669 = vmatprep.subr.mxu0 0.0
  %4670 = vmatpush2.msra.mxu0 0.0
  %4671 = vmatprep.subr.mxu0 0.0
  %4672 = vmatpush2.msra.mxu0 0.0
  %4673 = vmatprep.subr.mxu0 0.0
  %4674 = vmatpush2.msra.mxu0 0.0
  %4675 = vmatprep.mubr.f32.mxu0 0.0
  %4676 = vmatmul.mubr.f32.gmra.mxu0 %v4325
  %v4677 = vpop.f32.mrf.mxu0
  %v4678 = vadd.f32 %v4283, %v4677
  %v4679 = vpop.f32.mrf.mxu0
  %4680 = vdwg.mxu0
  %s4681 = scalar_lea.vmem %s6, 16
  %v4682 = vld [vmem:[%s4681] sm:$0xff]
  %4683 = vrot.lane.b32.xlu0 %v3869, 31
  %v4684 = vpop.permute.xlu0 %4683
  %4685 = vrot.lane.b32.xlu0 %v3870, 31
  %v4686 = vpop.permute.xlu0 %4685
  %4687 = vrot.lane.b32.xlu0 %v3871, 31
  %v4688 = vpop.permute.xlu0 %4687
  %4689 = vrot.lane.b32.xlu0 %v3872, 31
  %v4690 = vpop.permute.xlu0 %4689
  %4691 = vrot.lane.b32.xlu0 %v3873, 31
  %v4692 = vpop.permute.xlu0 %4691
  %4693 = vrot.lane.b32.xlu0 %v3874, 31
  %v4694 = vpop.permute.xlu0 %4693
  %4695 = vrot.lane.b32.xlu0 %v3875, 31
  %v4696 = vpop.permute.xlu0 %4695
  %4697 = vrot.lane.b32.xlu0 %v3876, 31
  %v4698 = vpop.permute.xlu0 %4697
  %4699 = vrot.lane.b32.xlu0 %v3877, 31
  %v4700 = vpop.permute.xlu0 %4699
  %4701 = vrot.lane.b32.xlu0 %v3878, 31
  %v4702 = vpop.permute.xlu0 %4701
  %v4703 = vsel %vm882, %v4684, %v4686
  %v4704 = vsel %vm882, %v4686, %v4688
  %v4705 = vsel %vm882, %v4688, %v4690
  %v4706 = vsel %vm882, %v4690, %v4692
  %v4707 = vsel %vm882, %v4692, %v4694
  %v4708 = vsel %vm882, %v4694, %v4696
  %v4709 = vsel %vm882, %v4696, %v4698
  %v4710 = vsel %vm882, %v4698, %v4700
  %v4711 = vsel %vm882, %v4700, %v4702
  %v4722 = vsel %vm106, %v4682, 0
  %4724 = vmatprep.subr.mxu0 0.0
  %4725 = vmatpush1.msra.mxu0 0.0
  %4726 = vmatprep.subr.mxu0 0.0
  %4727 = vmatpush1.msra.mxu0 0.0
  %4728 = vmatprep.subr.mxu0 0.0
  %4729 = vmatpush1.msra.mxu0 0.0
  %4730 = vmatprep.subr.mxu0 0.0
  %4731 = vmatpush1.msra.mxu0 0.0
  %4732 = vmatprep.subr.mxu0 0.0
  %4733 = vmatpush1.msra.mxu0 0.0
  %4734 = vmatprep.subr.mxu0 0.0
  %4735 = vmatpush1.msra.mxu0 0.0
  %4736 = vmatprep.subr.mxu0 0.0
  %4737 = vmatpush1.msra.mxu0 0.0
  %4738 = vmatprep.subr.mxu0 0.0
  %4739 = vmatpush1.msra.mxu0 0.0
  %4740 = vmatprep.subr.mxu0 0.0
  %4741 = vmatpush1.msra.mxu0 0.0
  %4742 = vmatprep.subr.mxu0 0.0
  %4743 = vmatpush1.msra.mxu0 0.0
  %4744 = vmatprep.subr.mxu0 0.0
  %4745 = vmatpush1.msra.mxu0 0.0
  %4746 = vmatprep.subr.mxu0 0.0
  %4747 = vmatpush1.msra.mxu0 0.0
  %4748 = vmatprep.subr.mxu0 0.0
  %4749 = vmatpush1.msra.mxu0 0.0
  %4750 = vmatprep.subr.mxu0 0.0
  %4751 = vmatpush1.msra.mxu0 0.0
  %4752 = vmatprep.subr.mxu0 0.0
  %4753 = vmatpush1.msra.mxu0 0.0
  %4754 = vmatprep.subr.mxu0 %v4704
  %4755 = vmatpush1.msra.mxu0 %v4703
  %4756 = vmatprep.subr.mxu0 0.0
  %4757 = vmatpush2.msra.mxu0 0.0
  %4758 = vmatprep.subr.mxu0 0.0
  %4759 = vmatpush2.msra.mxu0 0.0
  %4760 = vmatprep.subr.mxu0 0.0
  %4761 = vmatpush2.msra.mxu0 0.0
  %4762 = vmatprep.subr.mxu0 0.0
  %4763 = vmatpush2.msra.mxu0 0.0
  %4764 = vmatprep.subr.mxu0 0.0
  %4765 = vmatpush2.msra.mxu0 0.0
  %4766 = vmatprep.subr.mxu0 0.0
  %4767 = vmatpush2.msra.mxu0 0.0
  %4768 = vmatprep.subr.mxu0 0.0
  %4769 = vmatpush2.msra.mxu0 0.0
  %4770 = vmatprep.subr.mxu0 0.0
  %4771 = vmatpush2.msra.mxu0 0.0
  %4772 = vmatprep.subr.mxu0 0.0
  %4773 = vmatpush2.msra.mxu0 0.0
  %4774 = vmatprep.subr.mxu0 0.0
  %4775 = vmatpush2.msra.mxu0 0.0
  %4776 = vmatprep.subr.mxu0 0.0
  %4777 = vmatpush2.msra.mxu0 0.0
  %4778 = vmatprep.subr.mxu0 0.0
  %4779 = vmatpush2.msra.mxu0 0.0
  %4780 = vmatprep.subr.mxu0 0.0
  %4781 = vmatpush2.msra.mxu0 0.0
  %4782 = vmatprep.subr.mxu0 0.0
  %4783 = vmatpush2.msra.mxu0 0.0
  %4784 = vmatprep.subr.mxu0 0.0
  %4785 = vmatpush2.msra.mxu0 0.0
  %4786 = vmatprep.subr.mxu0 0.0
  %4787 = vmatpush2.msra.mxu0 0.0
  %4788 = vmatprep.mubr.f32.mxu0 0.0
  %4789 = vmatmul.mubr.f32.gmra.mxu0 %v4722
  %v4790 = vpop.f32.mrf.mxu0
  %v4791 = vadd.f32 0.0, %v4790
  %v4792 = vpop.f32.mrf.mxu0
  %v4793 = vadd.f32 0.0, %v4792
  %4794 = vdwg.mxu0
  %4795 = vmatprep.subr.mxu0 0.0
  %4796 = vmatpush1.msra.mxu0 0.0
  %4797 = vmatprep.subr.mxu0 0.0
  %4798 = vmatpush1.msra.mxu0 0.0
  %4799 = vmatprep.subr.mxu0 0.0
  %4800 = vmatpush1.msra.mxu0 0.0
  %4801 = vmatprep.subr.mxu0 0.0
  %4802 = vmatpush1.msra.mxu0 0.0
  %4803 = vmatprep.subr.mxu0 0.0
  %4804 = vmatpush1.msra.mxu0 0.0
  %4805 = vmatprep.subr.mxu0 0.0
  %4806 = vmatpush1.msra.mxu0 0.0
  %4807 = vmatprep.subr.mxu0 0.0
  %4808 = vmatpush1.msra.mxu0 0.0
  %4809 = vmatprep.subr.mxu0 0.0
  %4810 = vmatpush1.msra.mxu0 0.0
  %4811 = vmatprep.subr.mxu0 0.0
  %4812 = vmatpush1.msra.mxu0 0.0
  %4813 = vmatprep.subr.mxu0 0.0
  %4814 = vmatpush1.msra.mxu0 0.0
  %4815 = vmatprep.subr.mxu0 0.0
  %4816 = vmatpush1.msra.mxu0 0.0
  %4817 = vmatprep.subr.mxu0 0.0
  %4818 = vmatpush1.msra.mxu0 0.0
  %4819 = vmatprep.subr.mxu0 0.0
  %4820 = vmatpush1.msra.mxu0 0.0
  %4821 = vmatprep.subr.mxu0 0.0
  %4822 = vmatpush1.msra.mxu0 0.0
  %4823 = vmatprep.subr.mxu0 0.0
  %4824 = vmatpush1.msra.mxu0 0.0
  %4825 = vmatprep.subr.mxu0 %v4706
  %4826 = vmatpush1.msra.mxu0 %v4705
  %4827 = vmatprep.subr.mxu0 0.0
  %4828 = vmatpush2.msra.mxu0 0.0
  %4829 = vmatprep.subr.mxu0 0.0
  %4830 = vmatpush2.msra.mxu0 0.0
  %4831 = vmatprep.subr.mxu0 0.0
  %4832 = vmatpush2.msra.mxu0 0.0
  %4833 = vmatprep.subr.mxu0 0.0
  %4834 = vmatpush2.msra.mxu0 0.0
  %4835 = vmatprep.subr.mxu0 0.0
  %4836 = vmatpush2.msra.mxu0 0.0
  %4837 = vmatprep.subr.mxu0 0.0
  %4838 = vmatpush2.msra.mxu0 0.0
  %4839 = vmatprep.subr.mxu0 0.0
  %4840 = vmatpush2.msra.mxu0 0.0
  %4841 = vmatprep.subr.mxu0 0.0
  %4842 = vmatpush2.msra.mxu0 0.0
  %4843 = vmatprep.subr.mxu0 0.0
  %4844 = vmatpush2.msra.mxu0 0.0
  %4845 = vmatprep.subr.mxu0 0.0
  %4846 = vmatpush2.msra.mxu0 0.0
  %4847 = vmatprep.subr.mxu0 0.0
  %4848 = vmatpush2.msra.mxu0 0.0
  %4849 = vmatprep.subr.mxu0 0.0
  %4850 = vmatpush2.msra.mxu0 0.0
  %4851 = vmatprep.subr.mxu0 0.0
  %4852 = vmatpush2.msra.mxu0 0.0
  %4853 = vmatprep.subr.mxu0 0.0
  %4854 = vmatpush2.msra.mxu0 0.0
  %4855 = vmatprep.subr.mxu0 0.0
  %4856 = vmatpush2.msra.mxu0 0.0
  %4857 = vmatprep.subr.mxu0 0.0
  %4858 = vmatpush2.msra.mxu0 0.0
  %4859 = vmatprep.mubr.f32.mxu0 0.0
  %4860 = vmatmul.mubr.f32.gmra.mxu0 %v4722
  %v4861 = vpop.f32.mrf.mxu0
  %v4862 = vadd.f32 0.0, %v4861
  %v4863 = vpop.f32.mrf.mxu0
  %v4864 = vadd.f32 0.0, %v4863
  %4865 = vdwg.mxu0
  %4866 = vmatprep.subr.mxu0 0.0
  %4867 = vmatpush1.msra.mxu0 0.0
  %4868 = vmatprep.subr.mxu0 0.0
  %4869 = vmatpush1.msra.mxu0 0.0
  %4870 = vmatprep.subr.mxu0 0.0
  %4871 = vmatpush1.msra.mxu0 0.0
  %4872 = vmatprep.subr.mxu0 0.0
  %4873 = vmatpush1.msra.mxu0 0.0
  %4874 = vmatprep.subr.mxu0 0.0
  %4875 = vmatpush1.msra.mxu0 0.0
  %4876 = vmatprep.subr.mxu0 0.0
  %4877 = vmatpush1.msra.mxu0 0.0
  %4878 = vmatprep.subr.mxu0 0.0
  %4879 = vmatpush1.msra.mxu0 0.0
  %4880 = vmatprep.subr.mxu0 0.0
  %4881 = vmatpush1.msra.mxu0 0.0
  %4882 = vmatprep.subr.mxu0 0.0
  %4883 = vmatpush1.msra.mxu0 0.0
  %4884 = vmatprep.subr.mxu0 0.0
  %4885 = vmatpush1.msra.mxu0 0.0
  %4886 = vmatprep.subr.mxu0 0.0
  %4887 = vmatpush1.msra.mxu0 0.0
  %4888 = vmatprep.subr.mxu0 0.0
  %4889 = vmatpush1.msra.mxu0 0.0
  %4890 = vmatprep.subr.mxu0 0.0
  %4891 = vmatpush1.msra.mxu0 0.0
  %4892 = vmatprep.subr.mxu0 0.0
  %4893 = vmatpush1.msra.mxu0 0.0
  %4894 = vmatprep.subr.mxu0 0.0
  %4895 = vmatpush1.msra.mxu0 0.0
  %4896 = vmatprep.subr.mxu0 %v4708
  %4897 = vmatpush1.msra.mxu0 %v4707
  %4898 = vmatprep.subr.mxu0 0.0
  %4899 = vmatpush2.msra.mxu0 0.0
  %4900 = vmatprep.subr.mxu0 0.0
  %4901 = vmatpush2.msra.mxu0 0.0
  %4902 = vmatprep.subr.mxu0 0.0
  %4903 = vmatpush2.msra.mxu0 0.0
  %4904 = vmatprep.subr.mxu0 0.0
  %4905 = vmatpush2.msra.mxu0 0.0
  %4906 = vmatprep.subr.mxu0 0.0
  %4907 = vmatpush2.msra.mxu0 0.0
  %4908 = vmatprep.subr.mxu0 0.0
  %4909 = vmatpush2.msra.mxu0 0.0
  %4910 = vmatprep.subr.mxu0 0.0
  %4911 = vmatpush2.msra.mxu0 0.0
  %4912 = vmatprep.subr.mxu0 0.0
  %4913 = vmatpush2.msra.mxu0 0.0
  %4914 = vmatprep.subr.mxu0 0.0
  %4915 = vmatpush2.msra.mxu0 0.0
  %4916 = vmatprep.subr.mxu0 0.0
  %4917 = vmatpush2.msra.mxu0 0.0
  %4918 = vmatprep.subr.mxu0 0.0
  %4919 = vmatpush2.msra.mxu0 0.0
  %4920 = vmatprep.subr.mxu0 0.0
  %4921 = vmatpush2.msra.mxu0 0.0
  %4922 = vmatprep.subr.mxu0 0.0
  %4923 = vmatpush2.msra.mxu0 0.0
  %4924 = vmatprep.subr.mxu0 0.0
  %4925 = vmatpush2.msra.mxu0 0.0
  %4926 = vmatprep.subr.mxu0 0.0
  %4927 = vmatpush2.msra.mxu0 0.0
  %4928 = vmatprep.subr.mxu0 0.0
  %4929 = vmatpush2.msra.mxu0 0.0
  %4930 = vmatprep.mubr.f32.mxu0 0.0
  %4931 = vmatmul.mubr.f32.gmra.mxu0 %v4722
  %v4932 = vpop.f32.mrf.mxu0
  %v4933 = vadd.f32 0.0, %v4932
  %v4934 = vpop.f32.mrf.mxu0
  %v4935 = vadd.f32 0.0, %v4934
  %4936 = vdwg.mxu0
  %4937 = vmatprep.subr.mxu0 0.0
  %4938 = vmatpush1.msra.mxu0 0.0
  %4939 = vmatprep.subr.mxu0 0.0
  %4940 = vmatpush1.msra.mxu0 0.0
  %4941 = vmatprep.subr.mxu0 0.0
  %4942 = vmatpush1.msra.mxu0 0.0
  %4943 = vmatprep.subr.mxu0 0.0
  %4944 = vmatpush1.msra.mxu0 0.0
  %4945 = vmatprep.subr.mxu0 0.0
  %4946 = vmatpush1.msra.mxu0 0.0
  %4947 = vmatprep.subr.mxu0 0.0
  %4948 = vmatpush1.msra.mxu0 0.0
  %4949 = vmatprep.subr.mxu0 0.0
  %4950 = vmatpush1.msra.mxu0 0.0
  %4951 = vmatprep.subr.mxu0 0.0
  %4952 = vmatpush1.msra.mxu0 0.0
  %4953 = vmatprep.subr.mxu0 0.0
  %4954 = vmatpush1.msra.mxu0 0.0
  %4955 = vmatprep.subr.mxu0 0.0
  %4956 = vmatpush1.msra.mxu0 0.0
  %4957 = vmatprep.subr.mxu0 0.0
  %4958 = vmatpush1.msra.mxu0 0.0
  %4959 = vmatprep.subr.mxu0 0.0
  %4960 = vmatpush1.msra.mxu0 0.0
  %4961 = vmatprep.subr.mxu0 0.0
  %4962 = vmatpush1.msra.mxu0 0.0
  %4963 = vmatprep.subr.mxu0 0.0
  %4964 = vmatpush1.msra.mxu0 0.0
  %4965 = vmatprep.subr.mxu0 0.0
  %4966 = vmatpush1.msra.mxu0 0.0
  %4967 = vmatprep.subr.mxu0 %v4710
  %4968 = vmatpush1.msra.mxu0 %v4709
  %4969 = vmatprep.subr.mxu0 0.0
  %4970 = vmatpush2.msra.mxu0 0.0
  %4971 = vmatprep.subr.mxu0 0.0
  %4972 = vmatpush2.msra.mxu0 0.0
  %4973 = vmatprep.subr.mxu0 0.0
  %4974 = vmatpush2.msra.mxu0 0.0
  %4975 = vmatprep.subr.mxu0 0.0
  %4976 = vmatpush2.msra.mxu0 0.0
  %4977 = vmatprep.subr.mxu0 0.0
  %4978 = vmatpush2.msra.mxu0 0.0
  %4979 = vmatprep.subr.mxu0 0.0
  %4980 = vmatpush2.msra.mxu0 0.0
  %4981 = vmatprep.subr.mxu0 0.0
  %4982 = vmatpush2.msra.mxu0 0.0
  %4983 = vmatprep.subr.mxu0 0.0
  %4984 = vmatpush2.msra.mxu0 0.0
  %4985 = vmatprep.subr.mxu0 0.0
  %4986 = vmatpush2.msra.mxu0 0.0
  %4987 = vmatprep.subr.mxu0 0.0
  %4988 = vmatpush2.msra.mxu0 0.0
  %4989 = vmatprep.subr.mxu0 0.0
  %4990 = vmatpush2.msra.mxu0 0.0
  %4991 = vmatprep.subr.mxu0 0.0
  %4992 = vmatpush2.msra.mxu0 0.0
  %4993 = vmatprep.subr.mxu0 0.0
  %4994 = vmatpush2.msra.mxu0 0.0
  %4995 = vmatprep.subr.mxu0 0.0
  %4996 = vmatpush2.msra.mxu0 0.0
  %4997 = vmatprep.subr.mxu0 0.0
  %4998 = vmatpush2.msra.mxu0 0.0
  %4999 = vmatprep.subr.mxu0 0.0
  %5000 = vmatpush2.msra.mxu0 0.0
  %5001 = vmatprep.mubr.f32.mxu0 0.0
  %5002 = vmatmul.mubr.f32.gmra.mxu0 %v4722
  %v5003 = vpop.f32.mrf.mxu0
  %v5004 = vadd.f32 0.0, %v5003
  %v5005 = vpop.f32.mrf.mxu0
  %v5006 = vadd.f32 0.0, %v5005
  %5007 = vdwg.mxu0
  %5008 = vmatprep.subr.mxu0 0.0
  %5009 = vmatpush1.msra.mxu0 0.0
  %5010 = vmatprep.subr.mxu0 0.0
  %5011 = vmatpush1.msra.mxu0 0.0
  %5012 = vmatprep.subr.mxu0 0.0
  %5013 = vmatpush1.msra.mxu0 0.0
  %5014 = vmatprep.subr.mxu0 0.0
  %5015 = vmatpush1.msra.mxu0 0.0
  %5016 = vmatprep.subr.mxu0 0.0
  %5017 = vmatpush1.msra.mxu0 0.0
  %5018 = vmatprep.subr.mxu0 0.0
  %5019 = vmatpush1.msra.mxu0 0.0
  %5020 = vmatprep.subr.mxu0 0.0
  %5021 = vmatpush1.msra.mxu0 0.0
  %5022 = vmatprep.subr.mxu0 0.0
  %5023 = vmatpush1.msra.mxu0 0.0
  %5024 = vmatprep.subr.mxu0 0.0
  %5025 = vmatpush1.msra.mxu0 0.0
  %5026 = vmatprep.subr.mxu0 0.0
  %5027 = vmatpush1.msra.mxu0 0.0
  %5028 = vmatprep.subr.mxu0 0.0
  %5029 = vmatpush1.msra.mxu0 0.0
  %5030 = vmatprep.subr.mxu0 0.0
  %5031 = vmatpush1.msra.mxu0 0.0
  %5032 = vmatprep.subr.mxu0 0.0
  %5033 = vmatpush1.msra.mxu0 0.0
  %5034 = vmatprep.subr.mxu0 0.0
  %5035 = vmatpush1.msra.mxu0 0.0
  %5036 = vmatprep.subr.mxu0 0.0
  %5037 = vmatpush1.msra.mxu0 0.0
  %5038 = vmatprep.subr.mxu0 0.0
  %5039 = vmatpush1.msra.mxu0 %v4711
  %5040 = vmatprep.subr.mxu0 0.0
  %5041 = vmatpush2.msra.mxu0 0.0
  %5042 = vmatprep.subr.mxu0 0.0
  %5043 = vmatpush2.msra.mxu0 0.0
  %5044 = vmatprep.subr.mxu0 0.0
  %5045 = vmatpush2.msra.mxu0 0.0
  %5046 = vmatprep.subr.mxu0 0.0
  %5047 = vmatpush2.msra.mxu0 0.0
  %5048 = vmatprep.subr.mxu0 0.0
  %5049 = vmatpush2.msra.mxu0 0.0
  %5050 = vmatprep.subr.mxu0 0.0
  %5051 = vmatpush2.msra.mxu0 0.0
  %5052 = vmatprep.subr.mxu0 0.0
  %5053 = vmatpush2.msra.mxu0 0.0
  %5054 = vmatprep.subr.mxu0 0.0
  %5055 = vmatpush2.msra.mxu0 0.0
  %5056 = vmatprep.subr.mxu0 0.0
  %5057 = vmatpush2.msra.mxu0 0.0
  %5058 = vmatprep.subr.mxu0 0.0
  %5059 = vmatpush2.msra.mxu0 0.0
  %5060 = vmatprep.subr.mxu0 0.0
  %5061 = vmatpush2.msra.mxu0 0.0
  %5062 = vmatprep.subr.mxu0 0.0
  %5063 = vmatpush2.msra.mxu0 0.0
  %5064 = vmatprep.subr.mxu0 0.0
  %5065 = vmatpush2.msra.mxu0 0.0
  %5066 = vmatprep.subr.mxu0 0.0
  %5067 = vmatpush2.msra.mxu0 0.0
  %5068 = vmatprep.subr.mxu0 0.0
  %5069 = vmatpush2.msra.mxu0 0.0
  %5070 = vmatprep.subr.mxu0 0.0
  %5071 = vmatpush2.msra.mxu0 0.0
  %5072 = vmatprep.mubr.f32.mxu0 0.0
  %5073 = vmatmul.mubr.f32.gmra.mxu0 %v4722
  %v5074 = vpop.f32.mrf.mxu0
  %v5075 = vadd.f32 0.0, %v5074
  %v5076 = vpop.f32.mrf.mxu0
  %5077 = vdwg.mxu0
  %v5078 = vadd.f32 %v4394, %v4791
  %v5079 = vadd.f32 %v4396, %v4793
  %v5080 = vadd.f32 %v4465, %v4862
  %v5081 = vadd.f32 %v4467, %v4864
  %v5082 = vadd.f32 %v4536, %v4933
  %v5083 = vadd.f32 %v4538, %v4935
  %v5084 = vadd.f32 %v4607, %v5004
  %v5085 = vadd.f32 %v4609, %v5006
  %v5086 = vadd.f32 %v4678, %v5075
  %s5087 = scalar_lea.vmem %s6, 24
  %v5088 = vld [vmem:[%s5087] sm:$0xff]
  %5089 = vrot.lane.b32.xlu0 %v3869, 1
  %v5090 = vpop.permute.xlu0 %5089
  %5091 = vrot.lane.b32.xlu0 %v3870, 1
  %v5092 = vpop.permute.xlu0 %5091
  %5093 = vrot.lane.b32.xlu0 %v3871, 1
  %v5094 = vpop.permute.xlu0 %5093
  %5095 = vrot.lane.b32.xlu0 %v3872, 1
  %v5096 = vpop.permute.xlu0 %5095
  %5097 = vrot.lane.b32.xlu0 %v3873, 1
  %v5098 = vpop.permute.xlu0 %5097
  %5099 = vrot.lane.b32.xlu0 %v3874, 1
  %v5100 = vpop.permute.xlu0 %5099
  %5101 = vrot.lane.b32.xlu0 %v3875, 1
  %v5102 = vpop.permute.xlu0 %5101
  %5103 = vrot.lane.b32.xlu0 %v3876, 1
  %v5104 = vpop.permute.xlu0 %5103
  %5105 = vrot.lane.b32.xlu0 %v3877, 1
  %v5106 = vpop.permute.xlu0 %5105
  %5107 = vrot.lane.b32.xlu0 %v3878, 1
  %v5108 = vpop.permute.xlu0 %5107
  %v5109 = vsel %vm1289, %v5090, %v5092
  %v5110 = vsel %vm1289, %v5092, %v5094
  %v5111 = vsel %vm1289, %v5094, %v5096
  %v5112 = vsel %vm1289, %v5096, %v5098
  %v5113 = vsel %vm1289, %v5098, %v5100
  %v5114 = vsel %vm1289, %v5100, %v5102
  %v5115 = vsel %vm1289, %v5102, %v5104
  %v5116 = vsel %vm1289, %v5104, %v5106
  %v5117 = vsel %vm1289, %v5106, %v5108
  %v5128 = vsel %vm106, %v5088, 0
  %5130 = vmatprep.subr.mxu0 0.0
  %5131 = vmatpush1.msra.mxu0 0.0
  %5132 = vmatprep.subr.mxu0 0.0
  %5133 = vmatpush1.msra.mxu0 0.0
  %5134 = vmatprep.subr.mxu0 0.0
  %5135 = vmatpush1.msra.mxu0 0.0
  %5136 = vmatprep.subr.mxu0 0.0
  %5137 = vmatpush1.msra.mxu0 0.0
  %5138 = vmatprep.subr.mxu0 0.0
  %5139 = vmatpush1.msra.mxu0 0.0
  %5140 = vmatprep.subr.mxu0 0.0
  %5141 = vmatpush1.msra.mxu0 0.0
  %5142 = vmatprep.subr.mxu0 0.0
  %5143 = vmatpush1.msra.mxu0 0.0
  %5144 = vmatprep.subr.mxu0 0.0
  %5145 = vmatpush1.msra.mxu0 0.0
  %5146 = vmatprep.subr.mxu0 0.0
  %5147 = vmatpush1.msra.mxu0 0.0
  %5148 = vmatprep.subr.mxu0 0.0
  %5149 = vmatpush1.msra.mxu0 0.0
  %5150 = vmatprep.subr.mxu0 0.0
  %5151 = vmatpush1.msra.mxu0 0.0
  %5152 = vmatprep.subr.mxu0 0.0
  %5153 = vmatpush1.msra.mxu0 0.0
  %5154 = vmatprep.subr.mxu0 0.0
  %5155 = vmatpush1.msra.mxu0 0.0
  %5156 = vmatprep.subr.mxu0 0.0
  %5157 = vmatpush1.msra.mxu0 0.0
  %5158 = vmatprep.subr.mxu0 0.0
  %5159 = vmatpush1.msra.mxu0 0.0
  %5160 = vmatprep.subr.mxu0 %v5110
  %5161 = vmatpush1.msra.mxu0 %v5109
  %5162 = vmatprep.subr.mxu0 0.0
  %5163 = vmatpush2.msra.mxu0 0.0
  %5164 = vmatprep.subr.mxu0 0.0
  %5165 = vmatpush2.msra.mxu0 0.0
  %5166 = vmatprep.subr.mxu0 0.0
  %5167 = vmatpush2.msra.mxu0 0.0
  %5168 = vmatprep.subr.mxu0 0.0
  %5169 = vmatpush2.msra.mxu0 0.0
  %5170 = vmatprep.subr.mxu0 0.0
  %5171 = vmatpush2.msra.mxu0 0.0
  %5172 = vmatprep.subr.mxu0 0.0
  %5173 = vmatpush2.msra.mxu0 0.0
  %5174 = vmatprep.subr.mxu0 0.0
  %5175 = vmatpush2.msra.mxu0 0.0
  %5176 = vmatprep.subr.mxu0 0.0
  %5177 = vmatpush2.msra.mxu0 0.0
  %5178 = vmatprep.subr.mxu0 0.0
  %5179 = vmatpush2.msra.mxu0 0.0
  %5180 = vmatprep.subr.mxu0 0.0
  %5181 = vmatpush2.msra.mxu0 0.0
  %5182 = vmatprep.subr.mxu0 0.0
  %5183 = vmatpush2.msra.mxu0 0.0
  %5184 = vmatprep.subr.mxu0 0.0
  %5185 = vmatpush2.msra.mxu0 0.0
  %5186 = vmatprep.subr.mxu0 0.0
  %5187 = vmatpush2.msra.mxu0 0.0
  %5188 = vmatprep.subr.mxu0 0.0
  %5189 = vmatpush2.msra.mxu0 0.0
  %5190 = vmatprep.subr.mxu0 0.0
  %5191 = vmatpush2.msra.mxu0 0.0
  %5192 = vmatprep.subr.mxu0 0.0
  %5193 = vmatpush2.msra.mxu0 0.0
  %5194 = vmatprep.mubr.f32.mxu0 0.0
  %5195 = vmatmul.mubr.f32.gmra.mxu0 %v5128
  %v5196 = vpop.f32.mrf.mxu0
  %v5197 = vadd.f32 0.0, %v5196
  %v5198 = vpop.f32.mrf.mxu0
  %v5199 = vadd.f32 0.0, %v5198
  %5200 = vdwg.mxu0
  %5201 = vmatprep.subr.mxu0 0.0
  %5202 = vmatpush1.msra.mxu0 0.0
  %5203 = vmatprep.subr.mxu0 0.0
  %5204 = vmatpush1.msra.mxu0 0.0
  %5205 = vmatprep.subr.mxu0 0.0
  %5206 = vmatpush1.msra.mxu0 0.0
  %5207 = vmatprep.subr.mxu0 0.0
  %5208 = vmatpush1.msra.mxu0 0.0
  %5209 = vmatprep.subr.mxu0 0.0
  %5210 = vmatpush1.msra.mxu0 0.0
  %5211 = vmatprep.subr.mxu0 0.0
  %5212 = vmatpush1.msra.mxu0 0.0
  %5213 = vmatprep.subr.mxu0 0.0
  %5214 = vmatpush1.msra.mxu0 0.0
  %5215 = vmatprep.subr.mxu0 0.0
  %5216 = vmatpush1.msra.mxu0 0.0
  %5217 = vmatprep.subr.mxu0 0.0
  %5218 = vmatpush1.msra.mxu0 0.0
  %5219 = vmatprep.subr.mxu0 0.0
  %5220 = vmatpush1.msra.mxu0 0.0
  %5221 = vmatprep.subr.mxu0 0.0
  %5222 = vmatpush1.msra.mxu0 0.0
  %5223 = vmatprep.subr.mxu0 0.0
  %5224 = vmatpush1.msra.mxu0 0.0
  %5225 = vmatprep.subr.mxu0 0.0
  %5226 = vmatpush1.msra.mxu0 0.0
  %5227 = vmatprep.subr.mxu0 0.0
  %5228 = vmatpush1.msra.mxu0 0.0
  %5229 = vmatprep.subr.mxu0 0.0
  %5230 = vmatpush1.msra.mxu0 0.0
  %5231 = vmatprep.subr.mxu0 %v5112
  %5232 = vmatpush1.msra.mxu0 %v5111
  %5233 = vmatprep.subr.mxu0 0.0
  %5234 = vmatpush2.msra.mxu0 0.0
  %5235 = vmatprep.subr.mxu0 0.0
  %5236 = vmatpush2.msra.mxu0 0.0
  %5237 = vmatprep.subr.mxu0 0.0
  %5238 = vmatpush2.msra.mxu0 0.0
  %5239 = vmatprep.subr.mxu0 0.0
  %5240 = vmatpush2.msra.mxu0 0.0
  %5241 = vmatprep.subr.mxu0 0.0
  %5242 = vmatpush2.msra.mxu0 0.0
  %5243 = vmatprep.subr.mxu0 0.0
  %5244 = vmatpush2.msra.mxu0 0.0
  %5245 = vmatprep.subr.mxu0 0.0
  %5246 = vmatpush2.msra.mxu0 0.0
  %5247 = vmatprep.subr.mxu0 0.0
  %5248 = vmatpush2.msra.mxu0 0.0
  %5249 = vmatprep.subr.mxu0 0.0
  %5250 = vmatpush2.msra.mxu0 0.0
  %5251 = vmatprep.subr.mxu0 0.0
  %5252 = vmatpush2.msra.mxu0 0.0
  %5253 = vmatprep.subr.mxu0 0.0
  %5254 = vmatpush2.msra.mxu0 0.0
  %5255 = vmatprep.subr.mxu0 0.0
  %5256 = vmatpush2.msra.mxu0 0.0
  %5257 = vmatprep.subr.mxu0 0.0
  %5258 = vmatpush2.msra.mxu0 0.0
  %5259 = vmatprep.subr.mxu0 0.0
  %5260 = vmatpush2.msra.mxu0 0.0
  %5261 = vmatprep.subr.mxu0 0.0
  %5262 = vmatpush2.msra.mxu0 0.0
  %5263 = vmatprep.subr.mxu0 0.0
  %5264 = vmatpush2.msra.mxu0 0.0
  %5265 = vmatprep.mubr.f32.mxu0 0.0
  %5266 = vmatmul.mubr.f32.gmra.mxu0 %v5128
  %v5267 = vpop.f32.mrf.mxu0
  %v5268 = vadd.f32 0.0, %v5267
  %v5269 = vpop.f32.mrf.mxu0
  %v5270 = vadd.f32 0.0, %v5269
  %5271 = vdwg.mxu0
  %5272 = vmatprep.subr.mxu0 0.0
  %5273 = vmatpush1.msra.mxu0 0.0
  %5274 = vmatprep.subr.mxu0 0.0
  %5275 = vmatpush1.msra.mxu0 0.0
  %5276 = vmatprep.subr.mxu0 0.0
  %5277 = vmatpush1.msra.mxu0 0.0
  %5278 = vmatprep.subr.mxu0 0.0
  %5279 = vmatpush1.msra.mxu0 0.0
  %5280 = vmatprep.subr.mxu0 0.0
  %5281 = vmatpush1.msra.mxu0 0.0
  %5282 = vmatprep.subr.mxu0 0.0
  %5283 = vmatpush1.msra.mxu0 0.0
  %5284 = vmatprep.subr.mxu0 0.0
  %5285 = vmatpush1.msra.mxu0 0.0
  %5286 = vmatprep.subr.mxu0 0.0
  %5287 = vmatpush1.msra.mxu0 0.0
  %5288 = vmatprep.subr.mxu0 0.0
  %5289 = vmatpush1.msra.mxu0 0.0
  %5290 = vmatprep.subr.mxu0 0.0
  %5291 = vmatpush1.msra.mxu0 0.0
  %5292 = vmatprep.subr.mxu0 0.0
  %5293 = vmatpush1.msra.mxu0 0.0
  %5294 = vmatprep.subr.mxu0 0.0
  %5295 = vmatpush1.msra.mxu0 0.0
  %5296 = vmatprep.subr.mxu0 0.0
  %5297 = vmatpush1.msra.mxu0 0.0
  %5298 = vmatprep.subr.mxu0 0.0
  %5299 = vmatpush1.msra.mxu0 0.0
  %5300 = vmatprep.subr.mxu0 0.0
  %5301 = vmatpush1.msra.mxu0 0.0
  %5302 = vmatprep.subr.mxu0 %v5114
  %5303 = vmatpush1.msra.mxu0 %v5113
  %5304 = vmatprep.subr.mxu0 0.0
  %5305 = vmatpush2.msra.mxu0 0.0
  %5306 = vmatprep.subr.mxu0 0.0
  %5307 = vmatpush2.msra.mxu0 0.0
  %5308 = vmatprep.subr.mxu0 0.0
  %5309 = vmatpush2.msra.mxu0 0.0
  %5310 = vmatprep.subr.mxu0 0.0
  %5311 = vmatpush2.msra.mxu0 0.0
  %5312 = vmatprep.subr.mxu0 0.0
  %5313 = vmatpush2.msra.mxu0 0.0
  %5314 = vmatprep.subr.mxu0 0.0
  %5315 = vmatpush2.msra.mxu0 0.0
  %5316 = vmatprep.subr.mxu0 0.0
  %5317 = vmatpush2.msra.mxu0 0.0
  %5318 = vmatprep.subr.mxu0 0.0
  %5319 = vmatpush2.msra.mxu0 0.0
  %5320 = vmatprep.subr.mxu0 0.0
  %5321 = vmatpush2.msra.mxu0 0.0
  %5322 = vmatprep.subr.mxu0 0.0
  %5323 = vmatpush2.msra.mxu0 0.0
  %5324 = vmatprep.subr.mxu0 0.0
  %5325 = vmatpush2.msra.mxu0 0.0
  %5326 = vmatprep.subr.mxu0 0.0
  %5327 = vmatpush2.msra.mxu0 0.0
  %5328 = vmatprep.subr.mxu0 0.0
  %5329 = vmatpush2.msra.mxu0 0.0
  %5330 = vmatprep.subr.mxu0 0.0
  %5331 = vmatpush2.msra.mxu0 0.0
  %5332 = vmatprep.subr.mxu0 0.0
  %5333 = vmatpush2.msra.mxu0 0.0
  %5334 = vmatprep.subr.mxu0 0.0
  %5335 = vmatpush2.msra.mxu0 0.0
  %5336 = vmatprep.mubr.f32.mxu0 0.0
  %5337 = vmatmul.mubr.f32.gmra.mxu0 %v5128
  %v5338 = vpop.f32.mrf.mxu0
  %v5339 = vadd.f32 0.0, %v5338
  %v5340 = vpop.f32.mrf.mxu0
  %v5341 = vadd.f32 0.0, %v5340
  %5342 = vdwg.mxu0
  %5343 = vmatprep.subr.mxu0 0.0
  %5344 = vmatpush1.msra.mxu0 0.0
  %5345 = vmatprep.subr.mxu0 0.0
  %5346 = vmatpush1.msra.mxu0 0.0
  %5347 = vmatprep.subr.mxu0 0.0
  %5348 = vmatpush1.msra.mxu0 0.0
  %5349 = vmatprep.subr.mxu0 0.0
  %5350 = vmatpush1.msra.mxu0 0.0
  %5351 = vmatprep.subr.mxu0 0.0
  %5352 = vmatpush1.msra.mxu0 0.0
  %5353 = vmatprep.subr.mxu0 0.0
  %5354 = vmatpush1.msra.mxu0 0.0
  %5355 = vmatprep.subr.mxu0 0.0
  %5356 = vmatpush1.msra.mxu0 0.0
  %5357 = vmatprep.subr.mxu0 0.0
  %5358 = vmatpush1.msra.mxu0 0.0
  %5359 = vmatprep.subr.mxu0 0.0
  %5360 = vmatpush1.msra.mxu0 0.0
  %5361 = vmatprep.subr.mxu0 0.0
  %5362 = vmatpush1.msra.mxu0 0.0
  %5363 = vmatprep.subr.mxu0 0.0
  %5364 = vmatpush1.msra.mxu0 0.0
  %5365 = vmatprep.subr.mxu0 0.0
  %5366 = vmatpush1.msra.mxu0 0.0
  %5367 = vmatprep.subr.mxu0 0.0
  %5368 = vmatpush1.msra.mxu0 0.0
  %5369 = vmatprep.subr.mxu0 0.0
  %5370 = vmatpush1.msra.mxu0 0.0
  %5371 = vmatprep.subr.mxu0 0.0
  %5372 = vmatpush1.msra.mxu0 0.0
  %5373 = vmatprep.subr.mxu0 %v5116
  %5374 = vmatpush1.msra.mxu0 %v5115
  %5375 = vmatprep.subr.mxu0 0.0
  %5376 = vmatpush2.msra.mxu0 0.0
  %5377 = vmatprep.subr.mxu0 0.0
  %5378 = vmatpush2.msra.mxu0 0.0
  %5379 = vmatprep.subr.mxu0 0.0
  %5380 = vmatpush2.msra.mxu0 0.0
  %5381 = vmatprep.subr.mxu0 0.0
  %5382 = vmatpush2.msra.mxu0 0.0
  %5383 = vmatprep.subr.mxu0 0.0
  %5384 = vmatpush2.msra.mxu0 0.0
  %5385 = vmatprep.subr.mxu0 0.0
  %5386 = vmatpush2.msra.mxu0 0.0
  %5387 = vmatprep.subr.mxu0 0.0
  %5388 = vmatpush2.msra.mxu0 0.0
  %5389 = vmatprep.subr.mxu0 0.0
  %5390 = vmatpush2.msra.mxu0 0.0
  %5391 = vmatprep.subr.mxu0 0.0
  %5392 = vmatpush2.msra.mxu0 0.0
  %5393 = vmatprep.subr.mxu0 0.0
  %5394 = vmatpush2.msra.mxu0 0.0
  %5395 = vmatprep.subr.mxu0 0.0
  %5396 = vmatpush2.msra.mxu0 0.0
  %5397 = vmatprep.subr.mxu0 0.0
  %5398 = vmatpush2.msra.mxu0 0.0
  %5399 = vmatprep.subr.mxu0 0.0
  %5400 = vmatpush2.msra.mxu0 0.0
  %5401 = vmatprep.subr.mxu0 0.0
  %5402 = vmatpush2.msra.mxu0 0.0
  %5403 = vmatprep.subr.mxu0 0.0
  %5404 = vmatpush2.msra.mxu0 0.0
  %5405 = vmatprep.subr.mxu0 0.0
  %5406 = vmatpush2.msra.mxu0 0.0
  %5407 = vmatprep.mubr.f32.mxu0 0.0
  %5408 = vmatmul.mubr.f32.gmra.mxu0 %v5128
  %v5409 = vpop.f32.mrf.mxu0
  %v5410 = vadd.f32 0.0, %v5409
  %v5411 = vpop.f32.mrf.mxu0
  %v5412 = vadd.f32 0.0, %v5411
  %5413 = vdwg.mxu0
  %5414 = vmatprep.subr.mxu0 0.0
  %5415 = vmatpush1.msra.mxu0 0.0
  %5416 = vmatprep.subr.mxu0 0.0
  %5417 = vmatpush1.msra.mxu0 0.0
  %5418 = vmatprep.subr.mxu0 0.0
  %5419 = vmatpush1.msra.mxu0 0.0
  %5420 = vmatprep.subr.mxu0 0.0
  %5421 = vmatpush1.msra.mxu0 0.0
  %5422 = vmatprep.subr.mxu0 0.0
  %5423 = vmatpush1.msra.mxu0 0.0
  %5424 = vmatprep.subr.mxu0 0.0
  %5425 = vmatpush1.msra.mxu0 0.0
  %5426 = vmatprep.subr.mxu0 0.0
  %5427 = vmatpush1.msra.mxu0 0.0
  %5428 = vmatprep.subr.mxu0 0.0
  %5429 = vmatpush1.msra.mxu0 0.0
  %5430 = vmatprep.subr.mxu0 0.0
  %5431 = vmatpush1.msra.mxu0 0.0
  %5432 = vmatprep.subr.mxu0 0.0
  %5433 = vmatpush1.msra.mxu0 0.0
  %5434 = vmatprep.subr.mxu0 0.0
  %5435 = vmatpush1.msra.mxu0 0.0
  %5436 = vmatprep.subr.mxu0 0.0
  %5437 = vmatpush1.msra.mxu0 0.0
  %5438 = vmatprep.subr.mxu0 0.0
  %5439 = vmatpush1.msra.mxu0 0.0
  %5440 = vmatprep.subr.mxu0 0.0
  %5441 = vmatpush1.msra.mxu0 0.0
  %5442 = vmatprep.subr.mxu0 0.0
  %5443 = vmatpush1.msra.mxu0 0.0
  %5444 = vmatprep.subr.mxu0 0.0
  %5445 = vmatpush1.msra.mxu0 %v5117
  %5446 = vmatprep.subr.mxu0 0.0
  %5447 = vmatpush2.msra.mxu0 0.0
  %5448 = vmatprep.subr.mxu0 0.0
  %5449 = vmatpush2.msra.mxu0 0.0
  %5450 = vmatprep.subr.mxu0 0.0
  %5451 = vmatpush2.msra.mxu0 0.0
  %5452 = vmatprep.subr.mxu0 0.0
  %5453 = vmatpush2.msra.mxu0 0.0
  %5454 = vmatprep.subr.mxu0 0.0
  %5455 = vmatpush2.msra.mxu0 0.0
  %5456 = vmatprep.subr.mxu0 0.0
  %5457 = vmatpush2.msra.mxu0 0.0
  %5458 = vmatprep.subr.mxu0 0.0
  %5459 = vmatpush2.msra.mxu0 0.0
  %5460 = vmatprep.subr.mxu0 0.0
  %5461 = vmatpush2.msra.mxu0 0.0
  %5462 = vmatprep.subr.mxu0 0.0
  %5463 = vmatpush2.msra.mxu0 0.0
  %5464 = vmatprep.subr.mxu0 0.0
  %5465 = vmatpush2.msra.mxu0 0.0
  %5466 = vmatprep.subr.mxu0 0.0
  %5467 = vmatpush2.msra.mxu0 0.0
  %5468 = vmatprep.subr.mxu0 0.0
  %5469 = vmatpush2.msra.mxu0 0.0
  %5470 = vmatprep.subr.mxu0 0.0
  %5471 = vmatpush2.msra.mxu0 0.0
  %5472 = vmatprep.subr.mxu0 0.0
  %5473 = vmatpush2.msra.mxu0 0.0
  %5474 = vmatprep.subr.mxu0 0.0
  %5475 = vmatpush2.msra.mxu0 0.0
  %5476 = vmatprep.subr.mxu0 0.0
  %5477 = vmatpush2.msra.mxu0 0.0
  %5478 = vmatprep.mubr.f32.mxu0 0.0
  %5479 = vmatmul.mubr.f32.gmra.mxu0 %v5128
  %v5480 = vpop.f32.mrf.mxu0
  %v5481 = vadd.f32 0.0, %v5480
  %v5482 = vpop.f32.mrf.mxu0
  %5483 = vdwg.mxu0
  %v5484 = vadd.f32 %v5078, %v5197
  %v5485 = vadd.f32 %v5079, %v5199
  %v5486 = vadd.f32 %v5080, %v5268
  %v5487 = vadd.f32 %v5081, %v5270
  %v5488 = vadd.f32 %v5082, %v5339
  %v5489 = vadd.f32 %v5083, %v5341
  %v5490 = vadd.f32 %v5084, %v5410
  %v5491 = vadd.f32 %v5085, %v5412
  %v5492 = vadd.f32 %v5086, %v5481
  %s5493 = scalar_lea.vmem %s6, 32
  %v5494 = vld [vmem:[%s5493] sm:$0xff]
  %v5496 = vsel %vm106, %v5494, 0
  %5498 = vmatprep.subr.mxu0 0.0
  %5499 = vmatpush1.msra.mxu0 0.0
  %5500 = vmatprep.subr.mxu0 0.0
  %5501 = vmatpush1.msra.mxu0 0.0
  %5502 = vmatprep.subr.mxu0 0.0
  %5503 = vmatpush1.msra.mxu0 0.0
  %5504 = vmatprep.subr.mxu0 0.0
  %5505 = vmatpush1.msra.mxu0 0.0
  %5506 = vmatprep.subr.mxu0 0.0
  %5507 = vmatpush1.msra.mxu0 0.0
  %5508 = vmatprep.subr.mxu0 0.0
  %5509 = vmatpush1.msra.mxu0 0.0
  %5510 = vmatprep.subr.mxu0 0.0
  %5511 = vmatpush1.msra.mxu0 0.0
  %5512 = vmatprep.subr.mxu0 0.0
  %5513 = vmatpush1.msra.mxu0 0.0
  %5514 = vmatprep.subr.mxu0 0.0
  %5515 = vmatpush1.msra.mxu0 0.0
  %5516 = vmatprep.subr.mxu0 0.0
  %5517 = vmatpush1.msra.mxu0 0.0
  %5518 = vmatprep.subr.mxu0 0.0
  %5519 = vmatpush1.msra.mxu0 0.0
  %5520 = vmatprep.subr.mxu0 0.0
  %5521 = vmatpush1.msra.mxu0 0.0
  %5522 = vmatprep.subr.mxu0 0.0
  %5523 = vmatpush1.msra.mxu0 0.0
  %5524 = vmatprep.subr.mxu0 0.0
  %5525 = vmatpush1.msra.mxu0 0.0
  %5526 = vmatprep.subr.mxu0 0.0
  %5527 = vmatpush1.msra.mxu0 0.0
  %5528 = vmatprep.subr.mxu0 %v3871
  %5529 = vmatpush1.msra.mxu0 %v3870
  %5530 = vmatprep.subr.mxu0 0.0
  %5531 = vmatpush2.msra.mxu0 0.0
  %5532 = vmatprep.subr.mxu0 0.0
  %5533 = vmatpush2.msra.mxu0 0.0
  %5534 = vmatprep.subr.mxu0 0.0
  %5535 = vmatpush2.msra.mxu0 0.0
  %5536 = vmatprep.subr.mxu0 0.0
  %5537 = vmatpush2.msra.mxu0 0.0
  %5538 = vmatprep.subr.mxu0 0.0
  %5539 = vmatpush2.msra.mxu0 0.0
  %5540 = vmatprep.subr.mxu0 0.0
  %5541 = vmatpush2.msra.mxu0 0.0
  %5542 = vmatprep.subr.mxu0 0.0
  %5543 = vmatpush2.msra.mxu0 0.0
  %5544 = vmatprep.subr.mxu0 0.0
  %5545 = vmatpush2.msra.mxu0 0.0
  %5546 = vmatprep.subr.mxu0 0.0
  %5547 = vmatpush2.msra.mxu0 0.0
  %5548 = vmatprep.subr.mxu0 0.0
  %5549 = vmatpush2.msra.mxu0 0.0
  %5550 = vmatprep.subr.mxu0 0.0
  %5551 = vmatpush2.msra.mxu0 0.0
  %5552 = vmatprep.subr.mxu0 0.0
  %5553 = vmatpush2.msra.mxu0 0.0
  %5554 = vmatprep.subr.mxu0 0.0
  %5555 = vmatpush2.msra.mxu0 0.0
  %5556 = vmatprep.subr.mxu0 0.0
  %5557 = vmatpush2.msra.mxu0 0.0
  %5558 = vmatprep.subr.mxu0 0.0
  %5559 = vmatpush2.msra.mxu0 0.0
  %5560 = vmatprep.subr.mxu0 0.0
  %5561 = vmatpush2.msra.mxu0 0.0
  %5562 = vmatprep.mubr.f32.mxu0 0.0
  %5563 = vmatmul.mubr.f32.gmra.mxu0 %v5496
  %v5564 = vpop.f32.mrf.mxu0
  %v5565 = vadd.f32 0.0, %v5564
  %v5566 = vpop.f32.mrf.mxu0
  %v5567 = vadd.f32 0.0, %v5566
  %5568 = vdwg.mxu0
  %5569 = vmatprep.subr.mxu0 0.0
  %5570 = vmatpush1.msra.mxu0 0.0
  %5571 = vmatprep.subr.mxu0 0.0
  %5572 = vmatpush1.msra.mxu0 0.0
  %5573 = vmatprep.subr.mxu0 0.0
  %5574 = vmatpush1.msra.mxu0 0.0
  %5575 = vmatprep.subr.mxu0 0.0
  %5576 = vmatpush1.msra.mxu0 0.0
  %5577 = vmatprep.subr.mxu0 0.0
  %5578 = vmatpush1.msra.mxu0 0.0
  %5579 = vmatprep.subr.mxu0 0.0
  %5580 = vmatpush1.msra.mxu0 0.0
  %5581 = vmatprep.subr.mxu0 0.0
  %5582 = vmatpush1.msra.mxu0 0.0
  %5583 = vmatprep.subr.mxu0 0.0
  %5584 = vmatpush1.msra.mxu0 0.0
  %5585 = vmatprep.subr.mxu0 0.0
  %5586 = vmatpush1.msra.mxu0 0.0
  %5587 = vmatprep.subr.mxu0 0.0
  %5588 = vmatpush1.msra.mxu0 0.0
  %5589 = vmatprep.subr.mxu0 0.0
  %5590 = vmatpush1.msra.mxu0 0.0
  %5591 = vmatprep.subr.mxu0 0.0
  %5592 = vmatpush1.msra.mxu0 0.0
  %5593 = vmatprep.subr.mxu0 0.0
  %5594 = vmatpush1.msra.mxu0 0.0
  %5595 = vmatprep.subr.mxu0 0.0
  %5596 = vmatpush1.msra.mxu0 0.0
  %5597 = vmatprep.subr.mxu0 0.0
  %5598 = vmatpush1.msra.mxu0 0.0
  %5599 = vmatprep.subr.mxu0 %v3873
  %5600 = vmatpush1.msra.mxu0 %v3872
  %5601 = vmatprep.subr.mxu0 0.0
  %5602 = vmatpush2.msra.mxu0 0.0
  %5603 = vmatprep.subr.mxu0 0.0
  %5604 = vmatpush2.msra.mxu0 0.0
  %5605 = vmatprep.subr.mxu0 0.0
  %5606 = vmatpush2.msra.mxu0 0.0
  %5607 = vmatprep.subr.mxu0 0.0
  %5608 = vmatpush2.msra.mxu0 0.0
  %5609 = vmatprep.subr.mxu0 0.0
  %5610 = vmatpush2.msra.mxu0 0.0
  %5611 = vmatprep.subr.mxu0 0.0
  %5612 = vmatpush2.msra.mxu0 0.0
  %5613 = vmatprep.subr.mxu0 0.0
  %5614 = vmatpush2.msra.mxu0 0.0
  %5615 = vmatprep.subr.mxu0 0.0
  %5616 = vmatpush2.msra.mxu0 0.0
  %5617 = vmatprep.subr.mxu0 0.0
  %5618 = vmatpush2.msra.mxu0 0.0
  %5619 = vmatprep.subr.mxu0 0.0
  %5620 = vmatpush2.msra.mxu0 0.0
  %5621 = vmatprep.subr.mxu0 0.0
  %5622 = vmatpush2.msra.mxu0 0.0
  %5623 = vmatprep.subr.mxu0 0.0
  %5624 = vmatpush2.msra.mxu0 0.0
  %5625 = vmatprep.subr.mxu0 0.0
  %5626 = vmatpush2.msra.mxu0 0.0
  %5627 = vmatprep.subr.mxu0 0.0
  %5628 = vmatpush2.msra.mxu0 0.0
  %5629 = vmatprep.subr.mxu0 0.0
  %5630 = vmatpush2.msra.mxu0 0.0
  %5631 = vmatprep.subr.mxu0 0.0
  %5632 = vmatpush2.msra.mxu0 0.0
  %5633 = vmatprep.mubr.f32.mxu0 0.0
  %5634 = vmatmul.mubr.f32.gmra.mxu0 %v5496
  %v5635 = vpop.f32.mrf.mxu0
  %v5636 = vadd.f32 0.0, %v5635
  %v5637 = vpop.f32.mrf.mxu0
  %v5638 = vadd.f32 0.0, %v5637
  %5639 = vdwg.mxu0
  %5640 = vmatprep.subr.mxu0 0.0
  %5641 = vmatpush1.msra.mxu0 0.0
  %5642 = vmatprep.subr.mxu0 0.0
  %5643 = vmatpush1.msra.mxu0 0.0
  %5644 = vmatprep.subr.mxu0 0.0
  %5645 = vmatpush1.msra.mxu0 0.0
  %5646 = vmatprep.subr.mxu0 0.0
  %5647 = vmatpush1.msra.mxu0 0.0
  %5648 = vmatprep.subr.mxu0 0.0
  %5649 = vmatpush1.msra.mxu0 0.0
  %5650 = vmatprep.subr.mxu0 0.0
  %5651 = vmatpush1.msra.mxu0 0.0
  %5652 = vmatprep.subr.mxu0 0.0
  %5653 = vmatpush1.msra.mxu0 0.0
  %5654 = vmatprep.subr.mxu0 0.0
  %5655 = vmatpush1.msra.mxu0 0.0
  %5656 = vmatprep.subr.mxu0 0.0
  %5657 = vmatpush1.msra.mxu0 0.0
  %5658 = vmatprep.subr.mxu0 0.0
  %5659 = vmatpush1.msra.mxu0 0.0
  %5660 = vmatprep.subr.mxu0 0.0
  %5661 = vmatpush1.msra.mxu0 0.0
  %5662 = vmatprep.subr.mxu0 0.0
  %5663 = vmatpush1.msra.mxu0 0.0
  %5664 = vmatprep.subr.mxu0 0.0
  %5665 = vmatpush1.msra.mxu0 0.0
  %5666 = vmatprep.subr.mxu0 0.0
  %5667 = vmatpush1.msra.mxu0 0.0
  %5668 = vmatprep.subr.mxu0 0.0
  %5669 = vmatpush1.msra.mxu0 0.0
  %5670 = vmatprep.subr.mxu0 %v3875
  %5671 = vmatpush1.msra.mxu0 %v3874
  %5672 = vmatprep.subr.mxu0 0.0
  %5673 = vmatpush2.msra.mxu0 0.0
  %5674 = vmatprep.subr.mxu0 0.0
  %5675 = vmatpush2.msra.mxu0 0.0
  %5676 = vmatprep.subr.mxu0 0.0
  %5677 = vmatpush2.msra.mxu0 0.0
  %5678 = vmatprep.subr.mxu0 0.0
  %5679 = vmatpush2.msra.mxu0 0.0
  %5680 = vmatprep.subr.mxu0 0.0
  %5681 = vmatpush2.msra.mxu0 0.0
  %5682 = vmatprep.subr.mxu0 0.0
  %5683 = vmatpush2.msra.mxu0 0.0
  %5684 = vmatprep.subr.mxu0 0.0
  %5685 = vmatpush2.msra.mxu0 0.0
  %5686 = vmatprep.subr.mxu0 0.0
  %5687 = vmatpush2.msra.mxu0 0.0
  %5688 = vmatprep.subr.mxu0 0.0
  %5689 = vmatpush2.msra.mxu0 0.0
  %5690 = vmatprep.subr.mxu0 0.0
  %5691 = vmatpush2.msra.mxu0 0.0
  %5692 = vmatprep.subr.mxu0 0.0
  %5693 = vmatpush2.msra.mxu0 0.0
  %5694 = vmatprep.subr.mxu0 0.0
  %5695 = vmatpush2.msra.mxu0 0.0
  %5696 = vmatprep.subr.mxu0 0.0
  %5697 = vmatpush2.msra.mxu0 0.0
  %5698 = vmatprep.subr.mxu0 0.0
  %5699 = vmatpush2.msra.mxu0 0.0
  %5700 = vmatprep.subr.mxu0 0.0
  %5701 = vmatpush2.msra.mxu0 0.0
  %5702 = vmatprep.subr.mxu0 0.0
  %5703 = vmatpush2.msra.mxu0 0.0
  %5704 = vmatprep.mubr.f32.mxu0 0.0
  %5705 = vmatmul.mubr.f32.gmra.mxu0 %v5496
  %v5706 = vpop.f32.mrf.mxu0
  %v5707 = vadd.f32 0.0, %v5706
  %v5708 = vpop.f32.mrf.mxu0
  %v5709 = vadd.f32 0.0, %v5708
  %5710 = vdwg.mxu0
  %5711 = vmatprep.subr.mxu0 0.0
  %5712 = vmatpush1.msra.mxu0 0.0
  %5713 = vmatprep.subr.mxu0 0.0
  %5714 = vmatpush1.msra.mxu0 0.0
  %5715 = vmatprep.subr.mxu0 0.0
  %5716 = vmatpush1.msra.mxu0 0.0
  %5717 = vmatprep.subr.mxu0 0.0
  %5718 = vmatpush1.msra.mxu0 0.0
  %5719 = vmatprep.subr.mxu0 0.0
  %5720 = vmatpush1.msra.mxu0 0.0
  %5721 = vmatprep.subr.mxu0 0.0
  %5722 = vmatpush1.msra.mxu0 0.0
  %5723 = vmatprep.subr.mxu0 0.0
  %5724 = vmatpush1.msra.mxu0 0.0
  %5725 = vmatprep.subr.mxu0 0.0
  %5726 = vmatpush1.msra.mxu0 0.0
  %5727 = vmatprep.subr.mxu0 0.0
  %5728 = vmatpush1.msra.mxu0 0.0
  %5729 = vmatprep.subr.mxu0 0.0
  %5730 = vmatpush1.msra.mxu0 0.0
  %5731 = vmatprep.subr.mxu0 0.0
  %5732 = vmatpush1.msra.mxu0 0.0
  %5733 = vmatprep.subr.mxu0 0.0
  %5734 = vmatpush1.msra.mxu0 0.0
  %5735 = vmatprep.subr.mxu0 0.0
  %5736 = vmatpush1.msra.mxu0 0.0
  %5737 = vmatprep.subr.mxu0 0.0
  %5738 = vmatpush1.msra.mxu0 0.0
  %5739 = vmatprep.subr.mxu0 0.0
  %5740 = vmatpush1.msra.mxu0 0.0
  %5741 = vmatprep.subr.mxu0 %v3877
  %5742 = vmatpush1.msra.mxu0 %v3876
  %5743 = vmatprep.subr.mxu0 0.0
  %5744 = vmatpush2.msra.mxu0 0.0
  %5745 = vmatprep.subr.mxu0 0.0
  %5746 = vmatpush2.msra.mxu0 0.0
  %5747 = vmatprep.subr.mxu0 0.0
  %5748 = vmatpush2.msra.mxu0 0.0
  %5749 = vmatprep.subr.mxu0 0.0
  %5750 = vmatpush2.msra.mxu0 0.0
  %5751 = vmatprep.subr.mxu0 0.0
  %5752 = vmatpush2.msra.mxu0 0.0
  %5753 = vmatprep.subr.mxu0 0.0
  %5754 = vmatpush2.msra.mxu0 0.0
  %5755 = vmatprep.subr.mxu0 0.0
  %5756 = vmatpush2.msra.mxu0 0.0
  %5757 = vmatprep.subr.mxu0 0.0
  %5758 = vmatpush2.msra.mxu0 0.0
  %5759 = vmatprep.subr.mxu0 0.0
  %5760 = vmatpush2.msra.mxu0 0.0
  %5761 = vmatprep.subr.mxu0 0.0
  %5762 = vmatpush2.msra.mxu0 0.0
  %5763 = vmatprep.subr.mxu0 0.0
  %5764 = vmatpush2.msra.mxu0 0.0
  %5765 = vmatprep.subr.mxu0 0.0
  %5766 = vmatpush2.msra.mxu0 0.0
  %5767 = vmatprep.subr.mxu0 0.0
  %5768 = vmatpush2.msra.mxu0 0.0
  %5769 = vmatprep.subr.mxu0 0.0
  %5770 = vmatpush2.msra.mxu0 0.0
  %5771 = vmatprep.subr.mxu0 0.0
  %5772 = vmatpush2.msra.mxu0 0.0
  %5773 = vmatprep.subr.mxu0 0.0
  %5774 = vmatpush2.msra.mxu0 0.0
  %5775 = vmatprep.mubr.f32.mxu0 0.0
  %5776 = vmatmul.mubr.f32.gmra.mxu0 %v5496
  %v5777 = vpop.f32.mrf.mxu0
  %v5778 = vadd.f32 0.0, %v5777
  %v5779 = vpop.f32.mrf.mxu0
  %v5780 = vadd.f32 0.0, %v5779
  %5781 = vdwg.mxu0
  %5782 = vmatprep.subr.mxu0 0.0
  %5783 = vmatpush1.msra.mxu0 0.0
  %5784 = vmatprep.subr.mxu0 0.0
  %5785 = vmatpush1.msra.mxu0 0.0
  %5786 = vmatprep.subr.mxu0 0.0
  %5787 = vmatpush1.msra.mxu0 0.0
  %5788 = vmatprep.subr.mxu0 0.0
  %5789 = vmatpush1.msra.mxu0 0.0
  %5790 = vmatprep.subr.mxu0 0.0
  %5791 = vmatpush1.msra.mxu0 0.0
  %5792 = vmatprep.subr.mxu0 0.0
  %5793 = vmatpush1.msra.mxu0 0.0
  %5794 = vmatprep.subr.mxu0 0.0
  %5795 = vmatpush1.msra.mxu0 0.0
  %5796 = vmatprep.subr.mxu0 0.0
  %5797 = vmatpush1.msra.mxu0 0.0
  %5798 = vmatprep.subr.mxu0 0.0
  %5799 = vmatpush1.msra.mxu0 0.0
  %5800 = vmatprep.subr.mxu0 0.0
  %5801 = vmatpush1.msra.mxu0 0.0
  %5802 = vmatprep.subr.mxu0 0.0
  %5803 = vmatpush1.msra.mxu0 0.0
  %5804 = vmatprep.subr.mxu0 0.0
  %5805 = vmatpush1.msra.mxu0 0.0
  %5806 = vmatprep.subr.mxu0 0.0
  %5807 = vmatpush1.msra.mxu0 0.0
  %5808 = vmatprep.subr.mxu0 0.0
  %5809 = vmatpush1.msra.mxu0 0.0
  %5810 = vmatprep.subr.mxu0 0.0
  %5811 = vmatpush1.msra.mxu0 0.0
  %5812 = vmatprep.subr.mxu0 0.0
  %5813 = vmatpush1.msra.mxu0 %v3878
  %5814 = vmatprep.subr.mxu0 0.0
  %5815 = vmatpush2.msra.mxu0 0.0
  %5816 = vmatprep.subr.mxu0 0.0
  %5817 = vmatpush2.msra.mxu0 0.0
  %5818 = vmatprep.subr.mxu0 0.0
  %5819 = vmatpush2.msra.mxu0 0.0
  %5820 = vmatprep.subr.mxu0 0.0
  %5821 = vmatpush2.msra.mxu0 0.0
  %5822 = vmatprep.subr.mxu0 0.0
  %5823 = vmatpush2.msra.mxu0 0.0
  %5824 = vmatprep.subr.mxu0 0.0
  %5825 = vmatpush2.msra.mxu0 0.0
  %5826 = vmatprep.subr.mxu0 0.0
  %5827 = vmatpush2.msra.mxu0 0.0
  %5828 = vmatprep.subr.mxu0 0.0
  %5829 = vmatpush2.msra.mxu0 0.0
  %5830 = vmatprep.subr.mxu0 0.0
  %5831 = vmatpush2.msra.mxu0 0.0
  %5832 = vmatprep.subr.mxu0 0.0
  %5833 = vmatpush2.msra.mxu0 0.0
  %5834 = vmatprep.subr.mxu0 0.0
  %5835 = vmatpush2.msra.mxu0 0.0
  %5836 = vmatprep.subr.mxu0 0.0
  %5837 = vmatpush2.msra.mxu0 0.0
  %5838 = vmatprep.subr.mxu0 0.0
  %5839 = vmatpush2.msra.mxu0 0.0
  %5840 = vmatprep.subr.mxu0 0.0
  %5841 = vmatpush2.msra.mxu0 0.0
  %5842 = vmatprep.subr.mxu0 0.0
  %5843 = vmatpush2.msra.mxu0 0.0
  %5844 = vmatprep.subr.mxu0 0.0
  %5845 = vmatpush2.msra.mxu0 0.0
  %5846 = vmatprep.mubr.f32.mxu0 0.0
  %5847 = vmatmul.mubr.f32.gmra.mxu0 %v5496
  %v5848 = vpop.f32.mrf.mxu0
  %v5849 = vadd.f32 0.0, %v5848
  %v5850 = vpop.f32.mrf.mxu0
  %5851 = vdwg.mxu0
  %v5852 = vadd.f32 %v5484, %v5565
  %v5853 = vadd.f32 %v5485, %v5567
  %v5854 = vadd.f32 %v5486, %v5636
  %v5855 = vadd.f32 %v5487, %v5638
  %v5856 = vadd.f32 %v5488, %v5707
  %v5857 = vadd.f32 %v5489, %v5709
  %v5858 = vadd.f32 %v5490, %v5778
  %v5859 = vadd.f32 %v5491, %v5780
  %v5860 = vadd.f32 %v5492, %v5849
  %s5861 = scalar_lea.vmem %s6, 40
  %v5862 = vld [vmem:[%s5861] sm:$0xff]
  %v5863 = vld [vmem:[#allocation2 + $0x8] sm:$0xff]
  %v5864 = vld [vmem:[#allocation2 + $0x10] sm:$0xff]
  %v5865 = vld [vmem:[#allocation2 + $0x18] sm:$0xff]
  %v5866 = vld [vmem:[#allocation2 + $0x20] sm:$0xff]
  %v5867 = vld [vmem:[#allocation2 + $0x28] sm:$0xff]
  %v5868 = vld [vmem:[#allocation2 + $0x30] sm:$0xff]
  %v5869 = vld [vmem:[#allocation2 + $0x38] sm:$0xff]
  %v5870 = vld [vmem:[#allocation2 + $0x40] sm:$0xff]
  %v5871 = vld [vmem:[#allocation2 + $0x48] sm:$0xff]
  %v5872 = vld [vmem:[#allocation2 + $0x50] sm:$0xff]
  %5883 = vrot.lane.b32.xlu0 %v5863, 127
  %v5884 = vpop.permute.xlu0 %5883
  %5885 = vrot.lane.b32.xlu0 %v5864, 127
  %v5886 = vpop.permute.xlu0 %5885
  %5887 = vrot.lane.b32.xlu0 %v5865, 127
  %v5888 = vpop.permute.xlu0 %5887
  %5889 = vrot.lane.b32.xlu0 %v5866, 127
  %v5890 = vpop.permute.xlu0 %5889
  %5891 = vrot.lane.b32.xlu0 %v5867, 127
  %v5892 = vpop.permute.xlu0 %5891
  %5893 = vrot.lane.b32.xlu0 %v5868, 127
  %v5894 = vpop.permute.xlu0 %5893
  %5895 = vrot.lane.b32.xlu0 %v5869, 127
  %v5896 = vpop.permute.xlu0 %5895
  %5897 = vrot.lane.b32.xlu0 %v5870, 127
  %v5898 = vpop.permute.xlu0 %5897
  %5899 = vrot.lane.b32.xlu0 %v5871, 127
  %v5900 = vpop.permute.xlu0 %5899
  %5901 = vrot.lane.b32.xlu0 %v5872, 127
  %v5902 = vpop.permute.xlu0 %5901
  %v5903 = vsel %vm2084, %v5884, %v5886
  %v5904 = vsel %vm2084, %v5886, %v5888
  %v5905 = vsel %vm2084, %v5888, %v5890
  %v5906 = vsel %vm2084, %v5890, %v5892
  %v5907 = vsel %vm2084, %v5892, %v5894
  %v5908 = vsel %vm2084, %v5894, %v5896
  %v5909 = vsel %vm2084, %v5896, %v5898
  %v5910 = vsel %vm2084, %v5898, %v5900
  %v5911 = vsel %vm2084, %v5900, %v5902
  %v5922 = vsel %vm106, %v5862, 0
  %5924 = vmatprep.subr.mxu0 0.0
  %5925 = vmatpush1.msra.mxu0 0.0
  %5926 = vmatprep.subr.mxu0 0.0
  %5927 = vmatpush1.msra.mxu0 0.0
  %5928 = vmatprep.subr.mxu0 0.0
  %5929 = vmatpush1.msra.mxu0 0.0
  %5930 = vmatprep.subr.mxu0 0.0
  %5931 = vmatpush1.msra.mxu0 0.0
  %5932 = vmatprep.subr.mxu0 0.0
  %5933 = vmatpush1.msra.mxu0 0.0
  %5934 = vmatprep.subr.mxu0 0.0
  %5935 = vmatpush1.msra.mxu0 0.0
  %5936 = vmatprep.subr.mxu0 0.0
  %5937 = vmatpush1.msra.mxu0 0.0
  %5938 = vmatprep.subr.mxu0 0.0
  %5939 = vmatpush1.msra.mxu0 0.0
  %5940 = vmatprep.subr.mxu0 0.0
  %5941 = vmatpush1.msra.mxu0 0.0
  %5942 = vmatprep.subr.mxu0 0.0
  %5943 = vmatpush1.msra.mxu0 0.0
  %5944 = vmatprep.subr.mxu0 0.0
  %5945 = vmatpush1.msra.mxu0 0.0
  %5946 = vmatprep.subr.mxu0 0.0
  %5947 = vmatpush1.msra.mxu0 0.0
  %5948 = vmatprep.subr.mxu0 0.0
  %5949 = vmatpush1.msra.mxu0 0.0
  %5950 = vmatprep.subr.mxu0 0.0
  %5951 = vmatpush1.msra.mxu0 0.0
  %5952 = vmatprep.subr.mxu0 0.0
  %5953 = vmatpush1.msra.mxu0 0.0
  %5954 = vmatprep.subr.mxu0 %v5904
  %5955 = vmatpush1.msra.mxu0 %v5903
  %5956 = vmatprep.subr.mxu0 0.0
  %5957 = vmatpush2.msra.mxu0 0.0
  %5958 = vmatprep.subr.mxu0 0.0
  %5959 = vmatpush2.msra.mxu0 0.0
  %5960 = vmatprep.subr.mxu0 0.0
  %5961 = vmatpush2.msra.mxu0 0.0
  %5962 = vmatprep.subr.mxu0 0.0
  %5963 = vmatpush2.msra.mxu0 0.0
  %5964 = vmatprep.subr.mxu0 0.0
  %5965 = vmatpush2.msra.mxu0 0.0
  %5966 = vmatprep.subr.mxu0 0.0
  %5967 = vmatpush2.msra.mxu0 0.0
  %5968 = vmatprep.subr.mxu0 0.0
  %5969 = vmatpush2.msra.mxu0 0.0
  %5970 = vmatprep.subr.mxu0 0.0
  %5971 = vmatpush2.msra.mxu0 0.0
  %5972 = vmatprep.subr.mxu0 0.0
  %5973 = vmatpush2.msra.mxu0 0.0
  %5974 = vmatprep.subr.mxu0 0.0
  %5975 = vmatpush2.msra.mxu0 0.0
  %5976 = vmatprep.subr.mxu0 0.0
  %5977 = vmatpush2.msra.mxu0 0.0
  %5978 = vmatprep.subr.mxu0 0.0
  %5979 = vmatpush2.msra.mxu0 0.0
  %5980 = vmatprep.subr.mxu0 0.0
  %5981 = vmatpush2.msra.mxu0 0.0
  %5982 = vmatprep.subr.mxu0 0.0
  %5983 = vmatpush2.msra.mxu0 0.0
  %5984 = vmatprep.subr.mxu0 0.0
  %5985 = vmatpush2.msra.mxu0 0.0
  %5986 = vmatprep.subr.mxu0 0.0
  %5987 = vmatpush2.msra.mxu0 0.0
  %5988 = vmatprep.mubr.f32.mxu0 0.0
  %5989 = vmatmul.mubr.f32.gmra.mxu0 %v5922
  %v5990 = vpop.f32.mrf.mxu0
  %v5991 = vadd.f32 0.0, %v5990
  %v5992 = vpop.f32.mrf.mxu0
  %v5993 = vadd.f32 0.0, %v5992
  %5994 = vdwg.mxu0
  %5995 = vmatprep.subr.mxu0 0.0
  %5996 = vmatpush1.msra.mxu0 0.0
  %5997 = vmatprep.subr.mxu0 0.0
  %5998 = vmatpush1.msra.mxu0 0.0
  %5999 = vmatprep.subr.mxu0 0.0
  %6000 = vmatpush1.msra.mxu0 0.0
  %6001 = vmatprep.subr.mxu0 0.0
  %6002 = vmatpush1.msra.mxu0 0.0
  %6003 = vmatprep.subr.mxu0 0.0
  %6004 = vmatpush1.msra.mxu0 0.0
  %6005 = vmatprep.subr.mxu0 0.0
  %6006 = vmatpush1.msra.mxu0 0.0
  %6007 = vmatprep.subr.mxu0 0.0
  %6008 = vmatpush1.msra.mxu0 0.0
  %6009 = vmatprep.subr.mxu0 0.0
  %6010 = vmatpush1.msra.mxu0 0.0
  %6011 = vmatprep.subr.mxu0 0.0
  %6012 = vmatpush1.msra.mxu0 0.0
  %6013 = vmatprep.subr.mxu0 0.0
  %6014 = vmatpush1.msra.mxu0 0.0
  %6015 = vmatprep.subr.mxu0 0.0
  %6016 = vmatpush1.msra.mxu0 0.0
  %6017 = vmatprep.subr.mxu0 0.0
  %6018 = vmatpush1.msra.mxu0 0.0
  %6019 = vmatprep.subr.mxu0 0.0
  %6020 = vmatpush1.msra.mxu0 0.0
  %6021 = vmatprep.subr.mxu0 0.0
  %6022 = vmatpush1.msra.mxu0 0.0
  %6023 = vmatprep.subr.mxu0 0.0
  %6024 = vmatpush1.msra.mxu0 0.0
  %6025 = vmatprep.subr.mxu0 %v5906
  %6026 = vmatpush1.msra.mxu0 %v5905
  %6027 = vmatprep.subr.mxu0 0.0
  %6028 = vmatpush2.msra.mxu0 0.0
  %6029 = vmatprep.subr.mxu0 0.0
  %6030 = vmatpush2.msra.mxu0 0.0
  %6031 = vmatprep.subr.mxu0 0.0
  %6032 = vmatpush2.msra.mxu0 0.0
  %6033 = vmatprep.subr.mxu0 0.0
  %6034 = vmatpush2.msra.mxu0 0.0
  %6035 = vmatprep.subr.mxu0 0.0
  %6036 = vmatpush2.msra.mxu0 0.0
  %6037 = vmatprep.subr.mxu0 0.0
  %6038 = vmatpush2.msra.mxu0 0.0
  %6039 = vmatprep.subr.mxu0 0.0
  %6040 = vmatpush2.msra.mxu0 0.0
  %6041 = vmatprep.subr.mxu0 0.0
  %6042 = vmatpush2.msra.mxu0 0.0
  %6043 = vmatprep.subr.mxu0 0.0
  %6044 = vmatpush2.msra.mxu0 0.0
  %6045 = vmatprep.subr.mxu0 0.0
  %6046 = vmatpush2.msra.mxu0 0.0
  %6047 = vmatprep.subr.mxu0 0.0
  %6048 = vmatpush2.msra.mxu0 0.0
  %6049 = vmatprep.subr.mxu0 0.0
  %6050 = vmatpush2.msra.mxu0 0.0
  %6051 = vmatprep.subr.mxu0 0.0
  %6052 = vmatpush2.msra.mxu0 0.0
  %6053 = vmatprep.subr.mxu0 0.0
  %6054 = vmatpush2.msra.mxu0 0.0
  %6055 = vmatprep.subr.mxu0 0.0
  %6056 = vmatpush2.msra.mxu0 0.0
  %6057 = vmatprep.subr.mxu0 0.0
  %6058 = vmatpush2.msra.mxu0 0.0
  %6059 = vmatprep.mubr.f32.mxu0 0.0
  %6060 = vmatmul.mubr.f32.gmra.mxu0 %v5922
  %v6061 = vpop.f32.mrf.mxu0
  %v6062 = vadd.f32 0.0, %v6061
  %v6063 = vpop.f32.mrf.mxu0
  %v6064 = vadd.f32 0.0, %v6063
  %6065 = vdwg.mxu0
  %6066 = vmatprep.subr.mxu0 0.0
  %6067 = vmatpush1.msra.mxu0 0.0
  %6068 = vmatprep.subr.mxu0 0.0
  %6069 = vmatpush1.msra.mxu0 0.0
  %6070 = vmatprep.subr.mxu0 0.0
  %6071 = vmatpush1.msra.mxu0 0.0
  %6072 = vmatprep.subr.mxu0 0.0
  %6073 = vmatpush1.msra.mxu0 0.0
  %6074 = vmatprep.subr.mxu0 0.0
  %6075 = vmatpush1.msra.mxu0 0.0
  %6076 = vmatprep.subr.mxu0 0.0
  %6077 = vmatpush1.msra.mxu0 0.0
  %6078 = vmatprep.subr.mxu0 0.0
  %6079 = vmatpush1.msra.mxu0 0.0
  %6080 = vmatprep.subr.mxu0 0.0
  %6081 = vmatpush1.msra.mxu0 0.0
  %6082 = vmatprep.subr.mxu0 0.0
  %6083 = vmatpush1.msra.mxu0 0.0
  %6084 = vmatprep.subr.mxu0 0.0
  %6085 = vmatpush1.msra.mxu0 0.0
  %6086 = vmatprep.subr.mxu0 0.0
  %6087 = vmatpush1.msra.mxu0 0.0
  %6088 = vmatprep.subr.mxu0 0.0
  %6089 = vmatpush1.msra.mxu0 0.0
  %6090 = vmatprep.subr.mxu0 0.0
  %6091 = vmatpush1.msra.mxu0 0.0
  %6092 = vmatprep.subr.mxu0 0.0
  %6093 = vmatpush1.msra.mxu0 0.0
  %6094 = vmatprep.subr.mxu0 0.0
  %6095 = vmatpush1.msra.mxu0 0.0
  %6096 = vmatprep.subr.mxu0 %v5908
  %6097 = vmatpush1.msra.mxu0 %v5907
  %6098 = vmatprep.subr.mxu0 0.0
  %6099 = vmatpush2.msra.mxu0 0.0
  %6100 = vmatprep.subr.mxu0 0.0
  %6101 = vmatpush2.msra.mxu0 0.0
  %6102 = vmatprep.subr.mxu0 0.0
  %6103 = vmatpush2.msra.mxu0 0.0
  %6104 = vmatprep.subr.mxu0 0.0
  %6105 = vmatpush2.msra.mxu0 0.0
  %6106 = vmatprep.subr.mxu0 0.0
  %6107 = vmatpush2.msra.mxu0 0.0
  %6108 = vmatprep.subr.mxu0 0.0
  %6109 = vmatpush2.msra.mxu0 0.0
  %6110 = vmatprep.subr.mxu0 0.0
  %6111 = vmatpush2.msra.mxu0 0.0
  %6112 = vmatprep.subr.mxu0 0.0
  %6113 = vmatpush2.msra.mxu0 0.0
  %6114 = vmatprep.subr.mxu0 0.0
  %6115 = vmatpush2.msra.mxu0 0.0
  %6116 = vmatprep.subr.mxu0 0.0
  %6117 = vmatpush2.msra.mxu0 0.0
  %6118 = vmatprep.subr.mxu0 0.0
  %6119 = vmatpush2.msra.mxu0 0.0
  %6120 = vmatprep.subr.mxu0 0.0
  %6121 = vmatpush2.msra.mxu0 0.0
  %6122 = vmatprep.subr.mxu0 0.0
  %6123 = vmatpush2.msra.mxu0 0.0
  %6124 = vmatprep.subr.mxu0 0.0
  %6125 = vmatpush2.msra.mxu0 0.0
  %6126 = vmatprep.subr.mxu0 0.0
  %6127 = vmatpush2.msra.mxu0 0.0
  %6128 = vmatprep.subr.mxu0 0.0
  %6129 = vmatpush2.msra.mxu0 0.0
  %6130 = vmatprep.mubr.f32.mxu0 0.0
  %6131 = vmatmul.mubr.f32.gmra.mxu0 %v5922
  %v6132 = vpop.f32.mrf.mxu0
  %v6133 = vadd.f32 0.0, %v6132
  %v6134 = vpop.f32.mrf.mxu0
  %v6135 = vadd.f32 0.0, %v6134
  %6136 = vdwg.mxu0
  %6137 = vmatprep.subr.mxu0 0.0
  %6138 = vmatpush1.msra.mxu0 0.0
  %6139 = vmatprep.subr.mxu0 0.0
  %6140 = vmatpush1.msra.mxu0 0.0
  %6141 = vmatprep.subr.mxu0 0.0
  %6142 = vmatpush1.msra.mxu0 0.0
  %6143 = vmatprep.subr.mxu0 0.0
  %6144 = vmatpush1.msra.mxu0 0.0
  %6145 = vmatprep.subr.mxu0 0.0
  %6146 = vmatpush1.msra.mxu0 0.0
  %6147 = vmatprep.subr.mxu0 0.0
  %6148 = vmatpush1.msra.mxu0 0.0
  %6149 = vmatprep.subr.mxu0 0.0
  %6150 = vmatpush1.msra.mxu0 0.0
  %6151 = vmatprep.subr.mxu0 0.0
  %6152 = vmatpush1.msra.mxu0 0.0
  %6153 = vmatprep.subr.mxu0 0.0
  %6154 = vmatpush1.msra.mxu0 0.0
  %6155 = vmatprep.subr.mxu0 0.0
  %6156 = vmatpush1.msra.mxu0 0.0
  %6157 = vmatprep.subr.mxu0 0.0
  %6158 = vmatpush1.msra.mxu0 0.0
  %6159 = vmatprep.subr.mxu0 0.0
  %6160 = vmatpush1.msra.mxu0 0.0
  %6161 = vmatprep.subr.mxu0 0.0
  %6162 = vmatpush1.msra.mxu0 0.0
  %6163 = vmatprep.subr.mxu0 0.0
  %6164 = vmatpush1.msra.mxu0 0.0
  %6165 = vmatprep.subr.mxu0 0.0
  %6166 = vmatpush1.msra.mxu0 0.0
  %6167 = vmatprep.subr.mxu0 %v5910
  %6168 = vmatpush1.msra.mxu0 %v5909
  %6169 = vmatprep.subr.mxu0 0.0
  %6170 = vmatpush2.msra.mxu0 0.0
  %6171 = vmatprep.subr.mxu0 0.0
  %6172 = vmatpush2.msra.mxu0 0.0
  %6173 = vmatprep.subr.mxu0 0.0
  %6174 = vmatpush2.msra.mxu0 0.0
  %6175 = vmatprep.subr.mxu0 0.0
  %6176 = vmatpush2.msra.mxu0 0.0
  %6177 = vmatprep.subr.mxu0 0.0
  %6178 = vmatpush2.msra.mxu0 0.0
  %6179 = vmatprep.subr.mxu0 0.0
  %6180 = vmatpush2.msra.mxu0 0.0
  %6181 = vmatprep.subr.mxu0 0.0
  %6182 = vmatpush2.msra.mxu0 0.0
  %6183 = vmatprep.subr.mxu0 0.0
  %6184 = vmatpush2.msra.mxu0 0.0
  %6185 = vmatprep.subr.mxu0 0.0
  %6186 = vmatpush2.msra.mxu0 0.0
  %6187 = vmatprep.subr.mxu0 0.0
  %6188 = vmatpush2.msra.mxu0 0.0
  %6189 = vmatprep.subr.mxu0 0.0
  %6190 = vmatpush2.msra.mxu0 0.0
  %6191 = vmatprep.subr.mxu0 0.0
  %6192 = vmatpush2.msra.mxu0 0.0
  %6193 = vmatprep.subr.mxu0 0.0
  %6194 = vmatpush2.msra.mxu0 0.0
  %6195 = vmatprep.subr.mxu0 0.0
  %6196 = vmatpush2.msra.mxu0 0.0
  %6197 = vmatprep.subr.mxu0 0.0
  %6198 = vmatpush2.msra.mxu0 0.0
  %6199 = vmatprep.subr.mxu0 0.0
  %6200 = vmatpush2.msra.mxu0 0.0
  %6201 = vmatprep.mubr.f32.mxu0 0.0
  %6202 = vmatmul.mubr.f32.gmra.mxu0 %v5922
  %v6203 = vpop.f32.mrf.mxu0
  %v6204 = vadd.f32 0.0, %v6203
  %v6205 = vpop.f32.mrf.mxu0
  %v6206 = vadd.f32 0.0, %v6205
  %6207 = vdwg.mxu0
  %6208 = vmatprep.subr.mxu0 0.0
  %6209 = vmatpush1.msra.mxu0 0.0
  %6210 = vmatprep.subr.mxu0 0.0
  %6211 = vmatpush1.msra.mxu0 0.0
  %6212 = vmatprep.subr.mxu0 0.0
  %6213 = vmatpush1.msra.mxu0 0.0
  %6214 = vmatprep.subr.mxu0 0.0
  %6215 = vmatpush1.msra.mxu0 0.0
  %6216 = vmatprep.subr.mxu0 0.0
  %6217 = vmatpush1.msra.mxu0 0.0
  %6218 = vmatprep.subr.mxu0 0.0
  %6219 = vmatpush1.msra.mxu0 0.0
  %6220 = vmatprep.subr.mxu0 0.0
  %6221 = vmatpush1.msra.mxu0 0.0
  %6222 = vmatprep.subr.mxu0 0.0
  %6223 = vmatpush1.msra.mxu0 0.0
  %6224 = vmatprep.subr.mxu0 0.0
  %6225 = vmatpush1.msra.mxu0 0.0
  %6226 = vmatprep.subr.mxu0 0.0
  %6227 = vmatpush1.msra.mxu0 0.0
  %6228 = vmatprep.subr.mxu0 0.0
  %6229 = vmatpush1.msra.mxu0 0.0
  %6230 = vmatprep.subr.mxu0 0.0
  %6231 = vmatpush1.msra.mxu0 0.0
  %6232 = vmatprep.subr.mxu0 0.0
  %6233 = vmatpush1.msra.mxu0 0.0
  %6234 = vmatprep.subr.mxu0 0.0
  %6235 = vmatpush1.msra.mxu0 0.0
  %6236 = vmatprep.subr.mxu0 0.0
  %6237 = vmatpush1.msra.mxu0 0.0
  %6238 = vmatprep.subr.mxu0 0.0
  %6239 = vmatpush1.msra.mxu0 %v5911
  %6240 = vmatprep.subr.mxu0 0.0
  %6241 = vmatpush2.msra.mxu0 0.0
  %6242 = vmatprep.subr.mxu0 0.0
  %6243 = vmatpush2.msra.mxu0 0.0
  %6244 = vmatprep.subr.mxu0 0.0
  %6245 = vmatpush2.msra.mxu0 0.0
  %6246 = vmatprep.subr.mxu0 0.0
  %6247 = vmatpush2.msra.mxu0 0.0
  %6248 = vmatprep.subr.mxu0 0.0
  %6249 = vmatpush2.msra.mxu0 0.0
  %6250 = vmatprep.subr.mxu0 0.0
  %6251 = vmatpush2.msra.mxu0 0.0
  %6252 = vmatprep.subr.mxu0 0.0
  %6253 = vmatpush2.msra.mxu0 0.0
  %6254 = vmatprep.subr.mxu0 0.0
  %6255 = vmatpush2.msra.mxu0 0.0
  %6256 = vmatprep.subr.mxu0 0.0
  %6257 = vmatpush2.msra.mxu0 0.0
  %6258 = vmatprep.subr.mxu0 0.0
  %6259 = vmatpush2.msra.mxu0 0.0
  %6260 = vmatprep.subr.mxu0 0.0
  %6261 = vmatpush2.msra.mxu0 0.0
  %6262 = vmatprep.subr.mxu0 0.0
  %6263 = vmatpush2.msra.mxu0 0.0
  %6264 = vmatprep.subr.mxu0 0.0
  %6265 = vmatpush2.msra.mxu0 0.0
  %6266 = vmatprep.subr.mxu0 0.0
  %6267 = vmatpush2.msra.mxu0 0.0
  %6268 = vmatprep.subr.mxu0 0.0
  %6269 = vmatpush2.msra.mxu0 0.0
  %6270 = vmatprep.subr.mxu0 0.0
  %6271 = vmatpush2.msra.mxu0 0.0
  %6272 = vmatprep.mubr.f32.mxu0 0.0
  %6273 = vmatmul.mubr.f32.gmra.mxu0 %v5922
  %v6274 = vpop.f32.mrf.mxu0
  %v6275 = vadd.f32 0.0, %v6274
  %v6276 = vpop.f32.mrf.mxu0
  %6277 = vdwg.mxu0
  %v6278 = vadd.f32 %v5852, %v5991
  %v6279 = vadd.f32 %v5853, %v5993
  %v6280 = vadd.f32 %v5854, %v6062
  %v6281 = vadd.f32 %v5855, %v6064
  %v6282 = vadd.f32 %v5856, %v6133
  %v6283 = vadd.f32 %v5857, %v6135
  %v6284 = vadd.f32 %v5858, %v6204
  %v6285 = vadd.f32 %v5859, %v6206
  %v6286 = vadd.f32 %v5860, %v6275
  %s6287 = scalar_lea.vmem %s6, 48
  %v6288 = vld [vmem:[%s6287] sm:$0xff]
  %6289 = vrot.lane.b32.xlu0 %v5863, 97
  %v6290 = vpop.permute.xlu0 %6289
  %6291 = vrot.lane.b32.xlu0 %v5864, 97
  %v6292 = vpop.permute.xlu0 %6291
  %6293 = vrot.lane.b32.xlu0 %v5865, 97
  %v6294 = vpop.permute.xlu0 %6293
  %6295 = vrot.lane.b32.xlu0 %v5866, 97
  %v6296 = vpop.permute.xlu0 %6295
  %6297 = vrot.lane.b32.xlu0 %v5867, 97
  %v6298 = vpop.permute.xlu0 %6297
  %6299 = vrot.lane.b32.xlu0 %v5868, 97
  %v6300 = vpop.permute.xlu0 %6299
  %6301 = vrot.lane.b32.xlu0 %v5869, 97
  %v6302 = vpop.permute.xlu0 %6301
  %6303 = vrot.lane.b32.xlu0 %v5870, 97
  %v6304 = vpop.permute.xlu0 %6303
  %6305 = vrot.lane.b32.xlu0 %v5871, 97
  %v6306 = vpop.permute.xlu0 %6305
  %6307 = vrot.lane.b32.xlu0 %v5872, 97
  %v6308 = vpop.permute.xlu0 %6307
  %v6309 = vsel %vm2491, %v6290, %v6292
  %v6310 = vsel %vm2491, %v6292, %v6294
  %v6311 = vsel %vm2491, %v6294, %v6296
  %v6312 = vsel %vm2491, %v6296, %v6298
  %v6313 = vsel %vm2491, %v6298, %v6300
  %v6314 = vsel %vm2491, %v6300, %v6302
  %v6315 = vsel %vm2491, %v6302, %v6304
  %v6316 = vsel %vm2491, %v6304, %v6306
  %v6317 = vsel %vm2491, %v6306, %v6308
  %v6328 = vsel %vm106, %v6288, 0
  %6330 = vmatprep.subr.mxu0 0.0
  %6331 = vmatpush1.msra.mxu0 0.0
  %6332 = vmatprep.subr.mxu0 0.0
  %6333 = vmatpush1.msra.mxu0 0.0
  %6334 = vmatprep.subr.mxu0 0.0
  %6335 = vmatpush1.msra.mxu0 0.0
  %6336 = vmatprep.subr.mxu0 0.0
  %6337 = vmatpush1.msra.mxu0 0.0
  %6338 = vmatprep.subr.mxu0 0.0
  %6339 = vmatpush1.msra.mxu0 0.0
  %6340 = vmatprep.subr.mxu0 0.0
  %6341 = vmatpush1.msra.mxu0 0.0
  %6342 = vmatprep.subr.mxu0 0.0
  %6343 = vmatpush1.msra.mxu0 0.0
  %6344 = vmatprep.subr.mxu0 0.0
  %6345 = vmatpush1.msra.mxu0 0.0
  %6346 = vmatprep.subr.mxu0 0.0
  %6347 = vmatpush1.msra.mxu0 0.0
  %6348 = vmatprep.subr.mxu0 0.0
  %6349 = vmatpush1.msra.mxu0 0.0
  %6350 = vmatprep.subr.mxu0 0.0
  %6351 = vmatpush1.msra.mxu0 0.0
  %6352 = vmatprep.subr.mxu0 0.0
  %6353 = vmatpush1.msra.mxu0 0.0
  %6354 = vmatprep.subr.mxu0 0.0
  %6355 = vmatpush1.msra.mxu0 0.0
  %6356 = vmatprep.subr.mxu0 0.0
  %6357 = vmatpush1.msra.mxu0 0.0
  %6358 = vmatprep.subr.mxu0 0.0
  %6359 = vmatpush1.msra.mxu0 0.0
  %6360 = vmatprep.subr.mxu0 %v6310
  %6361 = vmatpush1.msra.mxu0 %v6309
  %6362 = vmatprep.subr.mxu0 0.0
  %6363 = vmatpush2.msra.mxu0 0.0
  %6364 = vmatprep.subr.mxu0 0.0
  %6365 = vmatpush2.msra.mxu0 0.0
  %6366 = vmatprep.subr.mxu0 0.0
  %6367 = vmatpush2.msra.mxu0 0.0
  %6368 = vmatprep.subr.mxu0 0.0
  %6369 = vmatpush2.msra.mxu0 0.0
  %6370 = vmatprep.subr.mxu0 0.0
  %6371 = vmatpush2.msra.mxu0 0.0
  %6372 = vmatprep.subr.mxu0 0.0
  %6373 = vmatpush2.msra.mxu0 0.0
  %6374 = vmatprep.subr.mxu0 0.0
  %6375 = vmatpush2.msra.mxu0 0.0
  %6376 = vmatprep.subr.mxu0 0.0
  %6377 = vmatpush2.msra.mxu0 0.0
  %6378 = vmatprep.subr.mxu0 0.0
  %6379 = vmatpush2.msra.mxu0 0.0
  %6380 = vmatprep.subr.mxu0 0.0
  %6381 = vmatpush2.msra.mxu0 0.0
  %6382 = vmatprep.subr.mxu0 0.0
  %6383 = vmatpush2.msra.mxu0 0.0
  %6384 = vmatprep.subr.mxu0 0.0
  %6385 = vmatpush2.msra.mxu0 0.0
  %6386 = vmatprep.subr.mxu0 0.0
  %6387 = vmatpush2.msra.mxu0 0.0
  %6388 = vmatprep.subr.mxu0 0.0
  %6389 = vmatpush2.msra.mxu0 0.0
  %6390 = vmatprep.subr.mxu0 0.0
  %6391 = vmatpush2.msra.mxu0 0.0
  %6392 = vmatprep.subr.mxu0 0.0
  %6393 = vmatpush2.msra.mxu0 0.0
  %6394 = vmatprep.mubr.f32.mxu0 0.0
  %6395 = vmatmul.mubr.f32.gmra.mxu0 %v6328
  %v6396 = vpop.f32.mrf.mxu0
  %v6397 = vadd.f32 0.0, %v6396
  %v6398 = vpop.f32.mrf.mxu0
  %v6399 = vadd.f32 0.0, %v6398
  %6400 = vdwg.mxu0
  %6401 = vmatprep.subr.mxu0 0.0
  %6402 = vmatpush1.msra.mxu0 0.0
  %6403 = vmatprep.subr.mxu0 0.0
  %6404 = vmatpush1.msra.mxu0 0.0
  %6405 = vmatprep.subr.mxu0 0.0
  %6406 = vmatpush1.msra.mxu0 0.0
  %6407 = vmatprep.subr.mxu0 0.0
  %6408 = vmatpush1.msra.mxu0 0.0
  %6409 = vmatprep.subr.mxu0 0.0
  %6410 = vmatpush1.msra.mxu0 0.0
  %6411 = vmatprep.subr.mxu0 0.0
  %6412 = vmatpush1.msra.mxu0 0.0
  %6413 = vmatprep.subr.mxu0 0.0
  %6414 = vmatpush1.msra.mxu0 0.0
  %6415 = vmatprep.subr.mxu0 0.0
  %6416 = vmatpush1.msra.mxu0 0.0
  %6417 = vmatprep.subr.mxu0 0.0
  %6418 = vmatpush1.msra.mxu0 0.0
  %6419 = vmatprep.subr.mxu0 0.0
  %6420 = vmatpush1.msra.mxu0 0.0
  %6421 = vmatprep.subr.mxu0 0.0
  %6422 = vmatpush1.msra.mxu0 0.0
  %6423 = vmatprep.subr.mxu0 0.0
  %6424 = vmatpush1.msra.mxu0 0.0
  %6425 = vmatprep.subr.mxu0 0.0
  %6426 = vmatpush1.msra.mxu0 0.0
  %6427 = vmatprep.subr.mxu0 0.0
  %6428 = vmatpush1.msra.mxu0 0.0
  %6429 = vmatprep.subr.mxu0 0.0
  %6430 = vmatpush1.msra.mxu0 0.0
  %6431 = vmatprep.subr.mxu0 %v6312
  %6432 = vmatpush1.msra.mxu0 %v6311
  %6433 = vmatprep.subr.mxu0 0.0
  %6434 = vmatpush2.msra.mxu0 0.0
  %6435 = vmatprep.subr.mxu0 0.0
  %6436 = vmatpush2.msra.mxu0 0.0
  %6437 = vmatprep.subr.mxu0 0.0
  %6438 = vmatpush2.msra.mxu0 0.0
  %6439 = vmatprep.subr.mxu0 0.0
  %6440 = vmatpush2.msra.mxu0 0.0
  %6441 = vmatprep.subr.mxu0 0.0
  %6442 = vmatpush2.msra.mxu0 0.0
  %6443 = vmatprep.subr.mxu0 0.0
  %6444 = vmatpush2.msra.mxu0 0.0
  %6445 = vmatprep.subr.mxu0 0.0
  %6446 = vmatpush2.msra.mxu0 0.0
  %6447 = vmatprep.subr.mxu0 0.0
  %6448 = vmatpush2.msra.mxu0 0.0
  %6449 = vmatprep.subr.mxu0 0.0
  %6450 = vmatpush2.msra.mxu0 0.0
  %6451 = vmatprep.subr.mxu0 0.0
  %6452 = vmatpush2.msra.mxu0 0.0
  %6453 = vmatprep.subr.mxu0 0.0
  %6454 = vmatpush2.msra.mxu0 0.0
  %6455 = vmatprep.subr.mxu0 0.0
  %6456 = vmatpush2.msra.mxu0 0.0
  %6457 = vmatprep.subr.mxu0 0.0
  %6458 = vmatpush2.msra.mxu0 0.0
  %6459 = vmatprep.subr.mxu0 0.0
  %6460 = vmatpush2.msra.mxu0 0.0
  %6461 = vmatprep.subr.mxu0 0.0
  %6462 = vmatpush2.msra.mxu0 0.0
  %6463 = vmatprep.subr.mxu0 0.0
  %6464 = vmatpush2.msra.mxu0 0.0
  %6465 = vmatprep.mubr.f32.mxu0 0.0
  %6466 = vmatmul.mubr.f32.gmra.mxu0 %v6328
  %v6467 = vpop.f32.mrf.mxu0
  %v6468 = vadd.f32 0.0, %v6467
  %v6469 = vpop.f32.mrf.mxu0
  %v6470 = vadd.f32 0.0, %v6469
  %6471 = vdwg.mxu0
  %6472 = vmatprep.subr.mxu0 0.0
  %6473 = vmatpush1.msra.mxu0 0.0
  %6474 = vmatprep.subr.mxu0 0.0
  %6475 = vmatpush1.msra.mxu0 0.0
  %6476 = vmatprep.subr.mxu0 0.0
  %6477 = vmatpush1.msra.mxu0 0.0
  %6478 = vmatprep.subr.mxu0 0.0
  %6479 = vmatpush1.msra.mxu0 0.0
  %6480 = vmatprep.subr.mxu0 0.0
  %6481 = vmatpush1.msra.mxu0 0.0
  %6482 = vmatprep.subr.mxu0 0.0
  %6483 = vmatpush1.msra.mxu0 0.0
  %6484 = vmatprep.subr.mxu0 0.0
  %6485 = vmatpush1.msra.mxu0 0.0
  %6486 = vmatprep.subr.mxu0 0.0
  %6487 = vmatpush1.msra.mxu0 0.0
  %6488 = vmatprep.subr.mxu0 0.0
  %6489 = vmatpush1.msra.mxu0 0.0
  %6490 = vmatprep.subr.mxu0 0.0
  %6491 = vmatpush1.msra.mxu0 0.0
  %6492 = vmatprep.subr.mxu0 0.0
  %6493 = vmatpush1.msra.mxu0 0.0
  %6494 = vmatprep.subr.mxu0 0.0
  %6495 = vmatpush1.msra.mxu0 0.0
  %6496 = vmatprep.subr.mxu0 0.0
  %6497 = vmatpush1.msra.mxu0 0.0
  %6498 = vmatprep.subr.mxu0 0.0
  %6499 = vmatpush1.msra.mxu0 0.0
  %6500 = vmatprep.subr.mxu0 0.0
  %6501 = vmatpush1.msra.mxu0 0.0
  %6502 = vmatprep.subr.mxu0 %v6314
  %6503 = vmatpush1.msra.mxu0 %v6313
  %6504 = vmatprep.subr.mxu0 0.0
  %6505 = vmatpush2.msra.mxu0 0.0
  %6506 = vmatprep.subr.mxu0 0.0
  %6507 = vmatpush2.msra.mxu0 0.0
  %6508 = vmatprep.subr.mxu0 0.0
  %6509 = vmatpush2.msra.mxu0 0.0
  %6510 = vmatprep.subr.mxu0 0.0
  %6511 = vmatpush2.msra.mxu0 0.0
  %6512 = vmatprep.subr.mxu0 0.0
  %6513 = vmatpush2.msra.mxu0 0.0
  %6514 = vmatprep.subr.mxu0 0.0
  %6515 = vmatpush2.msra.mxu0 0.0
  %6516 = vmatprep.subr.mxu0 0.0
  %6517 = vmatpush2.msra.mxu0 0.0
  %6518 = vmatprep.subr.mxu0 0.0
  %6519 = vmatpush2.msra.mxu0 0.0
  %6520 = vmatprep.subr.mxu0 0.0
  %6521 = vmatpush2.msra.mxu0 0.0
  %6522 = vmatprep.subr.mxu0 0.0
  %6523 = vmatpush2.msra.mxu0 0.0
  %6524 = vmatprep.subr.mxu0 0.0
  %6525 = vmatpush2.msra.mxu0 0.0
  %6526 = vmatprep.subr.mxu0 0.0
  %6527 = vmatpush2.msra.mxu0 0.0
  %6528 = vmatprep.subr.mxu0 0.0
  %6529 = vmatpush2.msra.mxu0 0.0
  %6530 = vmatprep.subr.mxu0 0.0
  %6531 = vmatpush2.msra.mxu0 0.0
  %6532 = vmatprep.subr.mxu0 0.0
  %6533 = vmatpush2.msra.mxu0 0.0
  %6534 = vmatprep.subr.mxu0 0.0
  %6535 = vmatpush2.msra.mxu0 0.0
  %6536 = vmatprep.mubr.f32.mxu0 0.0
  %6537 = vmatmul.mubr.f32.gmra.mxu0 %v6328
  %v6538 = vpop.f32.mrf.mxu0
  %v6539 = vadd.f32 0.0, %v6538
  %v6540 = vpop.f32.mrf.mxu0
  %v6541 = vadd.f32 0.0, %v6540
  %6542 = vdwg.mxu0
  %6543 = vmatprep.subr.mxu0 0.0
  %6544 = vmatpush1.msra.mxu0 0.0
  %6545 = vmatprep.subr.mxu0 0.0
  %6546 = vmatpush1.msra.mxu0 0.0
  %6547 = vmatprep.subr.mxu0 0.0
  %6548 = vmatpush1.msra.mxu0 0.0
  %6549 = vmatprep.subr.mxu0 0.0
  %6550 = vmatpush1.msra.mxu0 0.0
  %6551 = vmatprep.subr.mxu0 0.0
  %6552 = vmatpush1.msra.mxu0 0.0
  %6553 = vmatprep.subr.mxu0 0.0
  %6554 = vmatpush1.msra.mxu0 0.0
  %6555 = vmatprep.subr.mxu0 0.0
  %6556 = vmatpush1.msra.mxu0 0.0
  %6557 = vmatprep.subr.mxu0 0.0
  %6558 = vmatpush1.msra.mxu0 0.0
  %6559 = vmatprep.subr.mxu0 0.0
  %6560 = vmatpush1.msra.mxu0 0.0
  %6561 = vmatprep.subr.mxu0 0.0
  %6562 = vmatpush1.msra.mxu0 0.0
  %6563 = vmatprep.subr.mxu0 0.0
  %6564 = vmatpush1.msra.mxu0 0.0
  %6565 = vmatprep.subr.mxu0 0.0
  %6566 = vmatpush1.msra.mxu0 0.0
  %6567 = vmatprep.subr.mxu0 0.0
  %6568 = vmatpush1.msra.mxu0 0.0
  %6569 = vmatprep.subr.mxu0 0.0
  %6570 = vmatpush1.msra.mxu0 0.0
  %6571 = vmatprep.subr.mxu0 0.0
  %6572 = vmatpush1.msra.mxu0 0.0
  %6573 = vmatprep.subr.mxu0 %v6316
  %6574 = vmatpush1.msra.mxu0 %v6315
  %6575 = vmatprep.subr.mxu0 0.0
  %6576 = vmatpush2.msra.mxu0 0.0
  %6577 = vmatprep.subr.mxu0 0.0
  %6578 = vmatpush2.msra.mxu0 0.0
  %6579 = vmatprep.subr.mxu0 0.0
  %6580 = vmatpush2.msra.mxu0 0.0
  %6581 = vmatprep.subr.mxu0 0.0
  %6582 = vmatpush2.msra.mxu0 0.0
  %6583 = vmatprep.subr.mxu0 0.0
  %6584 = vmatpush2.msra.mxu0 0.0
  %6585 = vmatprep.subr.mxu0 0.0
  %6586 = vmatpush2.msra.mxu0 0.0
  %6587 = vmatprep.subr.mxu0 0.0
  %6588 = vmatpush2.msra.mxu0 0.0
  %6589 = vmatprep.subr.mxu0 0.0
  %6590 = vmatpush2.msra.mxu0 0.0
  %6591 = vmatprep.subr.mxu0 0.0
  %6592 = vmatpush2.msra.mxu0 0.0
  %6593 = vmatprep.subr.mxu0 0.0
  %6594 = vmatpush2.msra.mxu0 0.0
  %6595 = vmatprep.subr.mxu0 0.0
  %6596 = vmatpush2.msra.mxu0 0.0
  %6597 = vmatprep.subr.mxu0 0.0
  %6598 = vmatpush2.msra.mxu0 0.0
  %6599 = vmatprep.subr.mxu0 0.0
  %6600 = vmatpush2.msra.mxu0 0.0
  %6601 = vmatprep.subr.mxu0 0.0
  %6602 = vmatpush2.msra.mxu0 0.0
  %6603 = vmatprep.subr.mxu0 0.0
  %6604 = vmatpush2.msra.mxu0 0.0
  %6605 = vmatprep.subr.mxu0 0.0
  %6606 = vmatpush2.msra.mxu0 0.0
  %6607 = vmatprep.mubr.f32.mxu0 0.0
  %6608 = vmatmul.mubr.f32.gmra.mxu0 %v6328
  %v6609 = vpop.f32.mrf.mxu0
  %v6610 = vadd.f32 0.0, %v6609
  %v6611 = vpop.f32.mrf.mxu0
  %v6612 = vadd.f32 0.0, %v6611
  %6613 = vdwg.mxu0
  %6614 = vmatprep.subr.mxu0 0.0
  %6615 = vmatpush1.msra.mxu0 0.0
  %6616 = vmatprep.subr.mxu0 0.0
  %6617 = vmatpush1.msra.mxu0 0.0
  %6618 = vmatprep.subr.mxu0 0.0
  %6619 = vmatpush1.msra.mxu0 0.0
  %6620 = vmatprep.subr.mxu0 0.0
  %6621 = vmatpush1.msra.mxu0 0.0
  %6622 = vmatprep.subr.mxu0 0.0
  %6623 = vmatpush1.msra.mxu0 0.0
  %6624 = vmatprep.subr.mxu0 0.0
  %6625 = vmatpush1.msra.mxu0 0.0
  %6626 = vmatprep.subr.mxu0 0.0
  %6627 = vmatpush1.msra.mxu0 0.0
  %6628 = vmatprep.subr.mxu0 0.0
  %6629 = vmatpush1.msra.mxu0 0.0
  %6630 = vmatprep.subr.mxu0 0.0
  %6631 = vmatpush1.msra.mxu0 0.0
  %6632 = vmatprep.subr.mxu0 0.0
  %6633 = vmatpush1.msra.mxu0 0.0
  %6634 = vmatprep.subr.mxu0 0.0
  %6635 = vmatpush1.msra.mxu0 0.0
  %6636 = vmatprep.subr.mxu0 0.0
  %6637 = vmatpush1.msra.mxu0 0.0
  %6638 = vmatprep.subr.mxu0 0.0
  %6639 = vmatpush1.msra.mxu0 0.0
  %6640 = vmatprep.subr.mxu0 0.0
  %6641 = vmatpush1.msra.mxu0 0.0
  %6642 = vmatprep.subr.mxu0 0.0
  %6643 = vmatpush1.msra.mxu0 0.0
  %6644 = vmatprep.subr.mxu0 0.0
  %6645 = vmatpush1.msra.mxu0 %v6317
  %6646 = vmatprep.subr.mxu0 0.0
  %6647 = vmatpush2.msra.mxu0 0.0
  %6648 = vmatprep.subr.mxu0 0.0
  %6649 = vmatpush2.msra.mxu0 0.0
  %6650 = vmatprep.subr.mxu0 0.0
  %6651 = vmatpush2.msra.mxu0 0.0
  %6652 = vmatprep.subr.mxu0 0.0
  %6653 = vmatpush2.msra.mxu0 0.0
  %6654 = vmatprep.subr.mxu0 0.0
  %6655 = vmatpush2.msra.mxu0 0.0
  %6656 = vmatprep.subr.mxu0 0.0
  %6657 = vmatpush2.msra.mxu0 0.0
  %6658 = vmatprep.subr.mxu0 0.0
  %6659 = vmatpush2.msra.mxu0 0.0
  %6660 = vmatprep.subr.mxu0 0.0
  %6661 = vmatpush2.msra.mxu0 0.0
  %6662 = vmatprep.subr.mxu0 0.0
  %6663 = vmatpush2.msra.mxu0 0.0
  %6664 = vmatprep.subr.mxu0 0.0
  %6665 = vmatpush2.msra.mxu0 0.0
  %6666 = vmatprep.subr.mxu0 0.0
  %6667 = vmatpush2.msra.mxu0 0.0
  %6668 = vmatprep.subr.mxu0 0.0
  %6669 = vmatpush2.msra.mxu0 0.0
  %6670 = vmatprep.subr.mxu0 0.0
  %6671 = vmatpush2.msra.mxu0 0.0
  %6672 = vmatprep.subr.mxu0 0.0
  %6673 = vmatpush2.msra.mxu0 0.0
  %6674 = vmatprep.subr.mxu0 0.0
  %6675 = vmatpush2.msra.mxu0 0.0
  %6676 = vmatprep.subr.mxu0 0.0
  %6677 = vmatpush2.msra.mxu0 0.0
  %6678 = vmatprep.mubr.f32.mxu0 0.0
  %6679 = vmatmul.mubr.f32.gmra.mxu0 %v6328
  %v6680 = vpop.f32.mrf.mxu0
  %v6681 = vadd.f32 0.0, %v6680
  %v6682 = vpop.f32.mrf.mxu0
  %6683 = vdwg.mxu0
  %v6684 = vadd.f32 %v6278, %v6397
  %v6685 = vadd.f32 %v6279, %v6399
  %v6686 = vadd.f32 %v6280, %v6468
  %v6687 = vadd.f32 %v6281, %v6470
  %v6688 = vadd.f32 %v6282, %v6539
  %v6689 = vadd.f32 %v6283, %v6541
  %v6690 = vadd.f32 %v6284, %v6610
  %v6691 = vadd.f32 %v6285, %v6612
  %v6692 = vadd.f32 %v6286, %v6681
  %s6693 = scalar_lea.vmem %s6, 56
  %v6694 = vld [vmem:[%s6693] sm:$0xff]
  %6695 = vrot.lane.b32.xlu0 %v5863, 96
  %v6696 = vpop.permute.xlu0 %6695
  %6697 = vrot.lane.b32.xlu0 %v5864, 96
  %v6698 = vpop.permute.xlu0 %6697
  %6699 = vrot.lane.b32.xlu0 %v5865, 96
  %v6700 = vpop.permute.xlu0 %6699
  %6701 = vrot.lane.b32.xlu0 %v5866, 96
  %v6702 = vpop.permute.xlu0 %6701
  %6703 = vrot.lane.b32.xlu0 %v5867, 96
  %v6704 = vpop.permute.xlu0 %6703
  %6705 = vrot.lane.b32.xlu0 %v5868, 96
  %v6706 = vpop.permute.xlu0 %6705
  %6707 = vrot.lane.b32.xlu0 %v5869, 96
  %v6708 = vpop.permute.xlu0 %6707
  %6709 = vrot.lane.b32.xlu0 %v5870, 96
  %v6710 = vpop.permute.xlu0 %6709
  %6711 = vrot.lane.b32.xlu0 %v5871, 96
  %v6712 = vpop.permute.xlu0 %6711
  %6713 = vrot.lane.b32.xlu0 %v5872, 96
  %v6714 = vpop.permute.xlu0 %6713
  %v6715 = vsel %vm2898, %v6696, %v6698
  %v6716 = vsel %vm2898, %v6698, %v6700
  %v6717 = vsel %vm2898, %v6700, %v6702
  %v6718 = vsel %vm2898, %v6702, %v6704
  %v6719 = vsel %vm2898, %v6704, %v6706
  %v6720 = vsel %vm2898, %v6706, %v6708
  %v6721 = vsel %vm2898, %v6708, %v6710
  %v6722 = vsel %vm2898, %v6710, %v6712
  %v6723 = vsel %vm2898, %v6712, %v6714
  %v6734 = vsel %vm106, %v6694, 0
  %6736 = vmatprep.subr.mxu0 0.0
  %6737 = vmatpush1.msra.mxu0 0.0
  %6738 = vmatprep.subr.mxu0 0.0
  %6739 = vmatpush1.msra.mxu0 0.0
  %6740 = vmatprep.subr.mxu0 0.0
  %6741 = vmatpush1.msra.mxu0 0.0
  %6742 = vmatprep.subr.mxu0 0.0
  %6743 = vmatpush1.msra.mxu0 0.0
  %6744 = vmatprep.subr.mxu0 0.0
  %6745 = vmatpush1.msra.mxu0 0.0
  %6746 = vmatprep.subr.mxu0 0.0
  %6747 = vmatpush1.msra.mxu0 0.0
  %6748 = vmatprep.subr.mxu0 0.0
  %6749 = vmatpush1.msra.mxu0 0.0
  %6750 = vmatprep.subr.mxu0 0.0
  %6751 = vmatpush1.msra.mxu0 0.0
  %6752 = vmatprep.subr.mxu0 0.0
  %6753 = vmatpush1.msra.mxu0 0.0
  %6754 = vmatprep.subr.mxu0 0.0
  %6755 = vmatpush1.msra.mxu0 0.0
  %6756 = vmatprep.subr.mxu0 0.0
  %6757 = vmatpush1.msra.mxu0 0.0
  %6758 = vmatprep.subr.mxu0 0.0
  %6759 = vmatpush1.msra.mxu0 0.0
  %6760 = vmatprep.subr.mxu0 0.0
  %6761 = vmatpush1.msra.mxu0 0.0
  %6762 = vmatprep.subr.mxu0 0.0
  %6763 = vmatpush1.msra.mxu0 0.0
  %6764 = vmatprep.subr.mxu0 0.0
  %6765 = vmatpush1.msra.mxu0 0.0
  %6766 = vmatprep.subr.mxu0 %v6716
  %6767 = vmatpush1.msra.mxu0 %v6715
  %6768 = vmatprep.subr.mxu0 0.0
  %6769 = vmatpush2.msra.mxu0 0.0
  %6770 = vmatprep.subr.mxu0 0.0
  %6771 = vmatpush2.msra.mxu0 0.0
  %6772 = vmatprep.subr.mxu0 0.0
  %6773 = vmatpush2.msra.mxu0 0.0
  %6774 = vmatprep.subr.mxu0 0.0
  %6775 = vmatpush2.msra.mxu0 0.0
  %6776 = vmatprep.subr.mxu0 0.0
  %6777 = vmatpush2.msra.mxu0 0.0
  %6778 = vmatprep.subr.mxu0 0.0
  %6779 = vmatpush2.msra.mxu0 0.0
  %6780 = vmatprep.subr.mxu0 0.0
  %6781 = vmatpush2.msra.mxu0 0.0
  %6782 = vmatprep.subr.mxu0 0.0
  %6783 = vmatpush2.msra.mxu0 0.0
  %6784 = vmatprep.subr.mxu0 0.0
  %6785 = vmatpush2.msra.mxu0 0.0
  %6786 = vmatprep.subr.mxu0 0.0
  %6787 = vmatpush2.msra.mxu0 0.0
  %6788 = vmatprep.subr.mxu0 0.0
  %6789 = vmatpush2.msra.mxu0 0.0
  %6790 = vmatprep.subr.mxu0 0.0
  %6791 = vmatpush2.msra.mxu0 0.0
  %6792 = vmatprep.subr.mxu0 0.0
  %6793 = vmatpush2.msra.mxu0 0.0
  %6794 = vmatprep.subr.mxu0 0.0
  %6795 = vmatpush2.msra.mxu0 0.0
  %6796 = vmatprep.subr.mxu0 0.0
  %6797 = vmatpush2.msra.mxu0 0.0
  %6798 = vmatprep.subr.mxu0 0.0
  %6799 = vmatpush2.msra.mxu0 0.0
  %6800 = vmatprep.mubr.f32.mxu0 0.0
  %6801 = vmatmul.mubr.f32.gmra.mxu0 %v6734
  %v6802 = vpop.f32.mrf.mxu0
  %v6803 = vadd.f32 0.0, %v6802
  %v6804 = vpop.f32.mrf.mxu0
  %v6805 = vadd.f32 0.0, %v6804
  %6806 = vdwg.mxu0
  %6807 = vmatprep.subr.mxu0 0.0
  %6808 = vmatpush1.msra.mxu0 0.0
  %6809 = vmatprep.subr.mxu0 0.0
  %6810 = vmatpush1.msra.mxu0 0.0
  %6811 = vmatprep.subr.mxu0 0.0
  %6812 = vmatpush1.msra.mxu0 0.0
  %6813 = vmatprep.subr.mxu0 0.0
  %6814 = vmatpush1.msra.mxu0 0.0
  %6815 = vmatprep.subr.mxu0 0.0
  %6816 = vmatpush1.msra.mxu0 0.0
  %6817 = vmatprep.subr.mxu0 0.0
  %6818 = vmatpush1.msra.mxu0 0.0
  %6819 = vmatprep.subr.mxu0 0.0
  %6820 = vmatpush1.msra.mxu0 0.0
  %6821 = vmatprep.subr.mxu0 0.0
  %6822 = vmatpush1.msra.mxu0 0.0
  %6823 = vmatprep.subr.mxu0 0.0
  %6824 = vmatpush1.msra.mxu0 0.0
  %6825 = vmatprep.subr.mxu0 0.0
  %6826 = vmatpush1.msra.mxu0 0.0
  %6827 = vmatprep.subr.mxu0 0.0
  %6828 = vmatpush1.msra.mxu0 0.0
  %6829 = vmatprep.subr.mxu0 0.0
  %6830 = vmatpush1.msra.mxu0 0.0
  %6831 = vmatprep.subr.mxu0 0.0
  %6832 = vmatpush1.msra.mxu0 0.0
  %6833 = vmatprep.subr.mxu0 0.0
  %6834 = vmatpush1.msra.mxu0 0.0
  %6835 = vmatprep.subr.mxu0 0.0
  %6836 = vmatpush1.msra.mxu0 0.0
  %6837 = vmatprep.subr.mxu0 %v6718
  %6838 = vmatpush1.msra.mxu0 %v6717
  %6839 = vmatprep.subr.mxu0 0.0
  %6840 = vmatpush2.msra.mxu0 0.0
  %6841 = vmatprep.subr.mxu0 0.0
  %6842 = vmatpush2.msra.mxu0 0.0
  %6843 = vmatprep.subr.mxu0 0.0
  %6844 = vmatpush2.msra.mxu0 0.0
  %6845 = vmatprep.subr.mxu0 0.0
  %6846 = vmatpush2.msra.mxu0 0.0
  %6847 = vmatprep.subr.mxu0 0.0
  %6848 = vmatpush2.msra.mxu0 0.0
  %6849 = vmatprep.subr.mxu0 0.0
  %6850 = vmatpush2.msra.mxu0 0.0
  %6851 = vmatprep.subr.mxu0 0.0
  %6852 = vmatpush2.msra.mxu0 0.0
  %6853 = vmatprep.subr.mxu0 0.0
  %6854 = vmatpush2.msra.mxu0 0.0
  %6855 = vmatprep.subr.mxu0 0.0
  %6856 = vmatpush2.msra.mxu0 0.0
  %6857 = vmatprep.subr.mxu0 0.0
  %6858 = vmatpush2.msra.mxu0 0.0
  %6859 = vmatprep.subr.mxu0 0.0
  %6860 = vmatpush2.msra.mxu0 0.0
  %6861 = vmatprep.subr.mxu0 0.0
  %6862 = vmatpush2.msra.mxu0 0.0
  %6863 = vmatprep.subr.mxu0 0.0
  %6864 = vmatpush2.msra.mxu0 0.0
  %6865 = vmatprep.subr.mxu0 0.0
  %6866 = vmatpush2.msra.mxu0 0.0
  %6867 = vmatprep.subr.mxu0 0.0
  %6868 = vmatpush2.msra.mxu0 0.0
  %6869 = vmatprep.subr.mxu0 0.0
  %6870 = vmatpush2.msra.mxu0 0.0
  %6871 = vmatprep.mubr.f32.mxu0 0.0
  %6872 = vmatmul.mubr.f32.gmra.mxu0 %v6734
  %v6873 = vpop.f32.mrf.mxu0
  %v6874 = vadd.f32 0.0, %v6873
  %v6875 = vpop.f32.mrf.mxu0
  %v6876 = vadd.f32 0.0, %v6875
  %6877 = vdwg.mxu0
  %6878 = vmatprep.subr.mxu0 0.0
  %6879 = vmatpush1.msra.mxu0 0.0
  %6880 = vmatprep.subr.mxu0 0.0
  %6881 = vmatpush1.msra.mxu0 0.0
  %6882 = vmatprep.subr.mxu0 0.0
  %6883 = vmatpush1.msra.mxu0 0.0
  %6884 = vmatprep.subr.mxu0 0.0
  %6885 = vmatpush1.msra.mxu0 0.0
  %6886 = vmatprep.subr.mxu0 0.0
  %6887 = vmatpush1.msra.mxu0 0.0
  %6888 = vmatprep.subr.mxu0 0.0
  %6889 = vmatpush1.msra.mxu0 0.0
  %6890 = vmatprep.subr.mxu0 0.0
  %6891 = vmatpush1.msra.mxu0 0.0
  %6892 = vmatprep.subr.mxu0 0.0
  %6893 = vmatpush1.msra.mxu0 0.0
  %6894 = vmatprep.subr.mxu0 0.0
  %6895 = vmatpush1.msra.mxu0 0.0
  %6896 = vmatprep.subr.mxu0 0.0
  %6897 = vmatpush1.msra.mxu0 0.0
  %6898 = vmatprep.subr.mxu0 0.0
  %6899 = vmatpush1.msra.mxu0 0.0
  %6900 = vmatprep.subr.mxu0 0.0
  %6901 = vmatpush1.msra.mxu0 0.0
  %6902 = vmatprep.subr.mxu0 0.0
  %6903 = vmatpush1.msra.mxu0 0.0
  %6904 = vmatprep.subr.mxu0 0.0
  %6905 = vmatpush1.msra.mxu0 0.0
  %6906 = vmatprep.subr.mxu0 0.0
  %6907 = vmatpush1.msra.mxu0 0.0
  %6908 = vmatprep.subr.mxu0 %v6720
  %6909 = vmatpush1.msra.mxu0 %v6719
  %6910 = vmatprep.subr.mxu0 0.0
  %6911 = vmatpush2.msra.mxu0 0.0
  %6912 = vmatprep.subr.mxu0 0.0
  %6913 = vmatpush2.msra.mxu0 0.0
  %6914 = vmatprep.subr.mxu0 0.0
  %6915 = vmatpush2.msra.mxu0 0.0
  %6916 = vmatprep.subr.mxu0 0.0
  %6917 = vmatpush2.msra.mxu0 0.0
  %6918 = vmatprep.subr.mxu0 0.0
  %6919 = vmatpush2.msra.mxu0 0.0
  %6920 = vmatprep.subr.mxu0 0.0
  %6921 = vmatpush2.msra.mxu0 0.0
  %6922 = vmatprep.subr.mxu0 0.0
  %6923 = vmatpush2.msra.mxu0 0.0
  %6924 = vmatprep.subr.mxu0 0.0
  %6925 = vmatpush2.msra.mxu0 0.0
  %6926 = vmatprep.subr.mxu0 0.0
  %6927 = vmatpush2.msra.mxu0 0.0
  %6928 = vmatprep.subr.mxu0 0.0
  %6929 = vmatpush2.msra.mxu0 0.0
  %6930 = vmatprep.subr.mxu0 0.0
  %6931 = vmatpush2.msra.mxu0 0.0
  %6932 = vmatprep.subr.mxu0 0.0
  %6933 = vmatpush2.msra.mxu0 0.0
  %6934 = vmatprep.subr.mxu0 0.0
  %6935 = vmatpush2.msra.mxu0 0.0
  %6936 = vmatprep.subr.mxu0 0.0
  %6937 = vmatpush2.msra.mxu0 0.0
  %6938 = vmatprep.subr.mxu0 0.0
  %6939 = vmatpush2.msra.mxu0 0.0
  %6940 = vmatprep.subr.mxu0 0.0
  %6941 = vmatpush2.msra.mxu0 0.0
  %6942 = vmatprep.mubr.f32.mxu0 0.0
  %6943 = vmatmul.mubr.f32.gmra.mxu0 %v6734
  %v6944 = vpop.f32.mrf.mxu0
  %v6945 = vadd.f32 0.0, %v6944
  %v6946 = vpop.f32.mrf.mxu0
  %v6947 = vadd.f32 0.0, %v6946
  %6948 = vdwg.mxu0
  %6949 = vmatprep.subr.mxu0 0.0
  %6950 = vmatpush1.msra.mxu0 0.0
  %6951 = vmatprep.subr.mxu0 0.0
  %6952 = vmatpush1.msra.mxu0 0.0
  %6953 = vmatprep.subr.mxu0 0.0
  %6954 = vmatpush1.msra.mxu0 0.0
  %6955 = vmatprep.subr.mxu0 0.0
  %6956 = vmatpush1.msra.mxu0 0.0
  %6957 = vmatprep.subr.mxu0 0.0
  %6958 = vmatpush1.msra.mxu0 0.0
  %6959 = vmatprep.subr.mxu0 0.0
  %6960 = vmatpush1.msra.mxu0 0.0
  %6961 = vmatprep.subr.mxu0 0.0
  %6962 = vmatpush1.msra.mxu0 0.0
  %6963 = vmatprep.subr.mxu0 0.0
  %6964 = vmatpush1.msra.mxu0 0.0
  %6965 = vmatprep.subr.mxu0 0.0
  %6966 = vmatpush1.msra.mxu0 0.0
  %6967 = vmatprep.subr.mxu0 0.0
  %6968 = vmatpush1.msra.mxu0 0.0
  %6969 = vmatprep.subr.mxu0 0.0
  %6970 = vmatpush1.msra.mxu0 0.0
  %6971 = vmatprep.subr.mxu0 0.0
  %6972 = vmatpush1.msra.mxu0 0.0
  %6973 = vmatprep.subr.mxu0 0.0
  %6974 = vmatpush1.msra.mxu0 0.0
  %6975 = vmatprep.subr.mxu0 0.0
  %6976 = vmatpush1.msra.mxu0 0.0
  %6977 = vmatprep.subr.mxu0 0.0
  %6978 = vmatpush1.msra.mxu0 0.0
  %6979 = vmatprep.subr.mxu0 %v6722
  %6980 = vmatpush1.msra.mxu0 %v6721
  %6981 = vmatprep.subr.mxu0 0.0
  %6982 = vmatpush2.msra.mxu0 0.0
  %6983 = vmatprep.subr.mxu0 0.0
  %6984 = vmatpush2.msra.mxu0 0.0
  %6985 = vmatprep.subr.mxu0 0.0
  %6986 = vmatpush2.msra.mxu0 0.0
  %6987 = vmatprep.subr.mxu0 0.0
  %6988 = vmatpush2.msra.mxu0 0.0
  %6989 = vmatprep.subr.mxu0 0.0
  %6990 = vmatpush2.msra.mxu0 0.0
  %6991 = vmatprep.subr.mxu0 0.0
  %6992 = vmatpush2.msra.mxu0 0.0
  %6993 = vmatprep.subr.mxu0 0.0
  %6994 = vmatpush2.msra.mxu0 0.0
  %6995 = vmatprep.subr.mxu0 0.0
  %6996 = vmatpush2.msra.mxu0 0.0
  %6997 = vmatprep.subr.mxu0 0.0
  %6998 = vmatpush2.msra.mxu0 0.0
  %6999 = vmatprep.subr.mxu0 0.0
  %7000 = vmatpush2.msra.mxu0 0.0
  %7001 = vmatprep.subr.mxu0 0.0
  %7002 = vmatpush2.msra.mxu0 0.0
  %7003 = vmatprep.subr.mxu0 0.0
  %7004 = vmatpush2.msra.mxu0 0.0
  %7005 = vmatprep.subr.mxu0 0.0
  %7006 = vmatpush2.msra.mxu0 0.0
  %7007 = vmatprep.subr.mxu0 0.0
  %7008 = vmatpush2.msra.mxu0 0.0
  %7009 = vmatprep.subr.mxu0 0.0
  %7010 = vmatpush2.msra.mxu0 0.0
  %7011 = vmatprep.subr.mxu0 0.0
  %7012 = vmatpush2.msra.mxu0 0.0
  %7013 = vmatprep.mubr.f32.mxu0 0.0
  %7014 = vmatmul.mubr.f32.gmra.mxu0 %v6734
  %v7015 = vpop.f32.mrf.mxu0
  %v7016 = vadd.f32 0.0, %v7015
  %v7017 = vpop.f32.mrf.mxu0
  %v7018 = vadd.f32 0.0, %v7017
  %7019 = vdwg.mxu0
  %7020 = vmatprep.subr.mxu0 0.0
  %7021 = vmatpush1.msra.mxu0 0.0
  %7022 = vmatprep.subr.mxu0 0.0
  %7023 = vmatpush1.msra.mxu0 0.0
  %7024 = vmatprep.subr.mxu0 0.0
  %7025 = vmatpush1.msra.mxu0 0.0
  %7026 = vmatprep.subr.mxu0 0.0
  %7027 = vmatpush1.msra.mxu0 0.0
  %7028 = vmatprep.subr.mxu0 0.0
  %7029 = vmatpush1.msra.mxu0 0.0
  %7030 = vmatprep.subr.mxu0 0.0
  %7031 = vmatpush1.msra.mxu0 0.0
  %7032 = vmatprep.subr.mxu0 0.0
  %7033 = vmatpush1.msra.mxu0 0.0
  %7034 = vmatprep.subr.mxu0 0.0
  %7035 = vmatpush1.msra.mxu0 0.0
  %7036 = vmatprep.subr.mxu0 0.0
  %7037 = vmatpush1.msra.mxu0 0.0
  %7038 = vmatprep.subr.mxu0 0.0
  %7039 = vmatpush1.msra.mxu0 0.0
  %7040 = vmatprep.subr.mxu0 0.0
  %7041 = vmatpush1.msra.mxu0 0.0
  %7042 = vmatprep.subr.mxu0 0.0
  %7043 = vmatpush1.msra.mxu0 0.0
  %7044 = vmatprep.subr.mxu0 0.0
  %7045 = vmatpush1.msra.mxu0 0.0
  %7046 = vmatprep.subr.mxu0 0.0
  %7047 = vmatpush1.msra.mxu0 0.0
  %7048 = vmatprep.subr.mxu0 0.0
  %7049 = vmatpush1.msra.mxu0 0.0
  %7050 = vmatprep.subr.mxu0 0.0
  %7051 = vmatpush1.msra.mxu0 %v6723
  %7052 = vmatprep.subr.mxu0 0.0
  %7053 = vmatpush2.msra.mxu0 0.0
  %7054 = vmatprep.subr.mxu0 0.0
  %7055 = vmatpush2.msra.mxu0 0.0
  %7056 = vmatprep.subr.mxu0 0.0
  %7057 = vmatpush2.msra.mxu0 0.0
  %7058 = vmatprep.subr.mxu0 0.0
  %7059 = vmatpush2.msra.mxu0 0.0
  %7060 = vmatprep.subr.mxu0 0.0
  %7061 = vmatpush2.msra.mxu0 0.0
  %7062 = vmatprep.subr.mxu0 0.0
  %7063 = vmatpush2.msra.mxu0 0.0
  %7064 = vmatprep.subr.mxu0 0.0
  %7065 = vmatpush2.msra.mxu0 0.0
  %7066 = vmatprep.subr.mxu0 0.0
  %7067 = vmatpush2.msra.mxu0 0.0
  %7068 = vmatprep.subr.mxu0 0.0
  %7069 = vmatpush2.msra.mxu0 0.0
  %7070 = vmatprep.subr.mxu0 0.0
  %7071 = vmatpush2.msra.mxu0 0.0
  %7072 = vmatprep.subr.mxu0 0.0
  %7073 = vmatpush2.msra.mxu0 0.0
  %7074 = vmatprep.subr.mxu0 0.0
  %7075 = vmatpush2.msra.mxu0 0.0
  %7076 = vmatprep.subr.mxu0 0.0
  %7077 = vmatpush2.msra.mxu0 0.0
  %7078 = vmatprep.subr.mxu0 0.0
  %7079 = vmatpush2.msra.mxu0 0.0
  %7080 = vmatprep.subr.mxu0 0.0
  %7081 = vmatpush2.msra.mxu0 0.0
  %7082 = vmatprep.subr.mxu0 0.0
  %7083 = vmatpush2.msra.mxu0 0.0
  %7084 = vmatprep.mubr.f32.mxu0 0.0
  %7085 = vmatmul.mubr.f32.gmra.mxu0 %v6734
  %v7086 = vpop.f32.mrf.mxu0
  %v7087 = vadd.f32 0.0, %v7086
  %v7088 = vpop.f32.mrf.mxu0
  %7089 = vdwg.mxu0
  %v7090 = vadd.f32 %v6684, %v6803
  %v7091 = vadd.f32 %v6685, %v6805
  %v7092 = vadd.f32 %v6686, %v6874
  %v7093 = vadd.f32 %v6687, %v6876
  %v7094 = vadd.f32 %v6688, %v6945
  %v7095 = vadd.f32 %v6689, %v6947
  %v7096 = vadd.f32 %v6690, %v7016
  %v7097 = vadd.f32 %v6691, %v7018
  %v7098 = vadd.f32 %v6692, %v7087
  %s7099 = scalar_lea.vmem %s6, 64
  %v7100 = vld [vmem:[%s7099] sm:$0xff]
  %7101 = vrot.lane.b32.xlu0 %v5863, 95
  %v7102 = vpop.permute.xlu0 %7101
  %7103 = vrot.lane.b32.xlu0 %v5864, 95
  %v7104 = vpop.permute.xlu0 %7103
  %7105 = vrot.lane.b32.xlu0 %v5865, 95
  %v7106 = vpop.permute.xlu0 %7105
  %7107 = vrot.lane.b32.xlu0 %v5866, 95
  %v7108 = vpop.permute.xlu0 %7107
  %7109 = vrot.lane.b32.xlu0 %v5867, 95
  %v7110 = vpop.permute.xlu0 %7109
  %7111 = vrot.lane.b32.xlu0 %v5868, 95
  %v7112 = vpop.permute.xlu0 %7111
  %7113 = vrot.lane.b32.xlu0 %v5869, 95
  %v7114 = vpop.permute.xlu0 %7113
  %7115 = vrot.lane.b32.xlu0 %v5870, 95
  %v7116 = vpop.permute.xlu0 %7115
  %7117 = vrot.lane.b32.xlu0 %v5871, 95
  %v7118 = vpop.permute.xlu0 %7117
  %7119 = vrot.lane.b32.xlu0 %v5872, 95
  %v7120 = vpop.permute.xlu0 %7119
  %v7121 = vsel %vm3305, %v7102, %v7104
  %v7122 = vsel %vm3305, %v7104, %v7106
  %v7123 = vsel %vm3305, %v7106, %v7108
  %v7124 = vsel %vm3305, %v7108, %v7110
  %v7125 = vsel %vm3305, %v7110, %v7112
  %v7126 = vsel %vm3305, %v7112, %v7114
  %v7127 = vsel %vm3305, %v7114, %v7116
  %v7128 = vsel %vm3305, %v7116, %v7118
  %v7129 = vsel %vm3305, %v7118, %v7120
  %v7140 = vsel %vm106, %v7100, 0
  %7142 = vmatprep.subr.mxu0 0.0
  %7143 = vmatpush1.msra.mxu0 0.0
  %7144 = vmatprep.subr.mxu0 0.0
  %7145 = vmatpush1.msra.mxu0 0.0
  %7146 = vmatprep.subr.mxu0 0.0
  %7147 = vmatpush1.msra.mxu0 0.0
  %7148 = vmatprep.subr.mxu0 0.0
  %7149 = vmatpush1.msra.mxu0 0.0
  %7150 = vmatprep.subr.mxu0 0.0
  %7151 = vmatpush1.msra.mxu0 0.0
  %7152 = vmatprep.subr.mxu0 0.0
  %7153 = vmatpush1.msra.mxu0 0.0
  %7154 = vmatprep.subr.mxu0 0.0
  %7155 = vmatpush1.msra.mxu0 0.0
  %7156 = vmatprep.subr.mxu0 0.0
  %7157 = vmatpush1.msra.mxu0 0.0
  %7158 = vmatprep.subr.mxu0 0.0
  %7159 = vmatpush1.msra.mxu0 0.0
  %7160 = vmatprep.subr.mxu0 0.0
  %7161 = vmatpush1.msra.mxu0 0.0
  %7162 = vmatprep.subr.mxu0 0.0
  %7163 = vmatpush1.msra.mxu0 0.0
  %7164 = vmatprep.subr.mxu0 0.0
  %7165 = vmatpush1.msra.mxu0 0.0
  %7166 = vmatprep.subr.mxu0 0.0
  %7167 = vmatpush1.msra.mxu0 0.0
  %7168 = vmatprep.subr.mxu0 0.0
  %7169 = vmatpush1.msra.mxu0 0.0
  %7170 = vmatprep.subr.mxu0 0.0
  %7171 = vmatpush1.msra.mxu0 0.0
  %7172 = vmatprep.subr.mxu0 %v7122
  %7173 = vmatpush1.msra.mxu0 %v7121
  %7174 = vmatprep.subr.mxu0 0.0
  %7175 = vmatpush2.msra.mxu0 0.0
  %7176 = vmatprep.subr.mxu0 0.0
  %7177 = vmatpush2.msra.mxu0 0.0
  %7178 = vmatprep.subr.mxu0 0.0
  %7179 = vmatpush2.msra.mxu0 0.0
  %7180 = vmatprep.subr.mxu0 0.0
  %7181 = vmatpush2.msra.mxu0 0.0
  %7182 = vmatprep.subr.mxu0 0.0
  %7183 = vmatpush2.msra.mxu0 0.0
  %7184 = vmatprep.subr.mxu0 0.0
  %7185 = vmatpush2.msra.mxu0 0.0
  %7186 = vmatprep.subr.mxu0 0.0
  %7187 = vmatpush2.msra.mxu0 0.0
  %7188 = vmatprep.subr.mxu0 0.0
  %7189 = vmatpush2.msra.mxu0 0.0
  %7190 = vmatprep.subr.mxu0 0.0
  %7191 = vmatpush2.msra.mxu0 0.0
  %7192 = vmatprep.subr.mxu0 0.0
  %7193 = vmatpush2.msra.mxu0 0.0
  %7194 = vmatprep.subr.mxu0 0.0
  %7195 = vmatpush2.msra.mxu0 0.0
  %7196 = vmatprep.subr.mxu0 0.0
  %7197 = vmatpush2.msra.mxu0 0.0
  %7198 = vmatprep.subr.mxu0 0.0
  %7199 = vmatpush2.msra.mxu0 0.0
  %7200 = vmatprep.subr.mxu0 0.0
  %7201 = vmatpush2.msra.mxu0 0.0
  %7202 = vmatprep.subr.mxu0 0.0
  %7203 = vmatpush2.msra.mxu0 0.0
  %7204 = vmatprep.subr.mxu0 0.0
  %7205 = vmatpush2.msra.mxu0 0.0
  %7206 = vmatprep.mubr.f32.mxu0 0.0
  %7207 = vmatmul.mubr.f32.gmra.mxu0 %v7140
  %v7208 = vpop.f32.mrf.mxu0
  %v7209 = vadd.f32 0.0, %v7208
  %v7210 = vpop.f32.mrf.mxu0
  %v7211 = vadd.f32 0.0, %v7210
  %7212 = vdwg.mxu0
  %7213 = vmatprep.subr.mxu0 0.0
  %7214 = vmatpush1.msra.mxu0 0.0
  %7215 = vmatprep.subr.mxu0 0.0
  %7216 = vmatpush1.msra.mxu0 0.0
  %7217 = vmatprep.subr.mxu0 0.0
  %7218 = vmatpush1.msra.mxu0 0.0
  %7219 = vmatprep.subr.mxu0 0.0
  %7220 = vmatpush1.msra.mxu0 0.0
  %7221 = vmatprep.subr.mxu0 0.0
  %7222 = vmatpush1.msra.mxu0 0.0
  %7223 = vmatprep.subr.mxu0 0.0
  %7224 = vmatpush1.msra.mxu0 0.0
  %7225 = vmatprep.subr.mxu0 0.0
  %7226 = vmatpush1.msra.mxu0 0.0
  %7227 = vmatprep.subr.mxu0 0.0
  %7228 = vmatpush1.msra.mxu0 0.0
  %7229 = vmatprep.subr.mxu0 0.0
  %7230 = vmatpush1.msra.mxu0 0.0
  %7231 = vmatprep.subr.mxu0 0.0
  %7232 = vmatpush1.msra.mxu0 0.0
  %7233 = vmatprep.subr.mxu0 0.0
  %7234 = vmatpush1.msra.mxu0 0.0
  %7235 = vmatprep.subr.mxu0 0.0
  %7236 = vmatpush1.msra.mxu0 0.0
  %7237 = vmatprep.subr.mxu0 0.0
  %7238 = vmatpush1.msra.mxu0 0.0
  %7239 = vmatprep.subr.mxu0 0.0
  %7240 = vmatpush1.msra.mxu0 0.0
  %7241 = vmatprep.subr.mxu0 0.0
  %7242 = vmatpush1.msra.mxu0 0.0
  %7243 = vmatprep.subr.mxu0 %v7124
  %7244 = vmatpush1.msra.mxu0 %v7123
  %7245 = vmatprep.subr.mxu0 0.0
  %7246 = vmatpush2.msra.mxu0 0.0
  %7247 = vmatprep.subr.mxu0 0.0
  %7248 = vmatpush2.msra.mxu0 0.0
  %7249 = vmatprep.subr.mxu0 0.0
  %7250 = vmatpush2.msra.mxu0 0.0
  %7251 = vmatprep.subr.mxu0 0.0
  %7252 = vmatpush2.msra.mxu0 0.0
  %7253 = vmatprep.subr.mxu0 0.0
  %7254 = vmatpush2.msra.mxu0 0.0
  %7255 = vmatprep.subr.mxu0 0.0
  %7256 = vmatpush2.msra.mxu0 0.0
  %7257 = vmatprep.subr.mxu0 0.0
  %7258 = vmatpush2.msra.mxu0 0.0
  %7259 = vmatprep.subr.mxu0 0.0
  %7260 = vmatpush2.msra.mxu0 0.0
  %7261 = vmatprep.subr.mxu0 0.0
  %7262 = vmatpush2.msra.mxu0 0.0
  %7263 = vmatprep.subr.mxu0 0.0
  %7264 = vmatpush2.msra.mxu0 0.0
  %7265 = vmatprep.subr.mxu0 0.0
  %7266 = vmatpush2.msra.mxu0 0.0
  %7267 = vmatprep.subr.mxu0 0.0
  %7268 = vmatpush2.msra.mxu0 0.0
  %7269 = vmatprep.subr.mxu0 0.0
  %7270 = vmatpush2.msra.mxu0 0.0
  %7271 = vmatprep.subr.mxu0 0.0
  %7272 = vmatpush2.msra.mxu0 0.0
  %7273 = vmatprep.subr.mxu0 0.0
  %7274 = vmatpush2.msra.mxu0 0.0
  %7275 = vmatprep.subr.mxu0 0.0
  %7276 = vmatpush2.msra.mxu0 0.0
  %7277 = vmatprep.mubr.f32.mxu0 0.0
  %7278 = vmatmul.mubr.f32.gmra.mxu0 %v7140
  %v7279 = vpop.f32.mrf.mxu0
  %v7280 = vadd.f32 0.0, %v7279
  %v7281 = vpop.f32.mrf.mxu0
  %v7282 = vadd.f32 0.0, %v7281
  %7283 = vdwg.mxu0
  %7284 = vmatprep.subr.mxu0 0.0
  %7285 = vmatpush1.msra.mxu0 0.0
  %7286 = vmatprep.subr.mxu0 0.0
  %7287 = vmatpush1.msra.mxu0 0.0
  %7288 = vmatprep.subr.mxu0 0.0
  %7289 = vmatpush1.msra.mxu0 0.0
  %7290 = vmatprep.subr.mxu0 0.0
  %7291 = vmatpush1.msra.mxu0 0.0
  %7292 = vmatprep.subr.mxu0 0.0
  %7293 = vmatpush1.msra.mxu0 0.0
  %7294 = vmatprep.subr.mxu0 0.0
  %7295 = vmatpush1.msra.mxu0 0.0
  %7296 = vmatprep.subr.mxu0 0.0
  %7297 = vmatpush1.msra.mxu0 0.0
  %7298 = vmatprep.subr.mxu0 0.0
  %7299 = vmatpush1.msra.mxu0 0.0
  %7300 = vmatprep.subr.mxu0 0.0
  %7301 = vmatpush1.msra.mxu0 0.0
  %7302 = vmatprep.subr.mxu0 0.0
  %7303 = vmatpush1.msra.mxu0 0.0
  %7304 = vmatprep.subr.mxu0 0.0
  %7305 = vmatpush1.msra.mxu0 0.0
  %7306 = vmatprep.subr.mxu0 0.0
  %7307 = vmatpush1.msra.mxu0 0.0
  %7308 = vmatprep.subr.mxu0 0.0
  %7309 = vmatpush1.msra.mxu0 0.0
  %7310 = vmatprep.subr.mxu0 0.0
  %7311 = vmatpush1.msra.mxu0 0.0
  %7312 = vmatprep.subr.mxu0 0.0
  %7313 = vmatpush1.msra.mxu0 0.0
  %7314 = vmatprep.subr.mxu0 %v7126
  %7315 = vmatpush1.msra.mxu0 %v7125
  %7316 = vmatprep.subr.mxu0 0.0
  %7317 = vmatpush2.msra.mxu0 0.0
  %7318 = vmatprep.subr.mxu0 0.0
  %7319 = vmatpush2.msra.mxu0 0.0
  %7320 = vmatprep.subr.mxu0 0.0
  %7321 = vmatpush2.msra.mxu0 0.0
  %7322 = vmatprep.subr.mxu0 0.0
  %7323 = vmatpush2.msra.mxu0 0.0
  %7324 = vmatprep.subr.mxu0 0.0
  %7325 = vmatpush2.msra.mxu0 0.0
  %7326 = vmatprep.subr.mxu0 0.0
  %7327 = vmatpush2.msra.mxu0 0.0
  %7328 = vmatprep.subr.mxu0 0.0
  %7329 = vmatpush2.msra.mxu0 0.0
  %7330 = vmatprep.subr.mxu0 0.0
  %7331 = vmatpush2.msra.mxu0 0.0
  %7332 = vmatprep.subr.mxu0 0.0
  %7333 = vmatpush2.msra.mxu0 0.0
  %7334 = vmatprep.subr.mxu0 0.0
  %7335 = vmatpush2.msra.mxu0 0.0
  %7336 = vmatprep.subr.mxu0 0.0
  %7337 = vmatpush2.msra.mxu0 0.0
  %7338 = vmatprep.subr.mxu0 0.0
  %7339 = vmatpush2.msra.mxu0 0.0
  %7340 = vmatprep.subr.mxu0 0.0
  %7341 = vmatpush2.msra.mxu0 0.0
  %7342 = vmatprep.subr.mxu0 0.0
  %7343 = vmatpush2.msra.mxu0 0.0
  %7344 = vmatprep.subr.mxu0 0.0
  %7345 = vmatpush2.msra.mxu0 0.0
  %7346 = vmatprep.subr.mxu0 0.0
  %7347 = vmatpush2.msra.mxu0 0.0
  %7348 = vmatprep.mubr.f32.mxu0 0.0
  %7349 = vmatmul.mubr.f32.gmra.mxu0 %v7140
  %v7350 = vpop.f32.mrf.mxu0
  %v7351 = vadd.f32 0.0, %v7350
  %v7352 = vpop.f32.mrf.mxu0
  %v7353 = vadd.f32 0.0, %v7352
  %7354 = vdwg.mxu0
  %7355 = vmatprep.subr.mxu0 0.0
  %7356 = vmatpush1.msra.mxu0 0.0
  %7357 = vmatprep.subr.mxu0 0.0
  %7358 = vmatpush1.msra.mxu0 0.0
  %7359 = vmatprep.subr.mxu0 0.0
  %7360 = vmatpush1.msra.mxu0 0.0
  %7361 = vmatprep.subr.mxu0 0.0
  %7362 = vmatpush1.msra.mxu0 0.0
  %7363 = vmatprep.subr.mxu0 0.0
  %7364 = vmatpush1.msra.mxu0 0.0
  %7365 = vmatprep.subr.mxu0 0.0
  %7366 = vmatpush1.msra.mxu0 0.0
  %7367 = vmatprep.subr.mxu0 0.0
  %7368 = vmatpush1.msra.mxu0 0.0
  %7369 = vmatprep.subr.mxu0 0.0
  %7370 = vmatpush1.msra.mxu0 0.0
  %7371 = vmatprep.subr.mxu0 0.0
  %7372 = vmatpush1.msra.mxu0 0.0
  %7373 = vmatprep.subr.mxu0 0.0
  %7374 = vmatpush1.msra.mxu0 0.0
  %7375 = vmatprep.subr.mxu0 0.0
  %7376 = vmatpush1.msra.mxu0 0.0
  %7377 = vmatprep.subr.mxu0 0.0
  %7378 = vmatpush1.msra.mxu0 0.0
  %7379 = vmatprep.subr.mxu0 0.0
  %7380 = vmatpush1.msra.mxu0 0.0
  %7381 = vmatprep.subr.mxu0 0.0
  %7382 = vmatpush1.msra.mxu0 0.0
  %7383 = vmatprep.subr.mxu0 0.0
  %7384 = vmatpush1.msra.mxu0 0.0
  %7385 = vmatprep.subr.mxu0 %v7128
  %7386 = vmatpush1.msra.mxu0 %v7127
  %7387 = vmatprep.subr.mxu0 0.0
  %7388 = vmatpush2.msra.mxu0 0.0
  %7389 = vmatprep.subr.mxu0 0.0
  %7390 = vmatpush2.msra.mxu0 0.0
  %7391 = vmatprep.subr.mxu0 0.0
  %7392 = vmatpush2.msra.mxu0 0.0
  %7393 = vmatprep.subr.mxu0 0.0
  %7394 = vmatpush2.msra.mxu0 0.0
  %7395 = vmatprep.subr.mxu0 0.0
  %7396 = vmatpush2.msra.mxu0 0.0
  %7397 = vmatprep.subr.mxu0 0.0
  %7398 = vmatpush2.msra.mxu0 0.0
  %7399 = vmatprep.subr.mxu0 0.0
  %7400 = vmatpush2.msra.mxu0 0.0
  %7401 = vmatprep.subr.mxu0 0.0
  %7402 = vmatpush2.msra.mxu0 0.0
  %7403 = vmatprep.subr.mxu0 0.0
  %7404 = vmatpush2.msra.mxu0 0.0
  %7405 = vmatprep.subr.mxu0 0.0
  %7406 = vmatpush2.msra.mxu0 0.0
  %7407 = vmatprep.subr.mxu0 0.0
  %7408 = vmatpush2.msra.mxu0 0.0
  %7409 = vmatprep.subr.mxu0 0.0
  %7410 = vmatpush2.msra.mxu0 0.0
  %7411 = vmatprep.subr.mxu0 0.0
  %7412 = vmatpush2.msra.mxu0 0.0
  %7413 = vmatprep.subr.mxu0 0.0
  %7414 = vmatpush2.msra.mxu0 0.0
  %7415 = vmatprep.subr.mxu0 0.0
  %7416 = vmatpush2.msra.mxu0 0.0
  %7417 = vmatprep.subr.mxu0 0.0
  %7418 = vmatpush2.msra.mxu0 0.0
  %7419 = vmatprep.mubr.f32.mxu0 0.0
  %7420 = vmatmul.mubr.f32.gmra.mxu0 %v7140
  %v7421 = vpop.f32.mrf.mxu0
  %v7422 = vadd.f32 0.0, %v7421
  %v7423 = vpop.f32.mrf.mxu0
  %v7424 = vadd.f32 0.0, %v7423
  %7425 = vdwg.mxu0
  %7426 = vmatprep.subr.mxu0 0.0
  %7427 = vmatpush1.msra.mxu0 0.0
  %7428 = vmatprep.subr.mxu0 0.0
  %7429 = vmatpush1.msra.mxu0 0.0
  %7430 = vmatprep.subr.mxu0 0.0
  %7431 = vmatpush1.msra.mxu0 0.0
  %7432 = vmatprep.subr.mxu0 0.0
  %7433 = vmatpush1.msra.mxu0 0.0
  %7434 = vmatprep.subr.mxu0 0.0
  %7435 = vmatpush1.msra.mxu0 0.0
  %7436 = vmatprep.subr.mxu0 0.0
  %7437 = vmatpush1.msra.mxu0 0.0
  %7438 = vmatprep.subr.mxu0 0.0
  %7439 = vmatpush1.msra.mxu0 0.0
  %7440 = vmatprep.subr.mxu0 0.0
  %7441 = vmatpush1.msra.mxu0 0.0
  %7442 = vmatprep.subr.mxu0 0.0
  %7443 = vmatpush1.msra.mxu0 0.0
  %7444 = vmatprep.subr.mxu0 0.0
  %7445 = vmatpush1.msra.mxu0 0.0
  %7446 = vmatprep.subr.mxu0 0.0
  %7447 = vmatpush1.msra.mxu0 0.0
  %7448 = vmatprep.subr.mxu0 0.0
  %7449 = vmatpush1.msra.mxu0 0.0
  %7450 = vmatprep.subr.mxu0 0.0
  %7451 = vmatpush1.msra.mxu0 0.0
  %7452 = vmatprep.subr.mxu0 0.0
  %7453 = vmatpush1.msra.mxu0 0.0
  %7454 = vmatprep.subr.mxu0 0.0
  %7455 = vmatpush1.msra.mxu0 0.0
  %7456 = vmatprep.subr.mxu0 0.0
  %7457 = vmatpush1.msra.mxu0 %v7129
  %7458 = vmatprep.subr.mxu0 0.0
  %7459 = vmatpush2.msra.mxu0 0.0
  %7460 = vmatprep.subr.mxu0 0.0
  %7461 = vmatpush2.msra.mxu0 0.0
  %7462 = vmatprep.subr.mxu0 0.0
  %7463 = vmatpush2.msra.mxu0 0.0
  %7464 = vmatprep.subr.mxu0 0.0
  %7465 = vmatpush2.msra.mxu0 0.0
  %7466 = vmatprep.subr.mxu0 0.0
  %7467 = vmatpush2.msra.mxu0 0.0
  %7468 = vmatprep.subr.mxu0 0.0
  %7469 = vmatpush2.msra.mxu0 0.0
  %7470 = vmatprep.subr.mxu0 0.0
  %7471 = vmatpush2.msra.mxu0 0.0
  %7472 = vmatprep.subr.mxu0 0.0
  %7473 = vmatpush2.msra.mxu0 0.0
  %7474 = vmatprep.subr.mxu0 0.0
  %7475 = vmatpush2.msra.mxu0 0.0
  %7476 = vmatprep.subr.mxu0 0.0
  %7477 = vmatpush2.msra.mxu0 0.0
  %7478 = vmatprep.subr.mxu0 0.0
  %7479 = vmatpush2.msra.mxu0 0.0
  %7480 = vmatprep.subr.mxu0 0.0
  %7481 = vmatpush2.msra.mxu0 0.0
  %7482 = vmatprep.subr.mxu0 0.0
  %7483 = vmatpush2.msra.mxu0 0.0
  %7484 = vmatprep.subr.mxu0 0.0
  %7485 = vmatpush2.msra.mxu0 0.0
  %7486 = vmatprep.subr.mxu0 0.0
  %7487 = vmatpush2.msra.mxu0 0.0
  %7488 = vmatprep.subr.mxu0 0.0
  %7489 = vmatpush2.msra.mxu0 0.0
  %7490 = vmatprep.mubr.f32.mxu0 0.0
  %7491 = vmatmul.mubr.f32.gmra.mxu0 %v7140
  %v7492 = vpop.f32.mrf.mxu0
  %v7493 = vadd.f32 0.0, %v7492
  %v7494 = vpop.f32.mrf.mxu0
  %7495 = vdwg.mxu0
  %v7496 = vadd.f32 %v7090, %v7209
  %v7497 = vadd.f32 %v7091, %v7211
  %v7498 = vadd.f32 %v7092, %v7280
  %v7499 = vadd.f32 %v7093, %v7282
  %v7500 = vadd.f32 %v7094, %v7351
  %v7501 = vadd.f32 %v7095, %v7353
  %v7502 = vadd.f32 %v7096, %v7422
  %v7503 = vadd.f32 %v7097, %v7424
  %v7504 = vadd.f32 %v7098, %v7493
  %v7505 = vld [vmem:[%s7] sm:$0xff]
  %7507 = vset.pattern.permute.xlu0 0
  %7508 = vperm.xlu0 %7507, %v7505
  %v7509 = vpop.permute.xlu0 %7508
  %v7511 = vadd.f32 %v7496, %v7509
  %v7512 = vadd.f32 %v7497, %v7509
  %v7513 = vadd.f32 %v7498, %v7509
  %v7514 = vadd.f32 %v7499, %v7509
  %v7515 = vadd.f32 %v7500, %v7509
  %v7516 = vadd.f32 %v7501, %v7509
  %v7517 = vadd.f32 %v7502, %v7509
  %v7518 = vadd.f32 %v7503, %v7509
  %v7519 = vadd.f32 %v7504, %v7509
  %v7520 = vmul.f32 %v7511, %v35
  %v7521 = vmul.f32 %v7512, %v36
  %v7522 = vmul.f32 %v7513, %v37
  %v7523 = vmul.f32 %v7514, %v38
  %v7524 = vmul.f32 %v7515, %v39
  %v7525 = vmul.f32 %v7516, %v40
  %v7526 = vmul.f32 %v7517, %v41
  %v7527 = vmul.f32 %v7518, %v42
  %v7528 = vmul.f32 %v7519, %v43
  %v7529 = vadd.f32 %v7520, %v7521
  %v7530 = vadd.f32 %v7529, %v7522
  %v7531 = vadd.f32 %v7530, %v7523
  %v7532 = vadd.f32 %v7531, %v7524
  %v7533 = vadd.f32 %v7532, %v7525
  %v7534 = vadd.f32 %v7533, %v7526
  %v7535 = vadd.f32 %v7534, %v7527
  %v7536 = vadd.f32 %v7535, %v7528
  %7537 = vadd.xlane.f32.xlu0 %v7536
  %v7538 = vpop.xlane.xlu0 %7537
  %v7539 = vmul.f32 %v7538, 0.001953125
  %v7540 = vsub.f32 %v7511, %v7539
  %v7541 = vsub.f32 %v7512, %v7539
  %v7542 = vsub.f32 %v7513, %v7539
  %v7543 = vsub.f32 %v7514, %v7539
  %v7544 = vsub.f32 %v7515, %v7539
  %v7545 = vsub.f32 %v7516, %v7539
  %v7546 = vsub.f32 %v7517, %v7539
  %v7547 = vsub.f32 %v7518, %v7539
  %v7548 = vsub.f32 %v7519, %v7539
  %v7549 = vmul.f32 %v7540, %v7540
  %v7550 = vmul.f32 %v7541, %v7541
  %v7551 = vmul.f32 %v7542, %v7542
  %v7552 = vmul.f32 %v7543, %v7543
  %v7553 = vmul.f32 %v7544, %v7544
  %v7554 = vmul.f32 %v7545, %v7545
  %v7555 = vmul.f32 %v7546, %v7546
  %v7556 = vmul.f32 %v7547, %v7547
  %v7557 = vmul.f32 %v7548, %v7548
  %v7558 = vmul.f32 %v7549, %v35
  %v7559 = vmul.f32 %v7550, %v36
  %v7560 = vmul.f32 %v7551, %v37
  %v7561 = vmul.f32 %v7552, %v38
  %v7562 = vmul.f32 %v7553, %v39
  %v7563 = vmul.f32 %v7554, %v40
  %v7564 = vmul.f32 %v7555, %v41
  %v7565 = vmul.f32 %v7556, %v42
  %v7566 = vmul.f32 %v7557, %v43
  %v7567 = vadd.f32 %v7558, %v7559
  %v7568 = vadd.f32 %v7567, %v7560
  %v7569 = vadd.f32 %v7568, %v7561
  %v7570 = vadd.f32 %v7569, %v7562
  %v7571 = vadd.f32 %v7570, %v7563
  %v7572 = vadd.f32 %v7571, %v7564
  %v7573 = vadd.f32 %v7572, %v7565
  %v7574 = vadd.f32 %v7573, %v7566
  %7575 = vadd.xlane.f32.xlu0 %v7574
  %v7576 = vpop.xlane.xlu0 %7575
  %v7577 = vmul.f32 %v7576, 0.001953125
  %v7578 = vadd.f32 %v7577, 1e-05
  %v7579 = vrsqrt.pop %v7578
  %v7580 = vmul.f32 %v7578, %v7579
  %vm7581 = vcmp.eq.f32.partialorder %v7578, inf
  %v7582 = vsel %vm7581, %v7578, %v7580
  %vm7583 = vcmp.eq.f32.partialorder %v7578, 0.0
  %v7584 = vand.u32 %v7578, 2147483648
  %v7585 = vsel %vm7583, %v7584, %v7582
  %v7586 = vrcp.pop %v7585
  %v7587 = vmul.f32 1.0, %v7586
  %v7588 = vmul.f32 %v7540, %v7587
  %v7589 = vmul.f32 %v7541, %v7587
  %v7590 = vmul.f32 %v7542, %v7587
  %v7591 = vmul.f32 %v7543, %v7587
  %v7592 = vmul.f32 %v7544, %v7587
  %v7593 = vmul.f32 %v7545, %v7587
  %v7594 = vmul.f32 %v7546, %v7587
  %v7595 = vmul.f32 %v7547, %v7587
  %v7596 = vmul.f32 %v7548, %v7587
  %v7597 = vld [vmem:[%s8] sm:$0xff]
  %7599 = vset.pattern.permute.xlu0 0
  %7600 = vperm.xlu0 %7599, %v7597
  %v7601 = vpop.permute.xlu0 %7600
  %v7603 = vmul.f32 %v7588, %v7601
  %v7604 = vmul.f32 %v7589, %v7601
  %v7605 = vmul.f32 %v7590, %v7601
  %v7606 = vmul.f32 %v7591, %v7601
  %v7607 = vmul.f32 %v7592, %v7601
  %v7608 = vmul.f32 %v7593, %v7601
  %v7609 = vmul.f32 %v7594, %v7601
  %v7610 = vmul.f32 %v7595, %v7601
  %v7611 = vmul.f32 %v7596, %v7601
  %v7612 = vld [vmem:[%s9] sm:$0xff]
  %7614 = vset.pattern.permute.xlu0 0
  %7615 = vperm.xlu0 %7614, %v7612
  %v7616 = vpop.permute.xlu0 %7615
  %v7618 = vadd.f32 %v7603, %v7616
  %v7619 = vadd.f32 %v7604, %v7616
  %v7620 = vadd.f32 %v7605, %v7616
  %v7621 = vadd.f32 %v7606, %v7616
  %v7622 = vadd.f32 %v7607, %v7616
  %v7623 = vadd.f32 %v7608, %v7616
  %v7624 = vadd.f32 %v7609, %v7616
  %v7625 = vadd.f32 %v7610, %v7616
  %v7626 = vadd.f32 %v7611, %v7616
  %v7627 = vld [vmem:[%s0 + $0x8] sm:$0xff]
  %v7628 = vld [vmem:[%s0 + $0x10] sm:$0xff]
  %v7629 = vld [vmem:[%s0 + $0x18] sm:$0xff]
  %v7630 = vld [vmem:[%s0 + $0x20] sm:$0xff]
  %v7631 = vld [vmem:[%s0 + $0x28] sm:$0xff]
  %v7632 = vld [vmem:[%s0 + $0x30] sm:$0xff]
  %v7633 = vld [vmem:[%s0 + $0x38] sm:$0xff]
  %v7634 = vld [vmem:[%s0 + $0x40] sm:$0xff]
  %v7635 = vld [vmem:[%s0 + $0x48] sm:$0xff]
  %v7636 = vmul.f32 %v7618, %v35
  %v7637 = vmul.f32 %v7619, %v36
  %v7638 = vmul.f32 %v7620, %v37
  %v7639 = vmul.f32 %v7621, %v38
  %v7640 = vmul.f32 %v7622, %v39
  %v7641 = vmul.f32 %v7623, %v40
  %v7642 = vmul.f32 %v7624, %v41
  %v7643 = vmul.f32 %v7625, %v42
  %v7644 = vmul.f32 %v7626, %v43
  %v7645 = vadd.f32 %v7627, %v7636
  %v7646 = vadd.f32 %v7628, %v7637
  %v7647 = vadd.f32 %v7629, %v7638
  %v7648 = vadd.f32 %v7630, %v7639
  %v7649 = vadd.f32 %v7631, %v7640
  %v7650 = vadd.f32 %v7632, %v7641
  %v7651 = vadd.f32 %v7633, %v7642
  %v7652 = vadd.f32 %v7634, %v7643
  %v7653 = vadd.f32 %v7635, %v7644
  %7654 = vst [vmem:[%s10] sm:$0xff] %v7645
  %7655 = vst [vmem:[%s10 + $0x8] sm:$0xff] %v7646
  %7656 = vst [vmem:[%s10 + $0x10] sm:$0xff] %v7647
  %7657 = vst [vmem:[%s10 + $0x18] sm:$0xff] %v7648
  %7658 = vst [vmem:[%s10 + $0x20] sm:$0xff] %v7649
  %7659 = vst [vmem:[%s10 + $0x28] sm:$0xff] %v7650
  %7660 = vst [vmem:[%s10 + $0x30] sm:$0xff] %v7651
  %7661 = vst [vmem:[%s10 + $0x38] sm:$0xff] %v7652
  %7662 = vst [vmem:[%s10 + $0x40] sm:$0xff] %v7653
  // Predicated region
  $region42: #{resblock_forward.1} parent=0 // pred_check
    _
  $region43: #{resblock_forward.1} parent=0 // pred_check_branch
    %7664 = sbr.rel (0) target = $region45
  $region44: #{resblock_forward.1} parent=0 // pred_region
    _
  $region45: #{resblock_forward.1} parent=0 // pred_fallthru
    _
  // Predicated region
  $region46: #{resblock_forward.1} parent=0 // pred_check
    _
  $region47: #{resblock_forward.1} parent=0 // pred_check_branch
    %7666 = sbr.rel (0) target = $region49
  $region48: #{resblock_forward.1} parent=0 // pred_region
    _
  $region49: #{resblock_forward.1} parent=0 // pred_fallthru
    _

</llo_original>
